<compile_context>
chip_gen: v5e
topology: v5e:2x2
jax: 0.10.0
libtpu: 0.0.40
codegen_flags: <defaults>
</compile_context>

<pallas_src>
import math

import jax
import jax.numpy as jnp
from jax.experimental import pallas as pl
from jax.experimental.pallas import tpu as pltpu


def _round_up(x, m):
    return ((x + m - 1) // m) * m


# ----------------------------------------------------------------------------
# Pallas kernels
# ----------------------------------------------------------------------------
def _make_gemm_kernel(act):
    """out(Cout, Nsp) = W(Cout, K) @ cols(K, Nsp) + bias, optional fused tanh."""
    def kernel(w_ref, c_ref, b_ref, o_ref, acc_ref):
        @pl.when(pl.program_id(2) == 0)
        def _():
            acc_ref[...] = jnp.zeros_like(acc_ref)

        acc_ref[...] += jnp.dot(w_ref[...], c_ref[...],
                                preferred_element_type=jnp.float32)

        @pl.when(pl.program_id(2) == pl.num_programs(2) - 1)
        def _():
            y = acc_ref[...] + b_ref[...]            # per-row bias, lane broadcast
            if act == "tanh":
                y = jnp.tanh(y)
            o_ref[...] = y.astype(o_ref.dtype)
    return kernel


def _instnorm_lrelu_kernel(x_ref, o_ref):
    """Per-row (= per (c, n) instance) normalization over H*W, then LeakyReLU(0.01)."""
    x = x_ref[...]                                     # (rows, H*W)
    mean = jnp.mean(x, axis=1, keepdims=True)
    var = jnp.mean(jnp.square(x - mean), axis=1, keepdims=True)
    y = (x - mean) * jax.lax.rsqrt(var + 1e-5)
    o_ref[...] = jnp.where(y > 0, y, 0.01 * y)


# ----------------------------------------------------------------------------
# Pallas wrappers
# ----------------------------------------------------------------------------
def matmul_bias_t(wm, cols, bias, act="none"):
    """wm:(M,K) @ cols:(K,Nsp) + bias:(M,) -> (M,Nsp) f32, lane-dense spatial output."""
    M, K = wm.shape
    _, Nsp = cols.shape

    # M tile: true Cout padded to 8, capped at 32 (>=2 parallel M blocks for Cout=64).
    Mp = _round_up(M, 8)
    tm = Mp if Mp <= 32 else (32 if Mp % 32 == 0 else (16 if Mp % 16 == 0 else 8))
    # K tile: cover K in one fat reduction step when possible.
    Kp = _round_up(K, 128)
    if Kp <= 1024:
        tk = Kp
    else:
        tk = 512
        Kp = _round_up(K, tk)
    # N (spatial) tile: lane-dense, up to 512.
    Np = _round_up(Nsp, 128)
    if Np <= 512:
        tn = Np
    else:
        tn = 512
        Np = _round_up(Nsp, tn)

    wmp = wm.astype(jnp.bfloat16)
    if (Mp, Kp) != (M, K):
        wmp = jnp.pad(wmp, ((0, Mp - M), (0, Kp - K)))
    colsp = cols.astype(jnp.bfloat16)
    if (Kp, Np) != (K, Nsp):
        colsp = jnp.pad(colsp, ((0, Kp - K), (0, Np - Nsp)))
    bp = jnp.pad(bias.astype(jnp.float32), (0, Mp - M)).reshape(Mp, 1)

    grid = (Mp // tm, Np // tn, Kp // tk)
    cost = pl.CostEstimate(
        flops=2 * Mp * Np * Kp,
        transcendentals=(Mp * Np if act == "tanh" else 0),
        bytes_accessed=wmp.size * 2 + colsp.size * 2 + Mp * Np * 4 + Mp * 4)

    out = pl.pallas_call(
        _make_gemm_kernel(act),
        out_shape=jax.ShapeDtypeStruct((Mp, Np), jnp.float32),
        grid_spec=pltpu.PrefetchScalarGridSpec(
            num_scalar_prefetch=0,
            grid=grid,
            in_specs=[
                pl.BlockSpec((tm, tk), lambda i, j, k: (i, k)),
                pl.BlockSpec((tk, tn), lambda i, j, k: (k, j)),
                pl.BlockSpec((tm, 1), lambda i, j, k: (i, 0)),
            ],
            out_specs=pl.BlockSpec((tm, tn), lambda i, j, k: (i, j)),
            scratch_shapes=[pltpu.VMEM((tm, tn), jnp.float32)],
        ),
        compiler_params=pltpu.CompilerParams(
            dimension_semantics=("parallel", "parallel", "arbitrary")),
        cost_estimate=cost,
    )(wmp, colsp, bp)
    return out[:M, :Nsp]


def instance_norm_lrelu(x):
    """InstanceNorm2d (affine=False, eps=1e-5) + LeakyReLU(0.01) on (C, N, H, W)."""
    C, N, H, W = x.shape
    R, HW = C * N, H * W
    Rp = _round_up(R, 8)
    x2 = x.reshape(R, HW)
    if Rp != R:
        x2 = jnp.pad(x2, ((0, Rp - R), (0, 0)))
    if Rp * HW * 4 <= (4 << 20):         # small slab -> single block
        tr = Rp
    else:                                # large slab -> tile rows (multiple of 8)
        tr = 8
        for cand in (256, 128, 64, 32, 16):
            if Rp % cand == 0:
                tr = cand
                break
    out = pl.pallas_call(
        _instnorm_lrelu_kernel,
        out_shape=jax.ShapeDtypeStruct((Rp, HW), x2.dtype),
        grid_spec=pltpu.PrefetchScalarGridSpec(
            num_scalar_prefetch=0,
            grid=(Rp // tr,),
            in_specs=[pl.BlockSpec((tr, HW), lambda i: (i, 0))],
            out_specs=pl.BlockSpec((tr, HW), lambda i: (i, 0)),
        ),
        compiler_params=pltpu.CompilerParams(dimension_semantics=("parallel",)),
    )(x2)
    return out[:R].reshape(C, N, H, W)
    # TODO(synk): fuse InstanceNorm+LeakyReLU into the GEMM epilogue (needs masked
    # per-image stats when the padded lane dim mixes n and H*W).


# ----------------------------------------------------------------------------
# Conv / ConvTranspose glue (im2col in plain JAX, GEMM in Pallas) — CNHW layout
# ----------------------------------------------------------------------------
def _im2col(x, kh, kw, stride, pads):
    """x: (C,N,H,W) -> cols (kh*kw*C, N*Ho*Wo), tap-major feature ordering."""
    pad_t, pad_b, pad_l, pad_r = pads
    C, N, H, W = x.shape
    xp = jnp.pad(x, ((0, 0), (0, 0), (pad_t, pad_b), (pad_l, pad_r)))
    Ho = (H + pad_t + pad_b - kh) // stride + 1
    Wo = (W + pad_l + pad_r - kw) // stride + 1
    taps = []
    for i in range(kh):
        for j in range(kw):
            taps.append(jax.lax.slice(
                xp, (0, 0, i, j),
                (C, N, i + (Ho - 1) * stride + 1, j + (Wo - 1) * stride + 1),
                (1, 1, stride, stride)))               # (C, N, Ho, Wo)
    cols = jnp.stack(taps, axis=0).reshape(kh * kw * C, N * Ho * Wo)
    return cols, Ho, Wo
    # TODO(synk): fold the kh*kw tap loop into the Pallas grid (shifted-window reads)
    # instead of materializing the im2col matrix in HBM (matters for the 9x9 layers).


def conv2d(x, w, b, stride, pad, act="none"):
    """x: (Cin,N,H,W), w: (Cout,Cin,kh,kw), b: (Cout,) -> (Cout,N,Ho,Wo)."""
    Cout, Cin, kh, kw = w.shape
    _, N, _, _ = x.shape
    pads = (pad, pad, pad, pad) if isinstance(pad, int) else tuple(pad)
    cols, Ho, Wo = _im2col(x, kh, kw, stride, pads)
    wm = w.transpose(0, 2, 3, 1).reshape(Cout, kh * kw * Cin)   # tap-major K
    out = matmul_bias_t(wm, cols, b, act=act)                   # (Cout, N*Ho*Wo)
    return out.reshape(Cout, N, Ho, Wo)


def conv_transpose2d(x, w, b, stride, pad, act="none"):
    """x: (Cin,N,H,W), w: (Cin,Cout,kh,kw), b: (Cout,). Output = (H-1)*s - 2p + k."""
    Cin, Cout, kh, kw = w.shape
    _, N, H, W = x.shape
    if stride == 1:
        w_conv = jnp.flip(w, axis=(-2, -1)).transpose(1, 0, 2, 3)   # (Cout,Cin,kh,kw)
        return conv2d(x, w_conv, b, stride=1, pad=kh - 1 - pad, act=act)

    if stride == 2 and kh == 4 and kw == 4 and pad == 1:
        # Sub-pixel (phase) decomposition: 4 stride-1 convs with 2x2 sub-kernels
        # (no zero-dilated input -> 4x fewer FLOPs / im2col bytes than dilate+conv).
        phases = {}
        for ph in (0, 1):            # output-row parity
            for pw in (0, 1):        # output-col parity
                wsub = w[:, :, (3 - ph)::-2, (3 - pw)::-2]          # (Cin,Cout,2,2)
                w_conv = wsub.transpose(1, 0, 2, 3)                 # (Cout,Cin,2,2)
                phases[(ph, pw)] = conv2d(
                    x, w_conv, b, stride=1,
                    pad=(1 - ph, ph, 1 - pw, pw), act=act)          # (Cout,N,H,W)
        p = jnp.stack([jnp.stack([phases[(0, 0)], phases[(0, 1)]], 0),
                       jnp.stack([phases[(1, 0)], phases[(1, 1)]], 0)], 0)
        # p: (row_par, col_par, Cout, N, H, W) -> interleave to (Cout, N, 2H, 2W)
        return p.transpose(2, 3, 4, 0, 5, 1).reshape(Cout, N, 2 * H, 2 * W)

    # Generic fallback: zero-dilate + flipped conv.
    xd = jnp.zeros((Cin, N, (H - 1) * stride + 1, (W - 1) * stride + 1), x.dtype)
    xd = xd.at[:, :, ::stride, ::stride].set(x)
    w_conv = jnp.flip(w, axis=(-2, -1)).transpose(1, 0, 2, 3)
    return conv2d(xd, w_conv, b, stride=1, pad=kh - 1 - pad, act=act)


# ----------------------------------------------------------------------------
# Generator: parameters + forward
# ----------------------------------------------------------------------------
def init_params(key, in_ch, bf):
    # (kind, cin, cout, kernel)
    specs = {
        'c1_0': ('conv', in_ch, bf, 9),
        'c1_1': ('conv', bf, bf, 3),
        'c1_2': ('conv', bf, bf, 4),
        'c2_0': ('conv', bf, 2 * bf, 3),
        'c2_1': ('conv', 2 * bf, 2 * bf, 3),
        'c2_2': ('conv', 2 * bf, 2 * bf, 4),
        'c3_0': ('conv', 2 * bf, 4 * bf, 3),
        'c3_1': ('conv', 4 * bf, 4 * bf, 3),
        'c3_2': ('conv', 4 * bf, 4 * bf, 3),
        'c3_3': ('conv', 4 * bf, 4 * bf, 3),
        'c3_4': ('conv', 4 * bf, 4 * bf, 4),
        'c4_0': ('conv', 4 * bf, 4 * bf, 4),
        'd3':   ('convT', 4 * bf, 4 * bf, 4),
        'd2':   ('convT', 8 * bf, 2 * bf, 4),
        'd1':   ('convT', 4 * bf, bf, 4),
        'r0':   ('convT', 2 * bf, in_ch, 4),
        'r1':   ('convT', in_ch, in_ch, 9),
    }
    params = {}
    keys = jax.random.split(key, len(specs))
    for (name, (kind, cin, cout, k)), kk in zip(specs.items(), keys):
        k1, k2 = jax.random.split(kk)
        fan_in = (cin if kind == 'conv' else cout) * k * k
        bound = 1.0 / math.sqrt(fan_in)
        shape = (cout, cin, k, k) if kind == 'conv' else (cin, cout, k, k)
        w = jax.random.uniform(k1, shape, jnp.float32, -bound, bound)
        b = jax.random.uniform(k2, (cout,), jnp.float32, -bound, bound)
        params[name] = (w, b)
    return params


def generator_forward(params, x):
    p = params
    t = jnp.transpose(x, (1, 0, 2, 3))                 # NCHW -> CNHW (once)
    # conv1
    t = conv2d(t, *p['c1_0'], stride=1, pad=4); t = instance_norm_lrelu(t)
    t = conv2d(t, *p['c1_1'], stride=1, pad=1); t = instance_norm_lrelu(t)
    conv1_t = conv2d(t, *p['c1_2'], stride=2, pad=1)
    # conv2
    t = conv2d(conv1_t, *p['c2_0'], stride=1, pad=1); t = instance_norm_lrelu(t)
    t = conv2d(t, *p['c2_1'], stride=1, pad=1); t = instance_norm_lrelu(t)
    conv2_t = conv2d(t, *p['c2_2'], stride=2, pad=1)
    # conv3
    t = conv2d(conv2_t, *p['c3_0'], stride=1, pad=1); t = instance_norm_lrelu(t)
    t = conv2d(t, *p['c3_1'], stride=1, pad=1); t = instance_norm_lrelu(t)
    t = conv2d(t, *p['c3_2'], stride=1, pad=1); t = instance_norm_lrelu(t)
    t = conv2d(t, *p['c3_3'], stride=1, pad=1); t = instance_norm_lrelu(t)
    conv3_t = conv2d(t, *p['c3_4'], stride=2, pad=1)
    # conv4
    conv4_t = instance_norm_lrelu(conv2d(conv3_t, *p['c4_0'], stride=2, pad=1))
    # decoder with skip concats (channel axis = 0 in CNHW layout)
    t = instance_norm_lrelu(conv_transpose2d(conv4_t, *p['d3'], stride=2, pad=1))
    d3 = jnp.concatenate([t, conv3_t], axis=0)
    t = instance_norm_lrelu(conv_transpose2d(d3, *p['d2'], stride=2, pad=1))
    d2 = jnp.concatenate([t, conv2_t], axis=0)
    t = instance_norm_lrelu(conv_transpose2d(d2, *p['d1'], stride=2, pad=1))
    d1 = jnp.concatenate([t, conv1_t], axis=0)
    # recon (tanh fused into the final GEMM epilogue)
    t = instance_norm_lrelu(conv_transpose2d(d1, *p['r0'], stride=2, pad=1))
    t = conv_transpose2d(t, *p['r1'], stride=1, pad=4, act='tanh')
    return jnp.transpose(t, (1, 0, 2, 3))              # CNHW -> NCHW (once)


if __name__ == "__main__":
    input_channel, base_filter = 3, 8          # small synthetic config
    key = jax.random.PRNGKey(0)
    kx, kp = jax.random.split(key)
    # spatial 32 so the deepest feature map (after 4 stride-2 stages) is 2x2
    x = jax.random.normal(kx, (2, input_channel, 32, 32), jnp.float32)
    params = init_params(kp, input_channel, base_filter)

    fwd = jax.jit(generator_forward)
    out = fwd(params, x)
    jax.block_until_ready(out)
    assert out.shape == (2, input_channel, 32, 32), out.shape
    assert bool(jnp.all(jnp.isfinite(out)))
    print("KERNEL_OK")
</pallas_src>

<mosaic_0001>
module attributes {stable_mosaic.version = 11 : i64} {
  func.func @kernel(%arg0: i32, %arg1: i32, %arg2: i32, %arg3: memref<8x256xbf16, #tpu.memory_space<vmem>>, %arg4: memref<256x512xbf16, #tpu.memory_space<vmem>>, %arg5: memref<8x1xf32, #tpu.memory_space<vmem>>, %arg6: memref<8x512xf32, #tpu.memory_space<vmem>>, %arg7: memref<8x512xf32, #tpu.memory_space<vmem>>) attributes {dimension_semantics = [#tpu.dimension_semantics<parallel>, #tpu.dimension_semantics<parallel>, #tpu.dimension_semantics<arbitrary>], iteration_bounds = array<i64: 1, 4, 1>, scalar_prefetch = 0 : i64, scratch_operands = 1 : i64, tpu.core_type = #tpu.core_type<tc>, window_params = [{transform_indices = @transform_0, window_bounds = array<i64: 8, 256>}, {transform_indices = @transform_1, window_bounds = array<i64: 256, 512>}, {transform_indices = @transform_2, window_bounds = array<i64: 8, 1>}, {transform_indices = @transform_3, window_bounds = array<i64: 8, 512>}]} {
    %c0_i32 = arith.constant 0 : i32
    %0 = arith.cmpi eq, %arg2, %c0_i32 : i32
    %1 = arith.extui %0 : i1 to i32
    %c0_i32_0 = arith.constant 0 : i32
    %2 = arith.cmpi ne, %1, %c0_i32_0 : i32
    scf.if %2 {
      %cst_10 = arith.constant 0.000000e+00 : f32
      %12 = vector.broadcast %cst_10 : f32 to vector<8x512xf32>
      %c0_11 = arith.constant 0 : index
      %c0_12 = arith.constant 0 : index
      %13 = vector.load %arg7[%c0_11, %c0_12] : memref<8x512xf32, #tpu.memory_space<vmem>>, vector<8x512xf32>
      tpu.vector_store %arg7[%c0_11, %c0_12], %12 {strides = array<i32>} : memref<8x512xf32, #tpu.memory_space<vmem>>, vector<8x512xf32>,
    } else {
    }
    %c0 = arith.constant 0 : index
    %c0_1 = arith.constant 0 : index
    %3 = vector.load %arg7[%c0, %c0_1] : memref<8x512xf32, #tpu.memory_space<vmem>>, vector<8x512xf32>
    %c0_2 = arith.constant 0 : index
    %c0_3 = arith.constant 0 : index
    %4 = vector.load %arg3[%c0_2, %c0_3] : memref<8x256xbf16, #tpu.memory_space<vmem>>, vector<8x256xbf16>
    %c0_4 = arith.constant 0 : index
    %c0_5 = arith.constant 0 : index
    %5 = vector.load %arg4[%c0_4, %c0_5] : memref<256x512xbf16, #tpu.memory_space<vmem>>, vector<256x512xbf16>
    %cst = arith.constant dense<0.000000e+00> : vector<8x512xf32>
    %6 = tpu.matmul %4, %5, %cst {dimension_numbers = #tpu.dot_dimension_numbers<[1], [0], [0], [1], [0, 0, 1, 1], [], []>} : vector<8x256xbf16>, vector<256x512xbf16>, vector<8x512xf32> -> vector<8x512xf32>
    %7 = arith.addf %3, %6 : vector<8x512xf32>
    %c0_6 = arith.constant 0 : index
    %c0_7 = arith.constant 0 : index
    %8 = vector.load %arg7[%c0_6, %c0_7] : memref<8x512xf32, #tpu.memory_space<vmem>>, vector<8x512xf32>
    tpu.vector_store %arg7[%c0_6, %c0_7], %7 {strides = array<i32>} : memref<8x512xf32, #tpu.memory_space<vmem>>, vector<8x512xf32>,
    %c0_i32_8 = arith.constant 0 : i32
    %9 = arith.cmpi eq, %arg2, %c0_i32_8 : i32
    %10 = arith.extui %9 : i1 to i32
    %c0_i32_9 = arith.constant 0 : i32
    %11 = arith.cmpi ne, %10, %c0_i32_9 : i32
    scf.if %11 {
      %c0_10 = arith.constant 0 : index
      %c0_11 = arith.constant 0 : index
      %12 = vector.load %arg7[%c0_10, %c0_11] : memref<8x512xf32, #tpu.memory_space<vmem>>, vector<8x512xf32>
      %c0_12 = arith.constant 0 : index
      %c0_13 = arith.constant 0 : index
      %13 = vector.load %arg5[%c0_12, %c0_13] : memref<8x1xf32, #tpu.memory_space<vmem>>, vector<8x1xf32>
      %14 = vector.broadcast %13 : vector<8x1xf32> to vector<8x512xf32>
      %15 = arith.addf %12, %14 : vector<8x512xf32>
      %c0_14 = arith.constant 0 : index
      %c0_15 = arith.constant 0 : index
      %16 = vector.load %arg6[%c0_14, %c0_15] : memref<8x512xf32, #tpu.memory_space<vmem>>, vector<8x512xf32>
      tpu.vector_store %arg6[%c0_14, %c0_15], %15 {strides = array<i32>} : memref<8x512xf32, #tpu.memory_space<vmem>>, vector<8x512xf32>,
    } else {
    }
    return
  }
  func.func @transform_0(%arg0: i32, %arg1: i32, %arg2: i32) -> (i32, i32) {
    %c0_i32 = arith.constant 0 : i32
    return %arg0, %arg2 : i32, i32
  }
  func.func @transform_1(%arg0: i32, %arg1: i32, %arg2: i32) -> (i32, i32) {
    %c0_i32 = arith.constant 0 : i32
    return %arg2, %arg1 : i32, i32
  }
  func.func @transform_2(%arg0: i32, %arg1: i32, %arg2: i32) -> (i32, i32) {
    %c0_i32 = arith.constant 0 : i32
    %c0_i32_0 = arith.constant 0 : i32
    return %arg0, %c0_i32 : i32, i32
  }
  func.func @transform_3(%arg0: i32, %arg1: i32, %arg2: i32) -> (i32, i32) {
    %c0_i32 = arith.constant 0 : i32
    return %arg0, %arg1 : i32, i32
  }
}

module attributes {stable_mosaic.version = 11 : i64} {
  func.func @_instnorm_lrelu_kernel(%arg0: i32, %arg1: memref<16x1024xf32, #tpu.memory_space<vmem>>, %arg2: memref<16x1024xf32, #tpu.memory_space<vmem>>) attributes {dimension_semantics = [#tpu.dimension_semantics<parallel>], iteration_bounds = array<i64: 1>, scalar_prefetch = 0 : i64, scratch_operands = 0 : i64, tpu.core_type = #tpu.core_type<tc>, window_params = [{transform_indices = @transform_0, window_bounds = array<i64: 16, 1024>}, {transform_indices = @transform_1, window_bounds = array<i64: 16, 1024>}]} {
    %c0 = arith.constant 0 : index
    %c0_0 = arith.constant 0 : index
    %0 = vector.load %arg1[%c0, %c0_0] : memref<16x1024xf32, #tpu.memory_space<vmem>>, vector<16x1024xf32>
    %cst = arith.constant dense<0.000000e+00> : vector<16xf32>
    %1 = vector.multi_reduction <add>, %0, %cst [1] : vector<16x1024xf32> to vector<16xf32>
    %2 = vector.shape_cast %1 : vector<16xf32> to vector<16x1xf32>
    %cst_1 = arith.constant 1.024000e+03 : f32
    %3 = vector.broadcast %cst_1 : f32 to vector<16x1xf32>
    %4 = arith.divf %2, %3 : vector<16x1xf32>
    %5 = vector.broadcast %4 : vector<16x1xf32> to vector<16x1024xf32>
    %6 = arith.subf %0, %5 : vector<16x1024xf32>
    %7 = arith.mulf %6, %6 : vector<16x1024xf32>
    %cst_2 = arith.constant dense<0.000000e+00> : vector<16xf32>
    %8 = vector.multi_reduction <add>, %7, %cst_2 [1] : vector<16x1024xf32> to vector<16xf32>
    %9 = vector.shape_cast %8 : vector<16xf32> to vector<16x1xf32>
    %cst_3 = arith.constant 1.024000e+03 : f32
    %10 = vector.broadcast %cst_3 : f32 to vector<16x1xf32>
    %11 = arith.divf %9, %10 : vector<16x1xf32>
    %12 = vector.broadcast %4 : vector<16x1xf32> to vector<16x1024xf32>
    %13 = arith.subf %0, %12 : vector<16x1024xf32>
    %cst_4 = arith.constant 9.99999974E-6 : f32
    %14 = vector.broadcast %cst_4 : f32 to vector<16x1xf32>
    %15 = arith.addf %11, %14 : vector<16x1xf32>
    %16 = math.rsqrt %15 : vector<16x1xf32>
    %17 = vector.broadcast %16 : vector<16x1xf32> to vector<16x1024xf32>
    %18 = arith.mulf %13, %17 : vector<16x1024xf32>
    %cst_5 = arith.constant 0.000000e+00 : f32
    %19 = vector.broadcast %cst_5 : f32 to vector<16x1024xf32>
    %20 = arith.cmpf ogt, %18, %19 : vector<16x1024xf32>
    %cst_6 = arith.constant 0.00999999977 : f32
    %21 = vector.broadcast %cst_6 : f32 to vector<16x1024xf32>
    %22 = arith.mulf %21, %18 : vector<16x1024xf32>
    %23 = arith.select %20, %18, %22 : vector<16x1024xi1>, vector<16x1024xf32>
    %c0_7 = arith.constant 0 : index
    %c0_8 = arith.constant 0 : index
    %24 = vector.load %arg2[%c0_7, %c0_8] : memref<16x1024xf32, #tpu.memory_space<vmem>>, vector<16x1024xf32>
    tpu.vector_store %arg2[%c0_7, %c0_8], %23 {strides = array<i32>} : memref<16x1024xf32, #tpu.memory_space<vmem>>, vector<16x1024xf32>,
    return
  }
  func.func @transform_0(%arg0: i32) -> (i32, i32) {
    %c0_i32 = arith.constant 0 : i32
    %c0_i32_0 = arith.constant 0 : i32
    return %arg0, %c0_i32 : i32, i32
  }
  func.func @transform_1(%arg0: i32) -> (i32, i32) {
    %c0_i32 = arith.constant 0 : i32
    %c0_i32_0 = arith.constant 0 : i32
    return %arg0, %c0_i32 : i32, i32
  }
}

module attributes {stable_mosaic.version = 11 : i64} {
  func.func @kernel(%arg0: i32, %arg1: i32, %arg2: i32, %arg3: memref<8x128xbf16, #tpu.memory_space<vmem>>, %arg4: memref<128x512xbf16, #tpu.memory_space<vmem>>, %arg5: memref<8x1xf32, #tpu.memory_space<vmem>>, %arg6: memref<8x512xf32, #tpu.memory_space<vmem>>, %arg7: memref<8x512xf32, #tpu.memory_space<vmem>>) attributes {dimension_semantics = [#tpu.dimension_semantics<parallel>, #tpu.dimension_semantics<parallel>, #tpu.dimension_semantics<arbitrary>], iteration_bounds = array<i64: 1, 4, 1>, scalar_prefetch = 0 : i64, scratch_operands = 1 : i64, tpu.core_type = #tpu.core_type<tc>, window_params = [{transform_indices = @transform_0, window_bounds = array<i64: 8, 128>}, {transform_indices = @transform_1, window_bounds = array<i64: 128, 512>}, {transform_indices = @transform_2, window_bounds = array<i64: 8, 1>}, {transform_indices = @transform_3, window_bounds = array<i64: 8, 512>}]} {
    %c0_i32 = arith.constant 0 : i32
    %0 = arith.cmpi eq, %arg2, %c0_i32 : i32
    %1 = arith.extui %0 : i1 to i32
    %c0_i32_0 = arith.constant 0 : i32
    %2 = arith.cmpi ne, %1, %c0_i32_0 : i32
    scf.if %2 {
      %cst_10 = arith.constant 0.000000e+00 : f32
      %12 = vector.broadcast %cst_10 : f32 to vector<8x512xf32>
      %c0_11 = arith.constant 0 : index
      %c0_12 = arith.constant 0 : index
      %13 = vector.load %arg7[%c0_11, %c0_12] : memref<8x512xf32, #tpu.memory_space<vmem>>, vector<8x512xf32>
      tpu.vector_store %arg7[%c0_11, %c0_12], %12 {strides = array<i32>} : memref<8x512xf32, #tpu.memory_space<vmem>>, vector<8x512xf32>,
    } else {
    }
    %c0 = arith.constant 0 : index
    %c0_1 = arith.constant 0 : index
    %3 = vector.load %arg7[%c0, %c0_1] : memref<8x512xf32, #tpu.memory_space<vmem>>, vector<8x512xf32>
    %c0_2 = arith.constant 0 : index
    %c0_3 = arith.constant 0 : index
    %4 = vector.load %arg3[%c0_2, %c0_3] : memref<8x128xbf16, #tpu.memory_space<vmem>>, vector<8x128xbf16>
    %c0_4 = arith.constant 0 : index
    %c0_5 = arith.constant 0 : index
    %5 = vector.load %arg4[%c0_4, %c0_5] : memref<128x512xbf16, #tpu.memory_space<vmem>>, vector<128x512xbf16>
    %cst = arith.constant dense<0.000000e+00> : vector<8x512xf32>
    %6 = tpu.matmul %4, %5, %cst {dimension_numbers = #tpu.dot_dimension_numbers<[1], [0], [0], [1], [0, 0, 1, 1], [], []>} : vector<8x128xbf16>, vector<128x512xbf16>, vector<8x512xf32> -> vector<8x512xf32>
    %7 = arith.addf %3, %6 : vector<8x512xf32>
    %c0_6 = arith.constant 0 : index
    %c0_7 = arith.constant 0 : index
    %8 = vector.load %arg7[%c0_6, %c0_7] : memref<8x512xf32, #tpu.memory_space<vmem>>, vector<8x512xf32>
    tpu.vector_store %arg7[%c0_6, %c0_7], %7 {strides = array<i32>} : memref<8x512xf32, #tpu.memory_space<vmem>>, vector<8x512xf32>,
    %c0_i32_8 = arith.constant 0 : i32
    %9 = arith.cmpi eq, %arg2, %c0_i32_8 : i32
    %10 = arith.extui %9 : i1 to i32
    %c0_i32_9 = arith.constant 0 : i32
    %11 = arith.cmpi ne, %10, %c0_i32_9 : i32
    scf.if %11 {
      %c0_10 = arith.constant 0 : index
      %c0_11 = arith.constant 0 : index
      %12 = vector.load %arg7[%c0_10, %c0_11] : memref<8x512xf32, #tpu.memory_space<vmem>>, vector<8x512xf32>
      %c0_12 = arith.constant 0 : index
      %c0_13 = arith.constant 0 : index
      %13 = vector.load %arg5[%c0_12, %c0_13] : memref<8x1xf32, #tpu.memory_space<vmem>>, vector<8x1xf32>
      %14 = vector.broadcast %13 : vector<8x1xf32> to vector<8x512xf32>
      %15 = arith.addf %12, %14 : vector<8x512xf32>
      %c0_14 = arith.constant 0 : index
      %c0_15 = arith.constant 0 : index
      %16 = vector.load %arg6[%c0_14, %c0_15] : memref<8x512xf32, #tpu.memory_space<vmem>>, vector<8x512xf32>
      tpu.vector_store %arg6[%c0_14, %c0_15], %15 {strides = array<i32>} : memref<8x512xf32, #tpu.memory_space<vmem>>, vector<8x512xf32>,
    } else {
    }
    return
  }
  func.func @transform_0(%arg0: i32, %arg1: i32, %arg2: i32) -> (i32, i32) {
    %c0_i32 = arith.constant 0 : i32
    return %arg0, %arg2 : i32, i32
  }
  func.func @transform_1(%arg0: i32, %arg1: i32, %arg2: i32) -> (i32, i32) {
    %c0_i32 = arith.constant 0 : i32
    return %arg2, %arg1 : i32, i32
  }
  func.func @transform_2(%arg0: i32, %arg1: i32, %arg2: i32) -> (i32, i32) {
    %c0_i32 = arith.constant 0 : i32
    %c0_i32_0 = arith.constant 0 : i32
    return %arg0, %c0_i32 : i32, i32
  }
  func.func @transform_3(%arg0: i32, %arg1: i32, %arg2: i32) -> (i32, i32) {
    %c0_i32 = arith.constant 0 : i32
    return %arg0, %arg1 : i32, i32
  }
}

module attributes {stable_mosaic.version = 11 : i64} {
  func.func @kernel(%arg0: i32, %arg1: i32, %arg2: i32, %arg3: memref<8x128xbf16, #tpu.memory_space<vmem>>, %arg4: memref<128x512xbf16, #tpu.memory_space<vmem>>, %arg5: memref<8x1xf32, #tpu.memory_space<vmem>>, %arg6: memref<8x512xf32, #tpu.memory_space<vmem>>, %arg7: memref<8x512xf32, #tpu.memory_space<vmem>>) attributes {dimension_semantics = [#tpu.dimension_semantics<parallel>, #tpu.dimension_semantics<parallel>, #tpu.dimension_semantics<arbitrary>], iteration_bounds = array<i64: 1, 1, 1>, scalar_prefetch = 0 : i64, scratch_operands = 1 : i64, tpu.core_type = #tpu.core_type<tc>, window_params = [{transform_indices = @transform_0, window_bounds = array<i64: 8, 128>}, {transform_indices = @transform_1, window_bounds = array<i64: 128, 512>}, {transform_indices = @transform_2, window_bounds = array<i64: 8, 1>}, {transform_indices = @transform_3, window_bounds = array<i64: 8, 512>}]} {
    %c0_i32 = arith.constant 0 : i32
    %0 = arith.cmpi eq, %arg2, %c0_i32 : i32
    %1 = arith.extui %0 : i1 to i32
    %c0_i32_0 = arith.constant 0 : i32
    %2 = arith.cmpi ne, %1, %c0_i32_0 : i32
    scf.if %2 {
      %cst_10 = arith.constant 0.000000e+00 : f32
      %12 = vector.broadcast %cst_10 : f32 to vector<8x512xf32>
      %c0_11 = arith.constant 0 : index
      %c0_12 = arith.constant 0 : index
      %13 = vector.load %arg7[%c0_11, %c0_12] : memref<8x512xf32, #tpu.memory_space<vmem>>, vector<8x512xf32>
      tpu.vector_store %arg7[%c0_11, %c0_12], %12 {strides = array<i32>} : memref<8x512xf32, #tpu.memory_space<vmem>>, vector<8x512xf32>,
    } else {
    }
    %c0 = arith.constant 0 : index
    %c0_1 = arith.constant 0 : index
    %3 = vector.load %arg7[%c0, %c0_1] : memref<8x512xf32, #tpu.memory_space<vmem>>, vector<8x512xf32>
    %c0_2 = arith.constant 0 : index
    %c0_3 = arith.constant 0 : index
    %4 = vector.load %arg3[%c0_2, %c0_3] : memref<8x128xbf16, #tpu.memory_space<vmem>>, vector<8x128xbf16>
    %c0_4 = arith.constant 0 : index
    %c0_5 = arith.constant 0 : index
    %5 = vector.load %arg4[%c0_4, %c0_5] : memref<128x512xbf16, #tpu.memory_space<vmem>>, vector<128x512xbf16>
    %cst = arith.constant dense<0.000000e+00> : vector<8x512xf32>
    %6 = tpu.matmul %4, %5, %cst {dimension_numbers = #tpu.dot_dimension_numbers<[1], [0], [0], [1], [0, 0, 1, 1], [], []>} : vector<8x128xbf16>, vector<128x512xbf16>, vector<8x512xf32> -> vector<8x512xf32>
    %7 = arith.addf %3, %6 : vector<8x512xf32>
    %c0_6 = arith.constant 0 : index
    %c0_7 = arith.constant 0 : index
    %8 = vector.load %arg7[%c0_6, %c0_7] : memref<8x512xf32, #tpu.memory_space<vmem>>, vector<8x512xf32>
    tpu.vector_store %arg7[%c0_6, %c0_7], %7 {strides = array<i32>} : memref<8x512xf32, #tpu.memory_space<vmem>>, vector<8x512xf32>,
    %c0_i32_8 = arith.constant 0 : i32
    %9 = arith.cmpi eq, %arg2, %c0_i32_8 : i32
    %10 = arith.extui %9 : i1 to i32
    %c0_i32_9 = arith.constant 0 : i32
    %11 = arith.cmpi ne, %10, %c0_i32_9 : i32
    scf.if %11 {
      %c0_10 = arith.constant 0 : index
      %c0_11 = arith.constant 0 : index
      %12 = vector.load %arg7[%c0_10, %c0_11] : memref<8x512xf32, #tpu.memory_space<vmem>>, vector<8x512xf32>
      %c0_12 = arith.constant 0 : index
      %c0_13 = arith.constant 0 : index
      %13 = vector.load %arg5[%c0_12, %c0_13] : memref<8x1xf32, #tpu.memory_space<vmem>>, vector<8x1xf32>
      %14 = vector.broadcast %13 : vector<8x1xf32> to vector<8x512xf32>
      %15 = arith.addf %12, %14 : vector<8x512xf32>
      %c0_14 = arith.constant 0 : index
      %c0_15 = arith.constant 0 : index
      %16 = vector.load %arg6[%c0_14, %c0_15] : memref<8x512xf32, #tpu.memory_space<vmem>>, vector<8x512xf32>
      tpu.vector_store %arg6[%c0_14, %c0_15], %15 {strides = array<i32>} : memref<8x512xf32, #tpu.memory_space<vmem>>, vector<8x512xf32>,
    } else {
    }
    return
  }
  func.func @transform_0(%arg0: i32, %arg1: i32, %arg2: i32) -> (i32, i32) {
    %c0_i32 = arith.constant 0 : i32
    return %arg0, %arg2 : i32, i32
  }
  func.func @transform_1(%arg0: i32, %arg1: i32, %arg2: i32) -> (i32, i32) {
    %c0_i32 = arith.constant 0 : i32
    return %arg2, %arg1 : i32, i32
  }
  func.func @transform_2(%arg0: i32, %arg1: i32, %arg2: i32) -> (i32, i32) {
    %c0_i32 = arith.constant 0 : i32
    %c0_i32_0 = arith.constant 0 : i32
    return %arg0, %c0_i32 : i32, i32
  }
  func.func @transform_3(%arg0: i32, %arg1: i32, %arg2: i32) -> (i32, i32) {
    %c0_i32 = arith.constant 0 : i32
    return %arg0, %arg1 : i32, i32
  }
}

module attributes {stable_mosaic.version = 11 : i64} {
  func.func @kernel(%arg0: i32, %arg1: i32, %arg2: i32, %arg3: memref<16x128xbf16, #tpu.memory_space<vmem>>, %arg4: memref<128x512xbf16, #tpu.memory_space<vmem>>, %arg5: memref<16x1xf32, #tpu.memory_space<vmem>>, %arg6: memref<16x512xf32, #tpu.memory_space<vmem>>, %arg7: memref<16x512xf32, #tpu.memory_space<vmem>>) attributes {dimension_semantics = [#tpu.dimension_semantics<parallel>, #tpu.dimension_semantics<parallel>, #tpu.dimension_semantics<arbitrary>], iteration_bounds = array<i64: 1, 1, 1>, scalar_prefetch = 0 : i64, scratch_operands = 1 : i64, tpu.core_type = #tpu.core_type<tc>, window_params = [{transform_indices = @transform_0, window_bounds = array<i64: 16, 128>}, {transform_indices = @transform_1, window_bounds = array<i64: 128, 512>}, {transform_indices = @transform_2, window_bounds = array<i64: 16, 1>}, {transform_indices = @transform_3, window_bounds = array<i64: 16, 512>}]} {
    %c0_i32 = arith.constant 0 : i32
    %0 = arith.cmpi eq, %arg2, %c0_i32 : i32
    %1 = arith.extui %0 : i1 to i32
    %c0_i32_0 = arith.constant 0 : i32
    %2 = arith.cmpi ne, %1, %c0_i32_0 : i32
    scf.if %2 {
      %cst_10 = arith.constant 0.000000e+00 : f32
      %12 = vector.broadcast %cst_10 : f32 to vector<16x512xf32>
      %c0_11 = arith.constant 0 : index
      %c0_12 = arith.constant 0 : index
      %13 = vector.load %arg7[%c0_11, %c0_12] : memref<16x512xf32, #tpu.memory_space<vmem>>, vector<16x512xf32>
      tpu.vector_store %arg7[%c0_11, %c0_12], %12 {strides = array<i32>} : memref<16x512xf32, #tpu.memory_space<vmem>>, vector<16x512xf32>,
    } else {
    }
    %c0 = arith.constant 0 : index
    %c0_1 = arith.constant 0 : index
    %3 = vector.load %arg7[%c0, %c0_1] : memref<16x512xf32, #tpu.memory_space<vmem>>, vector<16x512xf32>
    %c0_2 = arith.constant 0 : index
    %c0_3 = arith.constant 0 : index
    %4 = vector.load %arg3[%c0_2, %c0_3] : memref<16x128xbf16, #tpu.memory_space<vmem>>, vector<16x128xbf16>
    %c0_4 = arith.constant 0 : index
    %c0_5 = arith.constant 0 : index
    %5 = vector.load %arg4[%c0_4, %c0_5] : memref<128x512xbf16, #tpu.memory_space<vmem>>, vector<128x512xbf16>
    %cst = arith.constant dense<0.000000e+00> : vector<16x512xf32>
    %6 = tpu.matmul %4, %5, %cst {dimension_numbers = #tpu.dot_dimension_numbers<[1], [0], [0], [1], [0, 0, 1, 1], [], []>} : vector<16x128xbf16>, vector<128x512xbf16>, vector<16x512xf32> -> vector<16x512xf32>
    %7 = arith.addf %3, %6 : vector<16x512xf32>
    %c0_6 = arith.constant 0 : index
    %c0_7 = arith.constant 0 : index
    %8 = vector.load %arg7[%c0_6, %c0_7] : memref<16x512xf32, #tpu.memory_space<vmem>>, vector<16x512xf32>
    tpu.vector_store %arg7[%c0_6, %c0_7], %7 {strides = array<i32>} : memref<16x512xf32, #tpu.memory_space<vmem>>, vector<16x512xf32>,
    %c0_i32_8 = arith.constant 0 : i32
    %9 = arith.cmpi eq, %arg2, %c0_i32_8 : i32
    %10 = arith.extui %9 : i1 to i32
    %c0_i32_9 = arith.constant 0 : i32
    %11 = arith.cmpi ne, %10, %c0_i32_9 : i32
    scf.if %11 {
      %c0_10 = arith.constant 0 : index
      %c0_11 = arith.constant 0 : index
      %12 = vector.load %arg7[%c0_10, %c0_11] : memref<16x512xf32, #tpu.memory_space<vmem>>, vector<16x512xf32>
      %c0_12 = arith.constant 0 : index
      %c0_13 = arith.constant 0 : index
      %13 = vector.load %arg5[%c0_12, %c0_13] : memref<16x1xf32, #tpu.memory_space<vmem>>, vector<16x1xf32>
      %14 = vector.broadcast %13 : vector<16x1xf32> to vector<16x512xf32>
      %15 = arith.addf %12, %14 : vector<16x512xf32>
      %c0_14 = arith.constant 0 : index
      %c0_15 = arith.constant 0 : index
      %16 = vector.load %arg6[%c0_14, %c0_15] : memref<16x512xf32, #tpu.memory_space<vmem>>, vector<16x512xf32>
      tpu.vector_store %arg6[%c0_14, %c0_15], %15 {strides = array<i32>} : memref<16x512xf32, #tpu.memory_space<vmem>>, vector<16x512xf32>,
    } else {
    }
    return
  }
  func.func @transform_0(%arg0: i32, %arg1: i32, %arg2: i32) -> (i32, i32) {
    %c0_i32 = arith.constant 0 : i32
    return %arg0, %arg2 : i32, i32
  }
  func.func @transform_1(%arg0: i32, %arg1: i32, %arg2: i32) -> (i32, i32) {
    %c0_i32 = arith.constant 0 : i32
    return %arg2, %arg1 : i32, i32
  }
  func.func @transform_2(%arg0: i32, %arg1: i32, %arg2: i32) -> (i32, i32) {
    %c0_i32 = arith.constant 0 : i32
    %c0_i32_0 = arith.constant 0 : i32
    return %arg0, %c0_i32 : i32, i32
  }
  func.func @transform_3(%arg0: i32, %arg1: i32, %arg2: i32) -> (i32, i32) {
    %c0_i32 = arith.constant 0 : i32
    return %arg0, %arg1 : i32, i32
  }
}

module attributes {stable_mosaic.version = 11 : i64} {
  func.func @_instnorm_lrelu_kernel(%arg0: i32, %arg1: memref<32x256xf32, #tpu.memory_space<vmem>>, %arg2: memref<32x256xf32, #tpu.memory_space<vmem>>) attributes {dimension_semantics = [#tpu.dimension_semantics<parallel>], iteration_bounds = array<i64: 1>, scalar_prefetch = 0 : i64, scratch_operands = 0 : i64, tpu.core_type = #tpu.core_type<tc>, window_params = [{transform_indices = @transform_0, window_bounds = array<i64: 32, 256>}, {transform_indices = @transform_1, window_bounds = array<i64: 32, 256>}]} {
    %c0 = arith.constant 0 : index
    %c0_0 = arith.constant 0 : index
    %0 = vector.load %arg1[%c0, %c0_0] : memref<32x256xf32, #tpu.memory_space<vmem>>, vector<32x256xf32>
    %cst = arith.constant dense<0.000000e+00> : vector<32xf32>
    %1 = vector.multi_reduction <add>, %0, %cst [1] : vector<32x256xf32> to vector<32xf32>
    %2 = vector.shape_cast %1 : vector<32xf32> to vector<32x1xf32>
    %cst_1 = arith.constant 2.560000e+02 : f32
    %3 = vector.broadcast %cst_1 : f32 to vector<32x1xf32>
    %4 = arith.divf %2, %3 : vector<32x1xf32>
    %5 = vector.broadcast %4 : vector<32x1xf32> to vector<32x256xf32>
    %6 = arith.subf %0, %5 : vector<32x256xf32>
    %7 = arith.mulf %6, %6 : vector<32x256xf32>
    %cst_2 = arith.constant dense<0.000000e+00> : vector<32xf32>
    %8 = vector.multi_reduction <add>, %7, %cst_2 [1] : vector<32x256xf32> to vector<32xf32>
    %9 = vector.shape_cast %8 : vector<32xf32> to vector<32x1xf32>
    %cst_3 = arith.constant 2.560000e+02 : f32
    %10 = vector.broadcast %cst_3 : f32 to vector<32x1xf32>
    %11 = arith.divf %9, %10 : vector<32x1xf32>
    %12 = vector.broadcast %4 : vector<32x1xf32> to vector<32x256xf32>
    %13 = arith.subf %0, %12 : vector<32x256xf32>
    %cst_4 = arith.constant 9.99999974E-6 : f32
    %14 = vector.broadcast %cst_4 : f32 to vector<32x1xf32>
    %15 = arith.addf %11, %14 : vector<32x1xf32>
    %16 = math.rsqrt %15 : vector<32x1xf32>
    %17 = vector.broadcast %16 : vector<32x1xf32> to vector<32x256xf32>
    %18 = arith.mulf %13, %17 : vector<32x256xf32>
    %cst_5 = arith.constant 0.000000e+00 : f32
    %19 = vector.broadcast %cst_5 : f32 to vector<32x256xf32>
    %20 = arith.cmpf ogt, %18, %19 : vector<32x256xf32>
    %cst_6 = arith.constant 0.00999999977 : f32
    %21 = vector.broadcast %cst_6 : f32 to vector<32x256xf32>
    %22 = arith.mulf %21, %18 : vector<32x256xf32>
    %23 = arith.select %20, %18, %22 : vector<32x256xi1>, vector<32x256xf32>
    %c0_7 = arith.constant 0 : index
    %c0_8 = arith.constant 0 : index
    %24 = vector.load %arg2[%c0_7, %c0_8] : memref<32x256xf32, #tpu.memory_space<vmem>>, vector<32x256xf32>
    tpu.vector_store %arg2[%c0_7, %c0_8], %23 {strides = array<i32>} : memref<32x256xf32, #tpu.memory_space<vmem>>, vector<32x256xf32>,
    return
  }
  func.func @transform_0(%arg0: i32) -> (i32, i32) {
    %c0_i32 = arith.constant 0 : i32
    %c0_i32_0 = arith.constant 0 : i32
    return %arg0, %c0_i32 : i32, i32
  }
  func.func @transform_1(%arg0: i32) -> (i32, i32) {
    %c0_i32 = arith.constant 0 : i32
    %c0_i32_0 = arith.constant 0 : i32
    return %arg0, %c0_i32 : i32, i32
  }
}

module attributes {stable_mosaic.version = 11 : i64} {
  func.func @kernel(%arg0: i32, %arg1: i32, %arg2: i32, %arg3: memref<16x256xbf16, #tpu.memory_space<vmem>>, %arg4: memref<256x512xbf16, #tpu.memory_space<vmem>>, %arg5: memref<16x1xf32, #tpu.memory_space<vmem>>, %arg6: memref<16x512xf32, #tpu.memory_space<vmem>>, %arg7: memref<16x512xf32, #tpu.memory_space<vmem>>) attributes {dimension_semantics = [#tpu.dimension_semantics<parallel>, #tpu.dimension_semantics<parallel>, #tpu.dimension_semantics<arbitrary>], iteration_bounds = array<i64: 1, 1, 1>, scalar_prefetch = 0 : i64, scratch_operands = 1 : i64, tpu.core_type = #tpu.core_type<tc>, window_params = [{transform_indices = @transform_0, window_bounds = array<i64: 16, 256>}, {transform_indices = @transform_1, window_bounds = array<i64: 256, 512>}, {transform_indices = @transform_2, window_bounds = array<i64: 16, 1>}, {transform_indices = @transform_3, window_bounds = array<i64: 16, 512>}]} {
    %c0_i32 = arith.constant 0 : i32
    %0 = arith.cmpi eq, %arg2, %c0_i32 : i32
    %1 = arith.extui %0 : i1 to i32
    %c0_i32_0 = arith.constant 0 : i32
    %2 = arith.cmpi ne, %1, %c0_i32_0 : i32
    scf.if %2 {
      %cst_10 = arith.constant 0.000000e+00 : f32
      %12 = vector.broadcast %cst_10 : f32 to vector<16x512xf32>
      %c0_11 = arith.constant 0 : index
      %c0_12 = arith.constant 0 : index
      %13 = vector.load %arg7[%c0_11, %c0_12] : memref<16x512xf32, #tpu.memory_space<vmem>>, vector<16x512xf32>
      tpu.vector_store %arg7[%c0_11, %c0_12], %12 {strides = array<i32>} : memref<16x512xf32, #tpu.memory_space<vmem>>, vector<16x512xf32>,
    } else {
    }
    %c0 = arith.constant 0 : index
    %c0_1 = arith.constant 0 : index
    %3 = vector.load %arg7[%c0, %c0_1] : memref<16x512xf32, #tpu.memory_space<vmem>>, vector<16x512xf32>
    %c0_2 = arith.constant 0 : index
    %c0_3 = arith.constant 0 : index
    %4 = vector.load %arg3[%c0_2, %c0_3] : memref<16x256xbf16, #tpu.memory_space<vmem>>, vector<16x256xbf16>
    %c0_4 = arith.constant 0 : index
    %c0_5 = arith.constant 0 : index
    %5 = vector.load %arg4[%c0_4, %c0_5] : memref<256x512xbf16, #tpu.memory_space<vmem>>, vector<256x512xbf16>
    %cst = arith.constant dense<0.000000e+00> : vector<16x512xf32>
    %6 = tpu.matmul %4, %5, %cst {dimension_numbers = #tpu.dot_dimension_numbers<[1], [0], [0], [1], [0, 0, 1, 1], [], []>} : vector<16x256xbf16>, vector<256x512xbf16>, vector<16x512xf32> -> vector<16x512xf32>
    %7 = arith.addf %3, %6 : vector<16x512xf32>
    %c0_6 = arith.constant 0 : index
    %c0_7 = arith.constant 0 : index
    %8 = vector.load %arg7[%c0_6, %c0_7] : memref<16x512xf32, #tpu.memory_space<vmem>>, vector<16x512xf32>
    tpu.vector_store %arg7[%c0_6, %c0_7], %7 {strides = array<i32>} : memref<16x512xf32, #tpu.memory_space<vmem>>, vector<16x512xf32>,
    %c0_i32_8 = arith.constant 0 : i32
    %9 = arith.cmpi eq, %arg2, %c0_i32_8 : i32
    %10 = arith.extui %9 : i1 to i32
    %c0_i32_9 = arith.constant 0 : i32
    %11 = arith.cmpi ne, %10, %c0_i32_9 : i32
    scf.if %11 {
      %c0_10 = arith.constant 0 : index
      %c0_11 = arith.constant 0 : index
      %12 = vector.load %arg7[%c0_10, %c0_11] : memref<16x512xf32, #tpu.memory_space<vmem>>, vector<16x512xf32>
      %c0_12 = arith.constant 0 : index
      %c0_13 = arith.constant 0 : index
      %13 = vector.load %arg5[%c0_12, %c0_13] : memref<16x1xf32, #tpu.memory_space<vmem>>, vector<16x1xf32>
      %14 = vector.broadcast %13 : vector<16x1xf32> to vector<16x512xf32>
      %15 = arith.addf %12, %14 : vector<16x512xf32>
      %c0_14 = arith.constant 0 : index
      %c0_15 = arith.constant 0 : index
      %16 = vector.load %arg6[%c0_14, %c0_15] : memref<16x512xf32, #tpu.memory_space<vmem>>, vector<16x512xf32>
      tpu.vector_store %arg6[%c0_14, %c0_15], %15 {strides = array<i32>} : memref<16x512xf32, #tpu.memory_space<vmem>>, vector<16x512xf32>,
    } else {
    }
    return
  }
  func.func @transform_0(%arg0: i32, %arg1: i32, %arg2: i32) -> (i32, i32) {
    %c0_i32 = arith.constant 0 : i32
    return %arg0, %arg2 : i32, i32
  }
  func.func @transform_1(%arg0: i32, %arg1: i32, %arg2: i32) -> (i32, i32) {
    %c0_i32 = arith.constant 0 : i32
    return %arg2, %arg1 : i32, i32
  }
  func.func @transform_2(%arg0: i32, %arg1: i32, %arg2: i32) -> (i32, i32) {
    %c0_i32 = arith.constant 0 : i32
    %c0_i32_0 = arith.constant 0 : i32
    return %arg0, %c0_i32 : i32, i32
  }
  func.func @transform_3(%arg0: i32, %arg1: i32, %arg2: i32) -> (i32, i32) {
    %c0_i32 = arith.constant 0 : i32
    return %arg0, %arg1 : i32, i32
  }
}

module attributes {stable_mosaic.version = 11 : i64} {
  func.func @kernel(%arg0: i32, %arg1: i32, %arg2: i32, %arg3: memref<16x256xbf16, #tpu.memory_space<vmem>>, %arg4: memref<256x128xbf16, #tpu.memory_space<vmem>>, %arg5: memref<16x1xf32, #tpu.memory_space<vmem>>, %arg6: memref<16x128xf32, #tpu.memory_space<vmem>>, %arg7: memref<16x128xf32, #tpu.memory_space<vmem>>) attributes {dimension_semantics = [#tpu.dimension_semantics<parallel>, #tpu.dimension_semantics<parallel>, #tpu.dimension_semantics<arbitrary>], iteration_bounds = array<i64: 1, 1, 1>, scalar_prefetch = 0 : i64, scratch_operands = 1 : i64, tpu.core_type = #tpu.core_type<tc>, window_params = [{transform_indices = @transform_0, window_bounds = array<i64: 16, 256>}, {transform_indices = @transform_1, window_bounds = array<i64: 256, 128>}, {transform_indices = @transform_2, window_bounds = array<i64: 16, 1>}, {transform_indices = @transform_3, window_bounds = array<i64: 16, 128>}]} {
    %c0_i32 = arith.constant 0 : i32
    %0 = arith.cmpi eq, %arg2, %c0_i32 : i32
    %1 = arith.extui %0 : i1 to i32
    %c0_i32_0 = arith.constant 0 : i32
    %2 = arith.cmpi ne, %1, %c0_i32_0 : i32
    scf.if %2 {
      %cst_10 = arith.constant 0.000000e+00 : f32
      %12 = vector.broadcast %cst_10 : f32 to vector<16x128xf32>
      %c0_11 = arith.constant 0 : index
      %c0_12 = arith.constant 0 : index
      %13 = vector.load %arg7[%c0_11, %c0_12] : memref<16x128xf32, #tpu.memory_space<vmem>>, vector<16x128xf32>
      tpu.vector_store %arg7[%c0_11, %c0_12], %12 {strides = array<i32>} : memref<16x128xf32, #tpu.memory_space<vmem>>, vector<16x128xf32>,
    } else {
    }
    %c0 = arith.constant 0 : index
    %c0_1 = arith.constant 0 : index
    %3 = vector.load %arg7[%c0, %c0_1] : memref<16x128xf32, #tpu.memory_space<vmem>>, vector<16x128xf32>
    %c0_2 = arith.constant 0 : index
    %c0_3 = arith.constant 0 : index
    %4 = vector.load %arg3[%c0_2, %c0_3] : memref<16x256xbf16, #tpu.memory_space<vmem>>, vector<16x256xbf16>
    %c0_4 = arith.constant 0 : index
    %c0_5 = arith.constant 0 : index
    %5 = vector.load %arg4[%c0_4, %c0_5] : memref<256x128xbf16, #tpu.memory_space<vmem>>, vector<256x128xbf16>
    %cst = arith.constant dense<0.000000e+00> : vector<16x128xf32>
    %6 = tpu.matmul %4, %5, %cst {dimension_numbers = #tpu.dot_dimension_numbers<[1], [0], [0], [1], [0, 0, 1, 1], [], []>} : vector<16x256xbf16>, vector<256x128xbf16>, vector<16x128xf32> -> vector<16x128xf32>
    %7 = arith.addf %3, %6 : vector<16x128xf32>
    %c0_6 = arith.constant 0 : index
    %c0_7 = arith.constant 0 : index
    %8 = vector.load %arg7[%c0_6, %c0_7] : memref<16x128xf32, #tpu.memory_space<vmem>>, vector<16x128xf32>
    tpu.vector_store %arg7[%c0_6, %c0_7], %7 {strides = array<i32>} : memref<16x128xf32, #tpu.memory_space<vmem>>, vector<16x128xf32>,
    %c0_i32_8 = arith.constant 0 : i32
    %9 = arith.cmpi eq, %arg2, %c0_i32_8 : i32
    %10 = arith.extui %9 : i1 to i32
    %c0_i32_9 = arith.constant 0 : i32
    %11 = arith.cmpi ne, %10, %c0_i32_9 : i32
    scf.if %11 {
      %c0_10 = arith.constant 0 : index
      %c0_11 = arith.constant 0 : index
      %12 = vector.load %arg7[%c0_10, %c0_11] : memref<16x128xf32, #tpu.memory_space<vmem>>, vector<16x128xf32>
      %c0_12 = arith.constant 0 : index
      %c0_13 = arith.constant 0 : index
      %13 = vector.load %arg5[%c0_12, %c0_13] : memref<16x1xf32, #tpu.memory_space<vmem>>, vector<16x1xf32>
      %14 = vector.broadcast %13 : vector<16x1xf32> to vector<16x128xf32>
      %15 = arith.addf %12, %14 : vector<16x128xf32>
      %c0_14 = arith.constant 0 : index
      %c0_15 = arith.constant 0 : index
      %16 = vector.load %arg6[%c0_14, %c0_15] : memref<16x128xf32, #tpu.memory_space<vmem>>, vector<16x128xf32>
      tpu.vector_store %arg6[%c0_14, %c0_15], %15 {strides = array<i32>} : memref<16x128xf32, #tpu.memory_space<vmem>>, vector<16x128xf32>,
    } else {
    }
    return
  }
  func.func @transform_0(%arg0: i32, %arg1: i32, %arg2: i32) -> (i32, i32) {
    %c0_i32 = arith.constant 0 : i32
    return %arg0, %arg2 : i32, i32
  }
  func.func @transform_1(%arg0: i32, %arg1: i32, %arg2: i32) -> (i32, i32) {
    %c0_i32 = arith.constant 0 : i32
    return %arg2, %arg1 : i32, i32
  }
  func.func @transform_2(%arg0: i32, %arg1: i32, %arg2: i32) -> (i32, i32) {
    %c0_i32 = arith.constant 0 : i32
    %c0_i32_0 = arith.constant 0 : i32
    return %arg0, %c0_i32 : i32, i32
  }
  func.func @transform_3(%arg0: i32, %arg1: i32, %arg2: i32) -> (i32, i32) {
    %c0_i32 = arith.constant 0 : i32
    return %arg0, %arg1 : i32, i32
  }
}

module attributes {stable_mosaic.version = 11 : i64} {
  func.func @kernel(%arg0: i32, %arg1: i32, %arg2: i32, %arg3: memref<32x256xbf16, #tpu.memory_space<vmem>>, %arg4: memref<256x128xbf16, #tpu.memory_space<vmem>>, %arg5: memref<32x1xf32, #tpu.memory_space<vmem>>, %arg6: memref<32x128xf32, #tpu.memory_space<vmem>>, %arg7: memref<32x128xf32, #tpu.memory_space<vmem>>) attributes {dimension_semantics = [#tpu.dimension_semantics<parallel>, #tpu.dimension_semantics<parallel>, #tpu.dimension_semantics<arbitrary>], iteration_bounds = array<i64: 1, 1, 1>, scalar_prefetch = 0 : i64, scratch_operands = 1 : i64, tpu.core_type = #tpu.core_type<tc>, window_params = [{transform_indices = @transform_0, window_bounds = array<i64: 32, 256>}, {transform_indices = @transform_1, window_bounds = array<i64: 256, 128>}, {transform_indices = @transform_2, window_bounds = array<i64: 32, 1>}, {transform_indices = @transform_3, window_bounds = array<i64: 32, 128>}]} {
    %c0_i32 = arith.constant 0 : i32
    %0 = arith.cmpi eq, %arg2, %c0_i32 : i32
    %1 = arith.extui %0 : i1 to i32
    %c0_i32_0 = arith.constant 0 : i32
    %2 = arith.cmpi ne, %1, %c0_i32_0 : i32
    scf.if %2 {
      %cst_10 = arith.constant 0.000000e+00 : f32
      %12 = vector.broadcast %cst_10 : f32 to vector<32x128xf32>
      %c0_11 = arith.constant 0 : index
      %c0_12 = arith.constant 0 : index
      %13 = vector.load %arg7[%c0_11, %c0_12] : memref<32x128xf32, #tpu.memory_space<vmem>>, vector<32x128xf32>
      tpu.vector_store %arg7[%c0_11, %c0_12], %12 {strides = array<i32>} : memref<32x128xf32, #tpu.memory_space<vmem>>, vector<32x128xf32>,
    } else {
    }
    %c0 = arith.constant 0 : index
    %c0_1 = arith.constant 0 : index
    %3 = vector.load %arg7[%c0, %c0_1] : memref<32x128xf32, #tpu.memory_space<vmem>>, vector<32x128xf32>
    %c0_2 = arith.constant 0 : index
    %c0_3 = arith.constant 0 : index
    %4 = vector.load %arg3[%c0_2, %c0_3] : memref<32x256xbf16, #tpu.memory_space<vmem>>, vector<32x256xbf16>
    %c0_4 = arith.constant 0 : index
    %c0_5 = arith.constant 0 : index
    %5 = vector.load %arg4[%c0_4, %c0_5] : memref<256x128xbf16, #tpu.memory_space<vmem>>, vector<256x128xbf16>
    %cst = arith.constant dense<0.000000e+00> : vector<32x128xf32>
    %6 = tpu.matmul %4, %5, %cst {dimension_numbers = #tpu.dot_dimension_numbers<[1], [0], [0], [1], [0, 0, 1, 1], [], []>} : vector<32x256xbf16>, vector<256x128xbf16>, vector<32x128xf32> -> vector<32x128xf32>
    %7 = arith.addf %3, %6 : vector<32x128xf32>
    %c0_6 = arith.constant 0 : index
    %c0_7 = arith.constant 0 : index
    %8 = vector.load %arg7[%c0_6, %c0_7] : memref<32x128xf32, #tpu.memory_space<vmem>>, vector<32x128xf32>
    tpu.vector_store %arg7[%c0_6, %c0_7], %7 {strides = array<i32>} : memref<32x128xf32, #tpu.memory_space<vmem>>, vector<32x128xf32>,
    %c0_i32_8 = arith.constant 0 : i32
    %9 = arith.cmpi eq, %arg2, %c0_i32_8 : i32
    %10 = arith.extui %9 : i1 to i32
    %c0_i32_9 = arith.constant 0 : i32
    %11 = arith.cmpi ne, %10, %c0_i32_9 : i32
    scf.if %11 {
      %c0_10 = arith.constant 0 : index
      %c0_11 = arith.constant 0 : index
      %12 = vector.load %arg7[%c0_10, %c0_11] : memref<32x128xf32, #tpu.memory_space<vmem>>, vector<32x128xf32>
      %c0_12 = arith.constant 0 : index
      %c0_13 = arith.constant 0 : index
      %13 = vector.load %arg5[%c0_12, %c0_13] : memref<32x1xf32, #tpu.memory_space<vmem>>, vector<32x1xf32>
      %14 = vector.broadcast %13 : vector<32x1xf32> to vector<32x128xf32>
      %15 = arith.addf %12, %14 : vector<32x128xf32>
      %c0_14 = arith.constant 0 : index
      %c0_15 = arith.constant 0 : index
      %16 = vector.load %arg6[%c0_14, %c0_15] : memref<32x128xf32, #tpu.memory_space<vmem>>, vector<32x128xf32>
      tpu.vector_store %arg6[%c0_14, %c0_15], %15 {strides = array<i32>} : memref<32x128xf32, #tpu.memory_space<vmem>>, vector<32x128xf32>,
    } else {
    }
    return
  }
  func.func @transform_0(%arg0: i32, %arg1: i32, %arg2: i32) -> (i32, i32) {
    %c0_i32 = arith.constant 0 : i32
    return %arg0, %arg2 : i32, i32
  }
  func.func @transform_1(%arg0: i32, %arg1: i32, %arg2: i32) -> (i32, i32) {
    %c0_i32 = arith.constant 0 : i32
    return %arg2, %arg1 : i32, i32
  }
  func.func @transform_2(%arg0: i32, %arg1: i32, %arg2: i32) -> (i32, i32) {
    %c0_i32 = arith.constant 0 : i32
    %c0_i32_0 = arith.constant 0 : i32
    return %arg0, %c0_i32 : i32, i32
  }
  func.func @transform_3(%arg0: i32, %arg1: i32, %arg2: i32) -> (i32, i32) {
    %c0_i32 = arith.constant 0 : i32
    return %arg0, %arg1 : i32, i32
  }
}

module attributes {stable_mosaic.version = 11 : i64} {
  func.func @_instnorm_lrelu_kernel(%arg0: i32, %arg1: memref<64x64xf32, #tpu.memory_space<vmem>>, %arg2: memref<64x64xf32, #tpu.memory_space<vmem>>) attributes {dimension_semantics = [#tpu.dimension_semantics<parallel>], iteration_bounds = array<i64: 1>, scalar_prefetch = 0 : i64, scratch_operands = 0 : i64, tpu.core_type = #tpu.core_type<tc>, window_params = [{transform_indices = @transform_0, window_bounds = array<i64: 64, 64>}, {transform_indices = @transform_1, window_bounds = array<i64: 64, 64>}]} {
    %c0 = arith.constant 0 : index
    %c0_0 = arith.constant 0 : index
    %0 = vector.load %arg1[%c0, %c0_0] : memref<64x64xf32, #tpu.memory_space<vmem>>, vector<64x64xf32>
    %cst = arith.constant dense<0.000000e+00> : vector<64xf32>
    %1 = vector.multi_reduction <add>, %0, %cst [1] : vector<64x64xf32> to vector<64xf32>
    %2 = vector.shape_cast %1 : vector<64xf32> to vector<64x1xf32>
    %cst_1 = arith.constant 6.400000e+01 : f32
    %3 = vector.broadcast %cst_1 : f32 to vector<64x1xf32>
    %4 = arith.divf %2, %3 : vector<64x1xf32>
    %5 = vector.broadcast %4 : vector<64x1xf32> to vector<64x64xf32>
    %6 = arith.subf %0, %5 : vector<64x64xf32>
    %7 = arith.mulf %6, %6 : vector<64x64xf32>
    %cst_2 = arith.constant dense<0.000000e+00> : vector<64xf32>
    %8 = vector.multi_reduction <add>, %7, %cst_2 [1] : vector<64x64xf32> to vector<64xf32>
    %9 = vector.shape_cast %8 : vector<64xf32> to vector<64x1xf32>
    %cst_3 = arith.constant 6.400000e+01 : f32
    %10 = vector.broadcast %cst_3 : f32 to vector<64x1xf32>
    %11 = arith.divf %9, %10 : vector<64x1xf32>
    %12 = vector.broadcast %4 : vector<64x1xf32> to vector<64x64xf32>
    %13 = arith.subf %0, %12 : vector<64x64xf32>
    %cst_4 = arith.constant 9.99999974E-6 : f32
    %14 = vector.broadcast %cst_4 : f32 to vector<64x1xf32>
    %15 = arith.addf %11, %14 : vector<64x1xf32>
    %16 = math.rsqrt %15 : vector<64x1xf32>
    %17 = vector.broadcast %16 : vector<64x1xf32> to vector<64x64xf32>
    %18 = arith.mulf %13, %17 : vector<64x64xf32>
    %cst_5 = arith.constant 0.000000e+00 : f32
    %19 = vector.broadcast %cst_5 : f32 to vector<64x64xf32>
    %20 = arith.cmpf ogt, %18, %19 : vector<64x64xf32>
    %cst_6 = arith.constant 0.00999999977 : f32
    %21 = vector.broadcast %cst_6 : f32 to vector<64x64xf32>
    %22 = arith.mulf %21, %18 : vector<64x64xf32>
    %23 = arith.select %20, %18, %22 : vector<64x64xi1>, vector<64x64xf32>
    %c0_7 = arith.constant 0 : index
    %c0_8 = arith.constant 0 : index
    %24 = vector.load %arg2[%c0_7, %c0_8] : memref<64x64xf32, #tpu.memory_space<vmem>>, vector<64x64xf32>
    tpu.vector_store %arg2[%c0_7, %c0_8], %23 {strides = array<i32>} : memref<64x64xf32, #tpu.memory_space<vmem>>, vector<64x64xf32>,
    return
  }
  func.func @transform_0(%arg0: i32) -> (i32, i32) {
    %c0_i32 = arith.constant 0 : i32
    %c0_i32_0 = arith.constant 0 : i32
    return %arg0, %c0_i32 : i32, i32
  }
  func.func @transform_1(%arg0: i32) -> (i32, i32) {
    %c0_i32 = arith.constant 0 : i32
    %c0_i32_0 = arith.constant 0 : i32
    return %arg0, %c0_i32 : i32, i32
  }
}

module attributes {stable_mosaic.version = 11 : i64} {
  func.func @kernel(%arg0: i32, %arg1: i32, %arg2: i32, %arg3: memref<32x384xbf16, #tpu.memory_space<vmem>>, %arg4: memref<384x128xbf16, #tpu.memory_space<vmem>>, %arg5: memref<32x1xf32, #tpu.memory_space<vmem>>, %arg6: memref<32x128xf32, #tpu.memory_space<vmem>>, %arg7: memref<32x128xf32, #tpu.memory_space<vmem>>) attributes {dimension_semantics = [#tpu.dimension_semantics<parallel>, #tpu.dimension_semantics<parallel>, #tpu.dimension_semantics<arbitrary>], iteration_bounds = array<i64: 1, 1, 1>, scalar_prefetch = 0 : i64, scratch_operands = 1 : i64, tpu.core_type = #tpu.core_type<tc>, window_params = [{transform_indices = @transform_0, window_bounds = array<i64: 32, 384>}, {transform_indices = @transform_1, window_bounds = array<i64: 384, 128>}, {transform_indices = @transform_2, window_bounds = array<i64: 32, 1>}, {transform_indices = @transform_3, window_bounds = array<i64: 32, 128>}]} {
    %c0_i32 = arith.constant 0 : i32
    %0 = arith.cmpi eq, %arg2, %c0_i32 : i32
    %1 = arith.extui %0 : i1 to i32
    %c0_i32_0 = arith.constant 0 : i32
    %2 = arith.cmpi ne, %1, %c0_i32_0 : i32
    scf.if %2 {
      %cst_10 = arith.constant 0.000000e+00 : f32
      %12 = vector.broadcast %cst_10 : f32 to vector<32x128xf32>
      %c0_11 = arith.constant 0 : index
      %c0_12 = arith.constant 0 : index
      %13 = vector.load %arg7[%c0_11, %c0_12] : memref<32x128xf32, #tpu.memory_space<vmem>>, vector<32x128xf32>
      tpu.vector_store %arg7[%c0_11, %c0_12], %12 {strides = array<i32>} : memref<32x128xf32, #tpu.memory_space<vmem>>, vector<32x128xf32>,
    } else {
    }
    %c0 = arith.constant 0 : index
    %c0_1 = arith.constant 0 : index
    %3 = vector.load %arg7[%c0, %c0_1] : memref<32x128xf32, #tpu.memory_space<vmem>>, vector<32x128xf32>
    %c0_2 = arith.constant 0 : index
    %c0_3 = arith.constant 0 : index
    %4 = vector.load %arg3[%c0_2, %c0_3] : memref<32x384xbf16, #tpu.memory_space<vmem>>, vector<32x384xbf16>
    %c0_4 = arith.constant 0 : index
    %c0_5 = arith.constant 0 : index
    %5 = vector.load %arg4[%c0_4, %c0_5] : memref<384x128xbf16, #tpu.memory_space<vmem>>, vector<384x128xbf16>
    %cst = arith.constant dense<0.000000e+00> : vector<32x128xf32>
    %6 = tpu.matmul %4, %5, %cst {dimension_numbers = #tpu.dot_dimension_numbers<[1], [0], [0], [1], [0, 0, 1, 1], [], []>} : vector<32x384xbf16>, vector<384x128xbf16>, vector<32x128xf32> -> vector<32x128xf32>
    %7 = arith.addf %3, %6 : vector<32x128xf32>
    %c0_6 = arith.constant 0 : index
    %c0_7 = arith.constant 0 : index
    %8 = vector.load %arg7[%c0_6, %c0_7] : memref<32x128xf32, #tpu.memory_space<vmem>>, vector<32x128xf32>
    tpu.vector_store %arg7[%c0_6, %c0_7], %7 {strides = array<i32>} : memref<32x128xf32, #tpu.memory_space<vmem>>, vector<32x128xf32>,
    %c0_i32_8 = arith.constant 0 : i32
    %9 = arith.cmpi eq, %arg2, %c0_i32_8 : i32
    %10 = arith.extui %9 : i1 to i32
    %c0_i32_9 = arith.constant 0 : i32
    %11 = arith.cmpi ne, %10, %c0_i32_9 : i32
    scf.if %11 {
      %c0_10 = arith.constant 0 : index
      %c0_11 = arith.constant 0 : index
      %12 = vector.load %arg7[%c0_10, %c0_11] : memref<32x128xf32, #tpu.memory_space<vmem>>, vector<32x128xf32>
      %c0_12 = arith.constant 0 : index
      %c0_13 = arith.constant 0 : index
      %13 = vector.load %arg5[%c0_12, %c0_13] : memref<32x1xf32, #tpu.memory_space<vmem>>, vector<32x1xf32>
      %14 = vector.broadcast %13 : vector<32x1xf32> to vector<32x128xf32>
      %15 = arith.addf %12, %14 : vector<32x128xf32>
      %c0_14 = arith.constant 0 : index
      %c0_15 = arith.constant 0 : index
      %16 = vector.load %arg6[%c0_14, %c0_15] : memref<32x128xf32, #tpu.memory_space<vmem>>, vector<32x128xf32>
      tpu.vector_store %arg6[%c0_14, %c0_15], %15 {strides = array<i32>} : memref<32x128xf32, #tpu.memory_space<vmem>>, vector<32x128xf32>,
    } else {
    }
    return
  }
  func.func @transform_0(%arg0: i32, %arg1: i32, %arg2: i32) -> (i32, i32) {
    %c0_i32 = arith.constant 0 : i32
    return %arg0, %arg2 : i32, i32
  }
  func.func @transform_1(%arg0: i32, %arg1: i32, %arg2: i32) -> (i32, i32) {
    %c0_i32 = arith.constant 0 : i32
    return %arg2, %arg1 : i32, i32
  }
  func.func @transform_2(%arg0: i32, %arg1: i32, %arg2: i32) -> (i32, i32) {
    %c0_i32 = arith.constant 0 : i32
    %c0_i32_0 = arith.constant 0 : i32
    return %arg0, %c0_i32 : i32, i32
  }
  func.func @transform_3(%arg0: i32, %arg1: i32, %arg2: i32) -> (i32, i32) {
    %c0_i32 = arith.constant 0 : i32
    return %arg0, %arg1 : i32, i32
  }
}

module attributes {stable_mosaic.version = 11 : i64} {
  func.func @kernel(%arg0: i32, %arg1: i32, %arg2: i32, %arg3: memref<32x512xbf16, #tpu.memory_space<vmem>>, %arg4: memref<512x128xbf16, #tpu.memory_space<vmem>>, %arg5: memref<32x1xf32, #tpu.memory_space<vmem>>, %arg6: memref<32x128xf32, #tpu.memory_space<vmem>>, %arg7: memref<32x128xf32, #tpu.memory_space<vmem>>) attributes {dimension_semantics = [#tpu.dimension_semantics<parallel>, #tpu.dimension_semantics<parallel>, #tpu.dimension_semantics<arbitrary>], iteration_bounds = array<i64: 1, 1, 1>, scalar_prefetch = 0 : i64, scratch_operands = 1 : i64, tpu.core_type = #tpu.core_type<tc>, window_params = [{transform_indices = @transform_0, window_bounds = array<i64: 32, 512>}, {transform_indices = @transform_1, window_bounds = array<i64: 512, 128>}, {transform_indices = @transform_2, window_bounds = array<i64: 32, 1>}, {transform_indices = @transform_3, window_bounds = array<i64: 32, 128>}]} {
    %c0_i32 = arith.constant 0 : i32
    %0 = arith.cmpi eq, %arg2, %c0_i32 : i32
    %1 = arith.extui %0 : i1 to i32
    %c0_i32_0 = arith.constant 0 : i32
    %2 = arith.cmpi ne, %1, %c0_i32_0 : i32
    scf.if %2 {
      %cst_10 = arith.constant 0.000000e+00 : f32
      %12 = vector.broadcast %cst_10 : f32 to vector<32x128xf32>
      %c0_11 = arith.constant 0 : index
      %c0_12 = arith.constant 0 : index
      %13 = vector.load %arg7[%c0_11, %c0_12] : memref<32x128xf32, #tpu.memory_space<vmem>>, vector<32x128xf32>
      tpu.vector_store %arg7[%c0_11, %c0_12], %12 {strides = array<i32>} : memref<32x128xf32, #tpu.memory_space<vmem>>, vector<32x128xf32>,
    } else {
    }
    %c0 = arith.constant 0 : index
    %c0_1 = arith.constant 0 : index
    %3 = vector.load %arg7[%c0, %c0_1] : memref<32x128xf32, #tpu.memory_space<vmem>>, vector<32x128xf32>
    %c0_2 = arith.constant 0 : index
    %c0_3 = arith.constant 0 : index
    %4 = vector.load %arg3[%c0_2, %c0_3] : memref<32x512xbf16, #tpu.memory_space<vmem>>, vector<32x512xbf16>
    %c0_4 = arith.constant 0 : index
    %c0_5 = arith.constant 0 : index
    %5 = vector.load %arg4[%c0_4, %c0_5] : memref<512x128xbf16, #tpu.memory_space<vmem>>, vector<512x128xbf16>
    %cst = arith.constant dense<0.000000e+00> : vector<32x128xf32>
    %6 = tpu.matmul %4, %5, %cst {dimension_numbers = #tpu.dot_dimension_numbers<[1], [0], [0], [1], [0, 0, 1, 1], [], []>} : vector<32x512xbf16>, vector<512x128xbf16>, vector<32x128xf32> -> vector<32x128xf32>
    %7 = arith.addf %3, %6 : vector<32x128xf32>
    %c0_6 = arith.constant 0 : index
    %c0_7 = arith.constant 0 : index
    %8 = vector.load %arg7[%c0_6, %c0_7] : memref<32x128xf32, #tpu.memory_space<vmem>>, vector<32x128xf32>
    tpu.vector_store %arg7[%c0_6, %c0_7], %7 {strides = array<i32>} : memref<32x128xf32, #tpu.memory_space<vmem>>, vector<32x128xf32>,
    %c0_i32_8 = arith.constant 0 : i32
    %9 = arith.cmpi eq, %arg2, %c0_i32_8 : i32
    %10 = arith.extui %9 : i1 to i32
    %c0_i32_9 = arith.constant 0 : i32
    %11 = arith.cmpi ne, %10, %c0_i32_9 : i32
    scf.if %11 {
      %c0_10 = arith.constant 0 : index
      %c0_11 = arith.constant 0 : index
      %12 = vector.load %arg7[%c0_10, %c0_11] : memref<32x128xf32, #tpu.memory_space<vmem>>, vector<32x128xf32>
      %c0_12 = arith.constant 0 : index
      %c0_13 = arith.constant 0 : index
      %13 = vector.load %arg5[%c0_12, %c0_13] : memref<32x1xf32, #tpu.memory_space<vmem>>, vector<32x1xf32>
      %14 = vector.broadcast %13 : vector<32x1xf32> to vector<32x128xf32>
      %15 = arith.addf %12, %14 : vector<32x128xf32>
      %c0_14 = arith.constant 0 : index
      %c0_15 = arith.constant 0 : index
      %16 = vector.load %arg6[%c0_14, %c0_15] : memref<32x128xf32, #tpu.memory_space<vmem>>, vector<32x128xf32>
      tpu.vector_store %arg6[%c0_14, %c0_15], %15 {strides = array<i32>} : memref<32x128xf32, #tpu.memory_space<vmem>>, vector<32x128xf32>,
    } else {
    }
    return
  }
  func.func @transform_0(%arg0: i32, %arg1: i32, %arg2: i32) -> (i32, i32) {
    %c0_i32 = arith.constant 0 : i32
    return %arg0, %arg2 : i32, i32
  }
  func.func @transform_1(%arg0: i32, %arg1: i32, %arg2: i32) -> (i32, i32) {
    %c0_i32 = arith.constant 0 : i32
    return %arg2, %arg1 : i32, i32
  }
  func.func @transform_2(%arg0: i32, %arg1: i32, %arg2: i32) -> (i32, i32) {
    %c0_i32 = arith.constant 0 : i32
    %c0_i32_0 = arith.constant 0 : i32
    return %arg0, %c0_i32 : i32, i32
  }
  func.func @transform_3(%arg0: i32, %arg1: i32, %arg2: i32) -> (i32, i32) {
    %c0_i32 = arith.constant 0 : i32
    return %arg0, %arg1 : i32, i32
  }
}

module attributes {stable_mosaic.version = 11 : i64} {
  func.func @_instnorm_lrelu_kernel(%arg0: i32, %arg1: memref<64x4xf32, #tpu.memory_space<vmem>>, %arg2: memref<64x4xf32, #tpu.memory_space<vmem>>) attributes {dimension_semantics = [#tpu.dimension_semantics<parallel>], iteration_bounds = array<i64: 1>, scalar_prefetch = 0 : i64, scratch_operands = 0 : i64, tpu.core_type = #tpu.core_type<tc>, window_params = [{transform_indices = @transform_0, window_bounds = array<i64: 64, 4>}, {transform_indices = @transform_1, window_bounds = array<i64: 64, 4>}]} {
    %c0 = arith.constant 0 : index
    %c0_0 = arith.constant 0 : index
    %0 = vector.load %arg1[%c0, %c0_0] : memref<64x4xf32, #tpu.memory_space<vmem>>, vector<64x4xf32>
    %cst = arith.constant dense<0.000000e+00> : vector<64xf32>
    %1 = vector.multi_reduction <add>, %0, %cst [1] : vector<64x4xf32> to vector<64xf32>
    %2 = vector.shape_cast %1 : vector<64xf32> to vector<64x1xf32>
    %cst_1 = arith.constant 4.000000e+00 : f32
    %3 = vector.broadcast %cst_1 : f32 to vector<64x1xf32>
    %4 = arith.divf %2, %3 : vector<64x1xf32>
    %5 = vector.broadcast %4 : vector<64x1xf32> to vector<64x4xf32>
    %6 = arith.subf %0, %5 : vector<64x4xf32>
    %7 = arith.mulf %6, %6 : vector<64x4xf32>
    %cst_2 = arith.constant dense<0.000000e+00> : vector<64xf32>
    %8 = vector.multi_reduction <add>, %7, %cst_2 [1] : vector<64x4xf32> to vector<64xf32>
    %9 = vector.shape_cast %8 : vector<64xf32> to vector<64x1xf32>
    %cst_3 = arith.constant 4.000000e+00 : f32
    %10 = vector.broadcast %cst_3 : f32 to vector<64x1xf32>
    %11 = arith.divf %9, %10 : vector<64x1xf32>
    %12 = vector.broadcast %4 : vector<64x1xf32> to vector<64x4xf32>
    %13 = arith.subf %0, %12 : vector<64x4xf32>
    %cst_4 = arith.constant 9.99999974E-6 : f32
    %14 = vector.broadcast %cst_4 : f32 to vector<64x1xf32>
    %15 = arith.addf %11, %14 : vector<64x1xf32>
    %16 = math.rsqrt %15 : vector<64x1xf32>
    %17 = vector.broadcast %16 : vector<64x1xf32> to vector<64x4xf32>
    %18 = arith.mulf %13, %17 : vector<64x4xf32>
    %cst_5 = arith.constant 0.000000e+00 : f32
    %19 = vector.broadcast %cst_5 : f32 to vector<64x4xf32>
    %20 = arith.cmpf ogt, %18, %19 : vector<64x4xf32>
    %cst_6 = arith.constant 0.00999999977 : f32
    %21 = vector.broadcast %cst_6 : f32 to vector<64x4xf32>
    %22 = arith.mulf %21, %18 : vector<64x4xf32>
    %23 = arith.select %20, %18, %22 : vector<64x4xi1>, vector<64x4xf32>
    %c0_7 = arith.constant 0 : index
    %c0_8 = arith.constant 0 : index
    %24 = vector.load %arg2[%c0_7, %c0_8] : memref<64x4xf32, #tpu.memory_space<vmem>>, vector<64x4xf32>
    tpu.vector_store %arg2[%c0_7, %c0_8], %23 {strides = array<i32>} : memref<64x4xf32, #tpu.memory_space<vmem>>, vector<64x4xf32>,
    return
  }
  func.func @transform_0(%arg0: i32) -> (i32, i32) {
    %c0_i32 = arith.constant 0 : i32
    %c0_i32_0 = arith.constant 0 : i32
    return %arg0, %c0_i32 : i32, i32
  }
  func.func @transform_1(%arg0: i32) -> (i32, i32) {
    %c0_i32 = arith.constant 0 : i32
    %c0_i32_0 = arith.constant 0 : i32
    return %arg0, %c0_i32 : i32, i32
  }
}

module attributes {stable_mosaic.version = 11 : i64} {
  func.func @kernel(%arg0: i32, %arg1: i32, %arg2: i32, %arg3: memref<32x128xbf16, #tpu.memory_space<vmem>>, %arg4: memref<128x128xbf16, #tpu.memory_space<vmem>>, %arg5: memref<32x1xf32, #tpu.memory_space<vmem>>, %arg6: memref<32x128xf32, #tpu.memory_space<vmem>>, %arg7: memref<32x128xf32, #tpu.memory_space<vmem>>) attributes {dimension_semantics = [#tpu.dimension_semantics<parallel>, #tpu.dimension_semantics<parallel>, #tpu.dimension_semantics<arbitrary>], iteration_bounds = array<i64: 1, 1, 1>, scalar_prefetch = 0 : i64, scratch_operands = 1 : i64, tpu.core_type = #tpu.core_type<tc>, window_params = [{transform_indices = @transform_0, window_bounds = array<i64: 32, 128>}, {transform_indices = @transform_1, window_bounds = array<i64: 128, 128>}, {transform_indices = @transform_2, window_bounds = array<i64: 32, 1>}, {transform_indices = @transform_3, window_bounds = array<i64: 32, 128>}]} {
    %c0_i32 = arith.constant 0 : i32
    %0 = arith.cmpi eq, %arg2, %c0_i32 : i32
    %1 = arith.extui %0 : i1 to i32
    %c0_i32_0 = arith.constant 0 : i32
    %2 = arith.cmpi ne, %1, %c0_i32_0 : i32
    scf.if %2 {
      %cst_10 = arith.constant 0.000000e+00 : f32
      %12 = vector.broadcast %cst_10 : f32 to vector<32x128xf32>
      %c0_11 = arith.constant 0 : index
      %c0_12 = arith.constant 0 : index
      %13 = vector.load %arg7[%c0_11, %c0_12] : memref<32x128xf32, #tpu.memory_space<vmem>>, vector<32x128xf32>
      tpu.vector_store %arg7[%c0_11, %c0_12], %12 {strides = array<i32>} : memref<32x128xf32, #tpu.memory_space<vmem>>, vector<32x128xf32>,
    } else {
    }
    %c0 = arith.constant 0 : index
    %c0_1 = arith.constant 0 : index
    %3 = vector.load %arg7[%c0, %c0_1] : memref<32x128xf32, #tpu.memory_space<vmem>>, vector<32x128xf32>
    %c0_2 = arith.constant 0 : index
    %c0_3 = arith.constant 0 : index
    %4 = vector.load %arg3[%c0_2, %c0_3] : memref<32x128xbf16, #tpu.memory_space<vmem>>, vector<32x128xbf16>
    %c0_4 = arith.constant 0 : index
    %c0_5 = arith.constant 0 : index
    %5 = vector.load %arg4[%c0_4, %c0_5] : memref<128x128xbf16, #tpu.memory_space<vmem>>, vector<128x128xbf16>
    %cst = arith.constant dense<0.000000e+00> : vector<32x128xf32>
    %6 = tpu.matmul %4, %5, %cst {dimension_numbers = #tpu.dot_dimension_numbers<[1], [0], [0], [1], [0, 0, 1, 1], [], []>} : vector<32x128xbf16>, vector<128x128xbf16>, vector<32x128xf32> -> vector<32x128xf32>
    %7 = arith.addf %3, %6 : vector<32x128xf32>
    %c0_6 = arith.constant 0 : index
    %c0_7 = arith.constant 0 : index
    %8 = vector.load %arg7[%c0_6, %c0_7] : memref<32x128xf32, #tpu.memory_space<vmem>>, vector<32x128xf32>
    tpu.vector_store %arg7[%c0_6, %c0_7], %7 {strides = array<i32>} : memref<32x128xf32, #tpu.memory_space<vmem>>, vector<32x128xf32>,
    %c0_i32_8 = arith.constant 0 : i32
    %9 = arith.cmpi eq, %arg2, %c0_i32_8 : i32
    %10 = arith.extui %9 : i1 to i32
    %c0_i32_9 = arith.constant 0 : i32
    %11 = arith.cmpi ne, %10, %c0_i32_9 : i32
    scf.if %11 {
      %c0_10 = arith.constant 0 : index
      %c0_11 = arith.constant 0 : index
      %12 = vector.load %arg7[%c0_10, %c0_11] : memref<32x128xf32, #tpu.memory_space<vmem>>, vector<32x128xf32>
      %c0_12 = arith.constant 0 : index
      %c0_13 = arith.constant 0 : index
      %13 = vector.load %arg5[%c0_12, %c0_13] : memref<32x1xf32, #tpu.memory_space<vmem>>, vector<32x1xf32>
      %14 = vector.broadcast %13 : vector<32x1xf32> to vector<32x128xf32>
      %15 = arith.addf %12, %14 : vector<32x128xf32>
      %c0_14 = arith.constant 0 : index
      %c0_15 = arith.constant 0 : index
      %16 = vector.load %arg6[%c0_14, %c0_15] : memref<32x128xf32, #tpu.memory_space<vmem>>, vector<32x128xf32>
      tpu.vector_store %arg6[%c0_14, %c0_15], %15 {strides = array<i32>} : memref<32x128xf32, #tpu.memory_space<vmem>>, vector<32x128xf32>,
    } else {
    }
    return
  }
  func.func @transform_0(%arg0: i32, %arg1: i32, %arg2: i32) -> (i32, i32) {
    %c0_i32 = arith.constant 0 : i32
    return %arg0, %arg2 : i32, i32
  }
  func.func @transform_1(%arg0: i32, %arg1: i32, %arg2: i32) -> (i32, i32) {
    %c0_i32 = arith.constant 0 : i32
    return %arg2, %arg1 : i32, i32
  }
  func.func @transform_2(%arg0: i32, %arg1: i32, %arg2: i32) -> (i32, i32) {
    %c0_i32 = arith.constant 0 : i32
    %c0_i32_0 = arith.constant 0 : i32
    return %arg0, %c0_i32 : i32, i32
  }
  func.func @transform_3(%arg0: i32, %arg1: i32, %arg2: i32) -> (i32, i32) {
    %c0_i32 = arith.constant 0 : i32
    return %arg0, %arg1 : i32, i32
  }
}

module attributes {stable_mosaic.version = 11 : i64} {
  func.func @_instnorm_lrelu_kernel(%arg0: i32, %arg1: memref<64x16xf32, #tpu.memory_space<vmem>>, %arg2: memref<64x16xf32, #tpu.memory_space<vmem>>) attributes {dimension_semantics = [#tpu.dimension_semantics<parallel>], iteration_bounds = array<i64: 1>, scalar_prefetch = 0 : i64, scratch_operands = 0 : i64, tpu.core_type = #tpu.core_type<tc>, window_params = [{transform_indices = @transform_0, window_bounds = array<i64: 64, 16>}, {transform_indices = @transform_1, window_bounds = array<i64: 64, 16>}]} {
    %c0 = arith.constant 0 : index
    %c0_0 = arith.constant 0 : index
    %0 = vector.load %arg1[%c0, %c0_0] : memref<64x16xf32, #tpu.memory_space<vmem>>, vector<64x16xf32>
    %cst = arith.constant dense<0.000000e+00> : vector<64xf32>
    %1 = vector.multi_reduction <add>, %0, %cst [1] : vector<64x16xf32> to vector<64xf32>
    %2 = vector.shape_cast %1 : vector<64xf32> to vector<64x1xf32>
    %cst_1 = arith.constant 1.600000e+01 : f32
    %3 = vector.broadcast %cst_1 : f32 to vector<64x1xf32>
    %4 = arith.divf %2, %3 : vector<64x1xf32>
    %5 = vector.broadcast %4 : vector<64x1xf32> to vector<64x16xf32>
    %6 = arith.subf %0, %5 : vector<64x16xf32>
    %7 = arith.mulf %6, %6 : vector<64x16xf32>
    %cst_2 = arith.constant dense<0.000000e+00> : vector<64xf32>
    %8 = vector.multi_reduction <add>, %7, %cst_2 [1] : vector<64x16xf32> to vector<64xf32>
    %9 = vector.shape_cast %8 : vector<64xf32> to vector<64x1xf32>
    %cst_3 = arith.constant 1.600000e+01 : f32
    %10 = vector.broadcast %cst_3 : f32 to vector<64x1xf32>
    %11 = arith.divf %9, %10 : vector<64x1xf32>
    %12 = vector.broadcast %4 : vector<64x1xf32> to vector<64x16xf32>
    %13 = arith.subf %0, %12 : vector<64x16xf32>
    %cst_4 = arith.constant 9.99999974E-6 : f32
    %14 = vector.broadcast %cst_4 : f32 to vector<64x1xf32>
    %15 = arith.addf %11, %14 : vector<64x1xf32>
    %16 = math.rsqrt %15 : vector<64x1xf32>
    %17 = vector.broadcast %16 : vector<64x1xf32> to vector<64x16xf32>
    %18 = arith.mulf %13, %17 : vector<64x16xf32>
    %cst_5 = arith.constant 0.000000e+00 : f32
    %19 = vector.broadcast %cst_5 : f32 to vector<64x16xf32>
    %20 = arith.cmpf ogt, %18, %19 : vector<64x16xf32>
    %cst_6 = arith.constant 0.00999999977 : f32
    %21 = vector.broadcast %cst_6 : f32 to vector<64x16xf32>
    %22 = arith.mulf %21, %18 : vector<64x16xf32>
    %23 = arith.select %20, %18, %22 : vector<64x16xi1>, vector<64x16xf32>
    %c0_7 = arith.constant 0 : index
    %c0_8 = arith.constant 0 : index
    %24 = vector.load %arg2[%c0_7, %c0_8] : memref<64x16xf32, #tpu.memory_space<vmem>>, vector<64x16xf32>
    tpu.vector_store %arg2[%c0_7, %c0_8], %23 {strides = array<i32>} : memref<64x16xf32, #tpu.memory_space<vmem>>, vector<64x16xf32>,
    return
  }
  func.func @transform_0(%arg0: i32) -> (i32, i32) {
    %c0_i32 = arith.constant 0 : i32
    %c0_i32_0 = arith.constant 0 : i32
    return %arg0, %c0_i32 : i32, i32
  }
  func.func @transform_1(%arg0: i32) -> (i32, i32) {
    %c0_i32 = arith.constant 0 : i32
    %c0_i32_0 = arith.constant 0 : i32
    return %arg0, %c0_i32 : i32, i32
  }
}

module attributes {stable_mosaic.version = 11 : i64} {
  func.func @_instnorm_lrelu_kernel(%arg0: i32, %arg1: memref<32x64xf32, #tpu.memory_space<vmem>>, %arg2: memref<32x64xf32, #tpu.memory_space<vmem>>) attributes {dimension_semantics = [#tpu.dimension_semantics<parallel>], iteration_bounds = array<i64: 1>, scalar_prefetch = 0 : i64, scratch_operands = 0 : i64, tpu.core_type = #tpu.core_type<tc>, window_params = [{transform_indices = @transform_0, window_bounds = array<i64: 32, 64>}, {transform_indices = @transform_1, window_bounds = array<i64: 32, 64>}]} {
    %c0 = arith.constant 0 : index
    %c0_0 = arith.constant 0 : index
    %0 = vector.load %arg1[%c0, %c0_0] : memref<32x64xf32, #tpu.memory_space<vmem>>, vector<32x64xf32>
    %cst = arith.constant dense<0.000000e+00> : vector<32xf32>
    %1 = vector.multi_reduction <add>, %0, %cst [1] : vector<32x64xf32> to vector<32xf32>
    %2 = vector.shape_cast %1 : vector<32xf32> to vector<32x1xf32>
    %cst_1 = arith.constant 6.400000e+01 : f32
    %3 = vector.broadcast %cst_1 : f32 to vector<32x1xf32>
    %4 = arith.divf %2, %3 : vector<32x1xf32>
    %5 = vector.broadcast %4 : vector<32x1xf32> to vector<32x64xf32>
    %6 = arith.subf %0, %5 : vector<32x64xf32>
    %7 = arith.mulf %6, %6 : vector<32x64xf32>
    %cst_2 = arith.constant dense<0.000000e+00> : vector<32xf32>
    %8 = vector.multi_reduction <add>, %7, %cst_2 [1] : vector<32x64xf32> to vector<32xf32>
    %9 = vector.shape_cast %8 : vector<32xf32> to vector<32x1xf32>
    %cst_3 = arith.constant 6.400000e+01 : f32
    %10 = vector.broadcast %cst_3 : f32 to vector<32x1xf32>
    %11 = arith.divf %9, %10 : vector<32x1xf32>
    %12 = vector.broadcast %4 : vector<32x1xf32> to vector<32x64xf32>
    %13 = arith.subf %0, %12 : vector<32x64xf32>
    %cst_4 = arith.constant 9.99999974E-6 : f32
    %14 = vector.broadcast %cst_4 : f32 to vector<32x1xf32>
    %15 = arith.addf %11, %14 : vector<32x1xf32>
    %16 = math.rsqrt %15 : vector<32x1xf32>
    %17 = vector.broadcast %16 : vector<32x1xf32> to vector<32x64xf32>
    %18 = arith.mulf %13, %17 : vector<32x64xf32>
    %cst_5 = arith.constant 0.000000e+00 : f32
    %19 = vector.broadcast %cst_5 : f32 to vector<32x64xf32>
    %20 = arith.cmpf ogt, %18, %19 : vector<32x64xf32>
    %cst_6 = arith.constant 0.00999999977 : f32
    %21 = vector.broadcast %cst_6 : f32 to vector<32x64xf32>
    %22 = arith.mulf %21, %18 : vector<32x64xf32>
    %23 = arith.select %20, %18, %22 : vector<32x64xi1>, vector<32x64xf32>
    %c0_7 = arith.constant 0 : index
    %c0_8 = arith.constant 0 : index
    %24 = vector.load %arg2[%c0_7, %c0_8] : memref<32x64xf32, #tpu.memory_space<vmem>>, vector<32x64xf32>
    tpu.vector_store %arg2[%c0_7, %c0_8], %23 {strides = array<i32>} : memref<32x64xf32, #tpu.memory_space<vmem>>, vector<32x64xf32>,
    return
  }
  func.func @transform_0(%arg0: i32) -> (i32, i32) {
    %c0_i32 = arith.constant 0 : i32
    %c0_i32_0 = arith.constant 0 : i32
    return %arg0, %c0_i32 : i32, i32
  }
  func.func @transform_1(%arg0: i32) -> (i32, i32) {
    %c0_i32 = arith.constant 0 : i32
    %c0_i32_0 = arith.constant 0 : i32
    return %arg0, %c0_i32 : i32, i32
  }
}

module attributes {stable_mosaic.version = 11 : i64} {
  func.func @kernel(%arg0: i32, %arg1: i32, %arg2: i32, %arg3: memref<8x128xbf16, #tpu.memory_space<vmem>>, %arg4: memref<128x128xbf16, #tpu.memory_space<vmem>>, %arg5: memref<8x1xf32, #tpu.memory_space<vmem>>, %arg6: memref<8x128xf32, #tpu.memory_space<vmem>>, %arg7: memref<8x128xf32, #tpu.memory_space<vmem>>) attributes {dimension_semantics = [#tpu.dimension_semantics<parallel>, #tpu.dimension_semantics<parallel>, #tpu.dimension_semantics<arbitrary>], iteration_bounds = array<i64: 1, 1, 1>, scalar_prefetch = 0 : i64, scratch_operands = 1 : i64, tpu.core_type = #tpu.core_type<tc>, window_params = [{transform_indices = @transform_0, window_bounds = array<i64: 8, 128>}, {transform_indices = @transform_1, window_bounds = array<i64: 128, 128>}, {transform_indices = @transform_2, window_bounds = array<i64: 8, 1>}, {transform_indices = @transform_3, window_bounds = array<i64: 8, 128>}]} {
    %c0_i32 = arith.constant 0 : i32
    %0 = arith.cmpi eq, %arg2, %c0_i32 : i32
    %1 = arith.extui %0 : i1 to i32
    %c0_i32_0 = arith.constant 0 : i32
    %2 = arith.cmpi ne, %1, %c0_i32_0 : i32
    scf.if %2 {
      %cst_10 = arith.constant 0.000000e+00 : f32
      %12 = vector.broadcast %cst_10 : f32 to vector<8x128xf32>
      %c0_11 = arith.constant 0 : index
      %c0_12 = arith.constant 0 : index
      %13 = vector.load %arg7[%c0_11, %c0_12] : memref<8x128xf32, #tpu.memory_space<vmem>>, vector<8x128xf32>
      tpu.vector_store %arg7[%c0_11, %c0_12], %12 {strides = array<i32>} : memref<8x128xf32, #tpu.memory_space<vmem>>, vector<8x128xf32>,
    } else {
    }
    %c0 = arith.constant 0 : index
    %c0_1 = arith.constant 0 : index
    %3 = vector.load %arg7[%c0, %c0_1] : memref<8x128xf32, #tpu.memory_space<vmem>>, vector<8x128xf32>
    %c0_2 = arith.constant 0 : index
    %c0_3 = arith.constant 0 : index
    %4 = vector.load %arg3[%c0_2, %c0_3] : memref<8x128xbf16, #tpu.memory_space<vmem>>, vector<8x128xbf16>
    %c0_4 = arith.constant 0 : index
    %c0_5 = arith.constant 0 : index
    %5 = vector.load %arg4[%c0_4, %c0_5] : memref<128x128xbf16, #tpu.memory_space<vmem>>, vector<128x128xbf16>
    %cst = arith.constant dense<0.000000e+00> : vector<8x128xf32>
    %6 = tpu.matmul %4, %5, %cst {dimension_numbers = #tpu.dot_dimension_numbers<[1], [0], [0], [1], [0, 0, 1, 1], [], []>} : vector<8x128xbf16>, vector<128x128xbf16>, vector<8x128xf32> -> vector<8x128xf32>
    %7 = arith.addf %3, %6 : vector<8x128xf32>
    %c0_6 = arith.constant 0 : index
    %c0_7 = arith.constant 0 : index
    %8 = vector.load %arg7[%c0_6, %c0_7] : memref<8x128xf32, #tpu.memory_space<vmem>>, vector<8x128xf32>
    tpu.vector_store %arg7[%c0_6, %c0_7], %7 {strides = array<i32>} : memref<8x128xf32, #tpu.memory_space<vmem>>, vector<8x128xf32>,
    %c0_i32_8 = arith.constant 0 : i32
    %9 = arith.cmpi eq, %arg2, %c0_i32_8 : i32
    %10 = arith.extui %9 : i1 to i32
    %c0_i32_9 = arith.constant 0 : i32
    %11 = arith.cmpi ne, %10, %c0_i32_9 : i32
    scf.if %11 {
      %c0_10 = arith.constant 0 : index
      %c0_11 = arith.constant 0 : index
      %12 = vector.load %arg7[%c0_10, %c0_11] : memref<8x128xf32, #tpu.memory_space<vmem>>, vector<8x128xf32>
      %c0_12 = arith.constant 0 : index
      %c0_13 = arith.constant 0 : index
      %13 = vector.load %arg5[%c0_12, %c0_13] : memref<8x1xf32, #tpu.memory_space<vmem>>, vector<8x1xf32>
      %14 = vector.broadcast %13 : vector<8x1xf32> to vector<8x128xf32>
      %15 = arith.addf %12, %14 : vector<8x128xf32>
      %c0_14 = arith.constant 0 : index
      %c0_15 = arith.constant 0 : index
      %16 = vector.load %arg6[%c0_14, %c0_15] : memref<8x128xf32, #tpu.memory_space<vmem>>, vector<8x128xf32>
      tpu.vector_store %arg6[%c0_14, %c0_15], %15 {strides = array<i32>} : memref<8x128xf32, #tpu.memory_space<vmem>>, vector<8x128xf32>,
    } else {
    }
    return
  }
  func.func @transform_0(%arg0: i32, %arg1: i32, %arg2: i32) -> (i32, i32) {
    %c0_i32 = arith.constant 0 : i32
    return %arg0, %arg2 : i32, i32
  }
  func.func @transform_1(%arg0: i32, %arg1: i32, %arg2: i32) -> (i32, i32) {
    %c0_i32 = arith.constant 0 : i32
    return %arg2, %arg1 : i32, i32
  }
  func.func @transform_2(%arg0: i32, %arg1: i32, %arg2: i32) -> (i32, i32) {
    %c0_i32 = arith.constant 0 : i32
    %c0_i32_0 = arith.constant 0 : i32
    return %arg0, %c0_i32 : i32, i32
  }
  func.func @transform_3(%arg0: i32, %arg1: i32, %arg2: i32) -> (i32, i32) {
    %c0_i32 = arith.constant 0 : i32
    return %arg0, %arg1 : i32, i32
  }
}

module attributes {stable_mosaic.version = 11 : i64} {
  func.func @_instnorm_lrelu_kernel(%arg0: i32, %arg1: memref<16x256xf32, #tpu.memory_space<vmem>>, %arg2: memref<16x256xf32, #tpu.memory_space<vmem>>) attributes {dimension_semantics = [#tpu.dimension_semantics<parallel>], iteration_bounds = array<i64: 1>, scalar_prefetch = 0 : i64, scratch_operands = 0 : i64, tpu.core_type = #tpu.core_type<tc>, window_params = [{transform_indices = @transform_0, window_bounds = array<i64: 16, 256>}, {transform_indices = @transform_1, window_bounds = array<i64: 16, 256>}]} {
    %c0 = arith.constant 0 : index
    %c0_0 = arith.constant 0 : index
    %0 = vector.load %arg1[%c0, %c0_0] : memref<16x256xf32, #tpu.memory_space<vmem>>, vector<16x256xf32>
    %cst = arith.constant dense<0.000000e+00> : vector<16xf32>
    %1 = vector.multi_reduction <add>, %0, %cst [1] : vector<16x256xf32> to vector<16xf32>
    %2 = vector.shape_cast %1 : vector<16xf32> to vector<16x1xf32>
    %cst_1 = arith.constant 2.560000e+02 : f32
    %3 = vector.broadcast %cst_1 : f32 to vector<16x1xf32>
    %4 = arith.divf %2, %3 : vector<16x1xf32>
    %5 = vector.broadcast %4 : vector<16x1xf32> to vector<16x256xf32>
    %6 = arith.subf %0, %5 : vector<16x256xf32>
    %7 = arith.mulf %6, %6 : vector<16x256xf32>
    %cst_2 = arith.constant dense<0.000000e+00> : vector<16xf32>
    %8 = vector.multi_reduction <add>, %7, %cst_2 [1] : vector<16x256xf32> to vector<16xf32>
    %9 = vector.shape_cast %8 : vector<16xf32> to vector<16x1xf32>
    %cst_3 = arith.constant 2.560000e+02 : f32
    %10 = vector.broadcast %cst_3 : f32 to vector<16x1xf32>
    %11 = arith.divf %9, %10 : vector<16x1xf32>
    %12 = vector.broadcast %4 : vector<16x1xf32> to vector<16x256xf32>
    %13 = arith.subf %0, %12 : vector<16x256xf32>
    %cst_4 = arith.constant 9.99999974E-6 : f32
    %14 = vector.broadcast %cst_4 : f32 to vector<16x1xf32>
    %15 = arith.addf %11, %14 : vector<16x1xf32>
    %16 = math.rsqrt %15 : vector<16x1xf32>
    %17 = vector.broadcast %16 : vector<16x1xf32> to vector<16x256xf32>
    %18 = arith.mulf %13, %17 : vector<16x256xf32>
    %cst_5 = arith.constant 0.000000e+00 : f32
    %19 = vector.broadcast %cst_5 : f32 to vector<16x256xf32>
    %20 = arith.cmpf ogt, %18, %19 : vector<16x256xf32>
    %cst_6 = arith.constant 0.00999999977 : f32
    %21 = vector.broadcast %cst_6 : f32 to vector<16x256xf32>
    %22 = arith.mulf %21, %18 : vector<16x256xf32>
    %23 = arith.select %20, %18, %22 : vector<16x256xi1>, vector<16x256xf32>
    %c0_7 = arith.constant 0 : index
    %c0_8 = arith.constant 0 : index
    %24 = vector.load %arg2[%c0_7, %c0_8] : memref<16x256xf32, #tpu.memory_space<vmem>>, vector<16x256xf32>
    tpu.vector_store %arg2[%c0_7, %c0_8], %23 {strides = array<i32>} : memref<16x256xf32, #tpu.memory_space<vmem>>, vector<16x256xf32>,
    return
  }
  func.func @transform_0(%arg0: i32) -> (i32, i32) {
    %c0_i32 = arith.constant 0 : i32
    %c0_i32_0 = arith.constant 0 : i32
    return %arg0, %c0_i32 : i32, i32
  }
  func.func @transform_1(%arg0: i32) -> (i32, i32) {
    %c0_i32 = arith.constant 0 : i32
    %c0_i32_0 = arith.constant 0 : i32
    return %arg0, %c0_i32 : i32, i32
  }
}

module attributes {stable_mosaic.version = 11 : i64} {
  func.func @_instnorm_lrelu_kernel(%arg0: i32, %arg1: memref<8x1024xf32, #tpu.memory_space<vmem>>, %arg2: memref<8x1024xf32, #tpu.memory_space<vmem>>) attributes {dimension_semantics = [#tpu.dimension_semantics<parallel>], iteration_bounds = array<i64: 1>, scalar_prefetch = 0 : i64, scratch_operands = 0 : i64, tpu.core_type = #tpu.core_type<tc>, window_params = [{transform_indices = @transform_0, window_bounds = array<i64: 8, 1024>}, {transform_indices = @transform_1, window_bounds = array<i64: 8, 1024>}]} {
    %c0 = arith.constant 0 : index
    %c0_0 = arith.constant 0 : index
    %0 = vector.load %arg1[%c0, %c0_0] : memref<8x1024xf32, #tpu.memory_space<vmem>>, vector<8x1024xf32>
    %cst = arith.constant dense<0.000000e+00> : vector<8xf32>
    %1 = vector.multi_reduction <add>, %0, %cst [1] : vector<8x1024xf32> to vector<8xf32>
    %2 = vector.shape_cast %1 : vector<8xf32> to vector<8x1xf32>
    %cst_1 = arith.constant 1.024000e+03 : f32
    %3 = vector.broadcast %cst_1 : f32 to vector<8x1xf32>
    %4 = arith.divf %2, %3 : vector<8x1xf32>
    %5 = vector.broadcast %4 : vector<8x1xf32> to vector<8x1024xf32>
    %6 = arith.subf %0, %5 : vector<8x1024xf32>
    %7 = arith.mulf %6, %6 : vector<8x1024xf32>
    %cst_2 = arith.constant dense<0.000000e+00> : vector<8xf32>
    %8 = vector.multi_reduction <add>, %7, %cst_2 [1] : vector<8x1024xf32> to vector<8xf32>
    %9 = vector.shape_cast %8 : vector<8xf32> to vector<8x1xf32>
    %cst_3 = arith.constant 1.024000e+03 : f32
    %10 = vector.broadcast %cst_3 : f32 to vector<8x1xf32>
    %11 = arith.divf %9, %10 : vector<8x1xf32>
    %12 = vector.broadcast %4 : vector<8x1xf32> to vector<8x1024xf32>
    %13 = arith.subf %0, %12 : vector<8x1024xf32>
    %cst_4 = arith.constant 9.99999974E-6 : f32
    %14 = vector.broadcast %cst_4 : f32 to vector<8x1xf32>
    %15 = arith.addf %11, %14 : vector<8x1xf32>
    %16 = math.rsqrt %15 : vector<8x1xf32>
    %17 = vector.broadcast %16 : vector<8x1xf32> to vector<8x1024xf32>
    %18 = arith.mulf %13, %17 : vector<8x1024xf32>
    %cst_5 = arith.constant 0.000000e+00 : f32
    %19 = vector.broadcast %cst_5 : f32 to vector<8x1024xf32>
    %20 = arith.cmpf ogt, %18, %19 : vector<8x1024xf32>
    %cst_6 = arith.constant 0.00999999977 : f32
    %21 = vector.broadcast %cst_6 : f32 to vector<8x1024xf32>
    %22 = arith.mulf %21, %18 : vector<8x1024xf32>
    %23 = arith.select %20, %18, %22 : vector<8x1024xi1>, vector<8x1024xf32>
    %c0_7 = arith.constant 0 : index
    %c0_8 = arith.constant 0 : index
    %24 = vector.load %arg2[%c0_7, %c0_8] : memref<8x1024xf32, #tpu.memory_space<vmem>>, vector<8x1024xf32>
    tpu.vector_store %arg2[%c0_7, %c0_8], %23 {strides = array<i32>} : memref<8x1024xf32, #tpu.memory_space<vmem>>, vector<8x1024xf32>,
    return
  }
  func.func @transform_0(%arg0: i32) -> (i32, i32) {
    %c0_i32 = arith.constant 0 : i32
    %c0_i32_0 = arith.constant 0 : i32
    return %arg0, %c0_i32 : i32, i32
  }
  func.func @transform_1(%arg0: i32) -> (i32, i32) {
    %c0_i32 = arith.constant 0 : i32
    %c0_i32_0 = arith.constant 0 : i32
    return %arg0, %c0_i32 : i32, i32
  }
}

module attributes {stable_mosaic.version = 11 : i64} {
  func.func @kernel(%arg0: i32, %arg1: i32, %arg2: i32, %arg3: memref<8x256xbf16, #tpu.memory_space<vmem>>, %arg4: memref<256x512xbf16, #tpu.memory_space<vmem>>, %arg5: memref<8x1xf32, #tpu.memory_space<vmem>>, %arg6: memref<8x512xf32, #tpu.memory_space<vmem>>, %arg7: memref<8x512xf32, #tpu.memory_space<vmem>>) attributes {dimension_semantics = [#tpu.dimension_semantics<parallel>, #tpu.dimension_semantics<parallel>, #tpu.dimension_semantics<arbitrary>], iteration_bounds = array<i64: 1, 4, 1>, scalar_prefetch = 0 : i64, scratch_operands = 1 : i64, tpu.core_type = #tpu.core_type<tc>, window_params = [{transform_indices = @transform_0, window_bounds = array<i64: 8, 256>}, {transform_indices = @transform_1, window_bounds = array<i64: 256, 512>}, {transform_indices = @transform_2, window_bounds = array<i64: 8, 1>}, {transform_indices = @transform_3, window_bounds = array<i64: 8, 512>}]} {
    %c0_i32 = arith.constant 0 : i32
    %0 = arith.cmpi eq, %arg2, %c0_i32 : i32
    %1 = arith.extui %0 : i1 to i32
    %c0_i32_0 = arith.constant 0 : i32
    %2 = arith.cmpi ne, %1, %c0_i32_0 : i32
    scf.if %2 {
      %cst_10 = arith.constant 0.000000e+00 : f32
      %12 = vector.broadcast %cst_10 : f32 to vector<8x512xf32>
      %c0_11 = arith.constant 0 : index
      %c0_12 = arith.constant 0 : index
      %13 = vector.load %arg7[%c0_11, %c0_12] : memref<8x512xf32, #tpu.memory_space<vmem>>, vector<8x512xf32>
      tpu.vector_store %arg7[%c0_11, %c0_12], %12 {strides = array<i32>} : memref<8x512xf32, #tpu.memory_space<vmem>>, vector<8x512xf32>,
    } else {
    }
    %c0 = arith.constant 0 : index
    %c0_1 = arith.constant 0 : index
    %3 = vector.load %arg7[%c0, %c0_1] : memref<8x512xf32, #tpu.memory_space<vmem>>, vector<8x512xf32>
    %c0_2 = arith.constant 0 : index
    %c0_3 = arith.constant 0 : index
    %4 = vector.load %arg3[%c0_2, %c0_3] : memref<8x256xbf16, #tpu.memory_space<vmem>>, vector<8x256xbf16>
    %c0_4 = arith.constant 0 : index
    %c0_5 = arith.constant 0 : index
    %5 = vector.load %arg4[%c0_4, %c0_5] : memref<256x512xbf16, #tpu.memory_space<vmem>>, vector<256x512xbf16>
    %cst = arith.constant dense<0.000000e+00> : vector<8x512xf32>
    %6 = tpu.matmul %4, %5, %cst {dimension_numbers = #tpu.dot_dimension_numbers<[1], [0], [0], [1], [0, 0, 1, 1], [], []>} : vector<8x256xbf16>, vector<256x512xbf16>, vector<8x512xf32> -> vector<8x512xf32>
    %7 = arith.addf %3, %6 : vector<8x512xf32>
    %c0_6 = arith.constant 0 : index
    %c0_7 = arith.constant 0 : index
    %8 = vector.load %arg7[%c0_6, %c0_7] : memref<8x512xf32, #tpu.memory_space<vmem>>, vector<8x512xf32>
    tpu.vector_store %arg7[%c0_6, %c0_7], %7 {strides = array<i32>} : memref<8x512xf32, #tpu.memory_space<vmem>>, vector<8x512xf32>,
    %c0_i32_8 = arith.constant 0 : i32
    %9 = arith.cmpi eq, %arg2, %c0_i32_8 : i32
    %10 = arith.extui %9 : i1 to i32
    %c0_i32_9 = arith.constant 0 : i32
    %11 = arith.cmpi ne, %10, %c0_i32_9 : i32
    scf.if %11 {
      %c0_10 = arith.constant 0 : index
      %c0_11 = arith.constant 0 : index
      %12 = vector.load %arg7[%c0_10, %c0_11] : memref<8x512xf32, #tpu.memory_space<vmem>>, vector<8x512xf32>
      %c0_12 = arith.constant 0 : index
      %c0_13 = arith.constant 0 : index
      %13 = vector.load %arg5[%c0_12, %c0_13] : memref<8x1xf32, #tpu.memory_space<vmem>>, vector<8x1xf32>
      %14 = vector.broadcast %13 : vector<8x1xf32> to vector<8x512xf32>
      %15 = arith.addf %12, %14 : vector<8x512xf32>
      %16 = math.tanh %15 : vector<8x512xf32>
      %c0_14 = arith.constant 0 : index
      %c0_15 = arith.constant 0 : index
      %17 = vector.load %arg6[%c0_14, %c0_15] : memref<8x512xf32, #tpu.memory_space<vmem>>, vector<8x512xf32>
      tpu.vector_store %arg6[%c0_14, %c0_15], %16 {strides = array<i32>} : memref<8x512xf32, #tpu.memory_space<vmem>>, vector<8x512xf32>,
    } else {
    }
    return
  }
  func.func @transform_0(%arg0: i32, %arg1: i32, %arg2: i32) -> (i32, i32) {
    %c0_i32 = arith.constant 0 : i32
    return %arg0, %arg2 : i32, i32
  }
  func.func @transform_1(%arg0: i32, %arg1: i32, %arg2: i32) -> (i32, i32) {
    %c0_i32 = arith.constant 0 : i32
    return %arg2, %arg1 : i32, i32
  }
  func.func @transform_2(%arg0: i32, %arg1: i32, %arg2: i32) -> (i32, i32) {
    %c0_i32 = arith.constant 0 : i32
    %c0_i32_0 = arith.constant 0 : i32
    return %arg0, %c0_i32 : i32, i32
  }
  func.func @transform_3(%arg0: i32, %arg1: i32, %arg2: i32) -> (i32, i32) {
    %c0_i32 = arith.constant 0 : i32
    return %arg0, %arg1 : i32, i32
  }
}

</mosaic_0001>

<llo_original>
// kernel: generator_forward.43
$region0: #{generator_forward.43}
  #allocation0 [shape = 'u32[]', space=smem, size = 0x4, offset = 0x4, fixed_abs, tag = 'smem constant byte address 0x4 - core index']
  #allocation1 [shape = 'u32[72,128]{1,0:T(1,128)}', space=vmem, size = 0x9000, scoped, tag = 'internal scratch']
  %s0 = inlined_call_operand.vmem [shape: f32[16,1024], index: 0, kind: input, shape index: {}]
  %s1 = inlined_call_operand.vmem [shape: f32[16,1024], index: 1, kind: output, shape index: {}]
  %s2 = sld [smem:[#allocation0]]
  $region14: #{generator_forward.43} parent=0
    _
  %s4 = ssub.s32 1, %s2
  %s5 = scalar_select 0, %s4, %s2
  // Predicated region
  $region2: #{generator_forward.43} parent=0 // pred_check
    _
  $region3: #{generator_forward.43} parent=0 // pred_check_branch
    %7 = sbr.rel (0) target = $region5
  $region4: #{generator_forward.43} parent=0 // pred_region
    _
  $region5: #{generator_forward.43} parent=0 // pred_fallthru
    _
  %v8 = vld [vmem:[%s0] sm:$0xff]
  %v9 = vld [vmem:[%s0 + $0x8] sm:$0xff]
  %v10 = vld [vmem:[%s0 + $0x10] sm:$0xff]
  %v11 = vld [vmem:[%s0 + $0x18] sm:$0xff]
  %v12 = vld [vmem:[%s0 + $0x20] sm:$0xff]
  %v13 = vld [vmem:[%s0 + $0x28] sm:$0xff]
  %v14 = vld [vmem:[%s0 + $0x30] sm:$0xff]
  %v15 = vld [vmem:[%s0 + $0x38] sm:$0xff]
  %v16 = vld [vmem:[%s0 + $0x40] sm:$0xff]
  %v17 = vld [vmem:[%s0 + $0x48] sm:$0xff]
  %v18 = vld [vmem:[%s0 + $0x50] sm:$0xff]
  %v19 = vld [vmem:[%s0 + $0x58] sm:$0xff]
  %v20 = vld [vmem:[%s0 + $0x60] sm:$0xff]
  %v21 = vld [vmem:[%s0 + $0x68] sm:$0xff]
  %v22 = vld [vmem:[%s0 + $0x70] sm:$0xff]
  %v23 = vld [vmem:[%s0 + $0x78] sm:$0xff]
  %v24 = vadd.f32 %v8, %v9
  %v25 = vadd.f32 %v24, %v10
  %v26 = vadd.f32 %v25, %v11
  %v27 = vadd.f32 %v26, %v12
  %v28 = vadd.f32 %v27, %v13
  %v29 = vadd.f32 %v28, %v14
  %v30 = vadd.f32 %v29, %v15
  %31 = vadd.xlane.f32.xlu0 %v30
  %v32 = vpop.xlane.xlu0 %31
  %v33 = vadd.f32 %v16, %v17
  %v34 = vadd.f32 %v33, %v18
  %v35 = vadd.f32 %v34, %v19
  %v36 = vadd.f32 %v35, %v20
  %v37 = vadd.f32 %v36, %v21
  %v38 = vadd.f32 %v37, %v22
  %v39 = vadd.f32 %v38, %v23
  %40 = vadd.xlane.f32.xlu0 %v39
  %v41 = vpop.xlane.xlu0 %40
  %v42 = vrcp.pop 1024.0
  %v43 = vmul.f32 1024.0, %v42
  %v44 = vsub.f32 1.0, %v43
  %v45 = vmul.f32 %v42, %v44
  %v46 = vadd.f32 %v42, %v45
  %vm47 = vweird.f32 %v42
  %v48 = vsel %vm47, %v42, %v46
  %v49 = vmul.f32 %v32, %v48
  %v50 = vmul.f32 %v41, %v48
  %v51 = vsub.f32 %v8, %v49
  %v52 = vsub.f32 %v9, %v49
  %v53 = vsub.f32 %v10, %v49
  %v54 = vsub.f32 %v11, %v49
  %v55 = vsub.f32 %v12, %v49
  %v56 = vsub.f32 %v13, %v49
  %v57 = vsub.f32 %v14, %v49
  %v58 = vsub.f32 %v15, %v49
  %v59 = vsub.f32 %v16, %v50
  %v60 = vsub.f32 %v17, %v50
  %v61 = vsub.f32 %v18, %v50
  %v62 = vsub.f32 %v19, %v50
  %v63 = vsub.f32 %v20, %v50
  %v64 = vsub.f32 %v21, %v50
  %v65 = vsub.f32 %v22, %v50
  %v66 = vsub.f32 %v23, %v50
  %v67 = vmul.f32 %v51, %v51
  %v68 = vmul.f32 %v52, %v52
  %v69 = vmul.f32 %v53, %v53
  %v70 = vmul.f32 %v54, %v54
  %v71 = vmul.f32 %v55, %v55
  %v72 = vmul.f32 %v56, %v56
  %v73 = vmul.f32 %v57, %v57
  %v74 = vmul.f32 %v58, %v58
  %v75 = vmul.f32 %v59, %v59
  %v76 = vmul.f32 %v60, %v60
  %v77 = vmul.f32 %v61, %v61
  %v78 = vmul.f32 %v62, %v62
  %v79 = vmul.f32 %v63, %v63
  %v80 = vmul.f32 %v64, %v64
  %v81 = vmul.f32 %v65, %v65
  %v82 = vmul.f32 %v66, %v66
  %v83 = vadd.f32 %v67, %v68
  %v84 = vadd.f32 %v83, %v69
  %v85 = vadd.f32 %v84, %v70
  %v86 = vadd.f32 %v85, %v71
  %v87 = vadd.f32 %v86, %v72
  %v88 = vadd.f32 %v87, %v73
  %v89 = vadd.f32 %v88, %v74
  %90 = vadd.xlane.f32.xlu0 %v89
  %v91 = vpop.xlane.xlu0 %90
  %v92 = vadd.f32 %v75, %v76
  %v93 = vadd.f32 %v92, %v77
  %v94 = vadd.f32 %v93, %v78
  %v95 = vadd.f32 %v94, %v79
  %v96 = vadd.f32 %v95, %v80
  %v97 = vadd.f32 %v96, %v81
  %v98 = vadd.f32 %v97, %v82
  %99 = vadd.xlane.f32.xlu0 %v98
  %v100 = vpop.xlane.xlu0 %99
  %v101 = vmul.f32 %v91, %v48
  %v102 = vmul.f32 %v100, %v48
  %v103 = vadd.f32 %v101, 1e-05
  %v104 = vadd.f32 %v102, 1e-05
  %v105 = vrsqrt.pop %v103
  %v106 = vmul.f32 %v105, %v103
  %v107 = vmul.f32 %v106, %v105
  %v108 = vmul.f32 0.5, %v107
  %v109 = vsub.f32 1.5, %v108
  %v110 = vmul.f32 %v105, %v109
  %vm111 = vweird.f32 %v103
  %vm112 = vweird.f32 %v105
  %vm113 = vmor %vm111, %vm112
  %v114 = vsel %vm113, %v105, %v110
  %v115 = vrsqrt.pop %v104
  %v116 = vmul.f32 %v115, %v104
  %v117 = vmul.f32 %v116, %v115
  %v118 = vmul.f32 0.5, %v117
  %v119 = vsub.f32 1.5, %v118
  %v120 = vmul.f32 %v115, %v119
  %vm121 = vweird.f32 %v104
  %vm122 = vweird.f32 %v115
  %vm123 = vmor %vm121, %vm122
  %v124 = vsel %vm123, %v115, %v120
  %v125 = vmul.f32 %v51, %v114
  %v126 = vmul.f32 %v52, %v114
  %v127 = vmul.f32 %v53, %v114
  %v128 = vmul.f32 %v54, %v114
  %v129 = vmul.f32 %v55, %v114
  %v130 = vmul.f32 %v56, %v114
  %v131 = vmul.f32 %v57, %v114
  %v132 = vmul.f32 %v58, %v114
  %v133 = vmul.f32 %v59, %v124
  %v134 = vmul.f32 %v60, %v124
  %v135 = vmul.f32 %v61, %v124
  %v136 = vmul.f32 %v62, %v124
  %v137 = vmul.f32 %v63, %v124
  %v138 = vmul.f32 %v64, %v124
  %v139 = vmul.f32 %v65, %v124
  %v140 = vmul.f32 %v66, %v124
  %vm141 = vcmp.gt.f32.partialorder %v125, 0.0
  %vm142 = vcmp.gt.f32.partialorder %v126, 0.0
  %vm143 = vcmp.gt.f32.partialorder %v127, 0.0
  %vm144 = vcmp.gt.f32.partialorder %v128, 0.0
  %vm145 = vcmp.gt.f32.partialorder %v129, 0.0
  %vm146 = vcmp.gt.f32.partialorder %v130, 0.0
  %vm147 = vcmp.gt.f32.partialorder %v131, 0.0
  %vm148 = vcmp.gt.f32.partialorder %v132, 0.0
  %vm149 = vcmp.gt.f32.partialorder %v133, 0.0
  %vm150 = vcmp.gt.f32.partialorder %v134, 0.0
  %vm151 = vcmp.gt.f32.partialorder %v135, 0.0
  %vm152 = vcmp.gt.f32.partialorder %v136, 0.0
  %vm153 = vcmp.gt.f32.partialorder %v137, 0.0
  %vm154 = vcmp.gt.f32.partialorder %v138, 0.0
  %vm155 = vcmp.gt.f32.partialorder %v139, 0.0
  %vm156 = vcmp.gt.f32.partialorder %v140, 0.0
  %v157 = vmul.f32 %v125, 0.01
  %v158 = vmul.f32 %v126, 0.01
  %v159 = vmul.f32 %v127, 0.01
  %v160 = vmul.f32 %v128, 0.01
  %v161 = vmul.f32 %v129, 0.01
  %v162 = vmul.f32 %v130, 0.01
  %v163 = vmul.f32 %v131, 0.01
  %v164 = vmul.f32 %v132, 0.01
  %v165 = vmul.f32 %v133, 0.01
  %v166 = vmul.f32 %v134, 0.01
  %v167 = vmul.f32 %v135, 0.01
  %v168 = vmul.f32 %v136, 0.01
  %v169 = vmul.f32 %v137, 0.01
  %v170 = vmul.f32 %v138, 0.01
  %v171 = vmul.f32 %v139, 0.01
  %v172 = vmul.f32 %v140, 0.01
  %v173 = vsel %vm141, %v125, %v157
  %v174 = vsel %vm142, %v126, %v158
  %v175 = vsel %vm143, %v127, %v159
  %v176 = vsel %vm144, %v128, %v160
  %v177 = vsel %vm145, %v129, %v161
  %v178 = vsel %vm146, %v130, %v162
  %v179 = vsel %vm147, %v131, %v163
  %v180 = vsel %vm148, %v132, %v164
  %v181 = vsel %vm149, %v133, %v165
  %v182 = vsel %vm150, %v134, %v166
  %v183 = vsel %vm151, %v135, %v167
  %v184 = vsel %vm152, %v136, %v168
  %v185 = vsel %vm153, %v137, %v169
  %v186 = vsel %vm154, %v138, %v170
  %v187 = vsel %vm155, %v139, %v171
  %v188 = vsel %vm156, %v140, %v172
  %189 = vst [vmem:[%s1] sm:$0xff] %v173
  %190 = vst [vmem:[%s1 + $0x8] sm:$0xff] %v174
  %191 = vst [vmem:[%s1 + $0x10] sm:$0xff] %v175
  %192 = vst [vmem:[%s1 + $0x18] sm:$0xff] %v176
  %193 = vst [vmem:[%s1 + $0x20] sm:$0xff] %v177
  %194 = vst [vmem:[%s1 + $0x28] sm:$0xff] %v178
  %195 = vst [vmem:[%s1 + $0x30] sm:$0xff] %v179
  %196 = vst [vmem:[%s1 + $0x38] sm:$0xff] %v180
  %197 = vst [vmem:[%s1 + $0x40] sm:$0xff] %v181
  %198 = vst [vmem:[%s1 + $0x48] sm:$0xff] %v182
  %199 = vst [vmem:[%s1 + $0x50] sm:$0xff] %v183
  %200 = vst [vmem:[%s1 + $0x58] sm:$0xff] %v184
  %201 = vst [vmem:[%s1 + $0x60] sm:$0xff] %v185
  %202 = vst [vmem:[%s1 + $0x68] sm:$0xff] %v186
  %203 = vst [vmem:[%s1 + $0x70] sm:$0xff] %v187
  %204 = vst [vmem:[%s1 + $0x78] sm:$0xff] %v188
  // Predicated region
  $region6: #{generator_forward.43} parent=0 // pred_check
    _
  $region7: #{generator_forward.43} parent=0 // pred_check_branch
    %206 = sbr.rel (0) target = $region9
  $region8: #{generator_forward.43} parent=0 // pred_region
    _
  $region9: #{generator_forward.43} parent=0 // pred_fallthru
    _
  // Predicated region
  $region10: #{generator_forward.43} parent=0 // pred_check
    _
  $region11: #{generator_forward.43} parent=0 // pred_check_branch
    %208 = sbr.rel (0) target = $region13
  $region12: #{generator_forward.43} parent=0 // pred_region
    _
  $region13: #{generator_forward.43} parent=0 // pred_fallthru
    _

// kernel: generator_forward.42
$region0: #{generator_forward.42}
  #allocation0 [shape = 'u32[]', space=smem, size = 0x4, offset = 0x4, fixed_abs, tag = 'smem constant byte address 0x4 - core index']
  #allocation1 [shape = 'u32[72,128]{1,0:T(1,128)}', space=vmem, size = 0x9000, scoped, tag = 'internal scratch']
  #allocation2 [shape = 'f32[8,512]{1,0:T(8,128)}', space=vmem, size = 0x4000, scoped, tag = 'scratch operand']
  %s0 = inlined_call_operand.vmem [shape: bf16[8,256], index: 0, kind: input, shape index: {}]
  %s1 = inlined_call_operand.vmem [shape: bf16[256,2048], index: 1, kind: input, shape index: {}]
  %s2 = inlined_call_operand.vmem [shape: f32[8,1], index: 2, kind: input, shape index: {}]
  %s3 = inlined_call_operand.vmem [shape: f32[8,2048], index: 3, kind: output, shape index: {}]
  %s4 = sld [smem:[#allocation0]]
  $region76: #{generator_forward.42} parent=0
    _
  %s6 = ssub.s32 1, %s4
  %s7 = scalar_select 0, %s6, %s4
  $region1: #{generator_forward.42} parent=0
    #allocation3 [shape = 'u8[524288]{0}', space=vmem, size = 0x80000, scoped, tag = 'input window, operand 1']
    loop: start=0, step=1, limit=6
    $region2: #{generator_forward.42} parent=1 // loop_pre_header
      _
    $region3: #{generator_forward.42} parent=1 // loop_header
      %s9 = sphi 0, %s13
      %p10 = scmp.ge.s32.totalorder %s9, 6
      %s16 = sphi 0, %s35
      %s17 = sphi 0, %s31
      %s18 = sphi 0, %s27
      %s19 = sphi 0, %s16
      %s20 = sphi 0, %s17
      %s21 = sphi 0, %s18
      %s22 = sphi 0, %s19
      %s23 = sphi 0, %s20
      %s24 = sphi 0, %s21
      %s40 = sphi 0, %s42
      %s43 = sphi 0, %s40
      %s44 = sphi 0, %s43
      %s60 = sphi 0, %s44
      %s68 = sphi 0, %s70
      %s71 = sphi 0, %s68
      %s72 = sphi 0, %s71
      %s88 = sphi 0, %s72
      %s94 = sphi 0, %s96
      %s97 = sphi 0, %s94
      %s98 = sphi 0, %s97
      %s114 = sphi 0, %s98
      %s122 = sphi 0, %s124
      %s125 = sphi 0, %s122
      %s126 = sphi 0, %s125
      %s142 = sphi 0, %s126
    $region4: #{generator_forward.42} parent=1 // loop_header_branch
      %12 = sbr.rel (%p10) target = $region8
    $region5: #{generator_forward.42} parent=1 // loop_body
      %s14 = ssub.s32 %s9, 1
      %s15 = ssub.s32 %s9, 2
      %s25 = sadd.s32 1, %s18
      %p26 = scmp.ge.s32.totalorder %s25, 1
      %s27 = scalar_select %p26, 0, %s25
      %s28 = sadd.s32 1, %s17
      %s29 = scalar_select %p26, %s28, %s17
      %p30 = scmp.ge.s32.totalorder %s29, 4
      %s31 = scalar_select %p30, 0, %s29
      %s32 = sadd.s32 1, %s16
      %s33 = scalar_select %p30, %s32, %s16
      %p34 = scmp.ge.s32.totalorder %s33, 1
      %s35 = scalar_select %p34, 0, %s33
      %s36 = ssub.s32 %s16, %s35
      %s37 = ssub.s32 %s18, %s27
      %s38 = sor.u32 %s36, %s37
      %p39 = scmp.eq.s32.totalorder %s38, 0
      %s41 = sadd.s32 %s40, 1
      %s42 = scalar_select %p39, %s40, %s41
      %p45 = pneg %p39
      %p46 = scmp.eq.s32.totalorder %s9, 3
      %p47 = por %p45, %p46
      %p48 = scmp.ne.s32.totalorder %s40, %s43
      %p49 = scmp.eq.s32.totalorder %s9, 0
      %p50 = por %p48, %p49
      %p51 = scmp.ne.s32.totalorder %s40, %s43
      %p52 = scmp.eq.s32.totalorder %s14, 3
      %p53 = por %p51, %p52
      %p54 = scmp.ne.s32.totalorder %s43, %s44
      %p55 = scmp.eq.s32.totalorder %s14, 0
      %p56 = por %p54, %p55
      %p57 = scmp.ne.s32.totalorder %s43, %s44
      %p58 = scmp.eq.s32.totalorder %s15, 3
      %p59 = por %p57, %p58
      %p61 = scmp.ne.s32.totalorder %s44, %s60
      %p62 = scmp.eq.s32.totalorder %s15, 0
      %p63 = por %p61, %p62
      %s64 = ssub.s32 %s18, %s27
      %s65 = ssub.s32 %s17, %s31
      %s66 = sor.u32 %s64, %s65
      %p67 = scmp.eq.s32.totalorder %s66, 0
      %s69 = sadd.s32 %s68, 1
      %s70 = scalar_select %p67, %s68, %s69
      %p73 = pneg %p67
      %p74 = scmp.eq.s32.totalorder %s9, 3
      %p75 = por %p73, %p74
      %p76 = scmp.ne.s32.totalorder %s68, %s71
      %p77 = scmp.eq.s32.totalorder %s9, 0
      %p78 = por %p76, %p77
      %p79 = scmp.ne.s32.totalorder %s68, %s71
      %p80 = scmp.eq.s32.totalorder %s14, 3
      %p81 = por %p79, %p80
      %p82 = scmp.ne.s32.totalorder %s71, %s72
      %p83 = scmp.eq.s32.totalorder %s14, 0
      %p84 = por %p82, %p83
      %p85 = scmp.ne.s32.totalorder %s71, %s72
      %p86 = scmp.eq.s32.totalorder %s15, 3
      %p87 = por %p85, %p86
      %p89 = scmp.ne.s32.totalorder %s72, %s88
      %p90 = scmp.eq.s32.totalorder %s15, 0
      %p91 = por %p89, %p90
      %s92 = ssub.s32 %s16, %s35
      %p93 = scmp.eq.s32.totalorder %s92, 0
      %s95 = sadd.s32 %s94, 1
      %s96 = scalar_select %p93, %s94, %s95
      %p99 = pneg %p93
      %p100 = scmp.eq.s32.totalorder %s9, 3
      %p101 = por %p99, %p100
      %p102 = scmp.ne.s32.totalorder %s94, %s97
      %p103 = scmp.eq.s32.totalorder %s9, 0
      %p104 = por %p102, %p103
      %p105 = scmp.ne.s32.totalorder %s94, %s97
      %p106 = scmp.eq.s32.totalorder %s14, 3
      %p107 = por %p105, %p106
      %p108 = scmp.ne.s32.totalorder %s97, %s98
      %p109 = scmp.eq.s32.totalorder %s14, 0
      %p110 = por %p108, %p109
      %p111 = scmp.ne.s32.totalorder %s97, %s98
      %p112 = scmp.eq.s32.totalorder %s15, 3
      %p113 = por %p111, %p112
      %p115 = scmp.ne.s32.totalorder %s98, %s114
      %p116 = scmp.eq.s32.totalorder %s15, 0
      %p117 = por %p115, %p116
      %s118 = ssub.s32 %s16, %s35
      %s119 = ssub.s32 %s17, %s31
      %s120 = sor.u32 %s118, %s119
      %p121 = scmp.eq.s32.totalorder %s120, 0
      %s123 = sadd.s32 %s122, 1
      %s124 = scalar_select %p121, %s122, %s123
      %p127 = pneg %p121
      %p128 = scmp.eq.s32.totalorder %s9, 3
      %p129 = por %p127, %p128
      %p130 = scmp.ne.s32.totalorder %s122, %s125
      %p131 = scmp.eq.s32.totalorder %s9, 0
      %p132 = por %p130, %p131
      %p133 = scmp.ne.s32.totalorder %s122, %s125
      %p134 = scmp.eq.s32.totalorder %s14, 3
      %p135 = por %p133, %p134
      %p136 = scmp.ne.s32.totalorder %s125, %s126
      %p137 = scmp.eq.s32.totalorder %s14, 0
      %p138 = por %p136, %p137
      %p139 = scmp.ne.s32.totalorder %s125, %s126
      %p140 = scmp.eq.s32.totalorder %s15, 3
      %p141 = por %p139, %p140
      %p143 = scmp.ne.s32.totalorder %s126, %s142
      %p144 = scmp.eq.s32.totalorder %s15, 0
      %p145 = por %p143, %p144
      %p146 = scmp.le.s32.totalorder 1, %s9
      %p147 = scmp.lt.s32.totalorder %s9, 5
      %p148 = pnand %p146, %p147
      %p149 = pneg %p148
      // Predicated region
      $region9: #{generator_forward.42} parent=5 // pred_check
        _
      $region10: #{generator_forward.42} parent=5 // pred_check_branch
        %151 = sbr.rel (%p148) target = $region12
      $region11: #{generator_forward.42} parent=5 // pred_region
        %s152 = ssub.s32 %s9, 1
        // Predicated region
        $region13: #{generator_forward.42} parent=11 // pred_check
          %p153 = pneg %p56
        $region14: #{generator_forward.42} parent=11 // pred_check_branch
          %155 = sbr.rel (%p153) target = $region16
        $region15: #{generator_forward.42} parent=11 // pred_region
          %s156 = smul.u32 2, %s21
          %p157 = scmp.lt.s32.totalorder %s19, 0
          %s158 = scalar_select %p157, %s19, 0
          %p159 = scmp.lt.s32.totalorder %s156, 1
          %s160 = scalar_select %p159, %s156, 1
          %s161 = smul.addr %s158, 2
          %s162 = sadd.s32 %s160, %s161
          %s163 = smul.addr %s162, 4
          %s164 = scalar_lea.vmem %s0, %s163
          %s165 = smul.u32 2, %s21
        $region16: #{generator_forward.42} parent=11 // pred_fallthru
          _
        // Predicated region
        $region17: #{generator_forward.42} parent=11 // pred_check
          %p166 = pneg %p110
        $region18: #{generator_forward.42} parent=11 // pred_check_branch
          %168 = sbr.rel (%p166) target = $region20
        $region19: #{generator_forward.42} parent=11 // pred_region
          %p169 = scmp.lt.s32.totalorder %s19, 0
          %s170 = scalar_select %p169, %s19, 0
          %s171 = smul.addr %s170, 8
          %s172 = scalar_lea.vmem %s2, %s171
        $region20: #{generator_forward.42} parent=11 // pred_fallthru
          _
      $region12: #{generator_forward.42} parent=5 // pred_fallthru
        _
      %p173 = scmp.lt.s32.totalorder %s9, 4
      // Predicated region
      $region21: #{generator_forward.42} parent=5 // pred_check
        %p174 = pneg %p173
      $region22: #{generator_forward.42} parent=5 // pred_check_branch
        %176 = sbr.rel (%p174) target = $region24
      $region23: #{generator_forward.42} parent=5 // pred_region
        // Predicated region
        $region25: #{generator_forward.42} parent=23 // pred_check
          %p177 = pneg %p78
        $region26: #{generator_forward.42} parent=23 // pred_check_branch
          %179 = sbr.rel (%p177) target = $region28
        $region27: #{generator_forward.42} parent=23 // pred_region
          %s180 = sand.u32 %s68, 1
          %s181 = sand.u32 %s68, 1
          %s182 = smul.addr %s181, 512
          %s183 = scalar_lea.vmem [#allocation3], %s182
          %s184 = smul.u32 32, %s18
          %s185 = smul.u32 4, %s17
          %s186 = smul.addr %s184, 16
          %s187 = sadd.s32 %s185, %s186
          %s188 = smul.addr %s187, 4
          %s189 = scalar_lea.vmem %s1, %s188
          // Predicated region
          $region29: #{generator_forward.42} parent=27 // pred_check
            _
          $region30: #{generator_forward.42} parent=27 // pred_check_branch
            %191 = sbr.rel (0) target = $region32
          $region31: #{generator_forward.42} parent=27 // pred_region
            // Predicated region
            $region33: #{generator_forward.42} parent=31 // pred_check
              _
            $region34: #{generator_forward.42} parent=31 // pred_check_branch
              %193 = sbr.rel (0) target = $region36
            $region35: #{generator_forward.42} parent=31 // pred_region
              loop: start=0, step=1, limit=1
              $region37: #{generator_forward.42} parent=35 // loop_pre_header
                _
              $region38: #{generator_forward.42} parent=35 // loop_header
                %s195 = sphi 0, %s199
                %p196 = scmp.ge.s32.totalorder %s195, 1
                %s200 = sphi %s189, %s189
                %s201 = sphi %s183, %s183
              $region39: #{generator_forward.42} parent=35 // loop_header_branch
                %198 = sbr.rel (%p196) target = $region43
              $region40: #{generator_forward.42} parent=35 // loop_body
                %v202 = vld [vmem:[%s200] sm:$0xff]
                %203 = vst [vmem:[%s201] sm:$0xff] %v202
                %v204 = vld [vmem:[%s200 + $0x8] sm:$0xff]
                %205 = vst [vmem:[%s201 + $0x8] sm:$0xff] %v204
                %v206 = vld [vmem:[%s200 + $0x40] sm:$0xff]
                %207 = vst [vmem:[%s201 + $0x10] sm:$0xff] %v206
                %v208 = vld [vmem:[%s200 + $0x48] sm:$0xff]
                %209 = vst [vmem:[%s201 + $0x18] sm:$0xff] %v208
                %v210 = vld [vmem:[%s200 + $0x80] sm:$0xff]
                %211 = vst [vmem:[%s201 + $0x20] sm:$0xff] %v210
                %v212 = vld [vmem:[%s200 + $0x88] sm:$0xff]
                %213 = vst [vmem:[%s201 + $0x28] sm:$0xff] %v212
                %v214 = vld [vmem:[%s200 + $0xc0] sm:$0xff]
                %215 = vst [vmem:[%s201 + $0x30] sm:$0xff] %v214
                %v216 = vld [vmem:[%s200 + $0xc8] sm:$0xff]
                %217 = vst [vmem:[%s201 + $0x38] sm:$0xff] %v216
                %v218 = vld [vmem:[%s200 + $0x100] sm:$0xff]
                %219 = vst [vmem:[%s201 + $0x40] sm:$0xff] %v218
                %v220 = vld [vmem:[%s200 + $0x108] sm:$0xff]
                %221 = vst [vmem:[%s201 + $0x48] sm:$0xff] %v220
                %v222 = vld [vmem:[%s200 + $0x140] sm:$0xff]
                %223 = vst [vmem:[%s201 + $0x50] sm:$0xff] %v222
                %v224 = vld [vmem:[%s200 + $0x148] sm:$0xff]
                %225 = vst [vmem:[%s201 + $0x58] sm:$0xff] %v224
                %v226 = vld [vmem:[%s200 + $0x180] sm:$0xff]
                %227 = vst [vmem:[%s201 + $0x60] sm:$0xff] %v226
                %v228 = vld [vmem:[%s200 + $0x188] sm:$0xff]
                %229 = vst [vmem:[%s201 + $0x68] sm:$0xff] %v228
                %v230 = vld [vmem:[%s200 + $0x1c0] sm:$0xff]
                %231 = vst [vmem:[%s201 + $0x70] sm:$0xff] %v230
                %v232 = vld [vmem:[%s200 + $0x1c8] sm:$0xff]
                %233 = vst [vmem:[%s201 + $0x78] sm:$0xff] %v232
                %v234 = vld [vmem:[%s200 + $0x200] sm:$0xff]
                %235 = vst [vmem:[%s201 + $0x80] sm:$0xff] %v234
                %v236 = vld [vmem:[%s200 + $0x208] sm:$0xff]
                %237 = vst [vmem:[%s201 + $0x88] sm:$0xff] %v236
                %v238 = vld [vmem:[%s200 + $0x240] sm:$0xff]
                %239 = vst [vmem:[%s201 + $0x90] sm:$0xff] %v238
                %v240 = vld [vmem:[%s200 + $0x248] sm:$0xff]
                %241 = vst [vmem:[%s201 + $0x98] sm:$0xff] %v240
                %v242 = vld [vmem:[%s200 + $0x280] sm:$0xff]
                %243 = vst [vmem:[%s201 + $0xa0] sm:$0xff] %v242
                %v244 = vld [vmem:[%s200 + $0x288] sm:$0xff]
                %245 = vst [vmem:[%s201 + $0xa8] sm:$0xff] %v244
                %v246 = vld [vmem:[%s200 + $0x2c0] sm:$0xff]
                %247 = vst [vmem:[%s201 + $0xb0] sm:$0xff] %v246
                %v248 = vld [vmem:[%s200 + $0x2c8] sm:$0xff]
                %249 = vst [vmem:[%s201 + $0xb8] sm:$0xff] %v248
                %v250 = vld [vmem:[%s200 + $0x300] sm:$0xff]
                %251 = vst [vmem:[%s201 + $0xc0] sm:$0xff] %v250
                %v252 = vld [vmem:[%s200 + $0x308] sm:$0xff]
                %253 = vst [vmem:[%s201 + $0xc8] sm:$0xff] %v252
                %v254 = vld [vmem:[%s200 + $0x340] sm:$0xff]
                %255 = vst [vmem:[%s201 + $0xd0] sm:$0xff] %v254
                %v256 = vld [vmem:[%s200 + $0x348] sm:$0xff]
                %257 = vst [vmem:[%s201 + $0xd8] sm:$0xff] %v256
                %v258 = vld [vmem:[%s200 + $0x380] sm:$0xff]
                %259 = vst [vmem:[%s201 + $0xe0] sm:$0xff] %v258
                %v260 = vld [vmem:[%s200 + $0x388] sm:$0xff]
                %261 = vst [vmem:[%s201 + $0xe8] sm:$0xff] %v260
                %v262 = vld [vmem:[%s200 + $0x3c0] sm:$0xff]
                %263 = vst [vmem:[%s201 + $0xf0] sm:$0xff] %v262
                %v264 = vld [vmem:[%s200 + $0x3c8] sm:$0xff]
                %265 = vst [vmem:[%s201 + $0xf8] sm:$0xff] %v264
                %v266 = vld [vmem:[%s200 + $0x400] sm:$0xff]
                %267 = vst [vmem:[%s201 + $0x100] sm:$0xff] %v266
                %v268 = vld [vmem:[%s200 + $0x408] sm:$0xff]
                %269 = vst [vmem:[%s201 + $0x108] sm:$0xff] %v268
                %v270 = vld [vmem:[%s200 + $0x440] sm:$0xff]
                %271 = vst [vmem:[%s201 + $0x110] sm:$0xff] %v270
                %v272 = vld [vmem:[%s200 + $0x448] sm:$0xff]
                %273 = vst [vmem:[%s201 + $0x118] sm:$0xff] %v272
                %v274 = vld [vmem:[%s200 + $0x480] sm:$0xff]
                %275 = vst [vmem:[%s201 + $0x120] sm:$0xff] %v274
                %v276 = vld [vmem:[%s200 + $0x488] sm:$0xff]
                %277 = vst [vmem:[%s201 + $0x128] sm:$0xff] %v276
                %v278 = vld [vmem:[%s200 + $0x4c0] sm:$0xff]
                %279 = vst [vmem:[%s201 + $0x130] sm:$0xff] %v278
                %v280 = vld [vmem:[%s200 + $0x4c8] sm:$0xff]
                %281 = vst [vmem:[%s201 + $0x138] sm:$0xff] %v280
                %v282 = vld [vmem:[%s200 + $0x500] sm:$0xff]
                %283 = vst [vmem:[%s201 + $0x140] sm:$0xff] %v282
                %v284 = vld [vmem:[%s200 + $0x508] sm:$0xff]
                %285 = vst [vmem:[%s201 + $0x148] sm:$0xff] %v284
                %v286 = vld [vmem:[%s200 + $0x540] sm:$0xff]
                %287 = vst [vmem:[%s201 + $0x150] sm:$0xff] %v286
                %v288 = vld [vmem:[%s200 + $0x548] sm:$0xff]
                %289 = vst [vmem:[%s201 + $0x158] sm:$0xff] %v288
                %v290 = vld [vmem:[%s200 + $0x580] sm:$0xff]
                %291 = vst [vmem:[%s201 + $0x160] sm:$0xff] %v290
                %v292 = vld [vmem:[%s200 + $0x588] sm:$0xff]
                %293 = vst [vmem:[%s201 + $0x168] sm:$0xff] %v292
                %v294 = vld [vmem:[%s200 + $0x5c0] sm:$0xff]
                %295 = vst [vmem:[%s201 + $0x170] sm:$0xff] %v294
                %v296 = vld [vmem:[%s200 + $0x5c8] sm:$0xff]
                %297 = vst [vmem:[%s201 + $0x178] sm:$0xff] %v296
                %v298 = vld [vmem:[%s200 + $0x600] sm:$0xff]
                %299 = vst [vmem:[%s201 + $0x180] sm:$0xff] %v298
                %v300 = vld [vmem:[%s200 + $0x608] sm:$0xff]
                %301 = vst [vmem:[%s201 + $0x188] sm:$0xff] %v300
                %v302 = vld [vmem:[%s200 + $0x640] sm:$0xff]
                %303 = vst [vmem:[%s201 + $0x190] sm:$0xff] %v302
                %v304 = vld [vmem:[%s200 + $0x648] sm:$0xff]
                %305 = vst [vmem:[%s201 + $0x198] sm:$0xff] %v304
                %v306 = vld [vmem:[%s200 + $0x680] sm:$0xff]
                %307 = vst [vmem:[%s201 + $0x1a0] sm:$0xff] %v306
                %v308 = vld [vmem:[%s200 + $0x688] sm:$0xff]
                %309 = vst [vmem:[%s201 + $0x1a8] sm:$0xff] %v308
                %v310 = vld [vmem:[%s200 + $0x6c0] sm:$0xff]
                %311 = vst [vmem:[%s201 + $0x1b0] sm:$0xff] %v310
                %v312 = vld [vmem:[%s200 + $0x6c8] sm:$0xff]
                %313 = vst [vmem:[%s201 + $0x1b8] sm:$0xff] %v312
                %v314 = vld [vmem:[%s200 + $0x700] sm:$0xff]
                %315 = vst [vmem:[%s201 + $0x1c0] sm:$0xff] %v314
                %v316 = vld [vmem:[%s200 + $0x708] sm:$0xff]
                %317 = vst [vmem:[%s201 + $0x1c8] sm:$0xff] %v316
                %v318 = vld [vmem:[%s200 + $0x740] sm:$0xff]
                %319 = vst [vmem:[%s201 + $0x1d0] sm:$0xff] %v318
                %v320 = vld [vmem:[%s200 + $0x748] sm:$0xff]
                %321 = vst [vmem:[%s201 + $0x1d8] sm:$0xff] %v320
                %v322 = vld [vmem:[%s200 + $0x780] sm:$0xff]
                %323 = vst [vmem:[%s201 + $0x1e0] sm:$0xff] %v322
                %v324 = vld [vmem:[%s200 + $0x788] sm:$0xff]
                %325 = vst [vmem:[%s201 + $0x1e8] sm:$0xff] %v324
                %v326 = vld [vmem:[%s200 + $0x7c0] sm:$0xff]
                %327 = vst [vmem:[%s201 + $0x1f0] sm:$0xff] %v326
                %v328 = vld [vmem:[%s200 + $0x7c8] sm:$0xff]
                %329 = vst [vmem:[%s201 + $0x1f8] sm:$0xff] %v328
              $region41: #{generator_forward.42} parent=35 // loop_footer
                %s199 = sadd.s32 1, %s195
              $region42: #{generator_forward.42} parent=35 // loop_footer_branch
                %194 = sbr.rel target = $region38
              $region43: #{generator_forward.42} parent=35 // loop_exit
                _
            $region36: #{generator_forward.42} parent=31 // pred_fallthru
              _
            // Predicated region
            $region44: #{generator_forward.42} parent=31 // pred_check
              _
            $region45: #{generator_forward.42} parent=31 // pred_check_branch
              %331 = sbr.rel target = $region47
            $region46: #{generator_forward.42} parent=31 // pred_region
              _
            $region47: #{generator_forward.42} parent=31 // pred_fallthru
              _
          $region32: #{generator_forward.42} parent=27 // pred_fallthru
            _
          %332 = vnop
        $region28: #{generator_forward.42} parent=23 // pred_fallthru
          _
      $region24: #{generator_forward.42} parent=5 // pred_fallthru
        _
      %p333 = scmp.le.s32.totalorder 1, %s9
      %p334 = scmp.lt.s32.totalorder %s9, 5
      %p335 = pnand %p333, %p334
      %p336 = pneg %p335
      // Predicated region
      $region48: #{generator_forward.42} parent=5 // pred_check
        _
      $region49: #{generator_forward.42} parent=5 // pred_check_branch
        %338 = sbr.rel (%p335) target = $region51
      $region50: #{generator_forward.42} parent=5 // pred_region
        %s339 = ssub.s32 %s9, 1
        %s340 = sand.u32 %s71, 1
        %s341 = sand.u32 %s71, 1
        %s342 = smul.addr %s341, 512
        %s343 = scalar_lea.vmem [#allocation3], %s342
        // Predicated region
        $region52: #{generator_forward.42} parent=50 // pred_check
          %p344 = pneg %p84
        $region53: #{generator_forward.42} parent=50 // pred_check_branch
          %346 = sbr.rel (%p344) target = $region55
        $region54: #{generator_forward.42} parent=50 // pred_region
          _
        $region55: #{generator_forward.42} parent=50 // pred_fallthru
          _
        %s347 = smul.u32 2, %s21
        %p348 = scmp.lt.s32.totalorder %s19, 0
        %s349 = scalar_select %p348, %s19, 0
        %p350 = scmp.lt.s32.totalorder %s347, 1
        %s351 = scalar_select %p350, %s347, 1
        %s352 = smul.addr %s349, 2
        %s353 = sadd.s32 %s351, %s352
        %s354 = smul.addr %s353, 4
        %s355 = scalar_lea.vmem %s0, %s354
        %p356 = pneg %p56
        %p357 = pneg %p53
        %s358 = sand.u32 %s71, 1
        %s359 = sand.u32 %s71, 1
        %s360 = smul.addr %s359, 512
        %s361 = scalar_lea.vmem [#allocation3], %s360
        %p362 = pneg %p84
        %p363 = pneg %p81
        %p364 = scmp.lt.s32.totalorder %s19, 0
        %s365 = scalar_select %p364, %s19, 0
        %s366 = smul.addr %s365, 8
        %s367 = scalar_lea.vmem %s2, %s366
        %p368 = pneg %p110
        %p369 = pneg %p107
        %p370 = pneg %p138
        %p371 = pneg %p135
        %s372 = smul.u32 4, %s20
        %p373 = scmp.lt.s32.totalorder %s19, 0
        %s374 = scalar_select %p373, %s19, 0
        %p375 = scmp.lt.s32.totalorder %s372, 15
        %s376 = scalar_select %p375, %s372, 15
        %s377 = smul.addr %s374, 16
        %s378 = sadd.s32 %s376, %s377
        %s379 = smul.addr %s378, 8
        %s380 = scalar_lea.vmem %s3, %s379
        %s381 = smul.u32 2, %s21
        %p382 = scmp.lt.s32.totalorder %s19, 0
        %s383 = scalar_select %p382, %s19, 0
        %p384 = scmp.lt.s32.totalorder %s381, 1
        %s385 = scalar_select %p384, %s381, 1
        %s386 = smul.addr %s383, 2
        %s387 = sadd.s32 %s385, %s386
        %s388 = smul.addr %s387, 4
        %s389 = scalar_lea.vmem %s0, %s388
        %s390 = smul.u32 2, %s21
        %s391 = smul.u32 32, %s21
        %s392 = smul.u32 4, %s20
        %p393 = scmp.lt.s32.totalorder %s19, 0
        %s394 = scalar_select %p393, %s19, 0
        %s395 = smul.addr %s394, 8
        %s396 = scalar_lea.vmem %s2, %s395
        %s397 = smul.u32 4, %s20
        %p398 = scmp.lt.s32.totalorder %s19, 0
        %s399 = scalar_select %p398, %s19, 0
        %p400 = scmp.lt.s32.totalorder %s397, 15
        %s401 = scalar_select %p400, %s397, 15
        %s402 = smul.addr %s399, 16
        %s403 = sadd.s32 %s401, %s402
        %s404 = smul.addr %s403, 8
        %s405 = scalar_lea.vmem %s3, %s404
        %s406 = smul.u32 4, %s20
        %p407 = scmp.eq.s32.totalorder %s21, 0
        // Predicated region
        $region56: #{generator_forward.42} parent=50 // pred_check
          %p408 = pneg %p407
        $region57: #{generator_forward.42} parent=50 // pred_check_branch
          %410 = sbr.rel (%p408) target = $region59
        $region58: #{generator_forward.42} parent=50 // pred_region
          %411 = vst [vmem:[#allocation2] sm:$0xff] 0.0
          %412 = vst [vmem:[#allocation2 + $0x8] sm:$0xff] 0.0
          %413 = vst [vmem:[#allocation2 + $0x10] sm:$0xff] 0.0
          %414 = vst [vmem:[#allocation2 + $0x18] sm:$0xff] 0.0
        $region59: #{generator_forward.42} parent=50 // pred_fallthru
          _
        %v415 = vld [vmem:[#allocation2] sm:$0xff]
        %v416 = vld [vmem:[#allocation2 + $0x8] sm:$0xff]
        %v417 = vld [vmem:[#allocation2 + $0x10] sm:$0xff]
        %v418 = vld [vmem:[#allocation2 + $0x18] sm:$0xff]
        %v419 = vld [vmem:[%s389] sm:$0xff]
        %v420 = vld [vmem:[%s343] sm:$0xff]
        %v421 = vld [vmem:[%s343 + $0x8] sm:$0xff]
        %v422 = vld [vmem:[%s343 + $0x10] sm:$0xff]
        %v423 = vld [vmem:[%s343 + $0x18] sm:$0xff]
        %v424 = vld [vmem:[%s343 + $0x20] sm:$0xff]
        %v425 = vld [vmem:[%s343 + $0x28] sm:$0xff]
        %v426 = vld [vmem:[%s343 + $0x30] sm:$0xff]
        %v427 = vld [vmem:[%s343 + $0x38] sm:$0xff]
        %v428 = vld [vmem:[%s343 + $0x40] sm:$0xff]
        %v429 = vld [vmem:[%s343 + $0x48] sm:$0xff]
        %v430 = vld [vmem:[%s343 + $0x50] sm:$0xff]
        %v431 = vld [vmem:[%s343 + $0x58] sm:$0xff]
        %v432 = vld [vmem:[%s343 + $0x60] sm:$0xff]
        %v433 = vld [vmem:[%s343 + $0x68] sm:$0xff]
        %v434 = vld [vmem:[%s343 + $0x70] sm:$0xff]
        %v435 = vld [vmem:[%s343 + $0x78] sm:$0xff]
        %v436 = vld [vmem:[%s343 + $0x80] sm:$0xff]
        %v437 = vld [vmem:[%s343 + $0x88] sm:$0xff]
        %v438 = vld [vmem:[%s343 + $0x90] sm:$0xff]
        %v439 = vld [vmem:[%s343 + $0x98] sm:$0xff]
        %v440 = vld [vmem:[%s343 + $0xa0] sm:$0xff]
        %v441 = vld [vmem:[%s343 + $0xa8] sm:$0xff]
        %v442 = vld [vmem:[%s343 + $0xb0] sm:$0xff]
        %v443 = vld [vmem:[%s343 + $0xb8] sm:$0xff]
        %v444 = vld [vmem:[%s343 + $0xc0] sm:$0xff]
        %v445 = vld [vmem:[%s343 + $0xc8] sm:$0xff]
        %v446 = vld [vmem:[%s343 + $0xd0] sm:$0xff]
        %v447 = vld [vmem:[%s343 + $0xd8] sm:$0xff]
        %v448 = vld [vmem:[%s343 + $0xe0] sm:$0xff]
        %v449 = vld [vmem:[%s343 + $0xe8] sm:$0xff]
        %v450 = vld [vmem:[%s343 + $0xf0] sm:$0xff]
        %v451 = vld [vmem:[%s343 + $0xf8] sm:$0xff]
        %v452 = vld [vmem:[%s343 + $0x100] sm:$0xff]
        %v453 = vld [vmem:[%s343 + $0x108] sm:$0xff]
        %v454 = vld [vmem:[%s343 + $0x110] sm:$0xff]
        %v455 = vld [vmem:[%s343 + $0x118] sm:$0xff]
        %v456 = vld [vmem:[%s343 + $0x120] sm:$0xff]
        %v457 = vld [vmem:[%s343 + $0x128] sm:$0xff]
        %v458 = vld [vmem:[%s343 + $0x130] sm:$0xff]
        %v459 = vld [vmem:[%s343 + $0x138] sm:$0xff]
        %v460 = vld [vmem:[%s343 + $0x140] sm:$0xff]
        %v461 = vld [vmem:[%s343 + $0x148] sm:$0xff]
        %v462 = vld [vmem:[%s343 + $0x150] sm:$0xff]
        %v463 = vld [vmem:[%s343 + $0x158] sm:$0xff]
        %v464 = vld [vmem:[%s343 + $0x160] sm:$0xff]
        %v465 = vld [vmem:[%s343 + $0x168] sm:$0xff]
        %v466 = vld [vmem:[%s343 + $0x170] sm:$0xff]
        %v467 = vld [vmem:[%s343 + $0x178] sm:$0xff]
        %v468 = vld [vmem:[%s343 + $0x180] sm:$0xff]
        %v469 = vld [vmem:[%s343 + $0x188] sm:$0xff]
        %v470 = vld [vmem:[%s343 + $0x190] sm:$0xff]
        %v471 = vld [vmem:[%s343 + $0x198] sm:$0xff]
        %v472 = vld [vmem:[%s343 + $0x1a0] sm:$0xff]
        %v473 = vld [vmem:[%s343 + $0x1a8] sm:$0xff]
        %v474 = vld [vmem:[%s343 + $0x1b0] sm:$0xff]
        %v475 = vld [vmem:[%s343 + $0x1b8] sm:$0xff]
        %v476 = vld [vmem:[%s343 + $0x1c0] sm:$0xff]
        %v477 = vld [vmem:[%s343 + $0x1c8] sm:$0xff]
        %v478 = vld [vmem:[%s343 + $0x1d0] sm:$0xff]
        %v479 = vld [vmem:[%s343 + $0x1d8] sm:$0xff]
        %v480 = vld [vmem:[%s343 + $0x1e0] sm:$0xff]
        %v481 = vld [vmem:[%s343 + $0x1e8] sm:$0xff]
        %v482 = vld [vmem:[%s343 + $0x1f0] sm:$0xff]
        %v483 = vld [vmem:[%s343 + $0x1f8] sm:$0xff]
        %v485 = vunpack.c.l.b16 %v419
        %v486 = vunpack.c.h.b16 %v419
        %v487 = vpack.c.b16 %v485, %v485
        %v488 = vpack.c.b16 %v486, %v486
        %v555 = vunpack.c.l.b16 %v420
        %v556 = vunpack.c.h.b16 %v420
        %v557 = vunpack.c.l.b16 %v421
        %v558 = vunpack.c.h.b16 %v421
        %v559 = vunpack.c.l.b16 %v422
        %v560 = vunpack.c.h.b16 %v422
        %v561 = vunpack.c.l.b16 %v423
        %v562 = vunpack.c.h.b16 %v423
        %v563 = vunpack.c.l.b16 %v424
        %v564 = vunpack.c.h.b16 %v424
        %v565 = vunpack.c.l.b16 %v425
        %v566 = vunpack.c.h.b16 %v425
        %v567 = vunpack.c.l.b16 %v426
        %v568 = vunpack.c.h.b16 %v426
        %v569 = vunpack.c.l.b16 %v427
        %v570 = vunpack.c.h.b16 %v427
        %v571 = vunpack.c.l.b16 %v428
        %v572 = vunpack.c.h.b16 %v428
        %v573 = vunpack.c.l.b16 %v429
        %v574 = vunpack.c.h.b16 %v429
        %v575 = vunpack.c.l.b16 %v430
        %v576 = vunpack.c.h.b16 %v430
        %v577 = vunpack.c.l.b16 %v431
        %v578 = vunpack.c.h.b16 %v431
        %v579 = vunpack.c.l.b16 %v432
        %v580 = vunpack.c.h.b16 %v432
        %v581 = vunpack.c.l.b16 %v433
        %v582 = vunpack.c.h.b16 %v433
        %v583 = vunpack.c.l.b16 %v434
        %v584 = vunpack.c.h.b16 %v434
        %v585 = vunpack.c.l.b16 %v435
        %v586 = vunpack.c.h.b16 %v435
        %v587 = vunpack.c.l.b16 %v436
        %v588 = vunpack.c.h.b16 %v436
        %v589 = vunpack.c.l.b16 %v437
        %v590 = vunpack.c.h.b16 %v437
        %v591 = vunpack.c.l.b16 %v438
        %v592 = vunpack.c.h.b16 %v438
        %v593 = vunpack.c.l.b16 %v439
        %v594 = vunpack.c.h.b16 %v439
        %v595 = vunpack.c.l.b16 %v440
        %v596 = vunpack.c.h.b16 %v440
        %v597 = vunpack.c.l.b16 %v441
        %v598 = vunpack.c.h.b16 %v441
        %v599 = vunpack.c.l.b16 %v442
        %v600 = vunpack.c.h.b16 %v442
        %v601 = vunpack.c.l.b16 %v443
        %v602 = vunpack.c.h.b16 %v443
        %v603 = vunpack.c.l.b16 %v444
        %v604 = vunpack.c.h.b16 %v444
        %v605 = vunpack.c.l.b16 %v445
        %v606 = vunpack.c.h.b16 %v445
        %v607 = vunpack.c.l.b16 %v446
        %v608 = vunpack.c.h.b16 %v446
        %v609 = vunpack.c.l.b16 %v447
        %v610 = vunpack.c.h.b16 %v447
        %v611 = vunpack.c.l.b16 %v448
        %v612 = vunpack.c.h.b16 %v448
        %v613 = vunpack.c.l.b16 %v449
        %v614 = vunpack.c.h.b16 %v449
        %v615 = vunpack.c.l.b16 %v450
        %v616 = vunpack.c.h.b16 %v450
        %v617 = vunpack.c.l.b16 %v451
        %v618 = vunpack.c.h.b16 %v451
        %v619 = vunpack.c.l.b16 %v452
        %v620 = vunpack.c.h.b16 %v452
        %v621 = vunpack.c.l.b16 %v453
        %v622 = vunpack.c.h.b16 %v453
        %v623 = vunpack.c.l.b16 %v454
        %v624 = vunpack.c.h.b16 %v454
        %v625 = vunpack.c.l.b16 %v455
        %v626 = vunpack.c.h.b16 %v455
        %v627 = vunpack.c.l.b16 %v456
        %v628 = vunpack.c.h.b16 %v456
        %v629 = vunpack.c.l.b16 %v457
        %v630 = vunpack.c.h.b16 %v457
        %v631 = vunpack.c.l.b16 %v458
        %v632 = vunpack.c.h.b16 %v458
        %v633 = vunpack.c.l.b16 %v459
        %v634 = vunpack.c.h.b16 %v459
        %v635 = vunpack.c.l.b16 %v460
        %v636 = vunpack.c.h.b16 %v460
        %v637 = vunpack.c.l.b16 %v461
        %v638 = vunpack.c.h.b16 %v461
        %v639 = vunpack.c.l.b16 %v462
        %v640 = vunpack.c.h.b16 %v462
        %v641 = vunpack.c.l.b16 %v463
        %v642 = vunpack.c.h.b16 %v463
        %v643 = vunpack.c.l.b16 %v464
        %v644 = vunpack.c.h.b16 %v464
        %v645 = vunpack.c.l.b16 %v465
        %v646 = vunpack.c.h.b16 %v465
        %v647 = vunpack.c.l.b16 %v466
        %v648 = vunpack.c.h.b16 %v466
        %v649 = vunpack.c.l.b16 %v467
        %v650 = vunpack.c.h.b16 %v467
        %v651 = vunpack.c.l.b16 %v468
        %v652 = vunpack.c.h.b16 %v468
        %v653 = vunpack.c.l.b16 %v469
        %v654 = vunpack.c.h.b16 %v469
        %v655 = vunpack.c.l.b16 %v470
        %v656 = vunpack.c.h.b16 %v470
        %v657 = vunpack.c.l.b16 %v471
        %v658 = vunpack.c.h.b16 %v471
        %v659 = vunpack.c.l.b16 %v472
        %v660 = vunpack.c.h.b16 %v472
        %v661 = vunpack.c.l.b16 %v473
        %v662 = vunpack.c.h.b16 %v473
        %v663 = vunpack.c.l.b16 %v474
        %v664 = vunpack.c.h.b16 %v474
        %v665 = vunpack.c.l.b16 %v475
        %v666 = vunpack.c.h.b16 %v475
        %v667 = vunpack.c.l.b16 %v476
        %v668 = vunpack.c.h.b16 %v476
        %v669 = vunpack.c.l.b16 %v477
        %v670 = vunpack.c.h.b16 %v477
        %v671 = vunpack.c.l.b16 %v478
        %v672 = vunpack.c.h.b16 %v478
        %v673 = vunpack.c.l.b16 %v479
        %v674 = vunpack.c.h.b16 %v479
        %v675 = vunpack.c.l.b16 %v480
        %v676 = vunpack.c.h.b16 %v480
        %v677 = vunpack.c.l.b16 %v481
        %v678 = vunpack.c.h.b16 %v481
        %v679 = vunpack.c.l.b16 %v482
        %v680 = vunpack.c.h.b16 %v482
        %v681 = vunpack.c.l.b16 %v483
        %v682 = vunpack.c.h.b16 %v483
        %v683 = vpack.c.b16 %v559, %v555
        %v684 = vpack.c.b16 %v560, %v556
        %v685 = vpack.c.b16 %v561, %v557
        %v686 = vpack.c.b16 %v562, %v558
        %v687 = vpack.c.b16 %v567, %v563
        %v688 = vpack.c.b16 %v568, %v564
        %v689 = vpack.c.b16 %v569, %v565
        %v690 = vpack.c.b16 %v570, %v566
        %v691 = vpack.c.b16 %v575, %v571
        %v692 = vpack.c.b16 %v576, %v572
        %v693 = vpack.c.b16 %v577, %v573
        %v694 = vpack.c.b16 %v578, %v574
        %v695 = vpack.c.b16 %v583, %v579
        %v696 = vpack.c.b16 %v584, %v580
        %v697 = vpack.c.b16 %v585, %v581
        %v698 = vpack.c.b16 %v586, %v582
        %v699 = vpack.c.b16 %v591, %v587
        %v700 = vpack.c.b16 %v592, %v588
        %v701 = vpack.c.b16 %v593, %v589
        %v702 = vpack.c.b16 %v594, %v590
        %v703 = vpack.c.b16 %v599, %v595
        %v704 = vpack.c.b16 %v600, %v596
        %v705 = vpack.c.b16 %v601, %v597
        %v706 = vpack.c.b16 %v602, %v598
        %v707 = vpack.c.b16 %v607, %v603
        %v708 = vpack.c.b16 %v608, %v604
        %v709 = vpack.c.b16 %v609, %v605
        %v710 = vpack.c.b16 %v610, %v606
        %v711 = vpack.c.b16 %v615, %v611
        %v712 = vpack.c.b16 %v616, %v612
        %v713 = vpack.c.b16 %v617, %v613
        %v714 = vpack.c.b16 %v618, %v614
        %v715 = vpack.c.b16 %v623, %v619
        %v716 = vpack.c.b16 %v624, %v620
        %v717 = vpack.c.b16 %v625, %v621
        %v718 = vpack.c.b16 %v626, %v622
        %v719 = vpack.c.b16 %v631, %v627
        %v720 = vpack.c.b16 %v632, %v628
        %v721 = vpack.c.b16 %v633, %v629
        %v722 = vpack.c.b16 %v634, %v630
        %v723 = vpack.c.b16 %v639, %v635
        %v724 = vpack.c.b16 %v640, %v636
        %v725 = vpack.c.b16 %v641, %v637
        %v726 = vpack.c.b16 %v642, %v638
        %v727 = vpack.c.b16 %v647, %v643
        %v728 = vpack.c.b16 %v648, %v644
        %v729 = vpack.c.b16 %v649, %v645
        %v730 = vpack.c.b16 %v650, %v646
        %v731 = vpack.c.b16 %v655, %v651
        %v732 = vpack.c.b16 %v656, %v652
        %v733 = vpack.c.b16 %v657, %v653
        %v734 = vpack.c.b16 %v658, %v654
        %v735 = vpack.c.b16 %v663, %v659
        %v736 = vpack.c.b16 %v664, %v660
        %v737 = vpack.c.b16 %v665, %v661
        %v738 = vpack.c.b16 %v666, %v662
        %v739 = vpack.c.b16 %v671, %v667
        %v740 = vpack.c.b16 %v672, %v668
        %v741 = vpack.c.b16 %v673, %v669
        %v742 = vpack.c.b16 %v674, %v670
        %v743 = vpack.c.b16 %v679, %v675
        %v744 = vpack.c.b16 %v680, %v676
        %v745 = vpack.c.b16 %v681, %v677
        %v746 = vpack.c.b16 %v682, %v678
        %811 = vmatpush.bf16.msra.mxu0 %v711
        %812 = vmatpush.bf16.msra.mxu0 %v707
        %813 = vmatpush.bf16.msra.mxu0 %v703
        %814 = vmatpush.bf16.msra.mxu0 %v699
        %815 = vmatpush.bf16.msra.mxu0 %v695
        %816 = vmatpush.bf16.msra.mxu0 %v691
        %817 = vmatpush.bf16.msra.mxu0 %v687
        %818 = vmatpush.bf16.msra.mxu0 %v683
        %819 = vmatmul.bf16.gmra.mxu0 %v487
        %v820 = vpop.f32.mrf.mxu0
        %v821 = vadd.f32 0.0, %v820
        %v822 = vpop.f32.mrf.mxu0
        %823 = vdwg.mxu0
        %824 = vmatpush.bf16.msra.mxu0 %v743
        %825 = vmatpush.bf16.msra.mxu0 %v739
        %826 = vmatpush.bf16.msra.mxu0 %v735
        %827 = vmatpush.bf16.msra.mxu0 %v731
        %828 = vmatpush.bf16.msra.mxu0 %v727
        %829 = vmatpush.bf16.msra.mxu0 %v723
        %830 = vmatpush.bf16.msra.mxu0 %v719
        %831 = vmatpush.bf16.msra.mxu0 %v715
        %832 = vmatmul.bf16.gmra.mxu0 %v488
        %v833 = vpop.f32.mrf.mxu0
        %v834 = vadd.f32 %v821, %v833
        %v835 = vpop.f32.mrf.mxu0
        %836 = vdwg.mxu0
        %837 = vmatpush.bf16.msra.mxu0 %v712
        %838 = vmatpush.bf16.msra.mxu0 %v708
        %839 = vmatpush.bf16.msra.mxu0 %v704
        %840 = vmatpush.bf16.msra.mxu0 %v700
        %841 = vmatpush.bf16.msra.mxu0 %v696
        %842 = vmatpush.bf16.msra.mxu0 %v692
        %843 = vmatpush.bf16.msra.mxu0 %v688
        %844 = vmatpush.bf16.msra.mxu0 %v684
        %845 = vmatmul.bf16.gmra.mxu0 %v487
        %v846 = vpop.f32.mrf.mxu0
        %v847 = vadd.f32 0.0, %v846
        %v848 = vpop.f32.mrf.mxu0
        %849 = vdwg.mxu0
        %850 = vmatpush.bf16.msra.mxu0 %v744
        %851 = vmatpush.bf16.msra.mxu0 %v740
        %852 = vmatpush.bf16.msra.mxu0 %v736
        %853 = vmatpush.bf16.msra.mxu0 %v732
        %854 = vmatpush.bf16.msra.mxu0 %v728
        %855 = vmatpush.bf16.msra.mxu0 %v724
        %856 = vmatpush.bf16.msra.mxu0 %v720
        %857 = vmatpush.bf16.msra.mxu0 %v716
        %858 = vmatmul.bf16.gmra.mxu0 %v488
        %v859 = vpop.f32.mrf.mxu0
        %v860 = vadd.f32 %v847, %v859
        %v861 = vpop.f32.mrf.mxu0
        %862 = vdwg.mxu0
        %863 = vmatpush.bf16.msra.mxu0 %v713
        %864 = vmatpush.bf16.msra.mxu0 %v709
        %865 = vmatpush.bf16.msra.mxu0 %v705
        %866 = vmatpush.bf16.msra.mxu0 %v701
        %867 = vmatpush.bf16.msra.mxu0 %v697
        %868 = vmatpush.bf16.msra.mxu0 %v693
        %869 = vmatpush.bf16.msra.mxu0 %v689
        %870 = vmatpush.bf16.msra.mxu0 %v685
        %871 = vmatmul.bf16.gmra.mxu0 %v487
        %v872 = vpop.f32.mrf.mxu0
        %v873 = vadd.f32 0.0, %v872
        %v874 = vpop.f32.mrf.mxu0
        %875 = vdwg.mxu0
        %876 = vmatpush.bf16.msra.mxu0 %v745
        %877 = vmatpush.bf16.msra.mxu0 %v741
        %878 = vmatpush.bf16.msra.mxu0 %v737
        %879 = vmatpush.bf16.msra.mxu0 %v733
        %880 = vmatpush.bf16.msra.mxu0 %v729
        %881 = vmatpush.bf16.msra.mxu0 %v725
        %882 = vmatpush.bf16.msra.mxu0 %v721
        %883 = vmatpush.bf16.msra.mxu0 %v717
        %884 = vmatmul.bf16.gmra.mxu0 %v488
        %v885 = vpop.f32.mrf.mxu0
        %v886 = vadd.f32 %v873, %v885
        %v887 = vpop.f32.mrf.mxu0
        %888 = vdwg.mxu0
        %889 = vmatpush.bf16.msra.mxu0 %v714
        %890 = vmatpush.bf16.msra.mxu0 %v710
        %891 = vmatpush.bf16.msra.mxu0 %v706
        %892 = vmatpush.bf16.msra.mxu0 %v702
        %893 = vmatpush.bf16.msra.mxu0 %v698
        %894 = vmatpush.bf16.msra.mxu0 %v694
        %895 = vmatpush.bf16.msra.mxu0 %v690
        %896 = vmatpush.bf16.msra.mxu0 %v686
        %897 = vmatmul.bf16.gmra.mxu0 %v487
        %v898 = vpop.f32.mrf.mxu0
        %v899 = vadd.f32 0.0, %v898
        %v900 = vpop.f32.mrf.mxu0
        %901 = vdwg.mxu0
        %902 = vmatpush.bf16.msra.mxu0 %v746
        %903 = vmatpush.bf16.msra.mxu0 %v742
        %904 = vmatpush.bf16.msra.mxu0 %v738
        %905 = vmatpush.bf16.msra.mxu0 %v734
        %906 = vmatpush.bf16.msra.mxu0 %v730
        %907 = vmatpush.bf16.msra.mxu0 %v726
        %908 = vmatpush.bf16.msra.mxu0 %v722
        %909 = vmatpush.bf16.msra.mxu0 %v718
        %910 = vmatmul.bf16.gmra.mxu0 %v488
        %v911 = vpop.f32.mrf.mxu0
        %v912 = vadd.f32 %v899, %v911
        %v913 = vpop.f32.mrf.mxu0
        %914 = vdwg.mxu0
        %v915 = vadd.f32 %v415, %v834
        %v916 = vadd.f32 %v416, %v860
        %v917 = vadd.f32 %v417, %v886
        %v918 = vadd.f32 %v418, %v912
        %919 = vst [vmem:[#allocation2] sm:$0xff] %v915
        %920 = vst [vmem:[#allocation2 + $0x8] sm:$0xff] %v916
        %921 = vst [vmem:[#allocation2 + $0x10] sm:$0xff] %v917
        %922 = vst [vmem:[#allocation2 + $0x18] sm:$0xff] %v918
        // Predicated region
        $region60: #{generator_forward.42} parent=50 // pred_check
          %p923 = pneg %p407
        $region61: #{generator_forward.42} parent=50 // pred_check_branch
          %925 = sbr.rel (%p923) target = $region63
        $region62: #{generator_forward.42} parent=50 // pred_region
          %v926 = vld [vmem:[#allocation2] sm:$0xff]
          %v927 = vld [vmem:[#allocation2 + $0x8] sm:$0xff]
          %v928 = vld [vmem:[#allocation2 + $0x10] sm:$0xff]
          %v929 = vld [vmem:[#allocation2 + $0x18] sm:$0xff]
          %v930 = vld [vmem:[%s396] sm:$0xff]
          %932 = vset.pattern.permute.xlu0 0
          %933 = vperm.xlu0 %932, %v930
          %v934 = vpop.permute.xlu0 %933
          %v936 = vadd.f32 %v926, %v934
          %v937 = vadd.f32 %v927, %v934
          %v938 = vadd.f32 %v928, %v934
          %v939 = vadd.f32 %v929, %v934
          %940 = vst [vmem:[%s405] sm:$0xff] %v936
          %941 = vst [vmem:[%s405 + $0x8] sm:$0xff] %v937
          %942 = vst [vmem:[%s405 + $0x10] sm:$0xff] %v938
          %943 = vst [vmem:[%s405 + $0x18] sm:$0xff] %v939
        $region63: #{generator_forward.42} parent=50 // pred_fallthru
          _
        %s944 = smul.u32 4, %s20
        %p945 = scmp.lt.s32.totalorder %s19, 0
        %s946 = scalar_select %p945, %s19, 0
        %p947 = scmp.lt.s32.totalorder %s944, 15
        %s948 = scalar_select %p947, %s944, 15
        %s949 = smul.addr %s946, 16
        %s950 = sadd.s32 %s948, %s949
        %s951 = smul.addr %s950, 8
        %s952 = scalar_lea.vmem %s3, %s951
        // Predicated region
        $region64: #{generator_forward.42} parent=50 // pred_check
          %p953 = pneg %p135
        $region65: #{generator_forward.42} parent=50 // pred_check_branch
          %955 = sbr.rel (%p953) target = $region67
        $region66: #{generator_forward.42} parent=50 // pred_region
          %s956 = smul.u32 4, %s20
        $region67: #{generator_forward.42} parent=50 // pred_fallthru
          _
      $region51: #{generator_forward.42} parent=5 // pred_fallthru
        _
      %p957 = scmp.le.s32.totalorder 2, %s9
      // Predicated region
      $region68: #{generator_forward.42} parent=5 // pred_check
        %p958 = pneg %p957
      $region69: #{generator_forward.42} parent=5 // pred_check_branch
        %960 = sbr.rel (%p958) target = $region71
      $region70: #{generator_forward.42} parent=5 // pred_region
        %s961 = ssub.s32 %s9, 2
        // Predicated region
        $region72: #{generator_forward.42} parent=70 // pred_check
          %p962 = pneg %p141
        $region73: #{generator_forward.42} parent=70 // pred_check_branch
          %964 = sbr.rel (%p962) target = $region75
        $region74: #{generator_forward.42} parent=70 // pred_region
          %s965 = smul.u32 4, %s23
          %p966 = scmp.lt.s32.totalorder %s22, 0
          %s967 = scalar_select %p966, %s22, 0
          %p968 = scmp.lt.s32.totalorder %s965, 15
          %s969 = scalar_select %p968, %s965, 15
          %s970 = smul.addr %s967, 16
          %s971 = sadd.s32 %s969, %s970
          %s972 = smul.addr %s971, 8
          %s973 = scalar_lea.vmem %s3, %s972
        $region75: #{generator_forward.42} parent=70 // pred_fallthru
          _
      $region71: #{generator_forward.42} parent=5 // pred_fallthru
        _
    $region6: #{generator_forward.42} parent=1 // loop_footer
      %s13 = sadd.s32 1, %s9
    $region7: #{generator_forward.42} parent=1 // loop_footer_branch
      %8 = sbr.rel target = $region3
    $region8: #{generator_forward.42} parent=1 // loop_exit
      _

// kernel: generator_forward.44
$region0: #{generator_forward.44}
  #allocation0 [shape = 'u32[]', space=smem, size = 0x4, offset = 0x4, fixed_abs, tag = 'smem constant byte address 0x4 - core index']
  #allocation1 [shape = 'u32[72,128]{1,0:T(1,128)}', space=vmem, size = 0x9000, scoped, tag = 'internal scratch']
  #allocation2 [shape = 'f32[8,512]{1,0:T(8,128)}', space=vmem, size = 0x4000, scoped, tag = 'scratch operand']
  %s0 = inlined_call_operand.vmem [shape: bf16[8,128], index: 0, kind: input, shape index: {}]
  %s1 = inlined_call_operand.vmem [shape: bf16[128,2048], index: 1, kind: input, shape index: {}]
  %s2 = inlined_call_operand.vmem [shape: f32[8,1], index: 2, kind: input, shape index: {}]
  %s3 = inlined_call_operand.vmem [shape: f32[8,2048], index: 3, kind: output, shape index: {}]
  %s4 = sld [smem:[#allocation0]]
  $region76: #{generator_forward.44} parent=0
    _
  %s6 = ssub.s32 1, %s4
  %s7 = scalar_select 0, %s6, %s4
  $region1: #{generator_forward.44} parent=0
    #allocation3 [shape = 'u8[262144]{0}', space=vmem, size = 0x40000, scoped, tag = 'input window, operand 1']
    loop: start=0, step=1, limit=6
    $region2: #{generator_forward.44} parent=1 // loop_pre_header
      _
    $region3: #{generator_forward.44} parent=1 // loop_header
      %s9 = sphi 0, %s13
      %p10 = scmp.ge.s32.totalorder %s9, 6
      %s16 = sphi 0, %s35
      %s17 = sphi 0, %s31
      %s18 = sphi 0, %s27
      %s19 = sphi 0, %s16
      %s20 = sphi 0, %s17
      %s21 = sphi 0, %s18
      %s22 = sphi 0, %s19
      %s23 = sphi 0, %s20
      %s24 = sphi 0, %s21
      %s40 = sphi 0, %s42
      %s43 = sphi 0, %s40
      %s44 = sphi 0, %s43
      %s60 = sphi 0, %s44
      %s68 = sphi 0, %s70
      %s71 = sphi 0, %s68
      %s72 = sphi 0, %s71
      %s88 = sphi 0, %s72
      %s94 = sphi 0, %s96
      %s97 = sphi 0, %s94
      %s98 = sphi 0, %s97
      %s114 = sphi 0, %s98
      %s122 = sphi 0, %s124
      %s125 = sphi 0, %s122
      %s126 = sphi 0, %s125
      %s142 = sphi 0, %s126
    $region4: #{generator_forward.44} parent=1 // loop_header_branch
      %12 = sbr.rel (%p10) target = $region8
    $region5: #{generator_forward.44} parent=1 // loop_body
      %s14 = ssub.s32 %s9, 1
      %s15 = ssub.s32 %s9, 2
      %s25 = sadd.s32 1, %s18
      %p26 = scmp.ge.s32.totalorder %s25, 1
      %s27 = scalar_select %p26, 0, %s25
      %s28 = sadd.s32 1, %s17
      %s29 = scalar_select %p26, %s28, %s17
      %p30 = scmp.ge.s32.totalorder %s29, 4
      %s31 = scalar_select %p30, 0, %s29
      %s32 = sadd.s32 1, %s16
      %s33 = scalar_select %p30, %s32, %s16
      %p34 = scmp.ge.s32.totalorder %s33, 1
      %s35 = scalar_select %p34, 0, %s33
      %s36 = ssub.s32 %s16, %s35
      %s37 = ssub.s32 %s18, %s27
      %s38 = sor.u32 %s36, %s37
      %p39 = scmp.eq.s32.totalorder %s38, 0
      %s41 = sadd.s32 %s40, 1
      %s42 = scalar_select %p39, %s40, %s41
      %p45 = pneg %p39
      %p46 = scmp.eq.s32.totalorder %s9, 3
      %p47 = por %p45, %p46
      %p48 = scmp.ne.s32.totalorder %s40, %s43
      %p49 = scmp.eq.s32.totalorder %s9, 0
      %p50 = por %p48, %p49
      %p51 = scmp.ne.s32.totalorder %s40, %s43
      %p52 = scmp.eq.s32.totalorder %s14, 3
      %p53 = por %p51, %p52
      %p54 = scmp.ne.s32.totalorder %s43, %s44
      %p55 = scmp.eq.s32.totalorder %s14, 0
      %p56 = por %p54, %p55
      %p57 = scmp.ne.s32.totalorder %s43, %s44
      %p58 = scmp.eq.s32.totalorder %s15, 3
      %p59 = por %p57, %p58
      %p61 = scmp.ne.s32.totalorder %s44, %s60
      %p62 = scmp.eq.s32.totalorder %s15, 0
      %p63 = por %p61, %p62
      %s64 = ssub.s32 %s18, %s27
      %s65 = ssub.s32 %s17, %s31
      %s66 = sor.u32 %s64, %s65
      %p67 = scmp.eq.s32.totalorder %s66, 0
      %s69 = sadd.s32 %s68, 1
      %s70 = scalar_select %p67, %s68, %s69
      %p73 = pneg %p67
      %p74 = scmp.eq.s32.totalorder %s9, 3
      %p75 = por %p73, %p74
      %p76 = scmp.ne.s32.totalorder %s68, %s71
      %p77 = scmp.eq.s32.totalorder %s9, 0
      %p78 = por %p76, %p77
      %p79 = scmp.ne.s32.totalorder %s68, %s71
      %p80 = scmp.eq.s32.totalorder %s14, 3
      %p81 = por %p79, %p80
      %p82 = scmp.ne.s32.totalorder %s71, %s72
      %p83 = scmp.eq.s32.totalorder %s14, 0
      %p84 = por %p82, %p83
      %p85 = scmp.ne.s32.totalorder %s71, %s72
      %p86 = scmp.eq.s32.totalorder %s15, 3
      %p87 = por %p85, %p86
      %p89 = scmp.ne.s32.totalorder %s72, %s88
      %p90 = scmp.eq.s32.totalorder %s15, 0
      %p91 = por %p89, %p90
      %s92 = ssub.s32 %s16, %s35
      %p93 = scmp.eq.s32.totalorder %s92, 0
      %s95 = sadd.s32 %s94, 1
      %s96 = scalar_select %p93, %s94, %s95
      %p99 = pneg %p93
      %p100 = scmp.eq.s32.totalorder %s9, 3
      %p101 = por %p99, %p100
      %p102 = scmp.ne.s32.totalorder %s94, %s97
      %p103 = scmp.eq.s32.totalorder %s9, 0
      %p104 = por %p102, %p103
      %p105 = scmp.ne.s32.totalorder %s94, %s97
      %p106 = scmp.eq.s32.totalorder %s14, 3
      %p107 = por %p105, %p106
      %p108 = scmp.ne.s32.totalorder %s97, %s98
      %p109 = scmp.eq.s32.totalorder %s14, 0
      %p110 = por %p108, %p109
      %p111 = scmp.ne.s32.totalorder %s97, %s98
      %p112 = scmp.eq.s32.totalorder %s15, 3
      %p113 = por %p111, %p112
      %p115 = scmp.ne.s32.totalorder %s98, %s114
      %p116 = scmp.eq.s32.totalorder %s15, 0
      %p117 = por %p115, %p116
      %s118 = ssub.s32 %s16, %s35
      %s119 = ssub.s32 %s17, %s31
      %s120 = sor.u32 %s118, %s119
      %p121 = scmp.eq.s32.totalorder %s120, 0
      %s123 = sadd.s32 %s122, 1
      %s124 = scalar_select %p121, %s122, %s123
      %p127 = pneg %p121
      %p128 = scmp.eq.s32.totalorder %s9, 3
      %p129 = por %p127, %p128
      %p130 = scmp.ne.s32.totalorder %s122, %s125
      %p131 = scmp.eq.s32.totalorder %s9, 0
      %p132 = por %p130, %p131
      %p133 = scmp.ne.s32.totalorder %s122, %s125
      %p134 = scmp.eq.s32.totalorder %s14, 3
      %p135 = por %p133, %p134
      %p136 = scmp.ne.s32.totalorder %s125, %s126
      %p137 = scmp.eq.s32.totalorder %s14, 0
      %p138 = por %p136, %p137
      %p139 = scmp.ne.s32.totalorder %s125, %s126
      %p140 = scmp.eq.s32.totalorder %s15, 3
      %p141 = por %p139, %p140
      %p143 = scmp.ne.s32.totalorder %s126, %s142
      %p144 = scmp.eq.s32.totalorder %s15, 0
      %p145 = por %p143, %p144
      %p146 = scmp.le.s32.totalorder 1, %s9
      %p147 = scmp.lt.s32.totalorder %s9, 5
      %p148 = pnand %p146, %p147
      %p149 = pneg %p148
      // Predicated region
      $region9: #{generator_forward.44} parent=5 // pred_check
        _
      $region10: #{generator_forward.44} parent=5 // pred_check_branch
        %151 = sbr.rel (%p148) target = $region12
      $region11: #{generator_forward.44} parent=5 // pred_region
        %s152 = ssub.s32 %s9, 1
        // Predicated region
        $region13: #{generator_forward.44} parent=11 // pred_check
          %p153 = pneg %p56
        $region14: #{generator_forward.44} parent=11 // pred_check_branch
          %155 = sbr.rel (%p153) target = $region16
        $region15: #{generator_forward.44} parent=11 // pred_region
          %p156 = scmp.lt.s32.totalorder %s19, 0
          %s157 = scalar_select %p156, %s19, 0
          %p158 = scmp.lt.s32.totalorder %s21, 0
          %s159 = scalar_select %p158, %s21, 0
          %s160 = sadd.s32 %s159, %s157
          %s161 = smul.addr %s160, 4
          %s162 = scalar_lea.vmem %s0, %s161
        $region16: #{generator_forward.44} parent=11 // pred_fallthru
          _
        // Predicated region
        $region17: #{generator_forward.44} parent=11 // pred_check
          %p163 = pneg %p110
        $region18: #{generator_forward.44} parent=11 // pred_check_branch
          %165 = sbr.rel (%p163) target = $region20
        $region19: #{generator_forward.44} parent=11 // pred_region
          %p166 = scmp.lt.s32.totalorder %s19, 0
          %s167 = scalar_select %p166, %s19, 0
          %s168 = smul.addr %s167, 8
          %s169 = scalar_lea.vmem %s2, %s168
        $region20: #{generator_forward.44} parent=11 // pred_fallthru
          _
      $region12: #{generator_forward.44} parent=5 // pred_fallthru
        _
      %p170 = scmp.lt.s32.totalorder %s9, 4
      // Predicated region
      $region21: #{generator_forward.44} parent=5 // pred_check
        %p171 = pneg %p170
      $region22: #{generator_forward.44} parent=5 // pred_check_branch
        %173 = sbr.rel (%p171) target = $region24
      $region23: #{generator_forward.44} parent=5 // pred_region
        // Predicated region
        $region25: #{generator_forward.44} parent=23 // pred_check
          %p174 = pneg %p78
        $region26: #{generator_forward.44} parent=23 // pred_check_branch
          %176 = sbr.rel (%p174) target = $region28
        $region27: #{generator_forward.44} parent=23 // pred_region
          %s177 = sand.u32 %s68, 1
          %s178 = sand.u32 %s68, 1
          %s179 = smul.addr %s178, 256
          %s180 = scalar_lea.vmem [#allocation3], %s179
          %s181 = smul.u32 16, %s18
          %s182 = smul.u32 4, %s17
          %s183 = smul.addr %s181, 16
          %s184 = sadd.s32 %s182, %s183
          %s185 = smul.addr %s184, 4
          %s186 = scalar_lea.vmem %s1, %s185
          // Predicated region
          $region29: #{generator_forward.44} parent=27 // pred_check
            _
          $region30: #{generator_forward.44} parent=27 // pred_check_branch
            %188 = sbr.rel (0) target = $region32
          $region31: #{generator_forward.44} parent=27 // pred_region
            // Predicated region
            $region33: #{generator_forward.44} parent=31 // pred_check
              _
            $region34: #{generator_forward.44} parent=31 // pred_check_branch
              %190 = sbr.rel (0) target = $region36
            $region35: #{generator_forward.44} parent=31 // pred_region
              loop: start=0, step=1, limit=1
              $region37: #{generator_forward.44} parent=35 // loop_pre_header
                _
              $region38: #{generator_forward.44} parent=35 // loop_header
                %s192 = sphi 0, %s196
                %p193 = scmp.ge.s32.totalorder %s192, 1
                %s197 = sphi %s186, %s186
                %s198 = sphi %s180, %s180
              $region39: #{generator_forward.44} parent=35 // loop_header_branch
                %195 = sbr.rel (%p193) target = $region43
              $region40: #{generator_forward.44} parent=35 // loop_body
                %v199 = vld [vmem:[%s197] sm:$0xff]
                %200 = vst [vmem:[%s198] sm:$0xff] %v199
                %v201 = vld [vmem:[%s197 + $0x8] sm:$0xff]
                %202 = vst [vmem:[%s198 + $0x8] sm:$0xff] %v201
                %v203 = vld [vmem:[%s197 + $0x40] sm:$0xff]
                %204 = vst [vmem:[%s198 + $0x10] sm:$0xff] %v203
                %v205 = vld [vmem:[%s197 + $0x48] sm:$0xff]
                %206 = vst [vmem:[%s198 + $0x18] sm:$0xff] %v205
                %v207 = vld [vmem:[%s197 + $0x80] sm:$0xff]
                %208 = vst [vmem:[%s198 + $0x20] sm:$0xff] %v207
                %v209 = vld [vmem:[%s197 + $0x88] sm:$0xff]
                %210 = vst [vmem:[%s198 + $0x28] sm:$0xff] %v209
                %v211 = vld [vmem:[%s197 + $0xc0] sm:$0xff]
                %212 = vst [vmem:[%s198 + $0x30] sm:$0xff] %v211
                %v213 = vld [vmem:[%s197 + $0xc8] sm:$0xff]
                %214 = vst [vmem:[%s198 + $0x38] sm:$0xff] %v213
                %v215 = vld [vmem:[%s197 + $0x100] sm:$0xff]
                %216 = vst [vmem:[%s198 + $0x40] sm:$0xff] %v215
                %v217 = vld [vmem:[%s197 + $0x108] sm:$0xff]
                %218 = vst [vmem:[%s198 + $0x48] sm:$0xff] %v217
                %v219 = vld [vmem:[%s197 + $0x140] sm:$0xff]
                %220 = vst [vmem:[%s198 + $0x50] sm:$0xff] %v219
                %v221 = vld [vmem:[%s197 + $0x148] sm:$0xff]
                %222 = vst [vmem:[%s198 + $0x58] sm:$0xff] %v221
                %v223 = vld [vmem:[%s197 + $0x180] sm:$0xff]
                %224 = vst [vmem:[%s198 + $0x60] sm:$0xff] %v223
                %v225 = vld [vmem:[%s197 + $0x188] sm:$0xff]
                %226 = vst [vmem:[%s198 + $0x68] sm:$0xff] %v225
                %v227 = vld [vmem:[%s197 + $0x1c0] sm:$0xff]
                %228 = vst [vmem:[%s198 + $0x70] sm:$0xff] %v227
                %v229 = vld [vmem:[%s197 + $0x1c8] sm:$0xff]
                %230 = vst [vmem:[%s198 + $0x78] sm:$0xff] %v229
                %v231 = vld [vmem:[%s197 + $0x200] sm:$0xff]
                %232 = vst [vmem:[%s198 + $0x80] sm:$0xff] %v231
                %v233 = vld [vmem:[%s197 + $0x208] sm:$0xff]
                %234 = vst [vmem:[%s198 + $0x88] sm:$0xff] %v233
                %v235 = vld [vmem:[%s197 + $0x240] sm:$0xff]
                %236 = vst [vmem:[%s198 + $0x90] sm:$0xff] %v235
                %v237 = vld [vmem:[%s197 + $0x248] sm:$0xff]
                %238 = vst [vmem:[%s198 + $0x98] sm:$0xff] %v237
                %v239 = vld [vmem:[%s197 + $0x280] sm:$0xff]
                %240 = vst [vmem:[%s198 + $0xa0] sm:$0xff] %v239
                %v241 = vld [vmem:[%s197 + $0x288] sm:$0xff]
                %242 = vst [vmem:[%s198 + $0xa8] sm:$0xff] %v241
                %v243 = vld [vmem:[%s197 + $0x2c0] sm:$0xff]
                %244 = vst [vmem:[%s198 + $0xb0] sm:$0xff] %v243
                %v245 = vld [vmem:[%s197 + $0x2c8] sm:$0xff]
                %246 = vst [vmem:[%s198 + $0xb8] sm:$0xff] %v245
                %v247 = vld [vmem:[%s197 + $0x300] sm:$0xff]
                %248 = vst [vmem:[%s198 + $0xc0] sm:$0xff] %v247
                %v249 = vld [vmem:[%s197 + $0x308] sm:$0xff]
                %250 = vst [vmem:[%s198 + $0xc8] sm:$0xff] %v249
                %v251 = vld [vmem:[%s197 + $0x340] sm:$0xff]
                %252 = vst [vmem:[%s198 + $0xd0] sm:$0xff] %v251
                %v253 = vld [vmem:[%s197 + $0x348] sm:$0xff]
                %254 = vst [vmem:[%s198 + $0xd8] sm:$0xff] %v253
                %v255 = vld [vmem:[%s197 + $0x380] sm:$0xff]
                %256 = vst [vmem:[%s198 + $0xe0] sm:$0xff] %v255
                %v257 = vld [vmem:[%s197 + $0x388] sm:$0xff]
                %258 = vst [vmem:[%s198 + $0xe8] sm:$0xff] %v257
                %v259 = vld [vmem:[%s197 + $0x3c0] sm:$0xff]
                %260 = vst [vmem:[%s198 + $0xf0] sm:$0xff] %v259
                %v261 = vld [vmem:[%s197 + $0x3c8] sm:$0xff]
                %262 = vst [vmem:[%s198 + $0xf8] sm:$0xff] %v261
              $region41: #{generator_forward.44} parent=35 // loop_footer
                %s196 = sadd.s32 1, %s192
              $region42: #{generator_forward.44} parent=35 // loop_footer_branch
                %191 = sbr.rel target = $region38
              $region43: #{generator_forward.44} parent=35 // loop_exit
                _
            $region36: #{generator_forward.44} parent=31 // pred_fallthru
              _
            // Predicated region
            $region44: #{generator_forward.44} parent=31 // pred_check
              _
            $region45: #{generator_forward.44} parent=31 // pred_check_branch
              %264 = sbr.rel target = $region47
            $region46: #{generator_forward.44} parent=31 // pred_region
              _
            $region47: #{generator_forward.44} parent=31 // pred_fallthru
              _
          $region32: #{generator_forward.44} parent=27 // pred_fallthru
            _
          %265 = vnop
        $region28: #{generator_forward.44} parent=23 // pred_fallthru
          _
      $region24: #{generator_forward.44} parent=5 // pred_fallthru
        _
      %p266 = scmp.le.s32.totalorder 1, %s9
      %p267 = scmp.lt.s32.totalorder %s9, 5
      %p268 = pnand %p266, %p267
      %p269 = pneg %p268
      // Predicated region
      $region48: #{generator_forward.44} parent=5 // pred_check
        _
      $region49: #{generator_forward.44} parent=5 // pred_check_branch
        %271 = sbr.rel (%p268) target = $region51
      $region50: #{generator_forward.44} parent=5 // pred_region
        %s272 = ssub.s32 %s9, 1
        %s273 = sand.u32 %s71, 1
        %s274 = sand.u32 %s71, 1
        %s275 = smul.addr %s274, 256
        %s276 = scalar_lea.vmem [#allocation3], %s275
        // Predicated region
        $region52: #{generator_forward.44} parent=50 // pred_check
          %p277 = pneg %p84
        $region53: #{generator_forward.44} parent=50 // pred_check_branch
          %279 = sbr.rel (%p277) target = $region55
        $region54: #{generator_forward.44} parent=50 // pred_region
          _
        $region55: #{generator_forward.44} parent=50 // pred_fallthru
          _
        %p280 = scmp.lt.s32.totalorder %s19, 0
        %s281 = scalar_select %p280, %s19, 0
        %p282 = scmp.lt.s32.totalorder %s21, 0
        %s283 = scalar_select %p282, %s21, 0
        %s284 = sadd.s32 %s283, %s281
        %s285 = smul.addr %s284, 4
        %s286 = scalar_lea.vmem %s0, %s285
        %p287 = pneg %p56
        %p288 = pneg %p53
        %s289 = sand.u32 %s71, 1
        %s290 = sand.u32 %s71, 1
        %s291 = smul.addr %s290, 256
        %s292 = scalar_lea.vmem [#allocation3], %s291
        %p293 = pneg %p84
        %p294 = pneg %p81
        %p295 = scmp.lt.s32.totalorder %s19, 0
        %s296 = scalar_select %p295, %s19, 0
        %s297 = smul.addr %s296, 8
        %s298 = scalar_lea.vmem %s2, %s297
        %p299 = pneg %p110
        %p300 = pneg %p107
        %p301 = pneg %p138
        %p302 = pneg %p135
        %s303 = smul.u32 4, %s20
        %p304 = scmp.lt.s32.totalorder %s19, 0
        %s305 = scalar_select %p304, %s19, 0
        %p306 = scmp.lt.s32.totalorder %s303, 15
        %s307 = scalar_select %p306, %s303, 15
        %s308 = smul.addr %s305, 16
        %s309 = sadd.s32 %s307, %s308
        %s310 = smul.addr %s309, 8
        %s311 = scalar_lea.vmem %s3, %s310
        %p312 = scmp.lt.s32.totalorder %s19, 0
        %s313 = scalar_select %p312, %s19, 0
        %p314 = scmp.lt.s32.totalorder %s21, 0
        %s315 = scalar_select %p314, %s21, 0
        %s316 = sadd.s32 %s315, %s313
        %s317 = smul.addr %s316, 4
        %s318 = scalar_lea.vmem %s0, %s317
        %s319 = smul.u32 16, %s21
        %s320 = smul.u32 4, %s20
        %p321 = scmp.lt.s32.totalorder %s19, 0
        %s322 = scalar_select %p321, %s19, 0
        %s323 = smul.addr %s322, 8
        %s324 = scalar_lea.vmem %s2, %s323
        %s325 = smul.u32 4, %s20
        %p326 = scmp.lt.s32.totalorder %s19, 0
        %s327 = scalar_select %p326, %s19, 0
        %p328 = scmp.lt.s32.totalorder %s325, 15
        %s329 = scalar_select %p328, %s325, 15
        %s330 = smul.addr %s327, 16
        %s331 = sadd.s32 %s329, %s330
        %s332 = smul.addr %s331, 8
        %s333 = scalar_lea.vmem %s3, %s332
        %s334 = smul.u32 4, %s20
        %p335 = scmp.eq.s32.totalorder %s21, 0
        // Predicated region
        $region56: #{generator_forward.44} parent=50 // pred_check
          %p336 = pneg %p335
        $region57: #{generator_forward.44} parent=50 // pred_check_branch
          %338 = sbr.rel (%p336) target = $region59
        $region58: #{generator_forward.44} parent=50 // pred_region
          %339 = vst [vmem:[#allocation2] sm:$0xff] 0.0
          %340 = vst [vmem:[#allocation2 + $0x8] sm:$0xff] 0.0
          %341 = vst [vmem:[#allocation2 + $0x10] sm:$0xff] 0.0
          %342 = vst [vmem:[#allocation2 + $0x18] sm:$0xff] 0.0
        $region59: #{generator_forward.44} parent=50 // pred_fallthru
          _
        %v343 = vld [vmem:[#allocation2] sm:$0xff]
        %v344 = vld [vmem:[#allocation2 + $0x8] sm:$0xff]
        %v345 = vld [vmem:[#allocation2 + $0x10] sm:$0xff]
        %v346 = vld [vmem:[#allocation2 + $0x18] sm:$0xff]
        %v347 = vld [vmem:[%s318] sm:$0xf]
        %v348 = vld [vmem:[%s276] sm:$0xff]
        %v349 = vld [vmem:[%s276 + $0x8] sm:$0xff]
        %v350 = vld [vmem:[%s276 + $0x10] sm:$0xff]
        %v351 = vld [vmem:[%s276 + $0x18] sm:$0xff]
        %v352 = vld [vmem:[%s276 + $0x20] sm:$0xff]
        %v353 = vld [vmem:[%s276 + $0x28] sm:$0xff]
        %v354 = vld [vmem:[%s276 + $0x30] sm:$0xff]
        %v355 = vld [vmem:[%s276 + $0x38] sm:$0xff]
        %v356 = vld [vmem:[%s276 + $0x40] sm:$0xff]
        %v357 = vld [vmem:[%s276 + $0x48] sm:$0xff]
        %v358 = vld [vmem:[%s276 + $0x50] sm:$0xff]
        %v359 = vld [vmem:[%s276 + $0x58] sm:$0xff]
        %v360 = vld [vmem:[%s276 + $0x60] sm:$0xff]
        %v361 = vld [vmem:[%s276 + $0x68] sm:$0xff]
        %v362 = vld [vmem:[%s276 + $0x70] sm:$0xff]
        %v363 = vld [vmem:[%s276 + $0x78] sm:$0xff]
        %v364 = vld [vmem:[%s276 + $0x80] sm:$0xff]
        %v365 = vld [vmem:[%s276 + $0x88] sm:$0xff]
        %v366 = vld [vmem:[%s276 + $0x90] sm:$0xff]
        %v367 = vld [vmem:[%s276 + $0x98] sm:$0xff]
        %v368 = vld [vmem:[%s276 + $0xa0] sm:$0xff]
        %v369 = vld [vmem:[%s276 + $0xa8] sm:$0xff]
        %v370 = vld [vmem:[%s276 + $0xb0] sm:$0xff]
        %v371 = vld [vmem:[%s276 + $0xb8] sm:$0xff]
        %v372 = vld [vmem:[%s276 + $0xc0] sm:$0xff]
        %v373 = vld [vmem:[%s276 + $0xc8] sm:$0xff]
        %v374 = vld [vmem:[%s276 + $0xd0] sm:$0xff]
        %v375 = vld [vmem:[%s276 + $0xd8] sm:$0xff]
        %v376 = vld [vmem:[%s276 + $0xe0] sm:$0xff]
        %v377 = vld [vmem:[%s276 + $0xe8] sm:$0xff]
        %v378 = vld [vmem:[%s276 + $0xf0] sm:$0xff]
        %v379 = vld [vmem:[%s276 + $0xf8] sm:$0xff]
        %v412 = vunpack.c.l.b16 %v348
        %v413 = vunpack.c.h.b16 %v348
        %v414 = vunpack.c.l.b16 %v349
        %v415 = vunpack.c.h.b16 %v349
        %v416 = vunpack.c.l.b16 %v350
        %v417 = vunpack.c.h.b16 %v350
        %v418 = vunpack.c.l.b16 %v351
        %v419 = vunpack.c.h.b16 %v351
        %v420 = vunpack.c.l.b16 %v352
        %v421 = vunpack.c.h.b16 %v352
        %v422 = vunpack.c.l.b16 %v353
        %v423 = vunpack.c.h.b16 %v353
        %v424 = vunpack.c.l.b16 %v354
        %v425 = vunpack.c.h.b16 %v354
        %v426 = vunpack.c.l.b16 %v355
        %v427 = vunpack.c.h.b16 %v355
        %v428 = vunpack.c.l.b16 %v356
        %v429 = vunpack.c.h.b16 %v356
        %v430 = vunpack.c.l.b16 %v357
        %v431 = vunpack.c.h.b16 %v357
        %v432 = vunpack.c.l.b16 %v358
        %v433 = vunpack.c.h.b16 %v358
        %v434 = vunpack.c.l.b16 %v359
        %v435 = vunpack.c.h.b16 %v359
        %v436 = vunpack.c.l.b16 %v360
        %v437 = vunpack.c.h.b16 %v360
        %v438 = vunpack.c.l.b16 %v361
        %v439 = vunpack.c.h.b16 %v361
        %v440 = vunpack.c.l.b16 %v362
        %v441 = vunpack.c.h.b16 %v362
        %v442 = vunpack.c.l.b16 %v363
        %v443 = vunpack.c.h.b16 %v363
        %v444 = vunpack.c.l.b16 %v364
        %v445 = vunpack.c.h.b16 %v364
        %v446 = vunpack.c.l.b16 %v365
        %v447 = vunpack.c.h.b16 %v365
        %v448 = vunpack.c.l.b16 %v366
        %v449 = vunpack.c.h.b16 %v366
        %v450 = vunpack.c.l.b16 %v367
        %v451 = vunpack.c.h.b16 %v367
        %v452 = vunpack.c.l.b16 %v368
        %v453 = vunpack.c.h.b16 %v368
        %v454 = vunpack.c.l.b16 %v369
        %v455 = vunpack.c.h.b16 %v369
        %v456 = vunpack.c.l.b16 %v370
        %v457 = vunpack.c.h.b16 %v370
        %v458 = vunpack.c.l.b16 %v371
        %v459 = vunpack.c.h.b16 %v371
        %v460 = vunpack.c.l.b16 %v372
        %v461 = vunpack.c.h.b16 %v372
        %v462 = vunpack.c.l.b16 %v373
        %v463 = vunpack.c.h.b16 %v373
        %v464 = vunpack.c.l.b16 %v374
        %v465 = vunpack.c.h.b16 %v374
        %v466 = vunpack.c.l.b16 %v375
        %v467 = vunpack.c.h.b16 %v375
        %v468 = vunpack.c.l.b16 %v376
        %v469 = vunpack.c.h.b16 %v376
        %v470 = vunpack.c.l.b16 %v377
        %v471 = vunpack.c.h.b16 %v377
        %v472 = vunpack.c.l.b16 %v378
        %v473 = vunpack.c.h.b16 %v378
        %v474 = vunpack.c.l.b16 %v379
        %v475 = vunpack.c.h.b16 %v379
        %v476 = vpack.c.b16 %v416, %v412
        %v477 = vpack.c.b16 %v417, %v413
        %v478 = vpack.c.b16 %v418, %v414
        %v479 = vpack.c.b16 %v419, %v415
        %v480 = vpack.c.b16 %v424, %v420
        %v481 = vpack.c.b16 %v425, %v421
        %v482 = vpack.c.b16 %v426, %v422
        %v483 = vpack.c.b16 %v427, %v423
        %v484 = vpack.c.b16 %v432, %v428
        %v485 = vpack.c.b16 %v433, %v429
        %v486 = vpack.c.b16 %v434, %v430
        %v487 = vpack.c.b16 %v435, %v431
        %v488 = vpack.c.b16 %v440, %v436
        %v489 = vpack.c.b16 %v441, %v437
        %v490 = vpack.c.b16 %v442, %v438
        %v491 = vpack.c.b16 %v443, %v439
        %v492 = vpack.c.b16 %v448, %v444
        %v493 = vpack.c.b16 %v449, %v445
        %v494 = vpack.c.b16 %v450, %v446
        %v495 = vpack.c.b16 %v451, %v447
        %v496 = vpack.c.b16 %v456, %v452
        %v497 = vpack.c.b16 %v457, %v453
        %v498 = vpack.c.b16 %v458, %v454
        %v499 = vpack.c.b16 %v459, %v455
        %v500 = vpack.c.b16 %v464, %v460
        %v501 = vpack.c.b16 %v465, %v461
        %v502 = vpack.c.b16 %v466, %v462
        %v503 = vpack.c.b16 %v467, %v463
        %v504 = vpack.c.b16 %v472, %v468
        %v505 = vpack.c.b16 %v473, %v469
        %v506 = vpack.c.b16 %v474, %v470
        %v507 = vpack.c.b16 %v475, %v471
        %540 = vmatpush.bf16.msra.mxu0 %v504
        %541 = vmatpush.bf16.msra.mxu0 %v500
        %542 = vmatpush.bf16.msra.mxu0 %v496
        %543 = vmatpush.bf16.msra.mxu0 %v492
        %544 = vmatpush.bf16.msra.mxu0 %v488
        %545 = vmatpush.bf16.msra.mxu0 %v484
        %546 = vmatpush.bf16.msra.mxu0 %v480
        %547 = vmatpush.bf16.msra.mxu0 %v476
        %548 = vmatmul.bf16.gmra.mxu0 %v347
        %v549 = vpop.f32.mrf.mxu0
        %v550 = vadd.f32 0.0, %v549
        %v551 = vpop.f32.mrf.mxu0
        %552 = vdwg.mxu0
        %553 = vmatpush.bf16.msra.mxu0 %v505
        %554 = vmatpush.bf16.msra.mxu0 %v501
        %555 = vmatpush.bf16.msra.mxu0 %v497
        %556 = vmatpush.bf16.msra.mxu0 %v493
        %557 = vmatpush.bf16.msra.mxu0 %v489
        %558 = vmatpush.bf16.msra.mxu0 %v485
        %559 = vmatpush.bf16.msra.mxu0 %v481
        %560 = vmatpush.bf16.msra.mxu0 %v477
        %561 = vmatmul.bf16.gmra.mxu0 %v347
        %v562 = vpop.f32.mrf.mxu0
        %v563 = vadd.f32 0.0, %v562
        %v564 = vpop.f32.mrf.mxu0
        %565 = vdwg.mxu0
        %566 = vmatpush.bf16.msra.mxu0 %v506
        %567 = vmatpush.bf16.msra.mxu0 %v502
        %568 = vmatpush.bf16.msra.mxu0 %v498
        %569 = vmatpush.bf16.msra.mxu0 %v494
        %570 = vmatpush.bf16.msra.mxu0 %v490
        %571 = vmatpush.bf16.msra.mxu0 %v486
        %572 = vmatpush.bf16.msra.mxu0 %v482
        %573 = vmatpush.bf16.msra.mxu0 %v478
        %574 = vmatmul.bf16.gmra.mxu0 %v347
        %v575 = vpop.f32.mrf.mxu0
        %v576 = vadd.f32 0.0, %v575
        %v577 = vpop.f32.mrf.mxu0
        %578 = vdwg.mxu0
        %579 = vmatpush.bf16.msra.mxu0 %v507
        %580 = vmatpush.bf16.msra.mxu0 %v503
        %581 = vmatpush.bf16.msra.mxu0 %v499
        %582 = vmatpush.bf16.msra.mxu0 %v495
        %583 = vmatpush.bf16.msra.mxu0 %v491
        %584 = vmatpush.bf16.msra.mxu0 %v487
        %585 = vmatpush.bf16.msra.mxu0 %v483
        %586 = vmatpush.bf16.msra.mxu0 %v479
        %587 = vmatmul.bf16.gmra.mxu0 %v347
        %v588 = vpop.f32.mrf.mxu0
        %v589 = vadd.f32 0.0, %v588
        %v590 = vpop.f32.mrf.mxu0
        %591 = vdwg.mxu0
        %v592 = vadd.f32 %v343, %v550
        %v593 = vadd.f32 %v344, %v563
        %v594 = vadd.f32 %v345, %v576
        %v595 = vadd.f32 %v346, %v589
        %596 = vst [vmem:[#allocation2] sm:$0xff] %v592
        %597 = vst [vmem:[#allocation2 + $0x8] sm:$0xff] %v593
        %598 = vst [vmem:[#allocation2 + $0x10] sm:$0xff] %v594
        %599 = vst [vmem:[#allocation2 + $0x18] sm:$0xff] %v595
        // Predicated region
        $region60: #{generator_forward.44} parent=50 // pred_check
          %p600 = pneg %p335
        $region61: #{generator_forward.44} parent=50 // pred_check_branch
          %602 = sbr.rel (%p600) target = $region63
        $region62: #{generator_forward.44} parent=50 // pred_region
          %v603 = vld [vmem:[#allocation2] sm:$0xff]
          %v604 = vld [vmem:[#allocation2 + $0x8] sm:$0xff]
          %v605 = vld [vmem:[#allocation2 + $0x10] sm:$0xff]
          %v606 = vld [vmem:[#allocation2 + $0x18] sm:$0xff]
          %v607 = vld [vmem:[%s324] sm:$0xff]
          %609 = vset.pattern.permute.xlu0 0
          %610 = vperm.xlu0 %609, %v607
          %v611 = vpop.permute.xlu0 %610
          %v613 = vadd.f32 %v603, %v611
          %v614 = vadd.f32 %v604, %v611
          %v615 = vadd.f32 %v605, %v611
          %v616 = vadd.f32 %v606, %v611
          %617 = vst [vmem:[%s333] sm:$0xff] %v613
          %618 = vst [vmem:[%s333 + $0x8] sm:$0xff] %v614
          %619 = vst [vmem:[%s333 + $0x10] sm:$0xff] %v615
          %620 = vst [vmem:[%s333 + $0x18] sm:$0xff] %v616
        $region63: #{generator_forward.44} parent=50 // pred_fallthru
          _
        %s621 = smul.u32 4, %s20
        %p622 = scmp.lt.s32.totalorder %s19, 0
        %s623 = scalar_select %p622, %s19, 0
        %p624 = scmp.lt.s32.totalorder %s621, 15
        %s625 = scalar_select %p624, %s621, 15
        %s626 = smul.addr %s623, 16
        %s627 = sadd.s32 %s625, %s626
        %s628 = smul.addr %s627, 8
        %s629 = scalar_lea.vmem %s3, %s628
        // Predicated region
        $region64: #{generator_forward.44} parent=50 // pred_check
          %p630 = pneg %p135
        $region65: #{generator_forward.44} parent=50 // pred_check_branch
          %632 = sbr.rel (%p630) target = $region67
        $region66: #{generator_forward.44} parent=50 // pred_region
          %s633 = smul.u32 4, %s20
        $region67: #{generator_forward.44} parent=50 // pred_fallthru
          _
      $region51: #{generator_forward.44} parent=5 // pred_fallthru
        _
      %p634 = scmp.le.s32.totalorder 2, %s9
      // Predicated region
      $region68: #{generator_forward.44} parent=5 // pred_check
        %p635 = pneg %p634
      $region69: #{generator_forward.44} parent=5 // pred_check_branch
        %637 = sbr.rel (%p635) target = $region71
      $region70: #{generator_forward.44} parent=5 // pred_region
        %s638 = ssub.s32 %s9, 2
        // Predicated region
        $region72: #{generator_forward.44} parent=70 // pred_check
          %p639 = pneg %p141
        $region73: #{generator_forward.44} parent=70 // pred_check_branch
          %641 = sbr.rel (%p639) target = $region75
        $region74: #{generator_forward.44} parent=70 // pred_region
          %s642 = smul.u32 4, %s23
          %p643 = scmp.lt.s32.totalorder %s22, 0
          %s644 = scalar_select %p643, %s22, 0
          %p645 = scmp.lt.s32.totalorder %s642, 15
          %s646 = scalar_select %p645, %s642, 15
          %s647 = smul.addr %s644, 16
          %s648 = sadd.s32 %s646, %s647
          %s649 = smul.addr %s648, 8
          %s650 = scalar_lea.vmem %s3, %s649
        $region75: #{generator_forward.44} parent=70 // pred_fallthru
          _
      $region71: #{generator_forward.44} parent=5 // pred_fallthru
        _
    $region6: #{generator_forward.44} parent=1 // loop_footer
      %s13 = sadd.s32 1, %s9
    $region7: #{generator_forward.44} parent=1 // loop_footer_branch
      %8 = sbr.rel target = $region3
    $region8: #{generator_forward.44} parent=1 // loop_exit
      _

// kernel: generator_forward.46
$region0: #{generator_forward.46}
  #allocation0 [shape = 'u32[]', space=smem, size = 0x4, offset = 0x4, fixed_abs, tag = 'smem constant byte address 0x4 - core index']
  #allocation1 [shape = 'u32[72,128]{1,0:T(1,128)}', space=vmem, size = 0x9000, scoped, tag = 'internal scratch']
  #allocation2 [shape = 'f32[8,512]{1,0:T(8,128)}', space=vmem, size = 0x4000, scoped, tag = 'scratch operand']
  %s0 = inlined_call_operand.vmem [shape: bf16[8,128], index: 0, kind: input, shape index: {}]
  %s1 = inlined_call_operand.vmem [shape: bf16[128,512], index: 1, kind: input, shape index: {}]
  %s2 = inlined_call_operand.vmem [shape: f32[8,1], index: 2, kind: input, shape index: {}]
  %s3 = inlined_call_operand.vmem [shape: f32[8,512], index: 3, kind: output, shape index: {}]
  %s4 = sld [smem:[#allocation0]]
  $region30: #{generator_forward.46} parent=0
    _
  %s6 = ssub.s32 1, %s4
  %s7 = scalar_select 0, %s6, %s4
  // Predicated region
  $region2: #{generator_forward.46} parent=0 // pred_check
    _
  $region3: #{generator_forward.46} parent=0 // pred_check_branch
    %9 = sbr.rel (0) target = $region5
  $region4: #{generator_forward.46} parent=0 // pred_region
    _
  $region5: #{generator_forward.46} parent=0 // pred_fallthru
    _
  // Predicated region
  $region6: #{generator_forward.46} parent=0 // pred_check
    _
  $region7: #{generator_forward.46} parent=0 // pred_check_branch
    %11 = sbr.rel (0) target = $region9
  $region8: #{generator_forward.46} parent=0 // pred_region
    _
  $region9: #{generator_forward.46} parent=0 // pred_fallthru
    _
  // Predicated region
  $region10: #{generator_forward.46} parent=0 // pred_check
    _
  $region11: #{generator_forward.46} parent=0 // pred_check_branch
    %13 = sbr.rel (0) target = $region13
  $region12: #{generator_forward.46} parent=0 // pred_region
    _
  $region13: #{generator_forward.46} parent=0 // pred_fallthru
    _
  %p14 = scmp.eq.s32.totalorder 0, 0
  // Predicated region
  $region14: #{generator_forward.46} parent=0 // pred_check
    %p15 = pneg %p14
  $region15: #{generator_forward.46} parent=0 // pred_check_branch
    %17 = sbr.rel (%p15) target = $region17
  $region16: #{generator_forward.46} parent=0 // pred_region
    %18 = vst [vmem:[#allocation2] sm:$0xff] 0.0
    %19 = vst [vmem:[#allocation2 + $0x8] sm:$0xff] 0.0
    %20 = vst [vmem:[#allocation2 + $0x10] sm:$0xff] 0.0
    %21 = vst [vmem:[#allocation2 + $0x18] sm:$0xff] 0.0
  $region17: #{generator_forward.46} parent=0 // pred_fallthru
    _
  %v22 = vld [vmem:[#allocation2] sm:$0xff]
  %v23 = vld [vmem:[#allocation2 + $0x8] sm:$0xff]
  %v24 = vld [vmem:[#allocation2 + $0x10] sm:$0xff]
  %v25 = vld [vmem:[#allocation2 + $0x18] sm:$0xff]
  %v26 = vld [vmem:[%s0] sm:$0xf]
  %v27 = vld [vmem:[%s1] sm:$0xff]
  %v28 = vld [vmem:[%s1 + $0x8] sm:$0xff]
  %v29 = vld [vmem:[%s1 + $0x10] sm:$0xff]
  %v30 = vld [vmem:[%s1 + $0x18] sm:$0xff]
  %v31 = vld [vmem:[%s1 + $0x20] sm:$0xff]
  %v32 = vld [vmem:[%s1 + $0x28] sm:$0xff]
  %v33 = vld [vmem:[%s1 + $0x30] sm:$0xff]
  %v34 = vld [vmem:[%s1 + $0x38] sm:$0xff]
  %v35 = vld [vmem:[%s1 + $0x40] sm:$0xff]
  %v36 = vld [vmem:[%s1 + $0x48] sm:$0xff]
  %v37 = vld [vmem:[%s1 + $0x50] sm:$0xff]
  %v38 = vld [vmem:[%s1 + $0x58] sm:$0xff]
  %v39 = vld [vmem:[%s1 + $0x60] sm:$0xff]
  %v40 = vld [vmem:[%s1 + $0x68] sm:$0xff]
  %v41 = vld [vmem:[%s1 + $0x70] sm:$0xff]
  %v42 = vld [vmem:[%s1 + $0x78] sm:$0xff]
  %v43 = vld [vmem:[%s1 + $0x80] sm:$0xff]
  %v44 = vld [vmem:[%s1 + $0x88] sm:$0xff]
  %v45 = vld [vmem:[%s1 + $0x90] sm:$0xff]
  %v46 = vld [vmem:[%s1 + $0x98] sm:$0xff]
  %v47 = vld [vmem:[%s1 + $0xa0] sm:$0xff]
  %v48 = vld [vmem:[%s1 + $0xa8] sm:$0xff]
  %v49 = vld [vmem:[%s1 + $0xb0] sm:$0xff]
  %v50 = vld [vmem:[%s1 + $0xb8] sm:$0xff]
  %v51 = vld [vmem:[%s1 + $0xc0] sm:$0xff]
  %v52 = vld [vmem:[%s1 + $0xc8] sm:$0xff]
  %v53 = vld [vmem:[%s1 + $0xd0] sm:$0xff]
  %v54 = vld [vmem:[%s1 + $0xd8] sm:$0xff]
  %v55 = vld [vmem:[%s1 + $0xe0] sm:$0xff]
  %v56 = vld [vmem:[%s1 + $0xe8] sm:$0xff]
  %v57 = vld [vmem:[%s1 + $0xf0] sm:$0xff]
  %v58 = vld [vmem:[%s1 + $0xf8] sm:$0xff]
  %v91 = vunpack.c.l.b16 %v27
  %v92 = vunpack.c.h.b16 %v27
  %v93 = vunpack.c.l.b16 %v28
  %v94 = vunpack.c.h.b16 %v28
  %v95 = vunpack.c.l.b16 %v29
  %v96 = vunpack.c.h.b16 %v29
  %v97 = vunpack.c.l.b16 %v30
  %v98 = vunpack.c.h.b16 %v30
  %v99 = vunpack.c.l.b16 %v31
  %v100 = vunpack.c.h.b16 %v31
  %v101 = vunpack.c.l.b16 %v32
  %v102 = vunpack.c.h.b16 %v32
  %v103 = vunpack.c.l.b16 %v33
  %v104 = vunpack.c.h.b16 %v33
  %v105 = vunpack.c.l.b16 %v34
  %v106 = vunpack.c.h.b16 %v34
  %v107 = vunpack.c.l.b16 %v35
  %v108 = vunpack.c.h.b16 %v35
  %v109 = vunpack.c.l.b16 %v36
  %v110 = vunpack.c.h.b16 %v36
  %v111 = vunpack.c.l.b16 %v37
  %v112 = vunpack.c.h.b16 %v37
  %v113 = vunpack.c.l.b16 %v38
  %v114 = vunpack.c.h.b16 %v38
  %v115 = vunpack.c.l.b16 %v39
  %v116 = vunpack.c.h.b16 %v39
  %v117 = vunpack.c.l.b16 %v40
  %v118 = vunpack.c.h.b16 %v40
  %v119 = vunpack.c.l.b16 %v41
  %v120 = vunpack.c.h.b16 %v41
  %v121 = vunpack.c.l.b16 %v42
  %v122 = vunpack.c.h.b16 %v42
  %v123 = vunpack.c.l.b16 %v43
  %v124 = vunpack.c.h.b16 %v43
  %v125 = vunpack.c.l.b16 %v44
  %v126 = vunpack.c.h.b16 %v44
  %v127 = vunpack.c.l.b16 %v45
  %v128 = vunpack.c.h.b16 %v45
  %v129 = vunpack.c.l.b16 %v46
  %v130 = vunpack.c.h.b16 %v46
  %v131 = vunpack.c.l.b16 %v47
  %v132 = vunpack.c.h.b16 %v47
  %v133 = vunpack.c.l.b16 %v48
  %v134 = vunpack.c.h.b16 %v48
  %v135 = vunpack.c.l.b16 %v49
  %v136 = vunpack.c.h.b16 %v49
  %v137 = vunpack.c.l.b16 %v50
  %v138 = vunpack.c.h.b16 %v50
  %v139 = vunpack.c.l.b16 %v51
  %v140 = vunpack.c.h.b16 %v51
  %v141 = vunpack.c.l.b16 %v52
  %v142 = vunpack.c.h.b16 %v52
  %v143 = vunpack.c.l.b16 %v53
  %v144 = vunpack.c.h.b16 %v53
  %v145 = vunpack.c.l.b16 %v54
  %v146 = vunpack.c.h.b16 %v54
  %v147 = vunpack.c.l.b16 %v55
  %v148 = vunpack.c.h.b16 %v55
  %v149 = vunpack.c.l.b16 %v56
  %v150 = vunpack.c.h.b16 %v56
  %v151 = vunpack.c.l.b16 %v57
  %v152 = vunpack.c.h.b16 %v57
  %v153 = vunpack.c.l.b16 %v58
  %v154 = vunpack.c.h.b16 %v58
  %v155 = vpack.c.b16 %v95, %v91
  %v156 = vpack.c.b16 %v96, %v92
  %v157 = vpack.c.b16 %v97, %v93
  %v158 = vpack.c.b16 %v98, %v94
  %v159 = vpack.c.b16 %v103, %v99
  %v160 = vpack.c.b16 %v104, %v100
  %v161 = vpack.c.b16 %v105, %v101
  %v162 = vpack.c.b16 %v106, %v102
  %v163 = vpack.c.b16 %v111, %v107
  %v164 = vpack.c.b16 %v112, %v108
  %v165 = vpack.c.b16 %v113, %v109
  %v166 = vpack.c.b16 %v114, %v110
  %v167 = vpack.c.b16 %v119, %v115
  %v168 = vpack.c.b16 %v120, %v116
  %v169 = vpack.c.b16 %v121, %v117
  %v170 = vpack.c.b16 %v122, %v118
  %v171 = vpack.c.b16 %v127, %v123
  %v172 = vpack.c.b16 %v128, %v124
  %v173 = vpack.c.b16 %v129, %v125
  %v174 = vpack.c.b16 %v130, %v126
  %v175 = vpack.c.b16 %v135, %v131
  %v176 = vpack.c.b16 %v136, %v132
  %v177 = vpack.c.b16 %v137, %v133
  %v178 = vpack.c.b16 %v138, %v134
  %v179 = vpack.c.b16 %v143, %v139
  %v180 = vpack.c.b16 %v144, %v140
  %v181 = vpack.c.b16 %v145, %v141
  %v182 = vpack.c.b16 %v146, %v142
  %v183 = vpack.c.b16 %v151, %v147
  %v184 = vpack.c.b16 %v152, %v148
  %v185 = vpack.c.b16 %v153, %v149
  %v186 = vpack.c.b16 %v154, %v150
  %219 = vmatpush.bf16.msra.mxu0 %v183
  %220 = vmatpush.bf16.msra.mxu0 %v179
  %221 = vmatpush.bf16.msra.mxu0 %v175
  %222 = vmatpush.bf16.msra.mxu0 %v171
  %223 = vmatpush.bf16.msra.mxu0 %v167
  %224 = vmatpush.bf16.msra.mxu0 %v163
  %225 = vmatpush.bf16.msra.mxu0 %v159
  %226 = vmatpush.bf16.msra.mxu0 %v155
  %227 = vmatmul.bf16.gmra.mxu0 %v26
  %v228 = vpop.f32.mrf.mxu0
  %v229 = vadd.f32 0.0, %v228
  %v230 = vpop.f32.mrf.mxu0
  %231 = vdwg.mxu0
  %232 = vmatpush.bf16.msra.mxu0 %v184
  %233 = vmatpush.bf16.msra.mxu0 %v180
  %234 = vmatpush.bf16.msra.mxu0 %v176
  %235 = vmatpush.bf16.msra.mxu0 %v172
  %236 = vmatpush.bf16.msra.mxu0 %v168
  %237 = vmatpush.bf16.msra.mxu0 %v164
  %238 = vmatpush.bf16.msra.mxu0 %v160
  %239 = vmatpush.bf16.msra.mxu0 %v156
  %240 = vmatmul.bf16.gmra.mxu0 %v26
  %v241 = vpop.f32.mrf.mxu0
  %v242 = vadd.f32 0.0, %v241
  %v243 = vpop.f32.mrf.mxu0
  %244 = vdwg.mxu0
  %245 = vmatpush.bf16.msra.mxu0 %v185
  %246 = vmatpush.bf16.msra.mxu0 %v181
  %247 = vmatpush.bf16.msra.mxu0 %v177
  %248 = vmatpush.bf16.msra.mxu0 %v173
  %249 = vmatpush.bf16.msra.mxu0 %v169
  %250 = vmatpush.bf16.msra.mxu0 %v165
  %251 = vmatpush.bf16.msra.mxu0 %v161
  %252 = vmatpush.bf16.msra.mxu0 %v157
  %253 = vmatmul.bf16.gmra.mxu0 %v26
  %v254 = vpop.f32.mrf.mxu0
  %v255 = vadd.f32 0.0, %v254
  %v256 = vpop.f32.mrf.mxu0
  %257 = vdwg.mxu0
  %258 = vmatpush.bf16.msra.mxu0 %v186
  %259 = vmatpush.bf16.msra.mxu0 %v182
  %260 = vmatpush.bf16.msra.mxu0 %v178
  %261 = vmatpush.bf16.msra.mxu0 %v174
  %262 = vmatpush.bf16.msra.mxu0 %v170
  %263 = vmatpush.bf16.msra.mxu0 %v166
  %264 = vmatpush.bf16.msra.mxu0 %v162
  %265 = vmatpush.bf16.msra.mxu0 %v158
  %266 = vmatmul.bf16.gmra.mxu0 %v26
  %v267 = vpop.f32.mrf.mxu0
  %v268 = vadd.f32 0.0, %v267
  %v269 = vpop.f32.mrf.mxu0
  %270 = vdwg.mxu0
  %v271 = vadd.f32 %v22, %v229
  %v272 = vadd.f32 %v23, %v242
  %v273 = vadd.f32 %v24, %v255
  %v274 = vadd.f32 %v25, %v268
  %275 = vst [vmem:[#allocation2] sm:$0xff] %v271
  %276 = vst [vmem:[#allocation2 + $0x8] sm:$0xff] %v272
  %277 = vst [vmem:[#allocation2 + $0x10] sm:$0xff] %v273
  %278 = vst [vmem:[#allocation2 + $0x18] sm:$0xff] %v274
  // Predicated region
  $region18: #{generator_forward.46} parent=0 // pred_check
    %p279 = pneg %p14
  $region19: #{generator_forward.46} parent=0 // pred_check_branch
    %281 = sbr.rel (%p279) target = $region21
  $region20: #{generator_forward.46} parent=0 // pred_region
    %v282 = vld [vmem:[#allocation2] sm:$0xff]
    %v283 = vld [vmem:[#allocation2 + $0x8] sm:$0xff]
    %v284 = vld [vmem:[#allocation2 + $0x10] sm:$0xff]
    %v285 = vld [vmem:[#allocation2 + $0x18] sm:$0xff]
    %v286 = vld [vmem:[%s2] sm:$0xff]
    %288 = vset.pattern.permute.xlu0 0
    %289 = vperm.xlu0 %288, %v286
    %v290 = vpop.permute.xlu0 %289
    %v292 = vadd.f32 %v282, %v290
    %v293 = vadd.f32 %v283, %v290
    %v294 = vadd.f32 %v284, %v290
    %v295 = vadd.f32 %v285, %v290
    %296 = vst [vmem:[%s3] sm:$0xff] %v292
    %297 = vst [vmem:[%s3 + $0x8] sm:$0xff] %v293
    %298 = vst [vmem:[%s3 + $0x10] sm:$0xff] %v294
    %299 = vst [vmem:[%s3 + $0x18] sm:$0xff] %v295
  $region21: #{generator_forward.46} parent=0 // pred_fallthru
    _
  // Predicated region
  $region22: #{generator_forward.46} parent=0 // pred_check
    _
  $region23: #{generator_forward.46} parent=0 // pred_check_branch
    %301 = sbr.rel (0) target = $region25
  $region24: #{generator_forward.46} parent=0 // pred_region
    _
  $region25: #{generator_forward.46} parent=0 // pred_fallthru
    _
  // Predicated region
  $region26: #{generator_forward.46} parent=0 // pred_check
    _
  $region27: #{generator_forward.46} parent=0 // pred_check_branch
    %303 = sbr.rel (0) target = $region29
  $region28: #{generator_forward.46} parent=0 // pred_region
    _
  $region29: #{generator_forward.46} parent=0 // pred_fallthru
    _

// kernel: generator_forward.47
$region0: #{generator_forward.47}
  #allocation0 [shape = 'u32[]', space=smem, size = 0x4, offset = 0x4, fixed_abs, tag = 'smem constant byte address 0x4 - core index']
  #allocation1 [shape = 'u32[72,128]{1,0:T(1,128)}', space=vmem, size = 0x9000, scoped, tag = 'internal scratch']
  #allocation2 [shape = 'f32[16,512]{1,0:T(8,128)}', space=vmem, size = 0x8000, scoped, tag = 'scratch operand']
  %s0 = inlined_call_operand.vmem [shape: bf16[16,128], index: 0, kind: input, shape index: {}]
  %s1 = inlined_call_operand.vmem [shape: bf16[128,512], index: 1, kind: input, shape index: {}]
  %s2 = inlined_call_operand.vmem [shape: f32[16,1], index: 2, kind: input, shape index: {}]
  %s3 = inlined_call_operand.vmem [shape: f32[16,512], index: 3, kind: output, shape index: {}]
  %s4 = sld [smem:[#allocation0]]
  $region30: #{generator_forward.47} parent=0
    _
  %s6 = ssub.s32 1, %s4
  %s7 = scalar_select 0, %s6, %s4
  // Predicated region
  $region2: #{generator_forward.47} parent=0 // pred_check
    _
  $region3: #{generator_forward.47} parent=0 // pred_check_branch
    %9 = sbr.rel (0) target = $region5
  $region4: #{generator_forward.47} parent=0 // pred_region
    _
  $region5: #{generator_forward.47} parent=0 // pred_fallthru
    _
  // Predicated region
  $region6: #{generator_forward.47} parent=0 // pred_check
    _
  $region7: #{generator_forward.47} parent=0 // pred_check_branch
    %11 = sbr.rel (0) target = $region9
  $region8: #{generator_forward.47} parent=0 // pred_region
    _
  $region9: #{generator_forward.47} parent=0 // pred_fallthru
    _
  // Predicated region
  $region10: #{generator_forward.47} parent=0 // pred_check
    _
  $region11: #{generator_forward.47} parent=0 // pred_check_branch
    %13 = sbr.rel (0) target = $region13
  $region12: #{generator_forward.47} parent=0 // pred_region
    _
  $region13: #{generator_forward.47} parent=0 // pred_fallthru
    _
  %p14 = scmp.eq.s32.totalorder 0, 0
  // Predicated region
  $region14: #{generator_forward.47} parent=0 // pred_check
    %p15 = pneg %p14
  $region15: #{generator_forward.47} parent=0 // pred_check_branch
    %17 = sbr.rel (%p15) target = $region17
  $region16: #{generator_forward.47} parent=0 // pred_region
    %18 = vst [vmem:[#allocation2] sm:$0xff] 0.0
    %19 = vst [vmem:[#allocation2 + $0x8] sm:$0xff] 0.0
    %20 = vst [vmem:[#allocation2 + $0x10] sm:$0xff] 0.0
    %21 = vst [vmem:[#allocation2 + $0x18] sm:$0xff] 0.0
    %22 = vst [vmem:[#allocation2 + $0x20] sm:$0xff] 0.0
    %23 = vst [vmem:[#allocation2 + $0x28] sm:$0xff] 0.0
    %24 = vst [vmem:[#allocation2 + $0x30] sm:$0xff] 0.0
    %25 = vst [vmem:[#allocation2 + $0x38] sm:$0xff] 0.0
  $region17: #{generator_forward.47} parent=0 // pred_fallthru
    _
  %v26 = vld [vmem:[#allocation2] sm:$0xff]
  %v27 = vld [vmem:[#allocation2 + $0x8] sm:$0xff]
  %v28 = vld [vmem:[#allocation2 + $0x10] sm:$0xff]
  %v29 = vld [vmem:[#allocation2 + $0x18] sm:$0xff]
  %v30 = vld [vmem:[#allocation2 + $0x20] sm:$0xff]
  %v31 = vld [vmem:[#allocation2 + $0x28] sm:$0xff]
  %v32 = vld [vmem:[#allocation2 + $0x30] sm:$0xff]
  %v33 = vld [vmem:[#allocation2 + $0x38] sm:$0xff]
  %v34 = vld [vmem:[%s0] sm:$0xf]
  %v35 = vld [vmem:[%s0 + $0x4] sm:$0xf]
  %v36 = vld [vmem:[%s1] sm:$0xff]
  %v37 = vld [vmem:[%s1 + $0x8] sm:$0xff]
  %v38 = vld [vmem:[%s1 + $0x10] sm:$0xff]
  %v39 = vld [vmem:[%s1 + $0x18] sm:$0xff]
  %v40 = vld [vmem:[%s1 + $0x20] sm:$0xff]
  %v41 = vld [vmem:[%s1 + $0x28] sm:$0xff]
  %v42 = vld [vmem:[%s1 + $0x30] sm:$0xff]
  %v43 = vld [vmem:[%s1 + $0x38] sm:$0xff]
  %v44 = vld [vmem:[%s1 + $0x40] sm:$0xff]
  %v45 = vld [vmem:[%s1 + $0x48] sm:$0xff]
  %v46 = vld [vmem:[%s1 + $0x50] sm:$0xff]
  %v47 = vld [vmem:[%s1 + $0x58] sm:$0xff]
  %v48 = vld [vmem:[%s1 + $0x60] sm:$0xff]
  %v49 = vld [vmem:[%s1 + $0x68] sm:$0xff]
  %v50 = vld [vmem:[%s1 + $0x70] sm:$0xff]
  %v51 = vld [vmem:[%s1 + $0x78] sm:$0xff]
  %v52 = vld [vmem:[%s1 + $0x80] sm:$0xff]
  %v53 = vld [vmem:[%s1 + $0x88] sm:$0xff]
  %v54 = vld [vmem:[%s1 + $0x90] sm:$0xff]
  %v55 = vld [vmem:[%s1 + $0x98] sm:$0xff]
  %v56 = vld [vmem:[%s1 + $0xa0] sm:$0xff]
  %v57 = vld [vmem:[%s1 + $0xa8] sm:$0xff]
  %v58 = vld [vmem:[%s1 + $0xb0] sm:$0xff]
  %v59 = vld [vmem:[%s1 + $0xb8] sm:$0xff]
  %v60 = vld [vmem:[%s1 + $0xc0] sm:$0xff]
  %v61 = vld [vmem:[%s1 + $0xc8] sm:$0xff]
  %v62 = vld [vmem:[%s1 + $0xd0] sm:$0xff]
  %v63 = vld [vmem:[%s1 + $0xd8] sm:$0xff]
  %v64 = vld [vmem:[%s1 + $0xe0] sm:$0xff]
  %v65 = vld [vmem:[%s1 + $0xe8] sm:$0xff]
  %v66 = vld [vmem:[%s1 + $0xf0] sm:$0xff]
  %v67 = vld [vmem:[%s1 + $0xf8] sm:$0xff]
  %v70 = vunpack.c.l.b16 %v34
  %v71 = vunpack.c.l.b16 %v35
  %v72 = vpack.c.b16 %v71, %v70
  %v106 = vunpack.c.l.b16 %v36
  %v107 = vunpack.c.h.b16 %v36
  %v108 = vunpack.c.l.b16 %v37
  %v109 = vunpack.c.h.b16 %v37
  %v110 = vunpack.c.l.b16 %v38
  %v111 = vunpack.c.h.b16 %v38
  %v112 = vunpack.c.l.b16 %v39
  %v113 = vunpack.c.h.b16 %v39
  %v114 = vunpack.c.l.b16 %v40
  %v115 = vunpack.c.h.b16 %v40
  %v116 = vunpack.c.l.b16 %v41
  %v117 = vunpack.c.h.b16 %v41
  %v118 = vunpack.c.l.b16 %v42
  %v119 = vunpack.c.h.b16 %v42
  %v120 = vunpack.c.l.b16 %v43
  %v121 = vunpack.c.h.b16 %v43
  %v122 = vunpack.c.l.b16 %v44
  %v123 = vunpack.c.h.b16 %v44
  %v124 = vunpack.c.l.b16 %v45
  %v125 = vunpack.c.h.b16 %v45
  %v126 = vunpack.c.l.b16 %v46
  %v127 = vunpack.c.h.b16 %v46
  %v128 = vunpack.c.l.b16 %v47
  %v129 = vunpack.c.h.b16 %v47
  %v130 = vunpack.c.l.b16 %v48
  %v131 = vunpack.c.h.b16 %v48
  %v132 = vunpack.c.l.b16 %v49
  %v133 = vunpack.c.h.b16 %v49
  %v134 = vunpack.c.l.b16 %v50
  %v135 = vunpack.c.h.b16 %v50
  %v136 = vunpack.c.l.b16 %v51
  %v137 = vunpack.c.h.b16 %v51
  %v138 = vunpack.c.l.b16 %v52
  %v139 = vunpack.c.h.b16 %v52
  %v140 = vunpack.c.l.b16 %v53
  %v141 = vunpack.c.h.b16 %v53
  %v142 = vunpack.c.l.b16 %v54
  %v143 = vunpack.c.h.b16 %v54
  %v144 = vunpack.c.l.b16 %v55
  %v145 = vunpack.c.h.b16 %v55
  %v146 = vunpack.c.l.b16 %v56
  %v147 = vunpack.c.h.b16 %v56
  %v148 = vunpack.c.l.b16 %v57
  %v149 = vunpack.c.h.b16 %v57
  %v150 = vunpack.c.l.b16 %v58
  %v151 = vunpack.c.h.b16 %v58
  %v152 = vunpack.c.l.b16 %v59
  %v153 = vunpack.c.h.b16 %v59
  %v154 = vunpack.c.l.b16 %v60
  %v155 = vunpack.c.h.b16 %v60
  %v156 = vunpack.c.l.b16 %v61
  %v157 = vunpack.c.h.b16 %v61
  %v158 = vunpack.c.l.b16 %v62
  %v159 = vunpack.c.h.b16 %v62
  %v160 = vunpack.c.l.b16 %v63
  %v161 = vunpack.c.h.b16 %v63
  %v162 = vunpack.c.l.b16 %v64
  %v163 = vunpack.c.h.b16 %v64
  %v164 = vunpack.c.l.b16 %v65
  %v165 = vunpack.c.h.b16 %v65
  %v166 = vunpack.c.l.b16 %v66
  %v167 = vunpack.c.h.b16 %v66
  %v168 = vunpack.c.l.b16 %v67
  %v169 = vunpack.c.h.b16 %v67
  %v170 = vpack.c.b16 %v110, %v106
  %v171 = vpack.c.b16 %v111, %v107
  %v172 = vpack.c.b16 %v112, %v108
  %v173 = vpack.c.b16 %v113, %v109
  %v174 = vpack.c.b16 %v118, %v114
  %v175 = vpack.c.b16 %v119, %v115
  %v176 = vpack.c.b16 %v120, %v116
  %v177 = vpack.c.b16 %v121, %v117
  %v178 = vpack.c.b16 %v126, %v122
  %v179 = vpack.c.b16 %v127, %v123
  %v180 = vpack.c.b16 %v128, %v124
  %v181 = vpack.c.b16 %v129, %v125
  %v182 = vpack.c.b16 %v134, %v130
  %v183 = vpack.c.b16 %v135, %v131
  %v184 = vpack.c.b16 %v136, %v132
  %v185 = vpack.c.b16 %v137, %v133
  %v186 = vpack.c.b16 %v142, %v138
  %v187 = vpack.c.b16 %v143, %v139
  %v188 = vpack.c.b16 %v144, %v140
  %v189 = vpack.c.b16 %v145, %v141
  %v190 = vpack.c.b16 %v150, %v146
  %v191 = vpack.c.b16 %v151, %v147
  %v192 = vpack.c.b16 %v152, %v148
  %v193 = vpack.c.b16 %v153, %v149
  %v194 = vpack.c.b16 %v158, %v154
  %v195 = vpack.c.b16 %v159, %v155
  %v196 = vpack.c.b16 %v160, %v156
  %v197 = vpack.c.b16 %v161, %v157
  %v198 = vpack.c.b16 %v166, %v162
  %v199 = vpack.c.b16 %v167, %v163
  %v200 = vpack.c.b16 %v168, %v164
  %v201 = vpack.c.b16 %v169, %v165
  %234 = vmatpush.bf16.msra.mxu0 %v198
  %235 = vmatpush.bf16.msra.mxu0 %v194
  %236 = vmatpush.bf16.msra.mxu0 %v190
  %237 = vmatpush.bf16.msra.mxu0 %v186
  %238 = vmatpush.bf16.msra.mxu0 %v182
  %239 = vmatpush.bf16.msra.mxu0 %v178
  %240 = vmatpush.bf16.msra.mxu0 %v174
  %241 = vmatpush.bf16.msra.mxu0 %v170
  %242 = vmatmul.bf16.gmra.mxu0 %v72
  %v243 = vpop.f32.mrf.mxu0
  %v244 = vadd.f32 0.0, %v243
  %v245 = vpop.f32.mrf.mxu0
  %v246 = vadd.f32 0.0, %v245
  %247 = vdwg.mxu0
  %248 = vmatpush.bf16.msra.mxu0 %v199
  %249 = vmatpush.bf16.msra.mxu0 %v195
  %250 = vmatpush.bf16.msra.mxu0 %v191
  %251 = vmatpush.bf16.msra.mxu0 %v187
  %252 = vmatpush.bf16.msra.mxu0 %v183
  %253 = vmatpush.bf16.msra.mxu0 %v179
  %254 = vmatpush.bf16.msra.mxu0 %v175
  %255 = vmatpush.bf16.msra.mxu0 %v171
  %256 = vmatmul.bf16.gmra.mxu0 %v72
  %v257 = vpop.f32.mrf.mxu0
  %v258 = vadd.f32 0.0, %v257
  %v259 = vpop.f32.mrf.mxu0
  %v260 = vadd.f32 0.0, %v259
  %261 = vdwg.mxu0
  %262 = vmatpush.bf16.msra.mxu0 %v200
  %263 = vmatpush.bf16.msra.mxu0 %v196
  %264 = vmatpush.bf16.msra.mxu0 %v192
  %265 = vmatpush.bf16.msra.mxu0 %v188
  %266 = vmatpush.bf16.msra.mxu0 %v184
  %267 = vmatpush.bf16.msra.mxu0 %v180
  %268 = vmatpush.bf16.msra.mxu0 %v176
  %269 = vmatpush.bf16.msra.mxu0 %v172
  %270 = vmatmul.bf16.gmra.mxu0 %v72
  %v271 = vpop.f32.mrf.mxu0
  %v272 = vadd.f32 0.0, %v271
  %v273 = vpop.f32.mrf.mxu0
  %v274 = vadd.f32 0.0, %v273
  %275 = vdwg.mxu0
  %276 = vmatpush.bf16.msra.mxu0 %v201
  %277 = vmatpush.bf16.msra.mxu0 %v197
  %278 = vmatpush.bf16.msra.mxu0 %v193
  %279 = vmatpush.bf16.msra.mxu0 %v189
  %280 = vmatpush.bf16.msra.mxu0 %v185
  %281 = vmatpush.bf16.msra.mxu0 %v181
  %282 = vmatpush.bf16.msra.mxu0 %v177
  %283 = vmatpush.bf16.msra.mxu0 %v173
  %284 = vmatmul.bf16.gmra.mxu0 %v72
  %v285 = vpop.f32.mrf.mxu0
  %v286 = vadd.f32 0.0, %v285
  %v287 = vpop.f32.mrf.mxu0
  %v288 = vadd.f32 0.0, %v287
  %289 = vdwg.mxu0
  %v290 = vadd.f32 %v26, %v244
  %v291 = vadd.f32 %v27, %v258
  %v292 = vadd.f32 %v28, %v272
  %v293 = vadd.f32 %v29, %v286
  %v294 = vadd.f32 %v30, %v246
  %v295 = vadd.f32 %v31, %v260
  %v296 = vadd.f32 %v32, %v274
  %v297 = vadd.f32 %v33, %v288
  %298 = vst [vmem:[#allocation2] sm:$0xff] %v290
  %299 = vst [vmem:[#allocation2 + $0x8] sm:$0xff] %v291
  %300 = vst [vmem:[#allocation2 + $0x10] sm:$0xff] %v292
  %301 = vst [vmem:[#allocation2 + $0x18] sm:$0xff] %v293
  %302 = vst [vmem:[#allocation2 + $0x20] sm:$0xff] %v294
  %303 = vst [vmem:[#allocation2 + $0x28] sm:$0xff] %v295
  %304 = vst [vmem:[#allocation2 + $0x30] sm:$0xff] %v296
  %305 = vst [vmem:[#allocation2 + $0x38] sm:$0xff] %v297
  // Predicated region
  $region18: #{generator_forward.47} parent=0 // pred_check
    %p306 = pneg %p14
  $region19: #{generator_forward.47} parent=0 // pred_check_branch
    %308 = sbr.rel (%p306) target = $region21
  $region20: #{generator_forward.47} parent=0 // pred_region
    %v309 = vld [vmem:[#allocation2] sm:$0xff]
    %v310 = vld [vmem:[#allocation2 + $0x8] sm:$0xff]
    %v311 = vld [vmem:[#allocation2 + $0x10] sm:$0xff]
    %v312 = vld [vmem:[#allocation2 + $0x18] sm:$0xff]
    %v313 = vld [vmem:[#allocation2 + $0x20] sm:$0xff]
    %v314 = vld [vmem:[#allocation2 + $0x28] sm:$0xff]
    %v315 = vld [vmem:[#allocation2 + $0x30] sm:$0xff]
    %v316 = vld [vmem:[#allocation2 + $0x38] sm:$0xff]
    %v317 = vld [vmem:[%s2] sm:$0xff]
    %v318 = vld [vmem:[%s2 + $0x8] sm:$0xff]
    %320 = vset.pattern.permute.xlu0 0
    %321 = vperm.xlu0 %320, %v317
    %v322 = vpop.permute.xlu0 %321
    %325 = vset.pattern.permute.xlu0 0
    %326 = vperm.xlu0 %325, %v318
    %v327 = vpop.permute.xlu0 %326
    %v329 = vadd.f32 %v309, %v322
    %v330 = vadd.f32 %v310, %v322
    %v331 = vadd.f32 %v311, %v322
    %v332 = vadd.f32 %v312, %v322
    %v333 = vadd.f32 %v313, %v327
    %v334 = vadd.f32 %v314, %v327
    %v335 = vadd.f32 %v315, %v327
    %v336 = vadd.f32 %v316, %v327
    %337 = vst [vmem:[%s3] sm:$0xff] %v329
    %338 = vst [vmem:[%s3 + $0x8] sm:$0xff] %v330
    %339 = vst [vmem:[%s3 + $0x10] sm:$0xff] %v331
    %340 = vst [vmem:[%s3 + $0x18] sm:$0xff] %v332
    %341 = vst [vmem:[%s3 + $0x20] sm:$0xff] %v333
    %342 = vst [vmem:[%s3 + $0x28] sm:$0xff] %v334
    %343 = vst [vmem:[%s3 + $0x30] sm:$0xff] %v335
    %344 = vst [vmem:[%s3 + $0x38] sm:$0xff] %v336
  $region21: #{generator_forward.47} parent=0 // pred_fallthru
    _
  // Predicated region
  $region22: #{generator_forward.47} parent=0 // pred_check
    _
  $region23: #{generator_forward.47} parent=0 // pred_check_branch
    %346 = sbr.rel (0) target = $region25
  $region24: #{generator_forward.47} parent=0 // pred_region
    _
  $region25: #{generator_forward.47} parent=0 // pred_fallthru
    _
  // Predicated region
  $region26: #{generator_forward.47} parent=0 // pred_check
    _
  $region27: #{generator_forward.47} parent=0 // pred_check_branch
    %348 = sbr.rel (0) target = $region29
  $region28: #{generator_forward.47} parent=0 // pred_region
    _
  $region29: #{generator_forward.47} parent=0 // pred_fallthru
    _

// kernel: generator_forward.48
$region0: #{generator_forward.48}
  #allocation0 [shape = 'u32[]', space=smem, size = 0x4, offset = 0x4, fixed_abs, tag = 'smem constant byte address 0x4 - core index']
  #allocation1 [shape = 'u32[72,128]{1,0:T(1,128)}', space=vmem, size = 0x9000, scoped, tag = 'internal scratch']
  %s0 = inlined_call_operand.vmem [shape: f32[32,256], index: 0, kind: input, shape index: {}]
  %s1 = inlined_call_operand.vmem [shape: f32[32,256], index: 1, kind: output, shape index: {}]
  %s2 = sld [smem:[#allocation0]]
  $region14: #{generator_forward.48} parent=0
    _
  %s4 = ssub.s32 1, %s2
  %s5 = scalar_select 0, %s4, %s2
  // Predicated region
  $region2: #{generator_forward.48} parent=0 // pred_check
    _
  $region3: #{generator_forward.48} parent=0 // pred_check_branch
    %7 = sbr.rel (0) target = $region5
  $region4: #{generator_forward.48} parent=0 // pred_region
    _
  $region5: #{generator_forward.48} parent=0 // pred_fallthru
    _
  %v8 = vld [vmem:[%s0] sm:$0xff]
  %v9 = vld [vmem:[%s0 + $0x8] sm:$0xff]
  %v10 = vld [vmem:[%s0 + $0x10] sm:$0xff]
  %v11 = vld [vmem:[%s0 + $0x18] sm:$0xff]
  %v12 = vld [vmem:[%s0 + $0x20] sm:$0xff]
  %v13 = vld [vmem:[%s0 + $0x28] sm:$0xff]
  %v14 = vld [vmem:[%s0 + $0x30] sm:$0xff]
  %v15 = vld [vmem:[%s0 + $0x38] sm:$0xff]
  %v16 = vadd.f32 %v8, %v9
  %17 = vadd.xlane.f32.xlu0 %v16
  %v18 = vpop.xlane.xlu0 %17
  %v19 = vadd.f32 %v10, %v11
  %20 = vadd.xlane.f32.xlu0 %v19
  %v21 = vpop.xlane.xlu0 %20
  %v22 = vadd.f32 %v12, %v13
  %23 = vadd.xlane.f32.xlu0 %v22
  %v24 = vpop.xlane.xlu0 %23
  %v25 = vadd.f32 %v14, %v15
  %26 = vadd.xlane.f32.xlu0 %v25
  %v27 = vpop.xlane.xlu0 %26
  %v28 = vrcp.pop 256.0
  %v29 = vmul.f32 256.0, %v28
  %v30 = vsub.f32 1.0, %v29
  %v31 = vmul.f32 %v28, %v30
  %v32 = vadd.f32 %v28, %v31
  %vm33 = vweird.f32 %v28
  %v34 = vsel %vm33, %v28, %v32
  %v35 = vmul.f32 %v18, %v34
  %v36 = vmul.f32 %v21, %v34
  %v37 = vmul.f32 %v24, %v34
  %v38 = vmul.f32 %v27, %v34
  %v39 = vsub.f32 %v8, %v35
  %v40 = vsub.f32 %v9, %v35
  %v41 = vsub.f32 %v10, %v36
  %v42 = vsub.f32 %v11, %v36
  %v43 = vsub.f32 %v12, %v37
  %v44 = vsub.f32 %v13, %v37
  %v45 = vsub.f32 %v14, %v38
  %v46 = vsub.f32 %v15, %v38
  %v47 = vmul.f32 %v39, %v39
  %v48 = vmul.f32 %v40, %v40
  %v49 = vmul.f32 %v41, %v41
  %v50 = vmul.f32 %v42, %v42
  %v51 = vmul.f32 %v43, %v43
  %v52 = vmul.f32 %v44, %v44
  %v53 = vmul.f32 %v45, %v45
  %v54 = vmul.f32 %v46, %v46
  %v55 = vadd.f32 %v47, %v48
  %56 = vadd.xlane.f32.xlu0 %v55
  %v57 = vpop.xlane.xlu0 %56
  %v58 = vadd.f32 %v49, %v50
  %59 = vadd.xlane.f32.xlu0 %v58
  %v60 = vpop.xlane.xlu0 %59
  %v61 = vadd.f32 %v51, %v52
  %62 = vadd.xlane.f32.xlu0 %v61
  %v63 = vpop.xlane.xlu0 %62
  %v64 = vadd.f32 %v53, %v54
  %65 = vadd.xlane.f32.xlu0 %v64
  %v66 = vpop.xlane.xlu0 %65
  %v67 = vmul.f32 %v57, %v34
  %v68 = vmul.f32 %v60, %v34
  %v69 = vmul.f32 %v63, %v34
  %v70 = vmul.f32 %v66, %v34
  %v71 = vadd.f32 %v67, 1e-05
  %v72 = vadd.f32 %v68, 1e-05
  %v73 = vadd.f32 %v69, 1e-05
  %v74 = vadd.f32 %v70, 1e-05
  %v75 = vrsqrt.pop %v71
  %v76 = vmul.f32 %v75, %v71
  %v77 = vmul.f32 %v76, %v75
  %v78 = vmul.f32 0.5, %v77
  %v79 = vsub.f32 1.5, %v78
  %v80 = vmul.f32 %v75, %v79
  %vm81 = vweird.f32 %v71
  %vm82 = vweird.f32 %v75
  %vm83 = vmor %vm81, %vm82
  %v84 = vsel %vm83, %v75, %v80
  %v85 = vrsqrt.pop %v72
  %v86 = vmul.f32 %v85, %v72
  %v87 = vmul.f32 %v86, %v85
  %v88 = vmul.f32 0.5, %v87
  %v89 = vsub.f32 1.5, %v88
  %v90 = vmul.f32 %v85, %v89
  %vm91 = vweird.f32 %v72
  %vm92 = vweird.f32 %v85
  %vm93 = vmor %vm91, %vm92
  %v94 = vsel %vm93, %v85, %v90
  %v95 = vrsqrt.pop %v73
  %v96 = vmul.f32 %v95, %v73
  %v97 = vmul.f32 %v96, %v95
  %v98 = vmul.f32 0.5, %v97
  %v99 = vsub.f32 1.5, %v98
  %v100 = vmul.f32 %v95, %v99
  %vm101 = vweird.f32 %v73
  %vm102 = vweird.f32 %v95
  %vm103 = vmor %vm101, %vm102
  %v104 = vsel %vm103, %v95, %v100
  %v105 = vrsqrt.pop %v74
  %v106 = vmul.f32 %v105, %v74
  %v107 = vmul.f32 %v106, %v105
  %v108 = vmul.f32 0.5, %v107
  %v109 = vsub.f32 1.5, %v108
  %v110 = vmul.f32 %v105, %v109
  %vm111 = vweird.f32 %v74
  %vm112 = vweird.f32 %v105
  %vm113 = vmor %vm111, %vm112
  %v114 = vsel %vm113, %v105, %v110
  %v115 = vmul.f32 %v39, %v84
  %v116 = vmul.f32 %v40, %v84
  %v117 = vmul.f32 %v41, %v94
  %v118 = vmul.f32 %v42, %v94
  %v119 = vmul.f32 %v43, %v104
  %v120 = vmul.f32 %v44, %v104
  %v121 = vmul.f32 %v45, %v114
  %v122 = vmul.f32 %v46, %v114
  %vm123 = vcmp.gt.f32.partialorder %v115, 0.0
  %vm124 = vcmp.gt.f32.partialorder %v116, 0.0
  %vm125 = vcmp.gt.f32.partialorder %v117, 0.0
  %vm126 = vcmp.gt.f32.partialorder %v118, 0.0
  %vm127 = vcmp.gt.f32.partialorder %v119, 0.0
  %vm128 = vcmp.gt.f32.partialorder %v120, 0.0
  %vm129 = vcmp.gt.f32.partialorder %v121, 0.0
  %vm130 = vcmp.gt.f32.partialorder %v122, 0.0
  %v131 = vmul.f32 %v115, 0.01
  %v132 = vmul.f32 %v116, 0.01
  %v133 = vmul.f32 %v117, 0.01
  %v134 = vmul.f32 %v118, 0.01
  %v135 = vmul.f32 %v119, 0.01
  %v136 = vmul.f32 %v120, 0.01
  %v137 = vmul.f32 %v121, 0.01
  %v138 = vmul.f32 %v122, 0.01
  %v139 = vsel %vm123, %v115, %v131
  %v140 = vsel %vm124, %v116, %v132
  %v141 = vsel %vm125, %v117, %v133
  %v142 = vsel %vm126, %v118, %v134
  %v143 = vsel %vm127, %v119, %v135
  %v144 = vsel %vm128, %v120, %v136
  %v145 = vsel %vm129, %v121, %v137
  %v146 = vsel %vm130, %v122, %v138
  %147 = vst [vmem:[%s1] sm:$0xff] %v139
  %148 = vst [vmem:[%s1 + $0x8] sm:$0xff] %v140
  %149 = vst [vmem:[%s1 + $0x10] sm:$0xff] %v141
  %150 = vst [vmem:[%s1 + $0x18] sm:$0xff] %v142
  %151 = vst [vmem:[%s1 + $0x20] sm:$0xff] %v143
  %152 = vst [vmem:[%s1 + $0x28] sm:$0xff] %v144
  %153 = vst [vmem:[%s1 + $0x30] sm:$0xff] %v145
  %154 = vst [vmem:[%s1 + $0x38] sm:$0xff] %v146
  // Predicated region
  $region6: #{generator_forward.48} parent=0 // pred_check
    _
  $region7: #{generator_forward.48} parent=0 // pred_check_branch
    %156 = sbr.rel (0) target = $region9
  $region8: #{generator_forward.48} parent=0 // pred_region
    _
  $region9: #{generator_forward.48} parent=0 // pred_fallthru
    _
  // Predicated region
  $region10: #{generator_forward.48} parent=0 // pred_check
    _
  $region11: #{generator_forward.48} parent=0 // pred_check_branch
    %158 = sbr.rel (0) target = $region13
  $region12: #{generator_forward.48} parent=0 // pred_region
    _
  $region13: #{generator_forward.48} parent=0 // pred_fallthru
    _

// kernel: generator_forward.49
$region0: #{generator_forward.49}
  #allocation0 [shape = 'u32[]', space=smem, size = 0x4, offset = 0x4, fixed_abs, tag = 'smem constant byte address 0x4 - core index']
  #allocation1 [shape = 'u32[72,128]{1,0:T(1,128)}', space=vmem, size = 0x9000, scoped, tag = 'internal scratch']
  #allocation2 [shape = 'f32[16,512]{1,0:T(8,128)}', space=vmem, size = 0x8000, scoped, tag = 'scratch operand']
  %s0 = inlined_call_operand.vmem [shape: bf16[16,256], index: 0, kind: input, shape index: {}]
  %s1 = inlined_call_operand.vmem [shape: bf16[256,512], index: 1, kind: input, shape index: {}]
  %s2 = inlined_call_operand.vmem [shape: f32[16,1], index: 2, kind: input, shape index: {}]
  %s3 = inlined_call_operand.vmem [shape: f32[16,512], index: 3, kind: output, shape index: {}]
  %s4 = sld [smem:[#allocation0]]
  $region30: #{generator_forward.49} parent=0
    _
  %s6 = ssub.s32 1, %s4
  %s7 = scalar_select 0, %s6, %s4
  // Predicated region
  $region2: #{generator_forward.49} parent=0 // pred_check
    _
  $region3: #{generator_forward.49} parent=0 // pred_check_branch
    %9 = sbr.rel (0) target = $region5
  $region4: #{generator_forward.49} parent=0 // pred_region
    _
  $region5: #{generator_forward.49} parent=0 // pred_fallthru
    _
  // Predicated region
  $region6: #{generator_forward.49} parent=0 // pred_check
    _
  $region7: #{generator_forward.49} parent=0 // pred_check_branch
    %11 = sbr.rel (0) target = $region9
  $region8: #{generator_forward.49} parent=0 // pred_region
    _
  $region9: #{generator_forward.49} parent=0 // pred_fallthru
    _
  // Predicated region
  $region10: #{generator_forward.49} parent=0 // pred_check
    _
  $region11: #{generator_forward.49} parent=0 // pred_check_branch
    %13 = sbr.rel (0) target = $region13
  $region12: #{generator_forward.49} parent=0 // pred_region
    _
  $region13: #{generator_forward.49} parent=0 // pred_fallthru
    _
  %p14 = scmp.eq.s32.totalorder 0, 0
  // Predicated region
  $region14: #{generator_forward.49} parent=0 // pred_check
    %p15 = pneg %p14
  $region15: #{generator_forward.49} parent=0 // pred_check_branch
    %17 = sbr.rel (%p15) target = $region17
  $region16: #{generator_forward.49} parent=0 // pred_region
    %18 = vst [vmem:[#allocation2] sm:$0xff] 0.0
    %19 = vst [vmem:[#allocation2 + $0x8] sm:$0xff] 0.0
    %20 = vst [vmem:[#allocation2 + $0x10] sm:$0xff] 0.0
    %21 = vst [vmem:[#allocation2 + $0x18] sm:$0xff] 0.0
    %22 = vst [vmem:[#allocation2 + $0x20] sm:$0xff] 0.0
    %23 = vst [vmem:[#allocation2 + $0x28] sm:$0xff] 0.0
    %24 = vst [vmem:[#allocation2 + $0x30] sm:$0xff] 0.0
    %25 = vst [vmem:[#allocation2 + $0x38] sm:$0xff] 0.0
  $region17: #{generator_forward.49} parent=0 // pred_fallthru
    _
  %v26 = vld [vmem:[#allocation2] sm:$0xff]
  %v27 = vld [vmem:[#allocation2 + $0x8] sm:$0xff]
  %v28 = vld [vmem:[#allocation2 + $0x10] sm:$0xff]
  %v29 = vld [vmem:[#allocation2 + $0x18] sm:$0xff]
  %v30 = vld [vmem:[#allocation2 + $0x20] sm:$0xff]
  %v31 = vld [vmem:[#allocation2 + $0x28] sm:$0xff]
  %v32 = vld [vmem:[#allocation2 + $0x30] sm:$0xff]
  %v33 = vld [vmem:[#allocation2 + $0x38] sm:$0xff]
  %v34 = vld [vmem:[%s0] sm:$0xff]
  %v35 = vld [vmem:[%s0 + $0x8] sm:$0xff]
  %v36 = vld [vmem:[%s1] sm:$0xff]
  %v37 = vld [vmem:[%s1 + $0x8] sm:$0xff]
  %v38 = vld [vmem:[%s1 + $0x10] sm:$0xff]
  %v39 = vld [vmem:[%s1 + $0x18] sm:$0xff]
  %v40 = vld [vmem:[%s1 + $0x20] sm:$0xff]
  %v41 = vld [vmem:[%s1 + $0x28] sm:$0xff]
  %v42 = vld [vmem:[%s1 + $0x30] sm:$0xff]
  %v43 = vld [vmem:[%s1 + $0x38] sm:$0xff]
  %v44 = vld [vmem:[%s1 + $0x40] sm:$0xff]
  %v45 = vld [vmem:[%s1 + $0x48] sm:$0xff]
  %v46 = vld [vmem:[%s1 + $0x50] sm:$0xff]
  %v47 = vld [vmem:[%s1 + $0x58] sm:$0xff]
  %v48 = vld [vmem:[%s1 + $0x60] sm:$0xff]
  %v49 = vld [vmem:[%s1 + $0x68] sm:$0xff]
  %v50 = vld [vmem:[%s1 + $0x70] sm:$0xff]
  %v51 = vld [vmem:[%s1 + $0x78] sm:$0xff]
  %v52 = vld [vmem:[%s1 + $0x80] sm:$0xff]
  %v53 = vld [vmem:[%s1 + $0x88] sm:$0xff]
  %v54 = vld [vmem:[%s1 + $0x90] sm:$0xff]
  %v55 = vld [vmem:[%s1 + $0x98] sm:$0xff]
  %v56 = vld [vmem:[%s1 + $0xa0] sm:$0xff]
  %v57 = vld [vmem:[%s1 + $0xa8] sm:$0xff]
  %v58 = vld [vmem:[%s1 + $0xb0] sm:$0xff]
  %v59 = vld [vmem:[%s1 + $0xb8] sm:$0xff]
  %v60 = vld [vmem:[%s1 + $0xc0] sm:$0xff]
  %v61 = vld [vmem:[%s1 + $0xc8] sm:$0xff]
  %v62 = vld [vmem:[%s1 + $0xd0] sm:$0xff]
  %v63 = vld [vmem:[%s1 + $0xd8] sm:$0xff]
  %v64 = vld [vmem:[%s1 + $0xe0] sm:$0xff]
  %v65 = vld [vmem:[%s1 + $0xe8] sm:$0xff]
  %v66 = vld [vmem:[%s1 + $0xf0] sm:$0xff]
  %v67 = vld [vmem:[%s1 + $0xf8] sm:$0xff]
  %v68 = vld [vmem:[%s1 + $0x100] sm:$0xff]
  %v69 = vld [vmem:[%s1 + $0x108] sm:$0xff]
  %v70 = vld [vmem:[%s1 + $0x110] sm:$0xff]
  %v71 = vld [vmem:[%s1 + $0x118] sm:$0xff]
  %v72 = vld [vmem:[%s1 + $0x120] sm:$0xff]
  %v73 = vld [vmem:[%s1 + $0x128] sm:$0xff]
  %v74 = vld [vmem:[%s1 + $0x130] sm:$0xff]
  %v75 = vld [vmem:[%s1 + $0x138] sm:$0xff]
  %v76 = vld [vmem:[%s1 + $0x140] sm:$0xff]
  %v77 = vld [vmem:[%s1 + $0x148] sm:$0xff]
  %v78 = vld [vmem:[%s1 + $0x150] sm:$0xff]
  %v79 = vld [vmem:[%s1 + $0x158] sm:$0xff]
  %v80 = vld [vmem:[%s1 + $0x160] sm:$0xff]
  %v81 = vld [vmem:[%s1 + $0x168] sm:$0xff]
  %v82 = vld [vmem:[%s1 + $0x170] sm:$0xff]
  %v83 = vld [vmem:[%s1 + $0x178] sm:$0xff]
  %v84 = vld [vmem:[%s1 + $0x180] sm:$0xff]
  %v85 = vld [vmem:[%s1 + $0x188] sm:$0xff]
  %v86 = vld [vmem:[%s1 + $0x190] sm:$0xff]
  %v87 = vld [vmem:[%s1 + $0x198] sm:$0xff]
  %v88 = vld [vmem:[%s1 + $0x1a0] sm:$0xff]
  %v89 = vld [vmem:[%s1 + $0x1a8] sm:$0xff]
  %v90 = vld [vmem:[%s1 + $0x1b0] sm:$0xff]
  %v91 = vld [vmem:[%s1 + $0x1b8] sm:$0xff]
  %v92 = vld [vmem:[%s1 + $0x1c0] sm:$0xff]
  %v93 = vld [vmem:[%s1 + $0x1c8] sm:$0xff]
  %v94 = vld [vmem:[%s1 + $0x1d0] sm:$0xff]
  %v95 = vld [vmem:[%s1 + $0x1d8] sm:$0xff]
  %v96 = vld [vmem:[%s1 + $0x1e0] sm:$0xff]
  %v97 = vld [vmem:[%s1 + $0x1e8] sm:$0xff]
  %v98 = vld [vmem:[%s1 + $0x1f0] sm:$0xff]
  %v99 = vld [vmem:[%s1 + $0x1f8] sm:$0xff]
  %v102 = vunpack.c.l.b16 %v34
  %v103 = vunpack.c.h.b16 %v34
  %v104 = vunpack.c.l.b16 %v35
  %v105 = vunpack.c.h.b16 %v35
  %v106 = vpack.c.b16 %v104, %v102
  %v107 = vpack.c.b16 %v105, %v103
  %v174 = vunpack.c.l.b16 %v36
  %v175 = vunpack.c.h.b16 %v36
  %v176 = vunpack.c.l.b16 %v37
  %v177 = vunpack.c.h.b16 %v37
  %v178 = vunpack.c.l.b16 %v38
  %v179 = vunpack.c.h.b16 %v38
  %v180 = vunpack.c.l.b16 %v39
  %v181 = vunpack.c.h.b16 %v39
  %v182 = vunpack.c.l.b16 %v40
  %v183 = vunpack.c.h.b16 %v40
  %v184 = vunpack.c.l.b16 %v41
  %v185 = vunpack.c.h.b16 %v41
  %v186 = vunpack.c.l.b16 %v42
  %v187 = vunpack.c.h.b16 %v42
  %v188 = vunpack.c.l.b16 %v43
  %v189 = vunpack.c.h.b16 %v43
  %v190 = vunpack.c.l.b16 %v44
  %v191 = vunpack.c.h.b16 %v44
  %v192 = vunpack.c.l.b16 %v45
  %v193 = vunpack.c.h.b16 %v45
  %v194 = vunpack.c.l.b16 %v46
  %v195 = vunpack.c.h.b16 %v46
  %v196 = vunpack.c.l.b16 %v47
  %v197 = vunpack.c.h.b16 %v47
  %v198 = vunpack.c.l.b16 %v48
  %v199 = vunpack.c.h.b16 %v48
  %v200 = vunpack.c.l.b16 %v49
  %v201 = vunpack.c.h.b16 %v49
  %v202 = vunpack.c.l.b16 %v50
  %v203 = vunpack.c.h.b16 %v50
  %v204 = vunpack.c.l.b16 %v51
  %v205 = vunpack.c.h.b16 %v51
  %v206 = vunpack.c.l.b16 %v52
  %v207 = vunpack.c.h.b16 %v52
  %v208 = vunpack.c.l.b16 %v53
  %v209 = vunpack.c.h.b16 %v53
  %v210 = vunpack.c.l.b16 %v54
  %v211 = vunpack.c.h.b16 %v54
  %v212 = vunpack.c.l.b16 %v55
  %v213 = vunpack.c.h.b16 %v55
  %v214 = vunpack.c.l.b16 %v56
  %v215 = vunpack.c.h.b16 %v56
  %v216 = vunpack.c.l.b16 %v57
  %v217 = vunpack.c.h.b16 %v57
  %v218 = vunpack.c.l.b16 %v58
  %v219 = vunpack.c.h.b16 %v58
  %v220 = vunpack.c.l.b16 %v59
  %v221 = vunpack.c.h.b16 %v59
  %v222 = vunpack.c.l.b16 %v60
  %v223 = vunpack.c.h.b16 %v60
  %v224 = vunpack.c.l.b16 %v61
  %v225 = vunpack.c.h.b16 %v61
  %v226 = vunpack.c.l.b16 %v62
  %v227 = vunpack.c.h.b16 %v62
  %v228 = vunpack.c.l.b16 %v63
  %v229 = vunpack.c.h.b16 %v63
  %v230 = vunpack.c.l.b16 %v64
  %v231 = vunpack.c.h.b16 %v64
  %v232 = vunpack.c.l.b16 %v65
  %v233 = vunpack.c.h.b16 %v65
  %v234 = vunpack.c.l.b16 %v66
  %v235 = vunpack.c.h.b16 %v66
  %v236 = vunpack.c.l.b16 %v67
  %v237 = vunpack.c.h.b16 %v67
  %v238 = vunpack.c.l.b16 %v68
  %v239 = vunpack.c.h.b16 %v68
  %v240 = vunpack.c.l.b16 %v69
  %v241 = vunpack.c.h.b16 %v69
  %v242 = vunpack.c.l.b16 %v70
  %v243 = vunpack.c.h.b16 %v70
  %v244 = vunpack.c.l.b16 %v71
  %v245 = vunpack.c.h.b16 %v71
  %v246 = vunpack.c.l.b16 %v72
  %v247 = vunpack.c.h.b16 %v72
  %v248 = vunpack.c.l.b16 %v73
  %v249 = vunpack.c.h.b16 %v73
  %v250 = vunpack.c.l.b16 %v74
  %v251 = vunpack.c.h.b16 %v74
  %v252 = vunpack.c.l.b16 %v75
  %v253 = vunpack.c.h.b16 %v75
  %v254 = vunpack.c.l.b16 %v76
  %v255 = vunpack.c.h.b16 %v76
  %v256 = vunpack.c.l.b16 %v77
  %v257 = vunpack.c.h.b16 %v77
  %v258 = vunpack.c.l.b16 %v78
  %v259 = vunpack.c.h.b16 %v78
  %v260 = vunpack.c.l.b16 %v79
  %v261 = vunpack.c.h.b16 %v79
  %v262 = vunpack.c.l.b16 %v80
  %v263 = vunpack.c.h.b16 %v80
  %v264 = vunpack.c.l.b16 %v81
  %v265 = vunpack.c.h.b16 %v81
  %v266 = vunpack.c.l.b16 %v82
  %v267 = vunpack.c.h.b16 %v82
  %v268 = vunpack.c.l.b16 %v83
  %v269 = vunpack.c.h.b16 %v83
  %v270 = vunpack.c.l.b16 %v84
  %v271 = vunpack.c.h.b16 %v84
  %v272 = vunpack.c.l.b16 %v85
  %v273 = vunpack.c.h.b16 %v85
  %v274 = vunpack.c.l.b16 %v86
  %v275 = vunpack.c.h.b16 %v86
  %v276 = vunpack.c.l.b16 %v87
  %v277 = vunpack.c.h.b16 %v87
  %v278 = vunpack.c.l.b16 %v88
  %v279 = vunpack.c.h.b16 %v88
  %v280 = vunpack.c.l.b16 %v89
  %v281 = vunpack.c.h.b16 %v89
  %v282 = vunpack.c.l.b16 %v90
  %v283 = vunpack.c.h.b16 %v90
  %v284 = vunpack.c.l.b16 %v91
  %v285 = vunpack.c.h.b16 %v91
  %v286 = vunpack.c.l.b16 %v92
  %v287 = vunpack.c.h.b16 %v92
  %v288 = vunpack.c.l.b16 %v93
  %v289 = vunpack.c.h.b16 %v93
  %v290 = vunpack.c.l.b16 %v94
  %v291 = vunpack.c.h.b16 %v94
  %v292 = vunpack.c.l.b16 %v95
  %v293 = vunpack.c.h.b16 %v95
  %v294 = vunpack.c.l.b16 %v96
  %v295 = vunpack.c.h.b16 %v96
  %v296 = vunpack.c.l.b16 %v97
  %v297 = vunpack.c.h.b16 %v97
  %v298 = vunpack.c.l.b16 %v98
  %v299 = vunpack.c.h.b16 %v98
  %v300 = vunpack.c.l.b16 %v99
  %v301 = vunpack.c.h.b16 %v99
  %v302 = vpack.c.b16 %v178, %v174
  %v303 = vpack.c.b16 %v179, %v175
  %v304 = vpack.c.b16 %v180, %v176
  %v305 = vpack.c.b16 %v181, %v177
  %v306 = vpack.c.b16 %v186, %v182
  %v307 = vpack.c.b16 %v187, %v183
  %v308 = vpack.c.b16 %v188, %v184
  %v309 = vpack.c.b16 %v189, %v185
  %v310 = vpack.c.b16 %v194, %v190
  %v311 = vpack.c.b16 %v195, %v191
  %v312 = vpack.c.b16 %v196, %v192
  %v313 = vpack.c.b16 %v197, %v193
  %v314 = vpack.c.b16 %v202, %v198
  %v315 = vpack.c.b16 %v203, %v199
  %v316 = vpack.c.b16 %v204, %v200
  %v317 = vpack.c.b16 %v205, %v201
  %v318 = vpack.c.b16 %v210, %v206
  %v319 = vpack.c.b16 %v211, %v207
  %v320 = vpack.c.b16 %v212, %v208
  %v321 = vpack.c.b16 %v213, %v209
  %v322 = vpack.c.b16 %v218, %v214
  %v323 = vpack.c.b16 %v219, %v215
  %v324 = vpack.c.b16 %v220, %v216
  %v325 = vpack.c.b16 %v221, %v217
  %v326 = vpack.c.b16 %v226, %v222
  %v327 = vpack.c.b16 %v227, %v223
  %v328 = vpack.c.b16 %v228, %v224
  %v329 = vpack.c.b16 %v229, %v225
  %v330 = vpack.c.b16 %v234, %v230
  %v331 = vpack.c.b16 %v235, %v231
  %v332 = vpack.c.b16 %v236, %v232
  %v333 = vpack.c.b16 %v237, %v233
  %v334 = vpack.c.b16 %v242, %v238
  %v335 = vpack.c.b16 %v243, %v239
  %v336 = vpack.c.b16 %v244, %v240
  %v337 = vpack.c.b16 %v245, %v241
  %v338 = vpack.c.b16 %v250, %v246
  %v339 = vpack.c.b16 %v251, %v247
  %v340 = vpack.c.b16 %v252, %v248
  %v341 = vpack.c.b16 %v253, %v249
  %v342 = vpack.c.b16 %v258, %v254
  %v343 = vpack.c.b16 %v259, %v255
  %v344 = vpack.c.b16 %v260, %v256
  %v345 = vpack.c.b16 %v261, %v257
  %v346 = vpack.c.b16 %v266, %v262
  %v347 = vpack.c.b16 %v267, %v263
  %v348 = vpack.c.b16 %v268, %v264
  %v349 = vpack.c.b16 %v269, %v265
  %v350 = vpack.c.b16 %v274, %v270
  %v351 = vpack.c.b16 %v275, %v271
  %v352 = vpack.c.b16 %v276, %v272
  %v353 = vpack.c.b16 %v277, %v273
  %v354 = vpack.c.b16 %v282, %v278
  %v355 = vpack.c.b16 %v283, %v279
  %v356 = vpack.c.b16 %v284, %v280
  %v357 = vpack.c.b16 %v285, %v281
  %v358 = vpack.c.b16 %v290, %v286
  %v359 = vpack.c.b16 %v291, %v287
  %v360 = vpack.c.b16 %v292, %v288
  %v361 = vpack.c.b16 %v293, %v289
  %v362 = vpack.c.b16 %v298, %v294
  %v363 = vpack.c.b16 %v299, %v295
  %v364 = vpack.c.b16 %v300, %v296
  %v365 = vpack.c.b16 %v301, %v297
  %430 = vmatpush.bf16.msra.mxu0 %v330
  %431 = vmatpush.bf16.msra.mxu0 %v326
  %432 = vmatpush.bf16.msra.mxu0 %v322
  %433 = vmatpush.bf16.msra.mxu0 %v318
  %434 = vmatpush.bf16.msra.mxu0 %v314
  %435 = vmatpush.bf16.msra.mxu0 %v310
  %436 = vmatpush.bf16.msra.mxu0 %v306
  %437 = vmatpush.bf16.msra.mxu0 %v302
  %438 = vmatmul.bf16.gmra.mxu0 %v106
  %v439 = vpop.f32.mrf.mxu0
  %v440 = vadd.f32 0.0, %v439
  %v441 = vpop.f32.mrf.mxu0
  %v442 = vadd.f32 0.0, %v441
  %443 = vdwg.mxu0
  %444 = vmatpush.bf16.msra.mxu0 %v362
  %445 = vmatpush.bf16.msra.mxu0 %v358
  %446 = vmatpush.bf16.msra.mxu0 %v354
  %447 = vmatpush.bf16.msra.mxu0 %v350
  %448 = vmatpush.bf16.msra.mxu0 %v346
  %449 = vmatpush.bf16.msra.mxu0 %v342
  %450 = vmatpush.bf16.msra.mxu0 %v338
  %451 = vmatpush.bf16.msra.mxu0 %v334
  %452 = vmatmul.bf16.gmra.mxu0 %v107
  %v453 = vpop.f32.mrf.mxu0
  %v454 = vadd.f32 %v440, %v453
  %v455 = vpop.f32.mrf.mxu0
  %v456 = vadd.f32 %v442, %v455
  %457 = vdwg.mxu0
  %458 = vmatpush.bf16.msra.mxu0 %v331
  %459 = vmatpush.bf16.msra.mxu0 %v327
  %460 = vmatpush.bf16.msra.mxu0 %v323
  %461 = vmatpush.bf16.msra.mxu0 %v319
  %462 = vmatpush.bf16.msra.mxu0 %v315
  %463 = vmatpush.bf16.msra.mxu0 %v311
  %464 = vmatpush.bf16.msra.mxu0 %v307
  %465 = vmatpush.bf16.msra.mxu0 %v303
  %466 = vmatmul.bf16.gmra.mxu0 %v106
  %v467 = vpop.f32.mrf.mxu0
  %v468 = vadd.f32 0.0, %v467
  %v469 = vpop.f32.mrf.mxu0
  %v470 = vadd.f32 0.0, %v469
  %471 = vdwg.mxu0
  %472 = vmatpush.bf16.msra.mxu0 %v363
  %473 = vmatpush.bf16.msra.mxu0 %v359
  %474 = vmatpush.bf16.msra.mxu0 %v355
  %475 = vmatpush.bf16.msra.mxu0 %v351
  %476 = vmatpush.bf16.msra.mxu0 %v347
  %477 = vmatpush.bf16.msra.mxu0 %v343
  %478 = vmatpush.bf16.msra.mxu0 %v339
  %479 = vmatpush.bf16.msra.mxu0 %v335
  %480 = vmatmul.bf16.gmra.mxu0 %v107
  %v481 = vpop.f32.mrf.mxu0
  %v482 = vadd.f32 %v468, %v481
  %v483 = vpop.f32.mrf.mxu0
  %v484 = vadd.f32 %v470, %v483
  %485 = vdwg.mxu0
  %486 = vmatpush.bf16.msra.mxu0 %v332
  %487 = vmatpush.bf16.msra.mxu0 %v328
  %488 = vmatpush.bf16.msra.mxu0 %v324
  %489 = vmatpush.bf16.msra.mxu0 %v320
  %490 = vmatpush.bf16.msra.mxu0 %v316
  %491 = vmatpush.bf16.msra.mxu0 %v312
  %492 = vmatpush.bf16.msra.mxu0 %v308
  %493 = vmatpush.bf16.msra.mxu0 %v304
  %494 = vmatmul.bf16.gmra.mxu0 %v106
  %v495 = vpop.f32.mrf.mxu0
  %v496 = vadd.f32 0.0, %v495
  %v497 = vpop.f32.mrf.mxu0
  %v498 = vadd.f32 0.0, %v497
  %499 = vdwg.mxu0
  %500 = vmatpush.bf16.msra.mxu0 %v364
  %501 = vmatpush.bf16.msra.mxu0 %v360
  %502 = vmatpush.bf16.msra.mxu0 %v356
  %503 = vmatpush.bf16.msra.mxu0 %v352
  %504 = vmatpush.bf16.msra.mxu0 %v348
  %505 = vmatpush.bf16.msra.mxu0 %v344
  %506 = vmatpush.bf16.msra.mxu0 %v340
  %507 = vmatpush.bf16.msra.mxu0 %v336
  %508 = vmatmul.bf16.gmra.mxu0 %v107
  %v509 = vpop.f32.mrf.mxu0
  %v510 = vadd.f32 %v496, %v509
  %v511 = vpop.f32.mrf.mxu0
  %v512 = vadd.f32 %v498, %v511
  %513 = vdwg.mxu0
  %514 = vmatpush.bf16.msra.mxu0 %v333
  %515 = vmatpush.bf16.msra.mxu0 %v329
  %516 = vmatpush.bf16.msra.mxu0 %v325
  %517 = vmatpush.bf16.msra.mxu0 %v321
  %518 = vmatpush.bf16.msra.mxu0 %v317
  %519 = vmatpush.bf16.msra.mxu0 %v313
  %520 = vmatpush.bf16.msra.mxu0 %v309
  %521 = vmatpush.bf16.msra.mxu0 %v305
  %522 = vmatmul.bf16.gmra.mxu0 %v106
  %v523 = vpop.f32.mrf.mxu0
  %v524 = vadd.f32 0.0, %v523
  %v525 = vpop.f32.mrf.mxu0
  %v526 = vadd.f32 0.0, %v525
  %527 = vdwg.mxu0
  %528 = vmatpush.bf16.msra.mxu0 %v365
  %529 = vmatpush.bf16.msra.mxu0 %v361
  %530 = vmatpush.bf16.msra.mxu0 %v357
  %531 = vmatpush.bf16.msra.mxu0 %v353
  %532 = vmatpush.bf16.msra.mxu0 %v349
  %533 = vmatpush.bf16.msra.mxu0 %v345
  %534 = vmatpush.bf16.msra.mxu0 %v341
  %535 = vmatpush.bf16.msra.mxu0 %v337
  %536 = vmatmul.bf16.gmra.mxu0 %v107
  %v537 = vpop.f32.mrf.mxu0
  %v538 = vadd.f32 %v524, %v537
  %v539 = vpop.f32.mrf.mxu0
  %v540 = vadd.f32 %v526, %v539
  %541 = vdwg.mxu0
  %v542 = vadd.f32 %v26, %v454
  %v543 = vadd.f32 %v27, %v482
  %v544 = vadd.f32 %v28, %v510
  %v545 = vadd.f32 %v29, %v538
  %v546 = vadd.f32 %v30, %v456
  %v547 = vadd.f32 %v31, %v484
  %v548 = vadd.f32 %v32, %v512
  %v549 = vadd.f32 %v33, %v540
  %550 = vst [vmem:[#allocation2] sm:$0xff] %v542
  %551 = vst [vmem:[#allocation2 + $0x8] sm:$0xff] %v543
  %552 = vst [vmem:[#allocation2 + $0x10] sm:$0xff] %v544
  %553 = vst [vmem:[#allocation2 + $0x18] sm:$0xff] %v545
  %554 = vst [vmem:[#allocation2 + $0x20] sm:$0xff] %v546
  %555 = vst [vmem:[#allocation2 + $0x28] sm:$0xff] %v547
  %556 = vst [vmem:[#allocation2 + $0x30] sm:$0xff] %v548
  %557 = vst [vmem:[#allocation2 + $0x38] sm:$0xff] %v549
  // Predicated region
  $region18: #{generator_forward.49} parent=0 // pred_check
    %p558 = pneg %p14
  $region19: #{generator_forward.49} parent=0 // pred_check_branch
    %560 = sbr.rel (%p558) target = $region21
  $region20: #{generator_forward.49} parent=0 // pred_region
    %v561 = vld [vmem:[#allocation2] sm:$0xff]
    %v562 = vld [vmem:[#allocation2 + $0x8] sm:$0xff]
    %v563 = vld [vmem:[#allocation2 + $0x10] sm:$0xff]
    %v564 = vld [vmem:[#allocation2 + $0x18] sm:$0xff]
    %v565 = vld [vmem:[#allocation2 + $0x20] sm:$0xff]
    %v566 = vld [vmem:[#allocation2 + $0x28] sm:$0xff]
    %v567 = vld [vmem:[#allocation2 + $0x30] sm:$0xff]
    %v568 = vld [vmem:[#allocation2 + $0x38] sm:$0xff]
    %v569 = vld [vmem:[%s2] sm:$0xff]
    %v570 = vld [vmem:[%s2 + $0x8] sm:$0xff]
    %572 = vset.pattern.permute.xlu0 0
    %573 = vperm.xlu0 %572, %v569
    %v574 = vpop.permute.xlu0 %573
    %577 = vset.pattern.permute.xlu0 0
    %578 = vperm.xlu0 %577, %v570
    %v579 = vpop.permute.xlu0 %578
    %v581 = vadd.f32 %v561, %v574
    %v582 = vadd.f32 %v562, %v574
    %v583 = vadd.f32 %v563, %v574
    %v584 = vadd.f32 %v564, %v574
    %v585 = vadd.f32 %v565, %v579
    %v586 = vadd.f32 %v566, %v579
    %v587 = vadd.f32 %v567, %v579
    %v588 = vadd.f32 %v568, %v579
    %589 = vst [vmem:[%s3] sm:$0xff] %v581
    %590 = vst [vmem:[%s3 + $0x8] sm:$0xff] %v582
    %591 = vst [vmem:[%s3 + $0x10] sm:$0xff] %v583
    %592 = vst [vmem:[%s3 + $0x18] sm:$0xff] %v584
    %593 = vst [vmem:[%s3 + $0x20] sm:$0xff] %v585
    %594 = vst [vmem:[%s3 + $0x28] sm:$0xff] %v586
    %595 = vst [vmem:[%s3 + $0x30] sm:$0xff] %v587
    %596 = vst [vmem:[%s3 + $0x38] sm:$0xff] %v588
  $region21: #{generator_forward.49} parent=0 // pred_fallthru
    _
  // Predicated region
  $region22: #{generator_forward.49} parent=0 // pred_check
    _
  $region23: #{generator_forward.49} parent=0 // pred_check_branch
    %598 = sbr.rel (0) target = $region25
  $region24: #{generator_forward.49} parent=0 // pred_region
    _
  $region25: #{generator_forward.49} parent=0 // pred_fallthru
    _
  // Predicated region
  $region26: #{generator_forward.49} parent=0 // pred_check
    _
  $region27: #{generator_forward.49} parent=0 // pred_check_branch
    %600 = sbr.rel (0) target = $region29
  $region28: #{generator_forward.49} parent=0 // pred_region
    _
  $region29: #{generator_forward.49} parent=0 // pred_fallthru
    _

// kernel: generator_forward.51
$region0: #{generator_forward.51}
  #allocation0 [shape = 'u32[]', space=smem, size = 0x4, offset = 0x4, fixed_abs, tag = 'smem constant byte address 0x4 - core index']
  #allocation1 [shape = 'u32[72,128]{1,0:T(1,128)}', space=vmem, size = 0x9000, scoped, tag = 'internal scratch']
  #allocation2 [shape = 'f32[16,128]{1,0:T(8,128)}', space=vmem, size = 0x2000, scoped, tag = 'scratch operand']
  %s0 = inlined_call_operand.vmem [shape: bf16[16,256], index: 0, kind: input, shape index: {}]
  %s1 = inlined_call_operand.vmem [shape: bf16[256,128], index: 1, kind: input, shape index: {}]
  %s2 = inlined_call_operand.vmem [shape: f32[16,1], index: 2, kind: input, shape index: {}]
  %s3 = inlined_call_operand.vmem [shape: f32[16,128], index: 3, kind: output, shape index: {}]
  %s4 = sld [smem:[#allocation0]]
  $region30: #{generator_forward.51} parent=0
    _
  %s6 = ssub.s32 1, %s4
  %s7 = scalar_select 0, %s6, %s4
  // Predicated region
  $region2: #{generator_forward.51} parent=0 // pred_check
    _
  $region3: #{generator_forward.51} parent=0 // pred_check_branch
    %9 = sbr.rel (0) target = $region5
  $region4: #{generator_forward.51} parent=0 // pred_region
    _
  $region5: #{generator_forward.51} parent=0 // pred_fallthru
    _
  // Predicated region
  $region6: #{generator_forward.51} parent=0 // pred_check
    _
  $region7: #{generator_forward.51} parent=0 // pred_check_branch
    %11 = sbr.rel (0) target = $region9
  $region8: #{generator_forward.51} parent=0 // pred_region
    _
  $region9: #{generator_forward.51} parent=0 // pred_fallthru
    _
  // Predicated region
  $region10: #{generator_forward.51} parent=0 // pred_check
    _
  $region11: #{generator_forward.51} parent=0 // pred_check_branch
    %13 = sbr.rel (0) target = $region13
  $region12: #{generator_forward.51} parent=0 // pred_region
    _
  $region13: #{generator_forward.51} parent=0 // pred_fallthru
    _
  %p14 = scmp.eq.s32.totalorder 0, 0
  // Predicated region
  $region14: #{generator_forward.51} parent=0 // pred_check
    %p15 = pneg %p14
  $region15: #{generator_forward.51} parent=0 // pred_check_branch
    %17 = sbr.rel (%p15) target = $region17
  $region16: #{generator_forward.51} parent=0 // pred_region
    %18 = vst [vmem:[#allocation2] sm:$0xff] 0.0
    %19 = vst [vmem:[#allocation2 + $0x8] sm:$0xff] 0.0
  $region17: #{generator_forward.51} parent=0 // pred_fallthru
    _
  %v20 = vld [vmem:[#allocation2] sm:$0xff]
  %v21 = vld [vmem:[#allocation2 + $0x8] sm:$0xff]
  %v22 = vld [vmem:[%s0] sm:$0xff]
  %v23 = vld [vmem:[%s0 + $0x8] sm:$0xff]
  %v24 = vld [vmem:[%s1] sm:$0xf]
  %v25 = vld [vmem:[%s1 + $0x4] sm:$0xf]
  %v26 = vld [vmem:[%s1 + $0x8] sm:$0xf]
  %v27 = vld [vmem:[%s1 + $0xc] sm:$0xf]
  %v28 = vld [vmem:[%s1 + $0x10] sm:$0xf]
  %v29 = vld [vmem:[%s1 + $0x14] sm:$0xf]
  %v30 = vld [vmem:[%s1 + $0x18] sm:$0xf]
  %v31 = vld [vmem:[%s1 + $0x1c] sm:$0xf]
  %v32 = vld [vmem:[%s1 + $0x20] sm:$0xf]
  %v33 = vld [vmem:[%s1 + $0x24] sm:$0xf]
  %v34 = vld [vmem:[%s1 + $0x28] sm:$0xf]
  %v35 = vld [vmem:[%s1 + $0x2c] sm:$0xf]
  %v36 = vld [vmem:[%s1 + $0x30] sm:$0xf]
  %v37 = vld [vmem:[%s1 + $0x34] sm:$0xf]
  %v38 = vld [vmem:[%s1 + $0x38] sm:$0xf]
  %v39 = vld [vmem:[%s1 + $0x3c] sm:$0xf]
  %v40 = vld [vmem:[%s1 + $0x40] sm:$0xf]
  %v41 = vld [vmem:[%s1 + $0x44] sm:$0xf]
  %v42 = vld [vmem:[%s1 + $0x48] sm:$0xf]
  %v43 = vld [vmem:[%s1 + $0x4c] sm:$0xf]
  %v44 = vld [vmem:[%s1 + $0x50] sm:$0xf]
  %v45 = vld [vmem:[%s1 + $0x54] sm:$0xf]
  %v46 = vld [vmem:[%s1 + $0x58] sm:$0xf]
  %v47 = vld [vmem:[%s1 + $0x5c] sm:$0xf]
  %v48 = vld [vmem:[%s1 + $0x60] sm:$0xf]
  %v49 = vld [vmem:[%s1 + $0x64] sm:$0xf]
  %v50 = vld [vmem:[%s1 + $0x68] sm:$0xf]
  %v51 = vld [vmem:[%s1 + $0x6c] sm:$0xf]
  %v52 = vld [vmem:[%s1 + $0x70] sm:$0xf]
  %v53 = vld [vmem:[%s1 + $0x74] sm:$0xf]
  %v54 = vld [vmem:[%s1 + $0x78] sm:$0xf]
  %v55 = vld [vmem:[%s1 + $0x7c] sm:$0xf]
  %v58 = vunpack.c.l.b16 %v22
  %v59 = vunpack.c.h.b16 %v22
  %v60 = vunpack.c.l.b16 %v23
  %v61 = vunpack.c.h.b16 %v23
  %v62 = vpack.c.b16 %v60, %v58
  %v63 = vpack.c.b16 %v61, %v59
  %v98 = vunpack.c.l.b16 %v24
  %v99 = vunpack.c.l.b16 %v25
  %v100 = vunpack.c.l.b16 %v26
  %v101 = vunpack.c.l.b16 %v27
  %v102 = vunpack.c.l.b16 %v28
  %v103 = vunpack.c.l.b16 %v29
  %v104 = vunpack.c.l.b16 %v30
  %v105 = vunpack.c.l.b16 %v31
  %v106 = vunpack.c.l.b16 %v32
  %v107 = vunpack.c.l.b16 %v33
  %v108 = vunpack.c.l.b16 %v34
  %v109 = vunpack.c.l.b16 %v35
  %v110 = vunpack.c.l.b16 %v36
  %v111 = vunpack.c.l.b16 %v37
  %v112 = vunpack.c.l.b16 %v38
  %v113 = vunpack.c.l.b16 %v39
  %v114 = vunpack.c.l.b16 %v40
  %v115 = vunpack.c.l.b16 %v41
  %v116 = vunpack.c.l.b16 %v42
  %v117 = vunpack.c.l.b16 %v43
  %v118 = vunpack.c.l.b16 %v44
  %v119 = vunpack.c.l.b16 %v45
  %v120 = vunpack.c.l.b16 %v46
  %v121 = vunpack.c.l.b16 %v47
  %v122 = vunpack.c.l.b16 %v48
  %v123 = vunpack.c.l.b16 %v49
  %v124 = vunpack.c.l.b16 %v50
  %v125 = vunpack.c.l.b16 %v51
  %v126 = vunpack.c.l.b16 %v52
  %v127 = vunpack.c.l.b16 %v53
  %v128 = vunpack.c.l.b16 %v54
  %v129 = vunpack.c.l.b16 %v55
  %v130 = vpack.c.b16 %v99, %v98
  %v131 = vpack.c.b16 %v101, %v100
  %v132 = vpack.c.b16 %v103, %v102
  %v133 = vpack.c.b16 %v105, %v104
  %v134 = vpack.c.b16 %v107, %v106
  %v135 = vpack.c.b16 %v109, %v108
  %v136 = vpack.c.b16 %v111, %v110
  %v137 = vpack.c.b16 %v113, %v112
  %v138 = vpack.c.b16 %v115, %v114
  %v139 = vpack.c.b16 %v117, %v116
  %v140 = vpack.c.b16 %v119, %v118
  %v141 = vpack.c.b16 %v121, %v120
  %v142 = vpack.c.b16 %v123, %v122
  %v143 = vpack.c.b16 %v125, %v124
  %v144 = vpack.c.b16 %v127, %v126
  %v145 = vpack.c.b16 %v129, %v128
  %162 = vmatpush.bf16.msra.mxu0 %v137
  %163 = vmatpush.bf16.msra.mxu0 %v136
  %164 = vmatpush.bf16.msra.mxu0 %v135
  %165 = vmatpush.bf16.msra.mxu0 %v134
  %166 = vmatpush.bf16.msra.mxu0 %v133
  %167 = vmatpush.bf16.msra.mxu0 %v132
  %168 = vmatpush.bf16.msra.mxu0 %v131
  %169 = vmatpush.bf16.msra.mxu0 %v130
  %170 = vmatmul.bf16.gmra.mxu0 %v62
  %v171 = vpop.f32.mrf.mxu0
  %v172 = vadd.f32 0.0, %v171
  %v173 = vpop.f32.mrf.mxu0
  %v174 = vadd.f32 0.0, %v173
  %175 = vdwg.mxu0
  %176 = vmatpush.bf16.msra.mxu0 %v145
  %177 = vmatpush.bf16.msra.mxu0 %v144
  %178 = vmatpush.bf16.msra.mxu0 %v143
  %179 = vmatpush.bf16.msra.mxu0 %v142
  %180 = vmatpush.bf16.msra.mxu0 %v141
  %181 = vmatpush.bf16.msra.mxu0 %v140
  %182 = vmatpush.bf16.msra.mxu0 %v139
  %183 = vmatpush.bf16.msra.mxu0 %v138
  %184 = vmatmul.bf16.gmra.mxu0 %v63
  %v185 = vpop.f32.mrf.mxu0
  %v186 = vadd.f32 %v172, %v185
  %v187 = vpop.f32.mrf.mxu0
  %v188 = vadd.f32 %v174, %v187
  %189 = vdwg.mxu0
  %v190 = vadd.f32 %v20, %v186
  %v191 = vadd.f32 %v21, %v188
  %192 = vst [vmem:[#allocation2] sm:$0xff] %v190
  %193 = vst [vmem:[#allocation2 + $0x8] sm:$0xff] %v191
  // Predicated region
  $region18: #{generator_forward.51} parent=0 // pred_check
    %p194 = pneg %p14
  $region19: #{generator_forward.51} parent=0 // pred_check_branch
    %196 = sbr.rel (%p194) target = $region21
  $region20: #{generator_forward.51} parent=0 // pred_region
    %v197 = vld [vmem:[#allocation2] sm:$0xff]
    %v198 = vld [vmem:[#allocation2 + $0x8] sm:$0xff]
    %v199 = vld [vmem:[%s2] sm:$0xff]
    %v200 = vld [vmem:[%s2 + $0x8] sm:$0xff]
    %202 = vset.pattern.permute.xlu0 0
    %203 = vperm.xlu0 %202, %v199
    %v204 = vpop.permute.xlu0 %203
    %207 = vset.pattern.permute.xlu0 0
    %208 = vperm.xlu0 %207, %v200
    %v209 = vpop.permute.xlu0 %208
    %v211 = vadd.f32 %v197, %v204
    %v212 = vadd.f32 %v198, %v209
    %213 = vst [vmem:[%s3] sm:$0xff] %v211
    %214 = vst [vmem:[%s3 + $0x8] sm:$0xff] %v212
  $region21: #{generator_forward.51} parent=0 // pred_fallthru
    _
  // Predicated region
  $region22: #{generator_forward.51} parent=0 // pred_check
    _
  $region23: #{generator_forward.51} parent=0 // pred_check_branch
    %216 = sbr.rel (0) target = $region25
  $region24: #{generator_forward.51} parent=0 // pred_region
    _
  $region25: #{generator_forward.51} parent=0 // pred_fallthru
    _
  // Predicated region
  $region26: #{generator_forward.51} parent=0 // pred_check
    _
  $region27: #{generator_forward.51} parent=0 // pred_check_branch
    %218 = sbr.rel (0) target = $region29
  $region28: #{generator_forward.51} parent=0 // pred_region
    _
  $region29: #{generator_forward.51} parent=0 // pred_fallthru
    _

// kernel: generator_forward.52
$region0: #{generator_forward.52}
  #allocation0 [shape = 'u32[]', space=smem, size = 0x4, offset = 0x4, fixed_abs, tag = 'smem constant byte address 0x4 - core index']
  #allocation1 [shape = 'u32[72,128]{1,0:T(1,128)}', space=vmem, size = 0x9000, scoped, tag = 'internal scratch']
  #allocation2 [shape = 'f32[32,128]{1,0:T(8,128)}', space=vmem, size = 0x4000, scoped, tag = 'scratch operand']
  %s0 = inlined_call_operand.vmem [shape: bf16[32,256], index: 0, kind: input, shape index: {}]
  %s1 = inlined_call_operand.vmem [shape: bf16[256,128], index: 1, kind: input, shape index: {}]
  %s2 = inlined_call_operand.vmem [shape: f32[32,1], index: 2, kind: input, shape index: {}]
  %s3 = inlined_call_operand.vmem [shape: f32[32,128], index: 3, kind: output, shape index: {}]
  %s4 = sld [smem:[#allocation0]]
  $region30: #{generator_forward.52} parent=0
    _
  %s6 = ssub.s32 1, %s4
  %s7 = scalar_select 0, %s6, %s4
  // Predicated region
  $region2: #{generator_forward.52} parent=0 // pred_check
    _
  $region3: #{generator_forward.52} parent=0 // pred_check_branch
    %9 = sbr.rel (0) target = $region5
  $region4: #{generator_forward.52} parent=0 // pred_region
    _
  $region5: #{generator_forward.52} parent=0 // pred_fallthru
    _
  // Predicated region
  $region6: #{generator_forward.52} parent=0 // pred_check
    _
  $region7: #{generator_forward.52} parent=0 // pred_check_branch
    %11 = sbr.rel (0) target = $region9
  $region8: #{generator_forward.52} parent=0 // pred_region
    _
  $region9: #{generator_forward.52} parent=0 // pred_fallthru
    _
  // Predicated region
  $region10: #{generator_forward.52} parent=0 // pred_check
    _
  $region11: #{generator_forward.52} parent=0 // pred_check_branch
    %13 = sbr.rel (0) target = $region13
  $region12: #{generator_forward.52} parent=0 // pred_region
    _
  $region13: #{generator_forward.52} parent=0 // pred_fallthru
    _
  %p14 = scmp.eq.s32.totalorder 0, 0
  // Predicated region
  $region14: #{generator_forward.52} parent=0 // pred_check
    %p15 = pneg %p14
  $region15: #{generator_forward.52} parent=0 // pred_check_branch
    %17 = sbr.rel (%p15) target = $region17
  $region16: #{generator_forward.52} parent=0 // pred_region
    %18 = vst [vmem:[#allocation2] sm:$0xff] 0.0
    %19 = vst [vmem:[#allocation2 + $0x8] sm:$0xff] 0.0
    %20 = vst [vmem:[#allocation2 + $0x10] sm:$0xff] 0.0
    %21 = vst [vmem:[#allocation2 + $0x18] sm:$0xff] 0.0
  $region17: #{generator_forward.52} parent=0 // pred_fallthru
    _
  %v22 = vld [vmem:[#allocation2] sm:$0xff]
  %v23 = vld [vmem:[#allocation2 + $0x8] sm:$0xff]
  %v24 = vld [vmem:[#allocation2 + $0x10] sm:$0xff]
  %v25 = vld [vmem:[#allocation2 + $0x18] sm:$0xff]
  %v26 = vld [vmem:[%s0] sm:$0xff]
  %v27 = vld [vmem:[%s0 + $0x8] sm:$0xff]
  %v28 = vld [vmem:[%s0 + $0x10] sm:$0xff]
  %v29 = vld [vmem:[%s0 + $0x18] sm:$0xff]
  %v30 = vld [vmem:[%s1] sm:$0xf]
  %v31 = vld [vmem:[%s1 + $0x4] sm:$0xf]
  %v32 = vld [vmem:[%s1 + $0x8] sm:$0xf]
  %v33 = vld [vmem:[%s1 + $0xc] sm:$0xf]
  %v34 = vld [vmem:[%s1 + $0x10] sm:$0xf]
  %v35 = vld [vmem:[%s1 + $0x14] sm:$0xf]
  %v36 = vld [vmem:[%s1 + $0x18] sm:$0xf]
  %v37 = vld [vmem:[%s1 + $0x1c] sm:$0xf]
  %v38 = vld [vmem:[%s1 + $0x20] sm:$0xf]
  %v39 = vld [vmem:[%s1 + $0x24] sm:$0xf]
  %v40 = vld [vmem:[%s1 + $0x28] sm:$0xf]
  %v41 = vld [vmem:[%s1 + $0x2c] sm:$0xf]
  %v42 = vld [vmem:[%s1 + $0x30] sm:$0xf]
  %v43 = vld [vmem:[%s1 + $0x34] sm:$0xf]
  %v44 = vld [vmem:[%s1 + $0x38] sm:$0xf]
  %v45 = vld [vmem:[%s1 + $0x3c] sm:$0xf]
  %v46 = vld [vmem:[%s1 + $0x40] sm:$0xf]
  %v47 = vld [vmem:[%s1 + $0x44] sm:$0xf]
  %v48 = vld [vmem:[%s1 + $0x48] sm:$0xf]
  %v49 = vld [vmem:[%s1 + $0x4c] sm:$0xf]
  %v50 = vld [vmem:[%s1 + $0x50] sm:$0xf]
  %v51 = vld [vmem:[%s1 + $0x54] sm:$0xf]
  %v52 = vld [vmem:[%s1 + $0x58] sm:$0xf]
  %v53 = vld [vmem:[%s1 + $0x5c] sm:$0xf]
  %v54 = vld [vmem:[%s1 + $0x60] sm:$0xf]
  %v55 = vld [vmem:[%s1 + $0x64] sm:$0xf]
  %v56 = vld [vmem:[%s1 + $0x68] sm:$0xf]
  %v57 = vld [vmem:[%s1 + $0x6c] sm:$0xf]
  %v58 = vld [vmem:[%s1 + $0x70] sm:$0xf]
  %v59 = vld [vmem:[%s1 + $0x74] sm:$0xf]
  %v60 = vld [vmem:[%s1 + $0x78] sm:$0xf]
  %v61 = vld [vmem:[%s1 + $0x7c] sm:$0xf]
  %v66 = vunpack.c.l.b16 %v26
  %v67 = vunpack.c.h.b16 %v26
  %v68 = vunpack.c.l.b16 %v27
  %v69 = vunpack.c.h.b16 %v27
  %v70 = vunpack.c.l.b16 %v28
  %v71 = vunpack.c.h.b16 %v28
  %v72 = vunpack.c.l.b16 %v29
  %v73 = vunpack.c.h.b16 %v29
  %v74 = vpack.c.b16 %v68, %v66
  %v75 = vpack.c.b16 %v69, %v67
  %v76 = vpack.c.b16 %v72, %v70
  %v77 = vpack.c.b16 %v73, %v71
  %v114 = vunpack.c.l.b16 %v30
  %v115 = vunpack.c.l.b16 %v31
  %v116 = vunpack.c.l.b16 %v32
  %v117 = vunpack.c.l.b16 %v33
  %v118 = vunpack.c.l.b16 %v34
  %v119 = vunpack.c.l.b16 %v35
  %v120 = vunpack.c.l.b16 %v36
  %v121 = vunpack.c.l.b16 %v37
  %v122 = vunpack.c.l.b16 %v38
  %v123 = vunpack.c.l.b16 %v39
  %v124 = vunpack.c.l.b16 %v40
  %v125 = vunpack.c.l.b16 %v41
  %v126 = vunpack.c.l.b16 %v42
  %v127 = vunpack.c.l.b16 %v43
  %v128 = vunpack.c.l.b16 %v44
  %v129 = vunpack.c.l.b16 %v45
  %v130 = vunpack.c.l.b16 %v46
  %v131 = vunpack.c.l.b16 %v47
  %v132 = vunpack.c.l.b16 %v48
  %v133 = vunpack.c.l.b16 %v49
  %v134 = vunpack.c.l.b16 %v50
  %v135 = vunpack.c.l.b16 %v51
  %v136 = vunpack.c.l.b16 %v52
  %v137 = vunpack.c.l.b16 %v53
  %v138 = vunpack.c.l.b16 %v54
  %v139 = vunpack.c.l.b16 %v55
  %v140 = vunpack.c.l.b16 %v56
  %v141 = vunpack.c.l.b16 %v57
  %v142 = vunpack.c.l.b16 %v58
  %v143 = vunpack.c.l.b16 %v59
  %v144 = vunpack.c.l.b16 %v60
  %v145 = vunpack.c.l.b16 %v61
  %v146 = vpack.c.b16 %v115, %v114
  %v147 = vpack.c.b16 %v117, %v116
  %v148 = vpack.c.b16 %v119, %v118
  %v149 = vpack.c.b16 %v121, %v120
  %v150 = vpack.c.b16 %v123, %v122
  %v151 = vpack.c.b16 %v125, %v124
  %v152 = vpack.c.b16 %v127, %v126
  %v153 = vpack.c.b16 %v129, %v128
  %v154 = vpack.c.b16 %v131, %v130
  %v155 = vpack.c.b16 %v133, %v132
  %v156 = vpack.c.b16 %v135, %v134
  %v157 = vpack.c.b16 %v137, %v136
  %v158 = vpack.c.b16 %v139, %v138
  %v159 = vpack.c.b16 %v141, %v140
  %v160 = vpack.c.b16 %v143, %v142
  %v161 = vpack.c.b16 %v145, %v144
  %178 = vmatpush.bf16.msra.mxu0 %v153
  %179 = vmatpush.bf16.msra.mxu0 %v152
  %180 = vmatpush.bf16.msra.mxu0 %v151
  %181 = vmatpush.bf16.msra.mxu0 %v150
  %182 = vmatpush.bf16.msra.mxu0 %v149
  %183 = vmatpush.bf16.msra.mxu0 %v148
  %184 = vmatpush.bf16.msra.mxu0 %v147
  %185 = vmatpush.bf16.msra.mxu0 %v146
  %186 = vmatmul.bf16.gmra.mxu0 %v74
  %v187 = vpop.f32.mrf.mxu0
  %v188 = vadd.f32 0.0, %v187
  %v189 = vpop.f32.mrf.mxu0
  %v190 = vadd.f32 0.0, %v189
  %191 = vmatmul.bf16.gmra.mxu0 %v76
  %v192 = vpop.f32.mrf.mxu0
  %v193 = vadd.f32 0.0, %v192
  %v194 = vpop.f32.mrf.mxu0
  %v195 = vadd.f32 0.0, %v194
  %196 = vdwg.mxu0
  %197 = vmatpush.bf16.msra.mxu0 %v161
  %198 = vmatpush.bf16.msra.mxu0 %v160
  %199 = vmatpush.bf16.msra.mxu0 %v159
  %200 = vmatpush.bf16.msra.mxu0 %v158
  %201 = vmatpush.bf16.msra.mxu0 %v157
  %202 = vmatpush.bf16.msra.mxu0 %v156
  %203 = vmatpush.bf16.msra.mxu0 %v155
  %204 = vmatpush.bf16.msra.mxu0 %v154
  %205 = vmatmul.bf16.gmra.mxu0 %v75
  %v206 = vpop.f32.mrf.mxu0
  %v207 = vadd.f32 %v188, %v206
  %v208 = vpop.f32.mrf.mxu0
  %v209 = vadd.f32 %v190, %v208
  %210 = vmatmul.bf16.gmra.mxu0 %v77
  %v211 = vpop.f32.mrf.mxu0
  %v212 = vadd.f32 %v193, %v211
  %v213 = vpop.f32.mrf.mxu0
  %v214 = vadd.f32 %v195, %v213
  %215 = vdwg.mxu0
  %v216 = vadd.f32 %v22, %v207
  %v217 = vadd.f32 %v23, %v209
  %v218 = vadd.f32 %v24, %v212
  %v219 = vadd.f32 %v25, %v214
  %220 = vst [vmem:[#allocation2] sm:$0xff] %v216
  %221 = vst [vmem:[#allocation2 + $0x8] sm:$0xff] %v217
  %222 = vst [vmem:[#allocation2 + $0x10] sm:$0xff] %v218
  %223 = vst [vmem:[#allocation2 + $0x18] sm:$0xff] %v219
  // Predicated region
  $region18: #{generator_forward.52} parent=0 // pred_check
    %p224 = pneg %p14
  $region19: #{generator_forward.52} parent=0 // pred_check_branch
    %226 = sbr.rel (%p224) target = $region21
  $region20: #{generator_forward.52} parent=0 // pred_region
    %v227 = vld [vmem:[#allocation2] sm:$0xff]
    %v228 = vld [vmem:[#allocation2 + $0x8] sm:$0xff]
    %v229 = vld [vmem:[#allocation2 + $0x10] sm:$0xff]
    %v230 = vld [vmem:[#allocation2 + $0x18] sm:$0xff]
    %v231 = vld [vmem:[%s2] sm:$0xff]
    %v232 = vld [vmem:[%s2 + $0x8] sm:$0xff]
    %v233 = vld [vmem:[%s2 + $0x10] sm:$0xff]
    %v234 = vld [vmem:[%s2 + $0x18] sm:$0xff]
    %236 = vset.pattern.permute.xlu0 0
    %237 = vperm.xlu0 %236, %v231
    %v238 = vpop.permute.xlu0 %237
    %241 = vset.pattern.permute.xlu0 0
    %242 = vperm.xlu0 %241, %v232
    %v243 = vpop.permute.xlu0 %242
    %246 = vset.pattern.permute.xlu0 0
    %247 = vperm.xlu0 %246, %v233
    %v248 = vpop.permute.xlu0 %247
    %251 = vset.pattern.permute.xlu0 0
    %252 = vperm.xlu0 %251, %v234
    %v253 = vpop.permute.xlu0 %252
    %v255 = vadd.f32 %v227, %v238
    %v256 = vadd.f32 %v228, %v243
    %v257 = vadd.f32 %v229, %v248
    %v258 = vadd.f32 %v230, %v253
    %259 = vst [vmem:[%s3] sm:$0xff] %v255
    %260 = vst [vmem:[%s3 + $0x8] sm:$0xff] %v256
    %261 = vst [vmem:[%s3 + $0x10] sm:$0xff] %v257
    %262 = vst [vmem:[%s3 + $0x18] sm:$0xff] %v258
  $region21: #{generator_forward.52} parent=0 // pred_fallthru
    _
  // Predicated region
  $region22: #{generator_forward.52} parent=0 // pred_check
    _
  $region23: #{generator_forward.52} parent=0 // pred_check_branch
    %264 = sbr.rel (0) target = $region25
  $region24: #{generator_forward.52} parent=0 // pred_region
    _
  $region25: #{generator_forward.52} parent=0 // pred_fallthru
    _
  // Predicated region
  $region26: #{generator_forward.52} parent=0 // pred_check
    _
  $region27: #{generator_forward.52} parent=0 // pred_check_branch
    %266 = sbr.rel (0) target = $region29
  $region28: #{generator_forward.52} parent=0 // pred_region
    _
  $region29: #{generator_forward.52} parent=0 // pred_fallthru
    _

// kernel: generator_forward.53
$region0: #{generator_forward.53}
  #allocation0 [shape = 'u32[]', space=smem, size = 0x4, offset = 0x4, fixed_abs, tag = 'smem constant byte address 0x4 - core index']
  #allocation1 [shape = 'u32[72,128]{1,0:T(1,128)}', space=vmem, size = 0x9000, scoped, tag = 'internal scratch']
  %s0 = inlined_call_operand.vmem [shape: f32[64,64], index: 0, kind: input, shape index: {}]
  %s1 = inlined_call_operand.vmem [shape: f32[64,64], index: 1, kind: output, shape index: {}]
  %s2 = sld [smem:[#allocation0]]
  $region14: #{generator_forward.53} parent=0
    _
  %s4 = ssub.s32 1, %s2
  %s5 = scalar_select 0, %s4, %s2
  // Predicated region
  $region2: #{generator_forward.53} parent=0 // pred_check
    _
  $region3: #{generator_forward.53} parent=0 // pred_check_branch
    %7 = sbr.rel (0) target = $region5
  $region4: #{generator_forward.53} parent=0 // pred_region
    _
  $region5: #{generator_forward.53} parent=0 // pred_fallthru
    _
  %v8 = vld [vmem:[%s0] sm:$0xff]
  %v9 = vld [vmem:[%s0 + $0x8] sm:$0xff]
  %v10 = vld [vmem:[%s0 + $0x10] sm:$0xff]
  %v11 = vld [vmem:[%s0 + $0x18] sm:$0xff]
  %v12 = vld [vmem:[%s0 + $0x20] sm:$0xff]
  %v13 = vld [vmem:[%s0 + $0x28] sm:$0xff]
  %v14 = vld [vmem:[%s0 + $0x30] sm:$0xff]
  %v15 = vld [vmem:[%s0 + $0x38] sm:$0xff]
  %vm16 = vcmask 523264
  %v17 = vsel %vm16, %v8, 0.0
  %18 = vadd.xlane.f32.xlu0 %v17
  %v19 = vpop.xlane.xlu0 %18
  %v20 = vsel %vm16, %v9, 0.0
  %21 = vadd.xlane.f32.xlu0 %v20
  %v22 = vpop.xlane.xlu0 %21
  %v23 = vsel %vm16, %v10, 0.0
  %24 = vadd.xlane.f32.xlu0 %v23
  %v25 = vpop.xlane.xlu0 %24
  %v26 = vsel %vm16, %v11, 0.0
  %27 = vadd.xlane.f32.xlu0 %v26
  %v28 = vpop.xlane.xlu0 %27
  %v29 = vsel %vm16, %v12, 0.0
  %30 = vadd.xlane.f32.xlu0 %v29
  %v31 = vpop.xlane.xlu0 %30
  %v32 = vsel %vm16, %v13, 0.0
  %33 = vadd.xlane.f32.xlu0 %v32
  %v34 = vpop.xlane.xlu0 %33
  %v35 = vsel %vm16, %v14, 0.0
  %36 = vadd.xlane.f32.xlu0 %v35
  %v37 = vpop.xlane.xlu0 %36
  %v38 = vsel %vm16, %v15, 0.0
  %39 = vadd.xlane.f32.xlu0 %v38
  %v40 = vpop.xlane.xlu0 %39
  %v41 = vrcp.pop 64.0
  %v42 = vmul.f32 64.0, %v41
  %v43 = vsub.f32 1.0, %v42
  %v44 = vmul.f32 %v41, %v43
  %v45 = vadd.f32 %v41, %v44
  %vm46 = vweird.f32 %v41
  %v47 = vsel %vm46, %v41, %v45
  %v48 = vmul.f32 %v19, %v47
  %v49 = vmul.f32 %v22, %v47
  %v50 = vmul.f32 %v25, %v47
  %v51 = vmul.f32 %v28, %v47
  %v52 = vmul.f32 %v31, %v47
  %v53 = vmul.f32 %v34, %v47
  %v54 = vmul.f32 %v37, %v47
  %v55 = vmul.f32 %v40, %v47
  %v56 = vsub.f32 %v8, %v48
  %v57 = vsub.f32 %v9, %v49
  %v58 = vsub.f32 %v10, %v50
  %v59 = vsub.f32 %v11, %v51
  %v60 = vsub.f32 %v12, %v52
  %v61 = vsub.f32 %v13, %v53
  %v62 = vsub.f32 %v14, %v54
  %v63 = vsub.f32 %v15, %v55
  %v64 = vmul.f32 %v56, %v56
  %v65 = vmul.f32 %v57, %v57
  %v66 = vmul.f32 %v58, %v58
  %v67 = vmul.f32 %v59, %v59
  %v68 = vmul.f32 %v60, %v60
  %v69 = vmul.f32 %v61, %v61
  %v70 = vmul.f32 %v62, %v62
  %v71 = vmul.f32 %v63, %v63
  %v72 = vsel %vm16, %v64, 0.0
  %73 = vadd.xlane.f32.xlu0 %v72
  %v74 = vpop.xlane.xlu0 %73
  %v75 = vsel %vm16, %v65, 0.0
  %76 = vadd.xlane.f32.xlu0 %v75
  %v77 = vpop.xlane.xlu0 %76
  %v78 = vsel %vm16, %v66, 0.0
  %79 = vadd.xlane.f32.xlu0 %v78
  %v80 = vpop.xlane.xlu0 %79
  %v81 = vsel %vm16, %v67, 0.0
  %82 = vadd.xlane.f32.xlu0 %v81
  %v83 = vpop.xlane.xlu0 %82
  %v84 = vsel %vm16, %v68, 0.0
  %85 = vadd.xlane.f32.xlu0 %v84
  %v86 = vpop.xlane.xlu0 %85
  %v87 = vsel %vm16, %v69, 0.0
  %88 = vadd.xlane.f32.xlu0 %v87
  %v89 = vpop.xlane.xlu0 %88
  %v90 = vsel %vm16, %v70, 0.0
  %91 = vadd.xlane.f32.xlu0 %v90
  %v92 = vpop.xlane.xlu0 %91
  %v93 = vsel %vm16, %v71, 0.0
  %94 = vadd.xlane.f32.xlu0 %v93
  %v95 = vpop.xlane.xlu0 %94
  %v96 = vmul.f32 %v74, %v47
  %v97 = vmul.f32 %v77, %v47
  %v98 = vmul.f32 %v80, %v47
  %v99 = vmul.f32 %v83, %v47
  %v100 = vmul.f32 %v86, %v47
  %v101 = vmul.f32 %v89, %v47
  %v102 = vmul.f32 %v92, %v47
  %v103 = vmul.f32 %v95, %v47
  %v104 = vadd.f32 %v96, 1e-05
  %v105 = vadd.f32 %v97, 1e-05
  %v106 = vadd.f32 %v98, 1e-05
  %v107 = vadd.f32 %v99, 1e-05
  %v108 = vadd.f32 %v100, 1e-05
  %v109 = vadd.f32 %v101, 1e-05
  %v110 = vadd.f32 %v102, 1e-05
  %v111 = vadd.f32 %v103, 1e-05
  %v112 = vrsqrt.pop %v104
  %v113 = vmul.f32 %v112, %v104
  %v114 = vmul.f32 %v113, %v112
  %v115 = vmul.f32 0.5, %v114
  %v116 = vsub.f32 1.5, %v115
  %v117 = vmul.f32 %v112, %v116
  %vm118 = vweird.f32 %v104
  %vm119 = vweird.f32 %v112
  %vm120 = vmor %vm118, %vm119
  %v121 = vsel %vm120, %v112, %v117
  %v122 = vrsqrt.pop %v105
  %v123 = vmul.f32 %v122, %v105
  %v124 = vmul.f32 %v123, %v122
  %v125 = vmul.f32 0.5, %v124
  %v126 = vsub.f32 1.5, %v125
  %v127 = vmul.f32 %v122, %v126
  %vm128 = vweird.f32 %v105
  %vm129 = vweird.f32 %v122
  %vm130 = vmor %vm128, %vm129
  %v131 = vsel %vm130, %v122, %v127
  %v132 = vrsqrt.pop %v106
  %v133 = vmul.f32 %v132, %v106
  %v134 = vmul.f32 %v133, %v132
  %v135 = vmul.f32 0.5, %v134
  %v136 = vsub.f32 1.5, %v135
  %v137 = vmul.f32 %v132, %v136
  %vm138 = vweird.f32 %v106
  %vm139 = vweird.f32 %v132
  %vm140 = vmor %vm138, %vm139
  %v141 = vsel %vm140, %v132, %v137
  %v142 = vrsqrt.pop %v107
  %v143 = vmul.f32 %v142, %v107
  %v144 = vmul.f32 %v143, %v142
  %v145 = vmul.f32 0.5, %v144
  %v146 = vsub.f32 1.5, %v145
  %v147 = vmul.f32 %v142, %v146
  %vm148 = vweird.f32 %v107
  %vm149 = vweird.f32 %v142
  %vm150 = vmor %vm148, %vm149
  %v151 = vsel %vm150, %v142, %v147
  %v152 = vrsqrt.pop %v108
  %v153 = vmul.f32 %v152, %v108
  %v154 = vmul.f32 %v153, %v152
  %v155 = vmul.f32 0.5, %v154
  %v156 = vsub.f32 1.5, %v155
  %v157 = vmul.f32 %v152, %v156
  %vm158 = vweird.f32 %v108
  %vm159 = vweird.f32 %v152
  %vm160 = vmor %vm158, %vm159
  %v161 = vsel %vm160, %v152, %v157
  %v162 = vrsqrt.pop %v109
  %v163 = vmul.f32 %v162, %v109
  %v164 = vmul.f32 %v163, %v162
  %v165 = vmul.f32 0.5, %v164
  %v166 = vsub.f32 1.5, %v165
  %v167 = vmul.f32 %v162, %v166
  %vm168 = vweird.f32 %v109
  %vm169 = vweird.f32 %v162
  %vm170 = vmor %vm168, %vm169
  %v171 = vsel %vm170, %v162, %v167
  %v172 = vrsqrt.pop %v110
  %v173 = vmul.f32 %v172, %v110
  %v174 = vmul.f32 %v173, %v172
  %v175 = vmul.f32 0.5, %v174
  %v176 = vsub.f32 1.5, %v175
  %v177 = vmul.f32 %v172, %v176
  %vm178 = vweird.f32 %v110
  %vm179 = vweird.f32 %v172
  %vm180 = vmor %vm178, %vm179
  %v181 = vsel %vm180, %v172, %v177
  %v182 = vrsqrt.pop %v111
  %v183 = vmul.f32 %v182, %v111
  %v184 = vmul.f32 %v183, %v182
  %v185 = vmul.f32 0.5, %v184
  %v186 = vsub.f32 1.5, %v185
  %v187 = vmul.f32 %v182, %v186
  %vm188 = vweird.f32 %v111
  %vm189 = vweird.f32 %v182
  %vm190 = vmor %vm188, %vm189
  %v191 = vsel %vm190, %v182, %v187
  %v192 = vmul.f32 %v56, %v121
  %v193 = vmul.f32 %v57, %v131
  %v194 = vmul.f32 %v58, %v141
  %v195 = vmul.f32 %v59, %v151
  %v196 = vmul.f32 %v60, %v161
  %v197 = vmul.f32 %v61, %v171
  %v198 = vmul.f32 %v62, %v181
  %v199 = vmul.f32 %v63, %v191
  %vm200 = vcmp.gt.f32.partialorder %v192, 0.0
  %vm201 = vcmp.gt.f32.partialorder %v193, 0.0
  %vm202 = vcmp.gt.f32.partialorder %v194, 0.0
  %vm203 = vcmp.gt.f32.partialorder %v195, 0.0
  %vm204 = vcmp.gt.f32.partialorder %v196, 0.0
  %vm205 = vcmp.gt.f32.partialorder %v197, 0.0
  %vm206 = vcmp.gt.f32.partialorder %v198, 0.0
  %vm207 = vcmp.gt.f32.partialorder %v199, 0.0
  %v208 = vmul.f32 %v192, 0.01
  %v209 = vmul.f32 %v193, 0.01
  %v210 = vmul.f32 %v194, 0.01
  %v211 = vmul.f32 %v195, 0.01
  %v212 = vmul.f32 %v196, 0.01
  %v213 = vmul.f32 %v197, 0.01
  %v214 = vmul.f32 %v198, 0.01
  %v215 = vmul.f32 %v199, 0.01
  %v216 = vsel %vm200, %v192, %v208
  %v217 = vsel %vm201, %v193, %v209
  %v218 = vsel %vm202, %v194, %v210
  %v219 = vsel %vm203, %v195, %v211
  %v220 = vsel %vm204, %v196, %v212
  %v221 = vsel %vm205, %v197, %v213
  %v222 = vsel %vm206, %v198, %v214
  %v223 = vsel %vm207, %v199, %v215
  %224 = vst.msk [vmem:[%s1] sm:$0xff] %vm16, %v216
  %225 = vst.msk [vmem:[%s1 + $0x8] sm:$0xff] %vm16, %v217
  %226 = vst.msk [vmem:[%s1 + $0x10] sm:$0xff] %vm16, %v218
  %227 = vst.msk [vmem:[%s1 + $0x18] sm:$0xff] %vm16, %v219
  %228 = vst.msk [vmem:[%s1 + $0x20] sm:$0xff] %vm16, %v220
  %229 = vst.msk [vmem:[%s1 + $0x28] sm:$0xff] %vm16, %v221
  %230 = vst.msk [vmem:[%s1 + $0x30] sm:$0xff] %vm16, %v222
  %231 = vst.msk [vmem:[%s1 + $0x38] sm:$0xff] %vm16, %v223
  // Predicated region
  $region6: #{generator_forward.53} parent=0 // pred_check
    _
  $region7: #{generator_forward.53} parent=0 // pred_check_branch
    %233 = sbr.rel (0) target = $region9
  $region8: #{generator_forward.53} parent=0 // pred_region
    _
  $region9: #{generator_forward.53} parent=0 // pred_fallthru
    _
  // Predicated region
  $region10: #{generator_forward.53} parent=0 // pred_check
    _
  $region11: #{generator_forward.53} parent=0 // pred_check_branch
    %235 = sbr.rel (0) target = $region13
  $region12: #{generator_forward.53} parent=0 // pred_region
    _
  $region13: #{generator_forward.53} parent=0 // pred_fallthru
    _

// kernel: generator_forward.54
$region0: #{generator_forward.54}
  #allocation0 [shape = 'u32[]', space=smem, size = 0x4, offset = 0x4, fixed_abs, tag = 'smem constant byte address 0x4 - core index']
  #allocation1 [shape = 'u32[72,128]{1,0:T(1,128)}', space=vmem, size = 0x9000, scoped, tag = 'internal scratch']
  #allocation2 [shape = 'f32[32,128]{1,0:T(8,128)}', space=vmem, size = 0x4000, scoped, tag = 'scratch operand']
  %s0 = inlined_call_operand.vmem [shape: bf16[32,384], index: 0, kind: input, shape index: {}]
  %s1 = inlined_call_operand.vmem [shape: bf16[384,128], index: 1, kind: input, shape index: {}]
  %s2 = inlined_call_operand.vmem [shape: f32[32,1], index: 2, kind: input, shape index: {}]
  %s3 = inlined_call_operand.vmem [shape: f32[32,128], index: 3, kind: output, shape index: {}]
  %s4 = sld [smem:[#allocation0]]
  $region30: #{generator_forward.54} parent=0
    _
  %s6 = ssub.s32 1, %s4
  %s7 = scalar_select 0, %s6, %s4
  // Predicated region
  $region2: #{generator_forward.54} parent=0 // pred_check
    _
  $region3: #{generator_forward.54} parent=0 // pred_check_branch
    %9 = sbr.rel (0) target = $region5
  $region4: #{generator_forward.54} parent=0 // pred_region
    _
  $region5: #{generator_forward.54} parent=0 // pred_fallthru
    _
  // Predicated region
  $region6: #{generator_forward.54} parent=0 // pred_check
    _
  $region7: #{generator_forward.54} parent=0 // pred_check_branch
    %11 = sbr.rel (0) target = $region9
  $region8: #{generator_forward.54} parent=0 // pred_region
    _
  $region9: #{generator_forward.54} parent=0 // pred_fallthru
    _
  // Predicated region
  $region10: #{generator_forward.54} parent=0 // pred_check
    _
  $region11: #{generator_forward.54} parent=0 // pred_check_branch
    %13 = sbr.rel (0) target = $region13
  $region12: #{generator_forward.54} parent=0 // pred_region
    _
  $region13: #{generator_forward.54} parent=0 // pred_fallthru
    _
  %p14 = scmp.eq.s32.totalorder 0, 0
  // Predicated region
  $region14: #{generator_forward.54} parent=0 // pred_check
    %p15 = pneg %p14
  $region15: #{generator_forward.54} parent=0 // pred_check_branch
    %17 = sbr.rel (%p15) target = $region17
  $region16: #{generator_forward.54} parent=0 // pred_region
    %18 = vst [vmem:[#allocation2] sm:$0xff] 0.0
    %19 = vst [vmem:[#allocation2 + $0x8] sm:$0xff] 0.0
    %20 = vst [vmem:[#allocation2 + $0x10] sm:$0xff] 0.0
    %21 = vst [vmem:[#allocation2 + $0x18] sm:$0xff] 0.0
  $region17: #{generator_forward.54} parent=0 // pred_fallthru
    _
  %v22 = vld [vmem:[#allocation2] sm:$0xff]
  %v23 = vld [vmem:[#allocation2 + $0x8] sm:$0xff]
  %v24 = vld [vmem:[#allocation2 + $0x10] sm:$0xff]
  %v25 = vld [vmem:[#allocation2 + $0x18] sm:$0xff]
  %v26 = vld [vmem:[%s0] sm:$0xff]
  %v27 = vld [vmem:[%s0 + $0x8] sm:$0xf]
  %v28 = vld [vmem:[%s0 + $0xc] sm:$0xff]
  %v29 = vld [vmem:[%s0 + $0x14] sm:$0xf]
  %v30 = vld [vmem:[%s0 + $0x18] sm:$0xff]
  %v31 = vld [vmem:[%s0 + $0x20] sm:$0xf]
  %v32 = vld [vmem:[%s0 + $0x24] sm:$0xff]
  %v33 = vld [vmem:[%s0 + $0x2c] sm:$0xf]
  %v34 = vld [vmem:[%s1] sm:$0xf]
  %v35 = vld [vmem:[%s1 + $0x4] sm:$0xf]
  %v36 = vld [vmem:[%s1 + $0x8] sm:$0xf]
  %v37 = vld [vmem:[%s1 + $0xc] sm:$0xf]
  %v38 = vld [vmem:[%s1 + $0x10] sm:$0xf]
  %v39 = vld [vmem:[%s1 + $0x14] sm:$0xf]
  %v40 = vld [vmem:[%s1 + $0x18] sm:$0xf]
  %v41 = vld [vmem:[%s1 + $0x1c] sm:$0xf]
  %v42 = vld [vmem:[%s1 + $0x20] sm:$0xf]
  %v43 = vld [vmem:[%s1 + $0x24] sm:$0xf]
  %v44 = vld [vmem:[%s1 + $0x28] sm:$0xf]
  %v45 = vld [vmem:[%s1 + $0x2c] sm:$0xf]
  %v46 = vld [vmem:[%s1 + $0x30] sm:$0xf]
  %v47 = vld [vmem:[%s1 + $0x34] sm:$0xf]
  %v48 = vld [vmem:[%s1 + $0x38] sm:$0xf]
  %v49 = vld [vmem:[%s1 + $0x3c] sm:$0xf]
  %v50 = vld [vmem:[%s1 + $0x40] sm:$0xf]
  %v51 = vld [vmem:[%s1 + $0x44] sm:$0xf]
  %v52 = vld [vmem:[%s1 + $0x48] sm:$0xf]
  %v53 = vld [vmem:[%s1 + $0x4c] sm:$0xf]
  %v54 = vld [vmem:[%s1 + $0x50] sm:$0xf]
  %v55 = vld [vmem:[%s1 + $0x54] sm:$0xf]
  %v56 = vld [vmem:[%s1 + $0x58] sm:$0xf]
  %v57 = vld [vmem:[%s1 + $0x5c] sm:$0xf]
  %v58 = vld [vmem:[%s1 + $0x60] sm:$0xf]
  %v59 = vld [vmem:[%s1 + $0x64] sm:$0xf]
  %v60 = vld [vmem:[%s1 + $0x68] sm:$0xf]
  %v61 = vld [vmem:[%s1 + $0x6c] sm:$0xf]
  %v62 = vld [vmem:[%s1 + $0x70] sm:$0xf]
  %v63 = vld [vmem:[%s1 + $0x74] sm:$0xf]
  %v64 = vld [vmem:[%s1 + $0x78] sm:$0xf]
  %v65 = vld [vmem:[%s1 + $0x7c] sm:$0xf]
  %v66 = vld [vmem:[%s1 + $0x80] sm:$0xf]
  %v67 = vld [vmem:[%s1 + $0x84] sm:$0xf]
  %v68 = vld [vmem:[%s1 + $0x88] sm:$0xf]
  %v69 = vld [vmem:[%s1 + $0x8c] sm:$0xf]
  %v70 = vld [vmem:[%s1 + $0x90] sm:$0xf]
  %v71 = vld [vmem:[%s1 + $0x94] sm:$0xf]
  %v72 = vld [vmem:[%s1 + $0x98] sm:$0xf]
  %v73 = vld [vmem:[%s1 + $0x9c] sm:$0xf]
  %v74 = vld [vmem:[%s1 + $0xa0] sm:$0xf]
  %v75 = vld [vmem:[%s1 + $0xa4] sm:$0xf]
  %v76 = vld [vmem:[%s1 + $0xa8] sm:$0xf]
  %v77 = vld [vmem:[%s1 + $0xac] sm:$0xf]
  %v78 = vld [vmem:[%s1 + $0xb0] sm:$0xf]
  %v79 = vld [vmem:[%s1 + $0xb4] sm:$0xf]
  %v80 = vld [vmem:[%s1 + $0xb8] sm:$0xf]
  %v81 = vld [vmem:[%s1 + $0xbc] sm:$0xf]
  %v90 = vunpack.c.l.b16 %v26
  %v91 = vunpack.c.h.b16 %v26
  %v92 = vunpack.c.l.b16 %v27
  %v93 = vunpack.c.l.b16 %v28
  %v94 = vunpack.c.h.b16 %v28
  %v95 = vunpack.c.l.b16 %v29
  %v96 = vunpack.c.l.b16 %v30
  %v97 = vunpack.c.h.b16 %v30
  %v98 = vunpack.c.l.b16 %v31
  %v99 = vunpack.c.l.b16 %v32
  %v100 = vunpack.c.h.b16 %v32
  %v101 = vunpack.c.l.b16 %v33
  %v102 = vpack.c.b16 %v93, %v90
  %v103 = vpack.c.b16 %v94, %v91
  %v104 = vpack.c.b16 %v95, %v92
  %v105 = vpack.c.b16 %v99, %v96
  %v106 = vpack.c.b16 %v100, %v97
  %v107 = vpack.c.b16 %v101, %v98
  %v162 = vunpack.c.l.b16 %v34
  %v163 = vunpack.c.l.b16 %v35
  %v164 = vunpack.c.l.b16 %v36
  %v165 = vunpack.c.l.b16 %v37
  %v166 = vunpack.c.l.b16 %v38
  %v167 = vunpack.c.l.b16 %v39
  %v168 = vunpack.c.l.b16 %v40
  %v169 = vunpack.c.l.b16 %v41
  %v170 = vunpack.c.l.b16 %v42
  %v171 = vunpack.c.l.b16 %v43
  %v172 = vunpack.c.l.b16 %v44
  %v173 = vunpack.c.l.b16 %v45
  %v174 = vunpack.c.l.b16 %v46
  %v175 = vunpack.c.l.b16 %v47
  %v176 = vunpack.c.l.b16 %v48
  %v177 = vunpack.c.l.b16 %v49
  %v178 = vunpack.c.l.b16 %v50
  %v179 = vunpack.c.l.b16 %v51
  %v180 = vunpack.c.l.b16 %v52
  %v181 = vunpack.c.l.b16 %v53
  %v182 = vunpack.c.l.b16 %v54
  %v183 = vunpack.c.l.b16 %v55
  %v184 = vunpack.c.l.b16 %v56
  %v185 = vunpack.c.l.b16 %v57
  %v186 = vunpack.c.l.b16 %v58
  %v187 = vunpack.c.l.b16 %v59
  %v188 = vunpack.c.l.b16 %v60
  %v189 = vunpack.c.l.b16 %v61
  %v190 = vunpack.c.l.b16 %v62
  %v191 = vunpack.c.l.b16 %v63
  %v192 = vunpack.c.l.b16 %v64
  %v193 = vunpack.c.l.b16 %v65
  %v194 = vunpack.c.l.b16 %v66
  %v195 = vunpack.c.l.b16 %v67
  %v196 = vunpack.c.l.b16 %v68
  %v197 = vunpack.c.l.b16 %v69
  %v198 = vunpack.c.l.b16 %v70
  %v199 = vunpack.c.l.b16 %v71
  %v200 = vunpack.c.l.b16 %v72
  %v201 = vunpack.c.l.b16 %v73
  %v202 = vunpack.c.l.b16 %v74
  %v203 = vunpack.c.l.b16 %v75
  %v204 = vunpack.c.l.b16 %v76
  %v205 = vunpack.c.l.b16 %v77
  %v206 = vunpack.c.l.b16 %v78
  %v207 = vunpack.c.l.b16 %v79
  %v208 = vunpack.c.l.b16 %v80
  %v209 = vunpack.c.l.b16 %v81
  %v210 = vpack.c.b16 %v163, %v162
  %v211 = vpack.c.b16 %v165, %v164
  %v212 = vpack.c.b16 %v167, %v166
  %v213 = vpack.c.b16 %v169, %v168
  %v214 = vpack.c.b16 %v171, %v170
  %v215 = vpack.c.b16 %v173, %v172
  %v216 = vpack.c.b16 %v175, %v174
  %v217 = vpack.c.b16 %v177, %v176
  %v218 = vpack.c.b16 %v179, %v178
  %v219 = vpack.c.b16 %v181, %v180
  %v220 = vpack.c.b16 %v183, %v182
  %v221 = vpack.c.b16 %v185, %v184
  %v222 = vpack.c.b16 %v187, %v186
  %v223 = vpack.c.b16 %v189, %v188
  %v224 = vpack.c.b16 %v191, %v190
  %v225 = vpack.c.b16 %v193, %v192
  %v226 = vpack.c.b16 %v195, %v194
  %v227 = vpack.c.b16 %v197, %v196
  %v228 = vpack.c.b16 %v199, %v198
  %v229 = vpack.c.b16 %v201, %v200
  %v230 = vpack.c.b16 %v203, %v202
  %v231 = vpack.c.b16 %v205, %v204
  %v232 = vpack.c.b16 %v207, %v206
  %v233 = vpack.c.b16 %v209, %v208
  %258 = vmatpush.bf16.msra.mxu0 %v217
  %259 = vmatpush.bf16.msra.mxu0 %v216
  %260 = vmatpush.bf16.msra.mxu0 %v215
  %261 = vmatpush.bf16.msra.mxu0 %v214
  %262 = vmatpush.bf16.msra.mxu0 %v213
  %263 = vmatpush.bf16.msra.mxu0 %v212
  %264 = vmatpush.bf16.msra.mxu0 %v211
  %265 = vmatpush.bf16.msra.mxu0 %v210
  %266 = vmatmul.bf16.gmra.mxu0 %v102
  %v267 = vpop.f32.mrf.mxu0
  %v268 = vadd.f32 0.0, %v267
  %v269 = vpop.f32.mrf.mxu0
  %v270 = vadd.f32 0.0, %v269
  %271 = vmatmul.bf16.gmra.mxu0 %v105
  %v272 = vpop.f32.mrf.mxu0
  %v273 = vadd.f32 0.0, %v272
  %v274 = vpop.f32.mrf.mxu0
  %v275 = vadd.f32 0.0, %v274
  %276 = vdwg.mxu0
  %277 = vmatpush.bf16.msra.mxu0 %v225
  %278 = vmatpush.bf16.msra.mxu0 %v224
  %279 = vmatpush.bf16.msra.mxu0 %v223
  %280 = vmatpush.bf16.msra.mxu0 %v222
  %281 = vmatpush.bf16.msra.mxu0 %v221
  %282 = vmatpush.bf16.msra.mxu0 %v220
  %283 = vmatpush.bf16.msra.mxu0 %v219
  %284 = vmatpush.bf16.msra.mxu0 %v218
  %285 = vmatmul.bf16.gmra.mxu0 %v103
  %v286 = vpop.f32.mrf.mxu0
  %v287 = vadd.f32 %v268, %v286
  %v288 = vpop.f32.mrf.mxu0
  %v289 = vadd.f32 %v270, %v288
  %290 = vmatmul.bf16.gmra.mxu0 %v106
  %v291 = vpop.f32.mrf.mxu0
  %v292 = vadd.f32 %v273, %v291
  %v293 = vpop.f32.mrf.mxu0
  %v294 = vadd.f32 %v275, %v293
  %295 = vdwg.mxu0
  %296 = vmatpush.bf16.msra.mxu0 %v233
  %297 = vmatpush.bf16.msra.mxu0 %v232
  %298 = vmatpush.bf16.msra.mxu0 %v231
  %299 = vmatpush.bf16.msra.mxu0 %v230
  %300 = vmatpush.bf16.msra.mxu0 %v229
  %301 = vmatpush.bf16.msra.mxu0 %v228
  %302 = vmatpush.bf16.msra.mxu0 %v227
  %303 = vmatpush.bf16.msra.mxu0 %v226
  %304 = vmatmul.bf16.gmra.mxu0 %v104
  %v305 = vpop.f32.mrf.mxu0
  %v306 = vadd.f32 %v287, %v305
  %v307 = vpop.f32.mrf.mxu0
  %v308 = vadd.f32 %v289, %v307
  %309 = vmatmul.bf16.gmra.mxu0 %v107
  %v310 = vpop.f32.mrf.mxu0
  %v311 = vadd.f32 %v292, %v310
  %v312 = vpop.f32.mrf.mxu0
  %v313 = vadd.f32 %v294, %v312
  %314 = vdwg.mxu0
  %v315 = vadd.f32 %v22, %v306
  %v316 = vadd.f32 %v23, %v308
  %v317 = vadd.f32 %v24, %v311
  %v318 = vadd.f32 %v25, %v313
  %319 = vst [vmem:[#allocation2] sm:$0xff] %v315
  %320 = vst [vmem:[#allocation2 + $0x8] sm:$0xff] %v316
  %321 = vst [vmem:[#allocation2 + $0x10] sm:$0xff] %v317
  %322 = vst [vmem:[#allocation2 + $0x18] sm:$0xff] %v318
  // Predicated region
  $region18: #{generator_forward.54} parent=0 // pred_check
    %p323 = pneg %p14
  $region19: #{generator_forward.54} parent=0 // pred_check_branch
    %325 = sbr.rel (%p323) target = $region21
  $region20: #{generator_forward.54} parent=0 // pred_region
    %v326 = vld [vmem:[#allocation2] sm:$0xff]
    %v327 = vld [vmem:[#allocation2 + $0x8] sm:$0xff]
    %v328 = vld [vmem:[#allocation2 + $0x10] sm:$0xff]
    %v329 = vld [vmem:[#allocation2 + $0x18] sm:$0xff]
    %v330 = vld [vmem:[%s2] sm:$0xff]
    %v331 = vld [vmem:[%s2 + $0x8] sm:$0xff]
    %v332 = vld [vmem:[%s2 + $0x10] sm:$0xff]
    %v333 = vld [vmem:[%s2 + $0x18] sm:$0xff]
    %335 = vset.pattern.permute.xlu0 0
    %336 = vperm.xlu0 %335, %v330
    %v337 = vpop.permute.xlu0 %336
    %340 = vset.pattern.permute.xlu0 0
    %341 = vperm.xlu0 %340, %v331
    %v342 = vpop.permute.xlu0 %341
    %345 = vset.pattern.permute.xlu0 0
    %346 = vperm.xlu0 %345, %v332
    %v347 = vpop.permute.xlu0 %346
    %350 = vset.pattern.permute.xlu0 0
    %351 = vperm.xlu0 %350, %v333
    %v352 = vpop.permute.xlu0 %351
    %v354 = vadd.f32 %v326, %v337
    %v355 = vadd.f32 %v327, %v342
    %v356 = vadd.f32 %v328, %v347
    %v357 = vadd.f32 %v329, %v352
    %358 = vst [vmem:[%s3] sm:$0xff] %v354
    %359 = vst [vmem:[%s3 + $0x8] sm:$0xff] %v355
    %360 = vst [vmem:[%s3 + $0x10] sm:$0xff] %v356
    %361 = vst [vmem:[%s3 + $0x18] sm:$0xff] %v357
  $region21: #{generator_forward.54} parent=0 // pred_fallthru
    _
  // Predicated region
  $region22: #{generator_forward.54} parent=0 // pred_check
    _
  $region23: #{generator_forward.54} parent=0 // pred_check_branch
    %363 = sbr.rel (0) target = $region25
  $region24: #{generator_forward.54} parent=0 // pred_region
    _
  $region25: #{generator_forward.54} parent=0 // pred_fallthru
    _
  // Predicated region
  $region26: #{generator_forward.54} parent=0 // pred_check
    _
  $region27: #{generator_forward.54} parent=0 // pred_check_branch
    %365 = sbr.rel (0) target = $region29
  $region28: #{generator_forward.54} parent=0 // pred_region
    _
  $region29: #{generator_forward.54} parent=0 // pred_fallthru
    _

// kernel: generator_forward.60
$region0: #{generator_forward.60}
  #allocation0 [shape = 'u32[]', space=smem, size = 0x4, offset = 0x4, fixed_abs, tag = 'smem constant byte address 0x4 - core index']
  #allocation1 [shape = 'u32[72,128]{1,0:T(1,128)}', space=vmem, size = 0x9000, scoped, tag = 'internal scratch']
  #allocation2 [shape = 'f32[32,128]{1,0:T(8,128)}', space=vmem, size = 0x4000, scoped, tag = 'scratch operand']
  %s0 = inlined_call_operand.vmem [shape: bf16[32,512], index: 0, kind: input, shape index: {}]
  %s1 = inlined_call_operand.vmem [shape: bf16[512,128], index: 1, kind: input, shape index: {}]
  %s2 = inlined_call_operand.vmem [shape: f32[32,1], index: 2, kind: input, shape index: {}]
  %s3 = inlined_call_operand.vmem [shape: f32[32,128], index: 3, kind: output, shape index: {}]
  %s4 = sld [smem:[#allocation0]]
  $region30: #{generator_forward.60} parent=0
    _
  %s6 = ssub.s32 1, %s4
  %s7 = scalar_select 0, %s6, %s4
  // Predicated region
  $region2: #{generator_forward.60} parent=0 // pred_check
    _
  $region3: #{generator_forward.60} parent=0 // pred_check_branch
    %9 = sbr.rel (0) target = $region5
  $region4: #{generator_forward.60} parent=0 // pred_region
    _
  $region5: #{generator_forward.60} parent=0 // pred_fallthru
    _
  // Predicated region
  $region6: #{generator_forward.60} parent=0 // pred_check
    _
  $region7: #{generator_forward.60} parent=0 // pred_check_branch
    %11 = sbr.rel (0) target = $region9
  $region8: #{generator_forward.60} parent=0 // pred_region
    _
  $region9: #{generator_forward.60} parent=0 // pred_fallthru
    _
  // Predicated region
  $region10: #{generator_forward.60} parent=0 // pred_check
    _
  $region11: #{generator_forward.60} parent=0 // pred_check_branch
    %13 = sbr.rel (0) target = $region13
  $region12: #{generator_forward.60} parent=0 // pred_region
    _
  $region13: #{generator_forward.60} parent=0 // pred_fallthru
    _
  %p14 = scmp.eq.s32.totalorder 0, 0
  // Predicated region
  $region14: #{generator_forward.60} parent=0 // pred_check
    %p15 = pneg %p14
  $region15: #{generator_forward.60} parent=0 // pred_check_branch
    %17 = sbr.rel (%p15) target = $region17
  $region16: #{generator_forward.60} parent=0 // pred_region
    %18 = vst [vmem:[#allocation2] sm:$0xff] 0.0
    %19 = vst [vmem:[#allocation2 + $0x8] sm:$0xff] 0.0
    %20 = vst [vmem:[#allocation2 + $0x10] sm:$0xff] 0.0
    %21 = vst [vmem:[#allocation2 + $0x18] sm:$0xff] 0.0
  $region17: #{generator_forward.60} parent=0 // pred_fallthru
    _
  %v22 = vld [vmem:[#allocation2] sm:$0xff]
  %v23 = vld [vmem:[#allocation2 + $0x8] sm:$0xff]
  %v24 = vld [vmem:[#allocation2 + $0x10] sm:$0xff]
  %v25 = vld [vmem:[#allocation2 + $0x18] sm:$0xff]
  %v26 = vld [vmem:[%s0] sm:$0xff]
  %v27 = vld [vmem:[%s0 + $0x8] sm:$0xff]
  %v28 = vld [vmem:[%s0 + $0x10] sm:$0xff]
  %v29 = vld [vmem:[%s0 + $0x18] sm:$0xff]
  %v30 = vld [vmem:[%s0 + $0x20] sm:$0xff]
  %v31 = vld [vmem:[%s0 + $0x28] sm:$0xff]
  %v32 = vld [vmem:[%s0 + $0x30] sm:$0xff]
  %v33 = vld [vmem:[%s0 + $0x38] sm:$0xff]
  %v34 = vld [vmem:[%s1] sm:$0xf]
  %v35 = vld [vmem:[%s1 + $0x4] sm:$0xf]
  %v36 = vld [vmem:[%s1 + $0x8] sm:$0xf]
  %v37 = vld [vmem:[%s1 + $0xc] sm:$0xf]
  %v38 = vld [vmem:[%s1 + $0x10] sm:$0xf]
  %v39 = vld [vmem:[%s1 + $0x14] sm:$0xf]
  %v40 = vld [vmem:[%s1 + $0x18] sm:$0xf]
  %v41 = vld [vmem:[%s1 + $0x1c] sm:$0xf]
  %v42 = vld [vmem:[%s1 + $0x20] sm:$0xf]
  %v43 = vld [vmem:[%s1 + $0x24] sm:$0xf]
  %v44 = vld [vmem:[%s1 + $0x28] sm:$0xf]
  %v45 = vld [vmem:[%s1 + $0x2c] sm:$0xf]
  %v46 = vld [vmem:[%s1 + $0x30] sm:$0xf]
  %v47 = vld [vmem:[%s1 + $0x34] sm:$0xf]
  %v48 = vld [vmem:[%s1 + $0x38] sm:$0xf]
  %v49 = vld [vmem:[%s1 + $0x3c] sm:$0xf]
  %v50 = vld [vmem:[%s1 + $0x40] sm:$0xf]
  %v51 = vld [vmem:[%s1 + $0x44] sm:$0xf]
  %v52 = vld [vmem:[%s1 + $0x48] sm:$0xf]
  %v53 = vld [vmem:[%s1 + $0x4c] sm:$0xf]
  %v54 = vld [vmem:[%s1 + $0x50] sm:$0xf]
  %v55 = vld [vmem:[%s1 + $0x54] sm:$0xf]
  %v56 = vld [vmem:[%s1 + $0x58] sm:$0xf]
  %v57 = vld [vmem:[%s1 + $0x5c] sm:$0xf]
  %v58 = vld [vmem:[%s1 + $0x60] sm:$0xf]
  %v59 = vld [vmem:[%s1 + $0x64] sm:$0xf]
  %v60 = vld [vmem:[%s1 + $0x68] sm:$0xf]
  %v61 = vld [vmem:[%s1 + $0x6c] sm:$0xf]
  %v62 = vld [vmem:[%s1 + $0x70] sm:$0xf]
  %v63 = vld [vmem:[%s1 + $0x74] sm:$0xf]
  %v64 = vld [vmem:[%s1 + $0x78] sm:$0xf]
  %v65 = vld [vmem:[%s1 + $0x7c] sm:$0xf]
  %v66 = vld [vmem:[%s1 + $0x80] sm:$0xf]
  %v67 = vld [vmem:[%s1 + $0x84] sm:$0xf]
  %v68 = vld [vmem:[%s1 + $0x88] sm:$0xf]
  %v69 = vld [vmem:[%s1 + $0x8c] sm:$0xf]
  %v70 = vld [vmem:[%s1 + $0x90] sm:$0xf]
  %v71 = vld [vmem:[%s1 + $0x94] sm:$0xf]
  %v72 = vld [vmem:[%s1 + $0x98] sm:$0xf]
  %v73 = vld [vmem:[%s1 + $0x9c] sm:$0xf]
  %v74 = vld [vmem:[%s1 + $0xa0] sm:$0xf]
  %v75 = vld [vmem:[%s1 + $0xa4] sm:$0xf]
  %v76 = vld [vmem:[%s1 + $0xa8] sm:$0xf]
  %v77 = vld [vmem:[%s1 + $0xac] sm:$0xf]
  %v78 = vld [vmem:[%s1 + $0xb0] sm:$0xf]
  %v79 = vld [vmem:[%s1 + $0xb4] sm:$0xf]
  %v80 = vld [vmem:[%s1 + $0xb8] sm:$0xf]
  %v81 = vld [vmem:[%s1 + $0xbc] sm:$0xf]
  %v82 = vld [vmem:[%s1 + $0xc0] sm:$0xf]
  %v83 = vld [vmem:[%s1 + $0xc4] sm:$0xf]
  %v84 = vld [vmem:[%s1 + $0xc8] sm:$0xf]
  %v85 = vld [vmem:[%s1 + $0xcc] sm:$0xf]
  %v86 = vld [vmem:[%s1 + $0xd0] sm:$0xf]
  %v87 = vld [vmem:[%s1 + $0xd4] sm:$0xf]
  %v88 = vld [vmem:[%s1 + $0xd8] sm:$0xf]
  %v89 = vld [vmem:[%s1 + $0xdc] sm:$0xf]
  %v90 = vld [vmem:[%s1 + $0xe0] sm:$0xf]
  %v91 = vld [vmem:[%s1 + $0xe4] sm:$0xf]
  %v92 = vld [vmem:[%s1 + $0xe8] sm:$0xf]
  %v93 = vld [vmem:[%s1 + $0xec] sm:$0xf]
  %v94 = vld [vmem:[%s1 + $0xf0] sm:$0xf]
  %v95 = vld [vmem:[%s1 + $0xf4] sm:$0xf]
  %v96 = vld [vmem:[%s1 + $0xf8] sm:$0xf]
  %v97 = vld [vmem:[%s1 + $0xfc] sm:$0xf]
  %v106 = vunpack.c.l.b16 %v26
  %v107 = vunpack.c.h.b16 %v26
  %v108 = vunpack.c.l.b16 %v27
  %v109 = vunpack.c.h.b16 %v27
  %v110 = vunpack.c.l.b16 %v28
  %v111 = vunpack.c.h.b16 %v28
  %v112 = vunpack.c.l.b16 %v29
  %v113 = vunpack.c.h.b16 %v29
  %v114 = vunpack.c.l.b16 %v30
  %v115 = vunpack.c.h.b16 %v30
  %v116 = vunpack.c.l.b16 %v31
  %v117 = vunpack.c.h.b16 %v31
  %v118 = vunpack.c.l.b16 %v32
  %v119 = vunpack.c.h.b16 %v32
  %v120 = vunpack.c.l.b16 %v33
  %v121 = vunpack.c.h.b16 %v33
  %v122 = vpack.c.b16 %v110, %v106
  %v123 = vpack.c.b16 %v111, %v107
  %v124 = vpack.c.b16 %v112, %v108
  %v125 = vpack.c.b16 %v113, %v109
  %v126 = vpack.c.b16 %v118, %v114
  %v127 = vpack.c.b16 %v119, %v115
  %v128 = vpack.c.b16 %v120, %v116
  %v129 = vpack.c.b16 %v121, %v117
  %v202 = vunpack.c.l.b16 %v34
  %v203 = vunpack.c.l.b16 %v35
  %v204 = vunpack.c.l.b16 %v36
  %v205 = vunpack.c.l.b16 %v37
  %v206 = vunpack.c.l.b16 %v38
  %v207 = vunpack.c.l.b16 %v39
  %v208 = vunpack.c.l.b16 %v40
  %v209 = vunpack.c.l.b16 %v41
  %v210 = vunpack.c.l.b16 %v42
  %v211 = vunpack.c.l.b16 %v43
  %v212 = vunpack.c.l.b16 %v44
  %v213 = vunpack.c.l.b16 %v45
  %v214 = vunpack.c.l.b16 %v46
  %v215 = vunpack.c.l.b16 %v47
  %v216 = vunpack.c.l.b16 %v48
  %v217 = vunpack.c.l.b16 %v49
  %v218 = vunpack.c.l.b16 %v50
  %v219 = vunpack.c.l.b16 %v51
  %v220 = vunpack.c.l.b16 %v52
  %v221 = vunpack.c.l.b16 %v53
  %v222 = vunpack.c.l.b16 %v54
  %v223 = vunpack.c.l.b16 %v55
  %v224 = vunpack.c.l.b16 %v56
  %v225 = vunpack.c.l.b16 %v57
  %v226 = vunpack.c.l.b16 %v58
  %v227 = vunpack.c.l.b16 %v59
  %v228 = vunpack.c.l.b16 %v60
  %v229 = vunpack.c.l.b16 %v61
  %v230 = vunpack.c.l.b16 %v62
  %v231 = vunpack.c.l.b16 %v63
  %v232 = vunpack.c.l.b16 %v64
  %v233 = vunpack.c.l.b16 %v65
  %v234 = vunpack.c.l.b16 %v66
  %v235 = vunpack.c.l.b16 %v67
  %v236 = vunpack.c.l.b16 %v68
  %v237 = vunpack.c.l.b16 %v69
  %v238 = vunpack.c.l.b16 %v70
  %v239 = vunpack.c.l.b16 %v71
  %v240 = vunpack.c.l.b16 %v72
  %v241 = vunpack.c.l.b16 %v73
  %v242 = vunpack.c.l.b16 %v74
  %v243 = vunpack.c.l.b16 %v75
  %v244 = vunpack.c.l.b16 %v76
  %v245 = vunpack.c.l.b16 %v77
  %v246 = vunpack.c.l.b16 %v78
  %v247 = vunpack.c.l.b16 %v79
  %v248 = vunpack.c.l.b16 %v80
  %v249 = vunpack.c.l.b16 %v81
  %v250 = vunpack.c.l.b16 %v82
  %v251 = vunpack.c.l.b16 %v83
  %v252 = vunpack.c.l.b16 %v84
  %v253 = vunpack.c.l.b16 %v85
  %v254 = vunpack.c.l.b16 %v86
  %v255 = vunpack.c.l.b16 %v87
  %v256 = vunpack.c.l.b16 %v88
  %v257 = vunpack.c.l.b16 %v89
  %v258 = vunpack.c.l.b16 %v90
  %v259 = vunpack.c.l.b16 %v91
  %v260 = vunpack.c.l.b16 %v92
  %v261 = vunpack.c.l.b16 %v93
  %v262 = vunpack.c.l.b16 %v94
  %v263 = vunpack.c.l.b16 %v95
  %v264 = vunpack.c.l.b16 %v96
  %v265 = vunpack.c.l.b16 %v97
  %v266 = vpack.c.b16 %v203, %v202
  %v267 = vpack.c.b16 %v205, %v204
  %v268 = vpack.c.b16 %v207, %v206
  %v269 = vpack.c.b16 %v209, %v208
  %v270 = vpack.c.b16 %v211, %v210
  %v271 = vpack.c.b16 %v213, %v212
  %v272 = vpack.c.b16 %v215, %v214
  %v273 = vpack.c.b16 %v217, %v216
  %v274 = vpack.c.b16 %v219, %v218
  %v275 = vpack.c.b16 %v221, %v220
  %v276 = vpack.c.b16 %v223, %v222
  %v277 = vpack.c.b16 %v225, %v224
  %v278 = vpack.c.b16 %v227, %v226
  %v279 = vpack.c.b16 %v229, %v228
  %v280 = vpack.c.b16 %v231, %v230
  %v281 = vpack.c.b16 %v233, %v232
  %v282 = vpack.c.b16 %v235, %v234
  %v283 = vpack.c.b16 %v237, %v236
  %v284 = vpack.c.b16 %v239, %v238
  %v285 = vpack.c.b16 %v241, %v240
  %v286 = vpack.c.b16 %v243, %v242
  %v287 = vpack.c.b16 %v245, %v244
  %v288 = vpack.c.b16 %v247, %v246
  %v289 = vpack.c.b16 %v249, %v248
  %v290 = vpack.c.b16 %v251, %v250
  %v291 = vpack.c.b16 %v253, %v252
  %v292 = vpack.c.b16 %v255, %v254
  %v293 = vpack.c.b16 %v257, %v256
  %v294 = vpack.c.b16 %v259, %v258
  %v295 = vpack.c.b16 %v261, %v260
  %v296 = vpack.c.b16 %v263, %v262
  %v297 = vpack.c.b16 %v265, %v264
  %330 = vmatpush.bf16.msra.mxu0 %v273
  %331 = vmatpush.bf16.msra.mxu0 %v272
  %332 = vmatpush.bf16.msra.mxu0 %v271
  %333 = vmatpush.bf16.msra.mxu0 %v270
  %334 = vmatpush.bf16.msra.mxu0 %v269
  %335 = vmatpush.bf16.msra.mxu0 %v268
  %336 = vmatpush.bf16.msra.mxu0 %v267
  %337 = vmatpush.bf16.msra.mxu0 %v266
  %338 = vmatmul.bf16.gmra.mxu0 %v122
  %v339 = vpop.f32.mrf.mxu0
  %v340 = vadd.f32 0.0, %v339
  %v341 = vpop.f32.mrf.mxu0
  %v342 = vadd.f32 0.0, %v341
  %343 = vmatmul.bf16.gmra.mxu0 %v126
  %v344 = vpop.f32.mrf.mxu0
  %v345 = vadd.f32 0.0, %v344
  %v346 = vpop.f32.mrf.mxu0
  %v347 = vadd.f32 0.0, %v346
  %348 = vdwg.mxu0
  %349 = vmatpush.bf16.msra.mxu0 %v281
  %350 = vmatpush.bf16.msra.mxu0 %v280
  %351 = vmatpush.bf16.msra.mxu0 %v279
  %352 = vmatpush.bf16.msra.mxu0 %v278
  %353 = vmatpush.bf16.msra.mxu0 %v277
  %354 = vmatpush.bf16.msra.mxu0 %v276
  %355 = vmatpush.bf16.msra.mxu0 %v275
  %356 = vmatpush.bf16.msra.mxu0 %v274
  %357 = vmatmul.bf16.gmra.mxu0 %v123
  %v358 = vpop.f32.mrf.mxu0
  %v359 = vadd.f32 %v340, %v358
  %v360 = vpop.f32.mrf.mxu0
  %v361 = vadd.f32 %v342, %v360
  %362 = vmatmul.bf16.gmra.mxu0 %v127
  %v363 = vpop.f32.mrf.mxu0
  %v364 = vadd.f32 %v345, %v363
  %v365 = vpop.f32.mrf.mxu0
  %v366 = vadd.f32 %v347, %v365
  %367 = vdwg.mxu0
  %368 = vmatpush.bf16.msra.mxu0 %v289
  %369 = vmatpush.bf16.msra.mxu0 %v288
  %370 = vmatpush.bf16.msra.mxu0 %v287
  %371 = vmatpush.bf16.msra.mxu0 %v286
  %372 = vmatpush.bf16.msra.mxu0 %v285
  %373 = vmatpush.bf16.msra.mxu0 %v284
  %374 = vmatpush.bf16.msra.mxu0 %v283
  %375 = vmatpush.bf16.msra.mxu0 %v282
  %376 = vmatmul.bf16.gmra.mxu0 %v124
  %v377 = vpop.f32.mrf.mxu0
  %v378 = vadd.f32 %v359, %v377
  %v379 = vpop.f32.mrf.mxu0
  %v380 = vadd.f32 %v361, %v379
  %381 = vmatmul.bf16.gmra.mxu0 %v128
  %v382 = vpop.f32.mrf.mxu0
  %v383 = vadd.f32 %v364, %v382
  %v384 = vpop.f32.mrf.mxu0
  %v385 = vadd.f32 %v366, %v384
  %386 = vdwg.mxu0
  %387 = vmatpush.bf16.msra.mxu0 %v297
  %388 = vmatpush.bf16.msra.mxu0 %v296
  %389 = vmatpush.bf16.msra.mxu0 %v295
  %390 = vmatpush.bf16.msra.mxu0 %v294
  %391 = vmatpush.bf16.msra.mxu0 %v293
  %392 = vmatpush.bf16.msra.mxu0 %v292
  %393 = vmatpush.bf16.msra.mxu0 %v291
  %394 = vmatpush.bf16.msra.mxu0 %v290
  %395 = vmatmul.bf16.gmra.mxu0 %v125
  %v396 = vpop.f32.mrf.mxu0
  %v397 = vadd.f32 %v378, %v396
  %v398 = vpop.f32.mrf.mxu0
  %v399 = vadd.f32 %v380, %v398
  %400 = vmatmul.bf16.gmra.mxu0 %v129
  %v401 = vpop.f32.mrf.mxu0
  %v402 = vadd.f32 %v383, %v401
  %v403 = vpop.f32.mrf.mxu0
  %v404 = vadd.f32 %v385, %v403
  %405 = vdwg.mxu0
  %v406 = vadd.f32 %v22, %v397
  %v407 = vadd.f32 %v23, %v399
  %v408 = vadd.f32 %v24, %v402
  %v409 = vadd.f32 %v25, %v404
  %410 = vst [vmem:[#allocation2] sm:$0xff] %v406
  %411 = vst [vmem:[#allocation2 + $0x8] sm:$0xff] %v407
  %412 = vst [vmem:[#allocation2 + $0x10] sm:$0xff] %v408
  %413 = vst [vmem:[#allocation2 + $0x18] sm:$0xff] %v409
  // Predicated region
  $region18: #{generator_forward.60} parent=0 // pred_check
    %p414 = pneg %p14
  $region19: #{generator_forward.60} parent=0 // pred_check_branch
    %416 = sbr.rel (%p414) target = $region21
  $region20: #{generator_forward.60} parent=0 // pred_region
    %v417 = vld [vmem:[#allocation2] sm:$0xff]
    %v418 = vld [vmem:[#allocation2 + $0x8] sm:$0xff]
    %v419 = vld [vmem:[#allocation2 + $0x10] sm:$0xff]
    %v420 = vld [vmem:[#allocation2 + $0x18] sm:$0xff]
    %v421 = vld [vmem:[%s2] sm:$0xff]
    %v422 = vld [vmem:[%s2 + $0x8] sm:$0xff]
    %v423 = vld [vmem:[%s2 + $0x10] sm:$0xff]
    %v424 = vld [vmem:[%s2 + $0x18] sm:$0xff]
    %426 = vset.pattern.permute.xlu0 0
    %427 = vperm.xlu0 %426, %v421
    %v428 = vpop.permute.xlu0 %427
    %431 = vset.pattern.permute.xlu0 0
    %432 = vperm.xlu0 %431, %v422
    %v433 = vpop.permute.xlu0 %432
    %436 = vset.pattern.permute.xlu0 0
    %437 = vperm.xlu0 %436, %v423
    %v438 = vpop.permute.xlu0 %437
    %441 = vset.pattern.permute.xlu0 0
    %442 = vperm.xlu0 %441, %v424
    %v443 = vpop.permute.xlu0 %442
    %v445 = vadd.f32 %v417, %v428
    %v446 = vadd.f32 %v418, %v433
    %v447 = vadd.f32 %v419, %v438
    %v448 = vadd.f32 %v420, %v443
    %449 = vst [vmem:[%s3] sm:$0xff] %v445
    %450 = vst [vmem:[%s3 + $0x8] sm:$0xff] %v446
    %451 = vst [vmem:[%s3 + $0x10] sm:$0xff] %v447
    %452 = vst [vmem:[%s3 + $0x18] sm:$0xff] %v448
  $region21: #{generator_forward.60} parent=0 // pred_fallthru
    _
  // Predicated region
  $region22: #{generator_forward.60} parent=0 // pred_check
    _
  $region23: #{generator_forward.60} parent=0 // pred_check_branch
    %454 = sbr.rel (0) target = $region25
  $region24: #{generator_forward.60} parent=0 // pred_region
    _
  $region25: #{generator_forward.60} parent=0 // pred_fallthru
    _
  // Predicated region
  $region26: #{generator_forward.60} parent=0 // pred_check
    _
  $region27: #{generator_forward.60} parent=0 // pred_check_branch
    %456 = sbr.rel (0) target = $region29
  $region28: #{generator_forward.60} parent=0 // pred_region
    _
  $region29: #{generator_forward.60} parent=0 // pred_fallthru
    _

// kernel: generator_forward.62
$region0: #{generator_forward.62}
  #allocation0 [shape = 'u32[]', space=smem, size = 0x4, offset = 0x4, fixed_abs, tag = 'smem constant byte address 0x4 - core index']
  #allocation1 [shape = 'u32[72,128]{1,0:T(1,128)}', space=vmem, size = 0x9000, scoped, tag = 'internal scratch']
  %s0 = inlined_call_operand.vmem [shape: f32[64,4], index: 0, kind: input, shape index: {}]
  %s1 = inlined_call_operand.vmem [shape: f32[64,4], index: 1, kind: output, shape index: {}]
  %s2 = sld [smem:[#allocation0]]
  $region14: #{generator_forward.62} parent=0
    _
  %s4 = ssub.s32 1, %s2
  %s5 = scalar_select 0, %s4, %s2
  // Predicated region
  $region2: #{generator_forward.62} parent=0 // pred_check
    _
  $region3: #{generator_forward.62} parent=0 // pred_check_branch
    %7 = sbr.rel (0) target = $region5
  $region4: #{generator_forward.62} parent=0 // pred_region
    _
  $region5: #{generator_forward.62} parent=0 // pred_fallthru
    _
  %v8 = vld [vmem:[%s0] sm:$0xff]
  %v9 = vld [vmem:[%s0 + $0x8] sm:$0xff]
  %v10 = vld [vmem:[%s0 + $0x10] sm:$0xff]
  %v11 = vld [vmem:[%s0 + $0x18] sm:$0xff]
  %v12 = vld [vmem:[%s0 + $0x20] sm:$0xff]
  %v13 = vld [vmem:[%s0 + $0x28] sm:$0xff]
  %v14 = vld [vmem:[%s0 + $0x30] sm:$0xff]
  %v15 = vld [vmem:[%s0 + $0x38] sm:$0xff]
  %vm16 = vcmask 31744
  %v17 = vsel %vm16, %v8, 0.0
  %18 = vadd.xlane.f32.xlu0 %v17
  %v19 = vpop.xlane.xlu0 %18
  %v20 = vsel %vm16, %v9, 0.0
  %21 = vadd.xlane.f32.xlu0 %v20
  %v22 = vpop.xlane.xlu0 %21
  %v23 = vsel %vm16, %v10, 0.0
  %24 = vadd.xlane.f32.xlu0 %v23
  %v25 = vpop.xlane.xlu0 %24
  %v26 = vsel %vm16, %v11, 0.0
  %27 = vadd.xlane.f32.xlu0 %v26
  %v28 = vpop.xlane.xlu0 %27
  %v29 = vsel %vm16, %v12, 0.0
  %30 = vadd.xlane.f32.xlu0 %v29
  %v31 = vpop.xlane.xlu0 %30
  %v32 = vsel %vm16, %v13, 0.0
  %33 = vadd.xlane.f32.xlu0 %v32
  %v34 = vpop.xlane.xlu0 %33
  %v35 = vsel %vm16, %v14, 0.0
  %36 = vadd.xlane.f32.xlu0 %v35
  %v37 = vpop.xlane.xlu0 %36
  %v38 = vsel %vm16, %v15, 0.0
  %39 = vadd.xlane.f32.xlu0 %v38
  %v40 = vpop.xlane.xlu0 %39
  %v41 = vrcp.pop 4.0
  %v42 = vmul.f32 4.0, %v41
  %v43 = vsub.f32 1.0, %v42
  %v44 = vmul.f32 %v41, %v43
  %v45 = vadd.f32 %v41, %v44
  %vm46 = vweird.f32 %v41
  %v47 = vsel %vm46, %v41, %v45
  %v48 = vmul.f32 %v19, %v47
  %v49 = vmul.f32 %v22, %v47
  %v50 = vmul.f32 %v25, %v47
  %v51 = vmul.f32 %v28, %v47
  %v52 = vmul.f32 %v31, %v47
  %v53 = vmul.f32 %v34, %v47
  %v54 = vmul.f32 %v37, %v47
  %v55 = vmul.f32 %v40, %v47
  %v56 = vsub.f32 %v8, %v48
  %v57 = vsub.f32 %v9, %v49
  %v58 = vsub.f32 %v10, %v50
  %v59 = vsub.f32 %v11, %v51
  %v60 = vsub.f32 %v12, %v52
  %v61 = vsub.f32 %v13, %v53
  %v62 = vsub.f32 %v14, %v54
  %v63 = vsub.f32 %v15, %v55
  %v64 = vmul.f32 %v56, %v56
  %v65 = vmul.f32 %v57, %v57
  %v66 = vmul.f32 %v58, %v58
  %v67 = vmul.f32 %v59, %v59
  %v68 = vmul.f32 %v60, %v60
  %v69 = vmul.f32 %v61, %v61
  %v70 = vmul.f32 %v62, %v62
  %v71 = vmul.f32 %v63, %v63
  %v72 = vsel %vm16, %v64, 0.0
  %73 = vadd.xlane.f32.xlu0 %v72
  %v74 = vpop.xlane.xlu0 %73
  %v75 = vsel %vm16, %v65, 0.0
  %76 = vadd.xlane.f32.xlu0 %v75
  %v77 = vpop.xlane.xlu0 %76
  %v78 = vsel %vm16, %v66, 0.0
  %79 = vadd.xlane.f32.xlu0 %v78
  %v80 = vpop.xlane.xlu0 %79
  %v81 = vsel %vm16, %v67, 0.0
  %82 = vadd.xlane.f32.xlu0 %v81
  %v83 = vpop.xlane.xlu0 %82
  %v84 = vsel %vm16, %v68, 0.0
  %85 = vadd.xlane.f32.xlu0 %v84
  %v86 = vpop.xlane.xlu0 %85
  %v87 = vsel %vm16, %v69, 0.0
  %88 = vadd.xlane.f32.xlu0 %v87
  %v89 = vpop.xlane.xlu0 %88
  %v90 = vsel %vm16, %v70, 0.0
  %91 = vadd.xlane.f32.xlu0 %v90
  %v92 = vpop.xlane.xlu0 %91
  %v93 = vsel %vm16, %v71, 0.0
  %94 = vadd.xlane.f32.xlu0 %v93
  %v95 = vpop.xlane.xlu0 %94
  %v96 = vmul.f32 %v74, %v47
  %v97 = vmul.f32 %v77, %v47
  %v98 = vmul.f32 %v80, %v47
  %v99 = vmul.f32 %v83, %v47
  %v100 = vmul.f32 %v86, %v47
  %v101 = vmul.f32 %v89, %v47
  %v102 = vmul.f32 %v92, %v47
  %v103 = vmul.f32 %v95, %v47
  %v104 = vadd.f32 %v96, 1e-05
  %v105 = vadd.f32 %v97, 1e-05
  %v106 = vadd.f32 %v98, 1e-05
  %v107 = vadd.f32 %v99, 1e-05
  %v108 = vadd.f32 %v100, 1e-05
  %v109 = vadd.f32 %v101, 1e-05
  %v110 = vadd.f32 %v102, 1e-05
  %v111 = vadd.f32 %v103, 1e-05
  %v112 = vrsqrt.pop %v104
  %v113 = vmul.f32 %v112, %v104
  %v114 = vmul.f32 %v113, %v112
  %v115 = vmul.f32 0.5, %v114
  %v116 = vsub.f32 1.5, %v115
  %v117 = vmul.f32 %v112, %v116
  %vm118 = vweird.f32 %v104
  %vm119 = vweird.f32 %v112
  %vm120 = vmor %vm118, %vm119
  %v121 = vsel %vm120, %v112, %v117
  %v122 = vrsqrt.pop %v105
  %v123 = vmul.f32 %v122, %v105
  %v124 = vmul.f32 %v123, %v122
  %v125 = vmul.f32 0.5, %v124
  %v126 = vsub.f32 1.5, %v125
  %v127 = vmul.f32 %v122, %v126
  %vm128 = vweird.f32 %v105
  %vm129 = vweird.f32 %v122
  %vm130 = vmor %vm128, %vm129
  %v131 = vsel %vm130, %v122, %v127
  %v132 = vrsqrt.pop %v106
  %v133 = vmul.f32 %v132, %v106
  %v134 = vmul.f32 %v133, %v132
  %v135 = vmul.f32 0.5, %v134
  %v136 = vsub.f32 1.5, %v135
  %v137 = vmul.f32 %v132, %v136
  %vm138 = vweird.f32 %v106
  %vm139 = vweird.f32 %v132
  %vm140 = vmor %vm138, %vm139
  %v141 = vsel %vm140, %v132, %v137
  %v142 = vrsqrt.pop %v107
  %v143 = vmul.f32 %v142, %v107
  %v144 = vmul.f32 %v143, %v142
  %v145 = vmul.f32 0.5, %v144
  %v146 = vsub.f32 1.5, %v145
  %v147 = vmul.f32 %v142, %v146
  %vm148 = vweird.f32 %v107
  %vm149 = vweird.f32 %v142
  %vm150 = vmor %vm148, %vm149
  %v151 = vsel %vm150, %v142, %v147
  %v152 = vrsqrt.pop %v108
  %v153 = vmul.f32 %v152, %v108
  %v154 = vmul.f32 %v153, %v152
  %v155 = vmul.f32 0.5, %v154
  %v156 = vsub.f32 1.5, %v155
  %v157 = vmul.f32 %v152, %v156
  %vm158 = vweird.f32 %v108
  %vm159 = vweird.f32 %v152
  %vm160 = vmor %vm158, %vm159
  %v161 = vsel %vm160, %v152, %v157
  %v162 = vrsqrt.pop %v109
  %v163 = vmul.f32 %v162, %v109
  %v164 = vmul.f32 %v163, %v162
  %v165 = vmul.f32 0.5, %v164
  %v166 = vsub.f32 1.5, %v165
  %v167 = vmul.f32 %v162, %v166
  %vm168 = vweird.f32 %v109
  %vm169 = vweird.f32 %v162
  %vm170 = vmor %vm168, %vm169
  %v171 = vsel %vm170, %v162, %v167
  %v172 = vrsqrt.pop %v110
  %v173 = vmul.f32 %v172, %v110
  %v174 = vmul.f32 %v173, %v172
  %v175 = vmul.f32 0.5, %v174
  %v176 = vsub.f32 1.5, %v175
  %v177 = vmul.f32 %v172, %v176
  %vm178 = vweird.f32 %v110
  %vm179 = vweird.f32 %v172
  %vm180 = vmor %vm178, %vm179
  %v181 = vsel %vm180, %v172, %v177
  %v182 = vrsqrt.pop %v111
  %v183 = vmul.f32 %v182, %v111
  %v184 = vmul.f32 %v183, %v182
  %v185 = vmul.f32 0.5, %v184
  %v186 = vsub.f32 1.5, %v185
  %v187 = vmul.f32 %v182, %v186
  %vm188 = vweird.f32 %v111
  %vm189 = vweird.f32 %v182
  %vm190 = vmor %vm188, %vm189
  %v191 = vsel %vm190, %v182, %v187
  %v192 = vmul.f32 %v56, %v121
  %v193 = vmul.f32 %v57, %v131
  %v194 = vmul.f32 %v58, %v141
  %v195 = vmul.f32 %v59, %v151
  %v196 = vmul.f32 %v60, %v161
  %v197 = vmul.f32 %v61, %v171
  %v198 = vmul.f32 %v62, %v181
  %v199 = vmul.f32 %v63, %v191
  %vm200 = vcmp.gt.f32.partialorder %v192, 0.0
  %vm201 = vcmp.gt.f32.partialorder %v193, 0.0
  %vm202 = vcmp.gt.f32.partialorder %v194, 0.0
  %vm203 = vcmp.gt.f32.partialorder %v195, 0.0
  %vm204 = vcmp.gt.f32.partialorder %v196, 0.0
  %vm205 = vcmp.gt.f32.partialorder %v197, 0.0
  %vm206 = vcmp.gt.f32.partialorder %v198, 0.0
  %vm207 = vcmp.gt.f32.partialorder %v199, 0.0
  %v208 = vmul.f32 %v192, 0.01
  %v209 = vmul.f32 %v193, 0.01
  %v210 = vmul.f32 %v194, 0.01
  %v211 = vmul.f32 %v195, 0.01
  %v212 = vmul.f32 %v196, 0.01
  %v213 = vmul.f32 %v197, 0.01
  %v214 = vmul.f32 %v198, 0.01
  %v215 = vmul.f32 %v199, 0.01
  %v216 = vsel %vm200, %v192, %v208
  %v217 = vsel %vm201, %v193, %v209
  %v218 = vsel %vm202, %v194, %v210
  %v219 = vsel %vm203, %v195, %v211
  %v220 = vsel %vm204, %v196, %v212
  %v221 = vsel %vm205, %v197, %v213
  %v222 = vsel %vm206, %v198, %v214
  %v223 = vsel %vm207, %v199, %v215
  %224 = vst.msk [vmem:[%s1] sm:$0xff] %vm16, %v216
  %225 = vst.msk [vmem:[%s1 + $0x8] sm:$0xff] %vm16, %v217
  %226 = vst.msk [vmem:[%s1 + $0x10] sm:$0xff] %vm16, %v218
  %227 = vst.msk [vmem:[%s1 + $0x18] sm:$0xff] %vm16, %v219
  %228 = vst.msk [vmem:[%s1 + $0x20] sm:$0xff] %vm16, %v220
  %229 = vst.msk [vmem:[%s1 + $0x28] sm:$0xff] %vm16, %v221
  %230 = vst.msk [vmem:[%s1 + $0x30] sm:$0xff] %vm16, %v222
  %231 = vst.msk [vmem:[%s1 + $0x38] sm:$0xff] %vm16, %v223
  // Predicated region
  $region6: #{generator_forward.62} parent=0 // pred_check
    _
  $region7: #{generator_forward.62} parent=0 // pred_check_branch
    %233 = sbr.rel (0) target = $region9
  $region8: #{generator_forward.62} parent=0 // pred_region
    _
  $region9: #{generator_forward.62} parent=0 // pred_fallthru
    _
  // Predicated region
  $region10: #{generator_forward.62} parent=0 // pred_check
    _
  $region11: #{generator_forward.62} parent=0 // pred_check_branch
    %235 = sbr.rel (0) target = $region13
  $region12: #{generator_forward.62} parent=0 // pred_region
    _
  $region13: #{generator_forward.62} parent=0 // pred_fallthru
    _

// kernel: generator_forward.63
$region0: #{generator_forward.63}
  #allocation0 [shape = 'u32[]', space=smem, size = 0x4, offset = 0x4, fixed_abs, tag = 'smem constant byte address 0x4 - core index']
  #allocation1 [shape = 'u32[72,128]{1,0:T(1,128)}', space=vmem, size = 0x9000, scoped, tag = 'internal scratch']
  #allocation2 [shape = 'f32[32,128]{1,0:T(8,128)}', space=vmem, size = 0x4000, scoped, tag = 'scratch operand']
  %s0 = inlined_call_operand.vmem [shape: bf16[32,128], index: 0, kind: input, shape index: {}]
  %s1 = inlined_call_operand.vmem [shape: bf16[128,128], index: 1, kind: input, shape index: {}]
  %s2 = inlined_call_operand.vmem [shape: f32[32,1], index: 2, kind: input, shape index: {}]
  %s3 = inlined_call_operand.vmem [shape: f32[32,128], index: 3, kind: output, shape index: {}]
  %s4 = sld [smem:[#allocation0]]
  $region30: #{generator_forward.63} parent=0
    _
  %s6 = ssub.s32 1, %s4
  %s7 = scalar_select 0, %s6, %s4
  // Predicated region
  $region2: #{generator_forward.63} parent=0 // pred_check
    _
  $region3: #{generator_forward.63} parent=0 // pred_check_branch
    %9 = sbr.rel (0) target = $region5
  $region4: #{generator_forward.63} parent=0 // pred_region
    _
  $region5: #{generator_forward.63} parent=0 // pred_fallthru
    _
  // Predicated region
  $region6: #{generator_forward.63} parent=0 // pred_check
    _
  $region7: #{generator_forward.63} parent=0 // pred_check_branch
    %11 = sbr.rel (0) target = $region9
  $region8: #{generator_forward.63} parent=0 // pred_region
    _
  $region9: #{generator_forward.63} parent=0 // pred_fallthru
    _
  // Predicated region
  $region10: #{generator_forward.63} parent=0 // pred_check
    _
  $region11: #{generator_forward.63} parent=0 // pred_check_branch
    %13 = sbr.rel (0) target = $region13
  $region12: #{generator_forward.63} parent=0 // pred_region
    _
  $region13: #{generator_forward.63} parent=0 // pred_fallthru
    _
  %p14 = scmp.eq.s32.totalorder 0, 0
  // Predicated region
  $region14: #{generator_forward.63} parent=0 // pred_check
    %p15 = pneg %p14
  $region15: #{generator_forward.63} parent=0 // pred_check_branch
    %17 = sbr.rel (%p15) target = $region17
  $region16: #{generator_forward.63} parent=0 // pred_region
    %18 = vst [vmem:[#allocation2] sm:$0xff] 0.0
    %19 = vst [vmem:[#allocation2 + $0x8] sm:$0xff] 0.0
    %20 = vst [vmem:[#allocation2 + $0x10] sm:$0xff] 0.0
    %21 = vst [vmem:[#allocation2 + $0x18] sm:$0xff] 0.0
  $region17: #{generator_forward.63} parent=0 // pred_fallthru
    _
  %v22 = vld [vmem:[#allocation2] sm:$0xff]
  %v23 = vld [vmem:[#allocation2 + $0x8] sm:$0xff]
  %v24 = vld [vmem:[#allocation2 + $0x10] sm:$0xff]
  %v25 = vld [vmem:[#allocation2 + $0x18] sm:$0xff]
  %v26 = vld [vmem:[%s0] sm:$0xf]
  %v27 = vld [vmem:[%s0 + $0x4] sm:$0xf]
  %v28 = vld [vmem:[%s0 + $0x8] sm:$0xf]
  %v29 = vld [vmem:[%s0 + $0xc] sm:$0xf]
  %v30 = vld [vmem:[%s1] sm:$0xf]
  %v31 = vld [vmem:[%s1 + $0x4] sm:$0xf]
  %v32 = vld [vmem:[%s1 + $0x8] sm:$0xf]
  %v33 = vld [vmem:[%s1 + $0xc] sm:$0xf]
  %v34 = vld [vmem:[%s1 + $0x10] sm:$0xf]
  %v35 = vld [vmem:[%s1 + $0x14] sm:$0xf]
  %v36 = vld [vmem:[%s1 + $0x18] sm:$0xf]
  %v37 = vld [vmem:[%s1 + $0x1c] sm:$0xf]
  %v38 = vld [vmem:[%s1 + $0x20] sm:$0xf]
  %v39 = vld [vmem:[%s1 + $0x24] sm:$0xf]
  %v40 = vld [vmem:[%s1 + $0x28] sm:$0xf]
  %v41 = vld [vmem:[%s1 + $0x2c] sm:$0xf]
  %v42 = vld [vmem:[%s1 + $0x30] sm:$0xf]
  %v43 = vld [vmem:[%s1 + $0x34] sm:$0xf]
  %v44 = vld [vmem:[%s1 + $0x38] sm:$0xf]
  %v45 = vld [vmem:[%s1 + $0x3c] sm:$0xf]
  %v50 = vunpack.c.l.b16 %v26
  %v51 = vunpack.c.l.b16 %v27
  %v52 = vunpack.c.l.b16 %v28
  %v53 = vunpack.c.l.b16 %v29
  %v54 = vpack.c.b16 %v51, %v50
  %v55 = vpack.c.b16 %v53, %v52
  %v74 = vunpack.c.l.b16 %v30
  %v75 = vunpack.c.l.b16 %v31
  %v76 = vunpack.c.l.b16 %v32
  %v77 = vunpack.c.l.b16 %v33
  %v78 = vunpack.c.l.b16 %v34
  %v79 = vunpack.c.l.b16 %v35
  %v80 = vunpack.c.l.b16 %v36
  %v81 = vunpack.c.l.b16 %v37
  %v82 = vunpack.c.l.b16 %v38
  %v83 = vunpack.c.l.b16 %v39
  %v84 = vunpack.c.l.b16 %v40
  %v85 = vunpack.c.l.b16 %v41
  %v86 = vunpack.c.l.b16 %v42
  %v87 = vunpack.c.l.b16 %v43
  %v88 = vunpack.c.l.b16 %v44
  %v89 = vunpack.c.l.b16 %v45
  %v90 = vpack.c.b16 %v75, %v74
  %v91 = vpack.c.b16 %v77, %v76
  %v92 = vpack.c.b16 %v79, %v78
  %v93 = vpack.c.b16 %v81, %v80
  %v94 = vpack.c.b16 %v83, %v82
  %v95 = vpack.c.b16 %v85, %v84
  %v96 = vpack.c.b16 %v87, %v86
  %v97 = vpack.c.b16 %v89, %v88
  %106 = vmatpush.bf16.msra.mxu0 %v97
  %107 = vmatpush.bf16.msra.mxu0 %v96
  %108 = vmatpush.bf16.msra.mxu0 %v95
  %109 = vmatpush.bf16.msra.mxu0 %v94
  %110 = vmatpush.bf16.msra.mxu0 %v93
  %111 = vmatpush.bf16.msra.mxu0 %v92
  %112 = vmatpush.bf16.msra.mxu0 %v91
  %113 = vmatpush.bf16.msra.mxu0 %v90
  %114 = vmatmul.bf16.gmra.mxu0 %v54
  %v115 = vpop.f32.mrf.mxu0
  %v116 = vadd.f32 0.0, %v115
  %v117 = vpop.f32.mrf.mxu0
  %v118 = vadd.f32 0.0, %v117
  %119 = vmatmul.bf16.gmra.mxu0 %v55
  %v120 = vpop.f32.mrf.mxu0
  %v121 = vadd.f32 0.0, %v120
  %v122 = vpop.f32.mrf.mxu0
  %v123 = vadd.f32 0.0, %v122
  %124 = vdwg.mxu0
  %v125 = vadd.f32 %v22, %v116
  %v126 = vadd.f32 %v23, %v118
  %v127 = vadd.f32 %v24, %v121
  %v128 = vadd.f32 %v25, %v123
  %129 = vst [vmem:[#allocation2] sm:$0xff] %v125
  %130 = vst [vmem:[#allocation2 + $0x8] sm:$0xff] %v126
  %131 = vst [vmem:[#allocation2 + $0x10] sm:$0xff] %v127
  %132 = vst [vmem:[#allocation2 + $0x18] sm:$0xff] %v128
  // Predicated region
  $region18: #{generator_forward.63} parent=0 // pred_check
    %p133 = pneg %p14
  $region19: #{generator_forward.63} parent=0 // pred_check_branch
    %135 = sbr.rel (%p133) target = $region21
  $region20: #{generator_forward.63} parent=0 // pred_region
    %v136 = vld [vmem:[#allocation2] sm:$0xff]
    %v137 = vld [vmem:[#allocation2 + $0x8] sm:$0xff]
    %v138 = vld [vmem:[#allocation2 + $0x10] sm:$0xff]
    %v139 = vld [vmem:[#allocation2 + $0x18] sm:$0xff]
    %v140 = vld [vmem:[%s2] sm:$0xff]
    %v141 = vld [vmem:[%s2 + $0x8] sm:$0xff]
    %v142 = vld [vmem:[%s2 + $0x10] sm:$0xff]
    %v143 = vld [vmem:[%s2 + $0x18] sm:$0xff]
    %145 = vset.pattern.permute.xlu0 0
    %146 = vperm.xlu0 %145, %v140
    %v147 = vpop.permute.xlu0 %146
    %150 = vset.pattern.permute.xlu0 0
    %151 = vperm.xlu0 %150, %v141
    %v152 = vpop.permute.xlu0 %151
    %155 = vset.pattern.permute.xlu0 0
    %156 = vperm.xlu0 %155, %v142
    %v157 = vpop.permute.xlu0 %156
    %160 = vset.pattern.permute.xlu0 0
    %161 = vperm.xlu0 %160, %v143
    %v162 = vpop.permute.xlu0 %161
    %v164 = vadd.f32 %v136, %v147
    %v165 = vadd.f32 %v137, %v152
    %v166 = vadd.f32 %v138, %v157
    %v167 = vadd.f32 %v139, %v162
    %168 = vst [vmem:[%s3] sm:$0xff] %v164
    %169 = vst [vmem:[%s3 + $0x8] sm:$0xff] %v165
    %170 = vst [vmem:[%s3 + $0x10] sm:$0xff] %v166
    %171 = vst [vmem:[%s3 + $0x18] sm:$0xff] %v167
  $region21: #{generator_forward.63} parent=0 // pred_fallthru
    _
  // Predicated region
  $region22: #{generator_forward.63} parent=0 // pred_check
    _
  $region23: #{generator_forward.63} parent=0 // pred_check_branch
    %173 = sbr.rel (0) target = $region25
  $region24: #{generator_forward.63} parent=0 // pred_region
    _
  $region25: #{generator_forward.63} parent=0 // pred_fallthru
    _
  // Predicated region
  $region26: #{generator_forward.63} parent=0 // pred_check
    _
  $region27: #{generator_forward.63} parent=0 // pred_check_branch
    %175 = sbr.rel (0) target = $region29
  $region28: #{generator_forward.63} parent=0 // pred_region
    _
  $region29: #{generator_forward.63} parent=0 // pred_fallthru
    _

// kernel: generator_forward.67
$region0: #{generator_forward.67}
  #allocation0 [shape = 'u32[]', space=smem, size = 0x4, offset = 0x4, fixed_abs, tag = 'smem constant byte address 0x4 - core index']
  #allocation1 [shape = 'u32[72,128]{1,0:T(1,128)}', space=vmem, size = 0x9000, scoped, tag = 'internal scratch']
  %s0 = inlined_call_operand.vmem [shape: f32[64,16], index: 0, kind: input, shape index: {}]
  %s1 = inlined_call_operand.vmem [shape: f32[64,16], index: 1, kind: output, shape index: {}]
  %s2 = sld [smem:[#allocation0]]
  $region14: #{generator_forward.67} parent=0
    _
  %s4 = ssub.s32 1, %s2
  %s5 = scalar_select 0, %s4, %s2
  // Predicated region
  $region2: #{generator_forward.67} parent=0 // pred_check
    _
  $region3: #{generator_forward.67} parent=0 // pred_check_branch
    %7 = sbr.rel (0) target = $region5
  $region4: #{generator_forward.67} parent=0 // pred_region
    _
  $region5: #{generator_forward.67} parent=0 // pred_fallthru
    _
  %v8 = vld [vmem:[%s0] sm:$0xff]
  %v9 = vld [vmem:[%s0 + $0x8] sm:$0xff]
  %v10 = vld [vmem:[%s0 + $0x10] sm:$0xff]
  %v11 = vld [vmem:[%s0 + $0x18] sm:$0xff]
  %v12 = vld [vmem:[%s0 + $0x20] sm:$0xff]
  %v13 = vld [vmem:[%s0 + $0x28] sm:$0xff]
  %v14 = vld [vmem:[%s0 + $0x30] sm:$0xff]
  %v15 = vld [vmem:[%s0 + $0x38] sm:$0xff]
  %vm16 = vcmask 130048
  %v17 = vsel %vm16, %v8, 0.0
  %18 = vadd.xlane.f32.xlu0 %v17
  %v19 = vpop.xlane.xlu0 %18
  %v20 = vsel %vm16, %v9, 0.0
  %21 = vadd.xlane.f32.xlu0 %v20
  %v22 = vpop.xlane.xlu0 %21
  %v23 = vsel %vm16, %v10, 0.0
  %24 = vadd.xlane.f32.xlu0 %v23
  %v25 = vpop.xlane.xlu0 %24
  %v26 = vsel %vm16, %v11, 0.0
  %27 = vadd.xlane.f32.xlu0 %v26
  %v28 = vpop.xlane.xlu0 %27
  %v29 = vsel %vm16, %v12, 0.0
  %30 = vadd.xlane.f32.xlu0 %v29
  %v31 = vpop.xlane.xlu0 %30
  %v32 = vsel %vm16, %v13, 0.0
  %33 = vadd.xlane.f32.xlu0 %v32
  %v34 = vpop.xlane.xlu0 %33
  %v35 = vsel %vm16, %v14, 0.0
  %36 = vadd.xlane.f32.xlu0 %v35
  %v37 = vpop.xlane.xlu0 %36
  %v38 = vsel %vm16, %v15, 0.0
  %39 = vadd.xlane.f32.xlu0 %v38
  %v40 = vpop.xlane.xlu0 %39
  %v41 = vrcp.pop 16.0
  %v42 = vmul.f32 16.0, %v41
  %v43 = vsub.f32 1.0, %v42
  %v44 = vmul.f32 %v41, %v43
  %v45 = vadd.f32 %v41, %v44
  %vm46 = vweird.f32 %v41
  %v47 = vsel %vm46, %v41, %v45
  %v48 = vmul.f32 %v19, %v47
  %v49 = vmul.f32 %v22, %v47
  %v50 = vmul.f32 %v25, %v47
  %v51 = vmul.f32 %v28, %v47
  %v52 = vmul.f32 %v31, %v47
  %v53 = vmul.f32 %v34, %v47
  %v54 = vmul.f32 %v37, %v47
  %v55 = vmul.f32 %v40, %v47
  %v56 = vsub.f32 %v8, %v48
  %v57 = vsub.f32 %v9, %v49
  %v58 = vsub.f32 %v10, %v50
  %v59 = vsub.f32 %v11, %v51
  %v60 = vsub.f32 %v12, %v52
  %v61 = vsub.f32 %v13, %v53
  %v62 = vsub.f32 %v14, %v54
  %v63 = vsub.f32 %v15, %v55
  %v64 = vmul.f32 %v56, %v56
  %v65 = vmul.f32 %v57, %v57
  %v66 = vmul.f32 %v58, %v58
  %v67 = vmul.f32 %v59, %v59
  %v68 = vmul.f32 %v60, %v60
  %v69 = vmul.f32 %v61, %v61
  %v70 = vmul.f32 %v62, %v62
  %v71 = vmul.f32 %v63, %v63
  %v72 = vsel %vm16, %v64, 0.0
  %73 = vadd.xlane.f32.xlu0 %v72
  %v74 = vpop.xlane.xlu0 %73
  %v75 = vsel %vm16, %v65, 0.0
  %76 = vadd.xlane.f32.xlu0 %v75
  %v77 = vpop.xlane.xlu0 %76
  %v78 = vsel %vm16, %v66, 0.0
  %79 = vadd.xlane.f32.xlu0 %v78
  %v80 = vpop.xlane.xlu0 %79
  %v81 = vsel %vm16, %v67, 0.0
  %82 = vadd.xlane.f32.xlu0 %v81
  %v83 = vpop.xlane.xlu0 %82
  %v84 = vsel %vm16, %v68, 0.0
  %85 = vadd.xlane.f32.xlu0 %v84
  %v86 = vpop.xlane.xlu0 %85
  %v87 = vsel %vm16, %v69, 0.0
  %88 = vadd.xlane.f32.xlu0 %v87
  %v89 = vpop.xlane.xlu0 %88
  %v90 = vsel %vm16, %v70, 0.0
  %91 = vadd.xlane.f32.xlu0 %v90
  %v92 = vpop.xlane.xlu0 %91
  %v93 = vsel %vm16, %v71, 0.0
  %94 = vadd.xlane.f32.xlu0 %v93
  %v95 = vpop.xlane.xlu0 %94
  %v96 = vmul.f32 %v74, %v47
  %v97 = vmul.f32 %v77, %v47
  %v98 = vmul.f32 %v80, %v47
  %v99 = vmul.f32 %v83, %v47
  %v100 = vmul.f32 %v86, %v47
  %v101 = vmul.f32 %v89, %v47
  %v102 = vmul.f32 %v92, %v47
  %v103 = vmul.f32 %v95, %v47
  %v104 = vadd.f32 %v96, 1e-05
  %v105 = vadd.f32 %v97, 1e-05
  %v106 = vadd.f32 %v98, 1e-05
  %v107 = vadd.f32 %v99, 1e-05
  %v108 = vadd.f32 %v100, 1e-05
  %v109 = vadd.f32 %v101, 1e-05
  %v110 = vadd.f32 %v102, 1e-05
  %v111 = vadd.f32 %v103, 1e-05
  %v112 = vrsqrt.pop %v104
  %v113 = vmul.f32 %v112, %v104
  %v114 = vmul.f32 %v113, %v112
  %v115 = vmul.f32 0.5, %v114
  %v116 = vsub.f32 1.5, %v115
  %v117 = vmul.f32 %v112, %v116
  %vm118 = vweird.f32 %v104
  %vm119 = vweird.f32 %v112
  %vm120 = vmor %vm118, %vm119
  %v121 = vsel %vm120, %v112, %v117
  %v122 = vrsqrt.pop %v105
  %v123 = vmul.f32 %v122, %v105
  %v124 = vmul.f32 %v123, %v122
  %v125 = vmul.f32 0.5, %v124
  %v126 = vsub.f32 1.5, %v125
  %v127 = vmul.f32 %v122, %v126
  %vm128 = vweird.f32 %v105
  %vm129 = vweird.f32 %v122
  %vm130 = vmor %vm128, %vm129
  %v131 = vsel %vm130, %v122, %v127
  %v132 = vrsqrt.pop %v106
  %v133 = vmul.f32 %v132, %v106
  %v134 = vmul.f32 %v133, %v132
  %v135 = vmul.f32 0.5, %v134
  %v136 = vsub.f32 1.5, %v135
  %v137 = vmul.f32 %v132, %v136
  %vm138 = vweird.f32 %v106
  %vm139 = vweird.f32 %v132
  %vm140 = vmor %vm138, %vm139
  %v141 = vsel %vm140, %v132, %v137
  %v142 = vrsqrt.pop %v107
  %v143 = vmul.f32 %v142, %v107
  %v144 = vmul.f32 %v143, %v142
  %v145 = vmul.f32 0.5, %v144
  %v146 = vsub.f32 1.5, %v145
  %v147 = vmul.f32 %v142, %v146
  %vm148 = vweird.f32 %v107
  %vm149 = vweird.f32 %v142
  %vm150 = vmor %vm148, %vm149
  %v151 = vsel %vm150, %v142, %v147
  %v152 = vrsqrt.pop %v108
  %v153 = vmul.f32 %v152, %v108
  %v154 = vmul.f32 %v153, %v152
  %v155 = vmul.f32 0.5, %v154
  %v156 = vsub.f32 1.5, %v155
  %v157 = vmul.f32 %v152, %v156
  %vm158 = vweird.f32 %v108
  %vm159 = vweird.f32 %v152
  %vm160 = vmor %vm158, %vm159
  %v161 = vsel %vm160, %v152, %v157
  %v162 = vrsqrt.pop %v109
  %v163 = vmul.f32 %v162, %v109
  %v164 = vmul.f32 %v163, %v162
  %v165 = vmul.f32 0.5, %v164
  %v166 = vsub.f32 1.5, %v165
  %v167 = vmul.f32 %v162, %v166
  %vm168 = vweird.f32 %v109
  %vm169 = vweird.f32 %v162
  %vm170 = vmor %vm168, %vm169
  %v171 = vsel %vm170, %v162, %v167
  %v172 = vrsqrt.pop %v110
  %v173 = vmul.f32 %v172, %v110
  %v174 = vmul.f32 %v173, %v172
  %v175 = vmul.f32 0.5, %v174
  %v176 = vsub.f32 1.5, %v175
  %v177 = vmul.f32 %v172, %v176
  %vm178 = vweird.f32 %v110
  %vm179 = vweird.f32 %v172
  %vm180 = vmor %vm178, %vm179
  %v181 = vsel %vm180, %v172, %v177
  %v182 = vrsqrt.pop %v111
  %v183 = vmul.f32 %v182, %v111
  %v184 = vmul.f32 %v183, %v182
  %v185 = vmul.f32 0.5, %v184
  %v186 = vsub.f32 1.5, %v185
  %v187 = vmul.f32 %v182, %v186
  %vm188 = vweird.f32 %v111
  %vm189 = vweird.f32 %v182
  %vm190 = vmor %vm188, %vm189
  %v191 = vsel %vm190, %v182, %v187
  %v192 = vmul.f32 %v56, %v121
  %v193 = vmul.f32 %v57, %v131
  %v194 = vmul.f32 %v58, %v141
  %v195 = vmul.f32 %v59, %v151
  %v196 = vmul.f32 %v60, %v161
  %v197 = vmul.f32 %v61, %v171
  %v198 = vmul.f32 %v62, %v181
  %v199 = vmul.f32 %v63, %v191
  %vm200 = vcmp.gt.f32.partialorder %v192, 0.0
  %vm201 = vcmp.gt.f32.partialorder %v193, 0.0
  %vm202 = vcmp.gt.f32.partialorder %v194, 0.0
  %vm203 = vcmp.gt.f32.partialorder %v195, 0.0
  %vm204 = vcmp.gt.f32.partialorder %v196, 0.0
  %vm205 = vcmp.gt.f32.partialorder %v197, 0.0
  %vm206 = vcmp.gt.f32.partialorder %v198, 0.0
  %vm207 = vcmp.gt.f32.partialorder %v199, 0.0
  %v208 = vmul.f32 %v192, 0.01
  %v209 = vmul.f32 %v193, 0.01
  %v210 = vmul.f32 %v194, 0.01
  %v211 = vmul.f32 %v195, 0.01
  %v212 = vmul.f32 %v196, 0.01
  %v213 = vmul.f32 %v197, 0.01
  %v214 = vmul.f32 %v198, 0.01
  %v215 = vmul.f32 %v199, 0.01
  %v216 = vsel %vm200, %v192, %v208
  %v217 = vsel %vm201, %v193, %v209
  %v218 = vsel %vm202, %v194, %v210
  %v219 = vsel %vm203, %v195, %v211
  %v220 = vsel %vm204, %v196, %v212
  %v221 = vsel %vm205, %v197, %v213
  %v222 = vsel %vm206, %v198, %v214
  %v223 = vsel %vm207, %v199, %v215
  %224 = vst.msk [vmem:[%s1] sm:$0xff] %vm16, %v216
  %225 = vst.msk [vmem:[%s1 + $0x8] sm:$0xff] %vm16, %v217
  %226 = vst.msk [vmem:[%s1 + $0x10] sm:$0xff] %vm16, %v218
  %227 = vst.msk [vmem:[%s1 + $0x18] sm:$0xff] %vm16, %v219
  %228 = vst.msk [vmem:[%s1 + $0x20] sm:$0xff] %vm16, %v220
  %229 = vst.msk [vmem:[%s1 + $0x28] sm:$0xff] %vm16, %v221
  %230 = vst.msk [vmem:[%s1 + $0x30] sm:$0xff] %vm16, %v222
  %231 = vst.msk [vmem:[%s1 + $0x38] sm:$0xff] %vm16, %v223
  // Predicated region
  $region6: #{generator_forward.67} parent=0 // pred_check
    _
  $region7: #{generator_forward.67} parent=0 // pred_check_branch
    %233 = sbr.rel (0) target = $region9
  $region8: #{generator_forward.67} parent=0 // pred_region
    _
  $region9: #{generator_forward.67} parent=0 // pred_fallthru
    _
  // Predicated region
  $region10: #{generator_forward.67} parent=0 // pred_check
    _
  $region11: #{generator_forward.67} parent=0 // pred_check_branch
    %235 = sbr.rel (0) target = $region13
  $region12: #{generator_forward.67} parent=0 // pred_region
    _
  $region13: #{generator_forward.67} parent=0 // pred_fallthru
    _

// kernel: generator_forward.72
$region0: #{generator_forward.72}
  #allocation0 [shape = 'u32[]', space=smem, size = 0x4, offset = 0x4, fixed_abs, tag = 'smem constant byte address 0x4 - core index']
  #allocation1 [shape = 'u32[72,128]{1,0:T(1,128)}', space=vmem, size = 0x9000, scoped, tag = 'internal scratch']
  %s0 = inlined_call_operand.vmem [shape: f32[32,64], index: 0, kind: input, shape index: {}]
  %s1 = inlined_call_operand.vmem [shape: f32[32,64], index: 1, kind: output, shape index: {}]
  %s2 = sld [smem:[#allocation0]]
  $region14: #{generator_forward.72} parent=0
    _
  %s4 = ssub.s32 1, %s2
  %s5 = scalar_select 0, %s4, %s2
  // Predicated region
  $region2: #{generator_forward.72} parent=0 // pred_check
    _
  $region3: #{generator_forward.72} parent=0 // pred_check_branch
    %7 = sbr.rel (0) target = $region5
  $region4: #{generator_forward.72} parent=0 // pred_region
    _
  $region5: #{generator_forward.72} parent=0 // pred_fallthru
    _
  %v8 = vld [vmem:[%s0] sm:$0xff]
  %v9 = vld [vmem:[%s0 + $0x8] sm:$0xff]
  %v10 = vld [vmem:[%s0 + $0x10] sm:$0xff]
  %v11 = vld [vmem:[%s0 + $0x18] sm:$0xff]
  %vm12 = vcmask 523264
  %v13 = vsel %vm12, %v8, 0.0
  %14 = vadd.xlane.f32.xlu0 %v13
  %v15 = vpop.xlane.xlu0 %14
  %v16 = vsel %vm12, %v9, 0.0
  %17 = vadd.xlane.f32.xlu0 %v16
  %v18 = vpop.xlane.xlu0 %17
  %v19 = vsel %vm12, %v10, 0.0
  %20 = vadd.xlane.f32.xlu0 %v19
  %v21 = vpop.xlane.xlu0 %20
  %v22 = vsel %vm12, %v11, 0.0
  %23 = vadd.xlane.f32.xlu0 %v22
  %v24 = vpop.xlane.xlu0 %23
  %v25 = vrcp.pop 64.0
  %v26 = vmul.f32 64.0, %v25
  %v27 = vsub.f32 1.0, %v26
  %v28 = vmul.f32 %v25, %v27
  %v29 = vadd.f32 %v25, %v28
  %vm30 = vweird.f32 %v25
  %v31 = vsel %vm30, %v25, %v29
  %v32 = vmul.f32 %v15, %v31
  %v33 = vmul.f32 %v18, %v31
  %v34 = vmul.f32 %v21, %v31
  %v35 = vmul.f32 %v24, %v31
  %v36 = vsub.f32 %v8, %v32
  %v37 = vsub.f32 %v9, %v33
  %v38 = vsub.f32 %v10, %v34
  %v39 = vsub.f32 %v11, %v35
  %v40 = vmul.f32 %v36, %v36
  %v41 = vmul.f32 %v37, %v37
  %v42 = vmul.f32 %v38, %v38
  %v43 = vmul.f32 %v39, %v39
  %v44 = vsel %vm12, %v40, 0.0
  %45 = vadd.xlane.f32.xlu0 %v44
  %v46 = vpop.xlane.xlu0 %45
  %v47 = vsel %vm12, %v41, 0.0
  %48 = vadd.xlane.f32.xlu0 %v47
  %v49 = vpop.xlane.xlu0 %48
  %v50 = vsel %vm12, %v42, 0.0
  %51 = vadd.xlane.f32.xlu0 %v50
  %v52 = vpop.xlane.xlu0 %51
  %v53 = vsel %vm12, %v43, 0.0
  %54 = vadd.xlane.f32.xlu0 %v53
  %v55 = vpop.xlane.xlu0 %54
  %v56 = vmul.f32 %v46, %v31
  %v57 = vmul.f32 %v49, %v31
  %v58 = vmul.f32 %v52, %v31
  %v59 = vmul.f32 %v55, %v31
  %v60 = vadd.f32 %v56, 1e-05
  %v61 = vadd.f32 %v57, 1e-05
  %v62 = vadd.f32 %v58, 1e-05
  %v63 = vadd.f32 %v59, 1e-05
  %v64 = vrsqrt.pop %v60
  %v65 = vmul.f32 %v64, %v60
  %v66 = vmul.f32 %v65, %v64
  %v67 = vmul.f32 0.5, %v66
  %v68 = vsub.f32 1.5, %v67
  %v69 = vmul.f32 %v64, %v68
  %vm70 = vweird.f32 %v60
  %vm71 = vweird.f32 %v64
  %vm72 = vmor %vm70, %vm71
  %v73 = vsel %vm72, %v64, %v69
  %v74 = vrsqrt.pop %v61
  %v75 = vmul.f32 %v74, %v61
  %v76 = vmul.f32 %v75, %v74
  %v77 = vmul.f32 0.5, %v76
  %v78 = vsub.f32 1.5, %v77
  %v79 = vmul.f32 %v74, %v78
  %vm80 = vweird.f32 %v61
  %vm81 = vweird.f32 %v74
  %vm82 = vmor %vm80, %vm81
  %v83 = vsel %vm82, %v74, %v79
  %v84 = vrsqrt.pop %v62
  %v85 = vmul.f32 %v84, %v62
  %v86 = vmul.f32 %v85, %v84
  %v87 = vmul.f32 0.5, %v86
  %v88 = vsub.f32 1.5, %v87
  %v89 = vmul.f32 %v84, %v88
  %vm90 = vweird.f32 %v62
  %vm91 = vweird.f32 %v84
  %vm92 = vmor %vm90, %vm91
  %v93 = vsel %vm92, %v84, %v89
  %v94 = vrsqrt.pop %v63
  %v95 = vmul.f32 %v94, %v63
  %v96 = vmul.f32 %v95, %v94
  %v97 = vmul.f32 0.5, %v96
  %v98 = vsub.f32 1.5, %v97
  %v99 = vmul.f32 %v94, %v98
  %vm100 = vweird.f32 %v63
  %vm101 = vweird.f32 %v94
  %vm102 = vmor %vm100, %vm101
  %v103 = vsel %vm102, %v94, %v99
  %v104 = vmul.f32 %v36, %v73
  %v105 = vmul.f32 %v37, %v83
  %v106 = vmul.f32 %v38, %v93
  %v107 = vmul.f32 %v39, %v103
  %vm108 = vcmp.gt.f32.partialorder %v104, 0.0
  %vm109 = vcmp.gt.f32.partialorder %v105, 0.0
  %vm110 = vcmp.gt.f32.partialorder %v106, 0.0
  %vm111 = vcmp.gt.f32.partialorder %v107, 0.0
  %v112 = vmul.f32 %v104, 0.01
  %v113 = vmul.f32 %v105, 0.01
  %v114 = vmul.f32 %v106, 0.01
  %v115 = vmul.f32 %v107, 0.01
  %v116 = vsel %vm108, %v104, %v112
  %v117 = vsel %vm109, %v105, %v113
  %v118 = vsel %vm110, %v106, %v114
  %v119 = vsel %vm111, %v107, %v115
  %120 = vst.msk [vmem:[%s1] sm:$0xff] %vm12, %v116
  %121 = vst.msk [vmem:[%s1 + $0x8] sm:$0xff] %vm12, %v117
  %122 = vst.msk [vmem:[%s1 + $0x10] sm:$0xff] %vm12, %v118
  %123 = vst.msk [vmem:[%s1 + $0x18] sm:$0xff] %vm12, %v119
  // Predicated region
  $region6: #{generator_forward.72} parent=0 // pred_check
    _
  $region7: #{generator_forward.72} parent=0 // pred_check_branch
    %125 = sbr.rel (0) target = $region9
  $region8: #{generator_forward.72} parent=0 // pred_region
    _
  $region9: #{generator_forward.72} parent=0 // pred_fallthru
    _
  // Predicated region
  $region10: #{generator_forward.72} parent=0 // pred_check
    _
  $region11: #{generator_forward.72} parent=0 // pred_check_branch
    %127 = sbr.rel (0) target = $region13
  $region12: #{generator_forward.72} parent=0 // pred_region
    _
  $region13: #{generator_forward.72} parent=0 // pred_fallthru
    _

// kernel: generator_forward.73
$region0: #{generator_forward.73}
  #allocation0 [shape = 'u32[]', space=smem, size = 0x4, offset = 0x4, fixed_abs, tag = 'smem constant byte address 0x4 - core index']
  #allocation1 [shape = 'u32[72,128]{1,0:T(1,128)}', space=vmem, size = 0x9000, scoped, tag = 'internal scratch']
  #allocation2 [shape = 'f32[8,128]{1,0:T(8,128)}', space=vmem, size = 0x1000, scoped, tag = 'scratch operand']
  %s0 = inlined_call_operand.vmem [shape: bf16[8,128], index: 0, kind: input, shape index: {}]
  %s1 = inlined_call_operand.vmem [shape: bf16[128,128], index: 1, kind: input, shape index: {}]
  %s2 = inlined_call_operand.vmem [shape: f32[8,1], index: 2, kind: input, shape index: {}]
  %s3 = inlined_call_operand.vmem [shape: f32[8,128], index: 3, kind: output, shape index: {}]
  %s4 = sld [smem:[#allocation0]]
  $region30: #{generator_forward.73} parent=0
    _
  %s6 = ssub.s32 1, %s4
  %s7 = scalar_select 0, %s6, %s4
  // Predicated region
  $region2: #{generator_forward.73} parent=0 // pred_check
    _
  $region3: #{generator_forward.73} parent=0 // pred_check_branch
    %9 = sbr.rel (0) target = $region5
  $region4: #{generator_forward.73} parent=0 // pred_region
    _
  $region5: #{generator_forward.73} parent=0 // pred_fallthru
    _
  // Predicated region
  $region6: #{generator_forward.73} parent=0 // pred_check
    _
  $region7: #{generator_forward.73} parent=0 // pred_check_branch
    %11 = sbr.rel (0) target = $region9
  $region8: #{generator_forward.73} parent=0 // pred_region
    _
  $region9: #{generator_forward.73} parent=0 // pred_fallthru
    _
  // Predicated region
  $region10: #{generator_forward.73} parent=0 // pred_check
    _
  $region11: #{generator_forward.73} parent=0 // pred_check_branch
    %13 = sbr.rel (0) target = $region13
  $region12: #{generator_forward.73} parent=0 // pred_region
    _
  $region13: #{generator_forward.73} parent=0 // pred_fallthru
    _
  %p14 = scmp.eq.s32.totalorder 0, 0
  // Predicated region
  $region14: #{generator_forward.73} parent=0 // pred_check
    %p15 = pneg %p14
  $region15: #{generator_forward.73} parent=0 // pred_check_branch
    %17 = sbr.rel (%p15) target = $region17
  $region16: #{generator_forward.73} parent=0 // pred_region
    %18 = vst [vmem:[#allocation2] sm:$0xff] 0.0
  $region17: #{generator_forward.73} parent=0 // pred_fallthru
    _
  %v19 = vld [vmem:[#allocation2] sm:$0xff]
  %v20 = vld [vmem:[%s0] sm:$0xf]
  %v21 = vld [vmem:[%s1] sm:$0xf]
  %v22 = vld [vmem:[%s1 + $0x4] sm:$0xf]
  %v23 = vld [vmem:[%s1 + $0x8] sm:$0xf]
  %v24 = vld [vmem:[%s1 + $0xc] sm:$0xf]
  %v25 = vld [vmem:[%s1 + $0x10] sm:$0xf]
  %v26 = vld [vmem:[%s1 + $0x14] sm:$0xf]
  %v27 = vld [vmem:[%s1 + $0x18] sm:$0xf]
  %v28 = vld [vmem:[%s1 + $0x1c] sm:$0xf]
  %v29 = vld [vmem:[%s1 + $0x20] sm:$0xf]
  %v30 = vld [vmem:[%s1 + $0x24] sm:$0xf]
  %v31 = vld [vmem:[%s1 + $0x28] sm:$0xf]
  %v32 = vld [vmem:[%s1 + $0x2c] sm:$0xf]
  %v33 = vld [vmem:[%s1 + $0x30] sm:$0xf]
  %v34 = vld [vmem:[%s1 + $0x34] sm:$0xf]
  %v35 = vld [vmem:[%s1 + $0x38] sm:$0xf]
  %v36 = vld [vmem:[%s1 + $0x3c] sm:$0xf]
  %v53 = vunpack.c.l.b16 %v21
  %v54 = vunpack.c.l.b16 %v22
  %v55 = vunpack.c.l.b16 %v23
  %v56 = vunpack.c.l.b16 %v24
  %v57 = vunpack.c.l.b16 %v25
  %v58 = vunpack.c.l.b16 %v26
  %v59 = vunpack.c.l.b16 %v27
  %v60 = vunpack.c.l.b16 %v28
  %v61 = vunpack.c.l.b16 %v29
  %v62 = vunpack.c.l.b16 %v30
  %v63 = vunpack.c.l.b16 %v31
  %v64 = vunpack.c.l.b16 %v32
  %v65 = vunpack.c.l.b16 %v33
  %v66 = vunpack.c.l.b16 %v34
  %v67 = vunpack.c.l.b16 %v35
  %v68 = vunpack.c.l.b16 %v36
  %v69 = vpack.c.b16 %v54, %v53
  %v70 = vpack.c.b16 %v56, %v55
  %v71 = vpack.c.b16 %v58, %v57
  %v72 = vpack.c.b16 %v60, %v59
  %v73 = vpack.c.b16 %v62, %v61
  %v74 = vpack.c.b16 %v64, %v63
  %v75 = vpack.c.b16 %v66, %v65
  %v76 = vpack.c.b16 %v68, %v67
  %85 = vmatpush.bf16.msra.mxu0 %v76
  %86 = vmatpush.bf16.msra.mxu0 %v75
  %87 = vmatpush.bf16.msra.mxu0 %v74
  %88 = vmatpush.bf16.msra.mxu0 %v73
  %89 = vmatpush.bf16.msra.mxu0 %v72
  %90 = vmatpush.bf16.msra.mxu0 %v71
  %91 = vmatpush.bf16.msra.mxu0 %v70
  %92 = vmatpush.bf16.msra.mxu0 %v69
  %93 = vmatmul.bf16.gmra.mxu0 %v20
  %v94 = vpop.f32.mrf.mxu0
  %v95 = vadd.f32 0.0, %v94
  %v96 = vpop.f32.mrf.mxu0
  %97 = vdwg.mxu0
  %v98 = vadd.f32 %v19, %v95
  %99 = vst [vmem:[#allocation2] sm:$0xff] %v98
  // Predicated region
  $region18: #{generator_forward.73} parent=0 // pred_check
    %p100 = pneg %p14
  $region19: #{generator_forward.73} parent=0 // pred_check_branch
    %102 = sbr.rel (%p100) target = $region21
  $region20: #{generator_forward.73} parent=0 // pred_region
    %v103 = vld [vmem:[#allocation2] sm:$0xff]
    %v104 = vld [vmem:[%s2] sm:$0xff]
    %106 = vset.pattern.permute.xlu0 0
    %107 = vperm.xlu0 %106, %v104
    %v108 = vpop.permute.xlu0 %107
    %v110 = vadd.f32 %v103, %v108
    %111 = vst [vmem:[%s3] sm:$0xff] %v110
  $region21: #{generator_forward.73} parent=0 // pred_fallthru
    _
  // Predicated region
  $region22: #{generator_forward.73} parent=0 // pred_check
    _
  $region23: #{generator_forward.73} parent=0 // pred_check_branch
    %113 = sbr.rel (0) target = $region25
  $region24: #{generator_forward.73} parent=0 // pred_region
    _
  $region25: #{generator_forward.73} parent=0 // pred_fallthru
    _
  // Predicated region
  $region26: #{generator_forward.73} parent=0 // pred_check
    _
  $region27: #{generator_forward.73} parent=0 // pred_check_branch
    %115 = sbr.rel (0) target = $region29
  $region28: #{generator_forward.73} parent=0 // pred_region
    _
  $region29: #{generator_forward.73} parent=0 // pred_fallthru
    _

// kernel: generator_forward.77
$region0: #{generator_forward.77}
  #allocation0 [shape = 'u32[]', space=smem, size = 0x4, offset = 0x4, fixed_abs, tag = 'smem constant byte address 0x4 - core index']
  #allocation1 [shape = 'u32[72,128]{1,0:T(1,128)}', space=vmem, size = 0x9000, scoped, tag = 'internal scratch']
  %s0 = inlined_call_operand.vmem [shape: f32[16,256], index: 0, kind: input, shape index: {}]
  %s1 = inlined_call_operand.vmem [shape: f32[16,256], index: 1, kind: output, shape index: {}]
  %s2 = sld [smem:[#allocation0]]
  $region14: #{generator_forward.77} parent=0
    _
  %s4 = ssub.s32 1, %s2
  %s5 = scalar_select 0, %s4, %s2
  // Predicated region
  $region2: #{generator_forward.77} parent=0 // pred_check
    _
  $region3: #{generator_forward.77} parent=0 // pred_check_branch
    %7 = sbr.rel (0) target = $region5
  $region4: #{generator_forward.77} parent=0 // pred_region
    _
  $region5: #{generator_forward.77} parent=0 // pred_fallthru
    _
  %v8 = vld [vmem:[%s0] sm:$0xff]
  %v9 = vld [vmem:[%s0 + $0x8] sm:$0xff]
  %v10 = vld [vmem:[%s0 + $0x10] sm:$0xff]
  %v11 = vld [vmem:[%s0 + $0x18] sm:$0xff]
  %v12 = vadd.f32 %v8, %v9
  %13 = vadd.xlane.f32.xlu0 %v12
  %v14 = vpop.xlane.xlu0 %13
  %v15 = vadd.f32 %v10, %v11
  %16 = vadd.xlane.f32.xlu0 %v15
  %v17 = vpop.xlane.xlu0 %16
  %v18 = vrcp.pop 256.0
  %v19 = vmul.f32 256.0, %v18
  %v20 = vsub.f32 1.0, %v19
  %v21 = vmul.f32 %v18, %v20
  %v22 = vadd.f32 %v18, %v21
  %vm23 = vweird.f32 %v18
  %v24 = vsel %vm23, %v18, %v22
  %v25 = vmul.f32 %v14, %v24
  %v26 = vmul.f32 %v17, %v24
  %v27 = vsub.f32 %v8, %v25
  %v28 = vsub.f32 %v9, %v25
  %v29 = vsub.f32 %v10, %v26
  %v30 = vsub.f32 %v11, %v26
  %v31 = vmul.f32 %v27, %v27
  %v32 = vmul.f32 %v28, %v28
  %v33 = vmul.f32 %v29, %v29
  %v34 = vmul.f32 %v30, %v30
  %v35 = vadd.f32 %v31, %v32
  %36 = vadd.xlane.f32.xlu0 %v35
  %v37 = vpop.xlane.xlu0 %36
  %v38 = vadd.f32 %v33, %v34
  %39 = vadd.xlane.f32.xlu0 %v38
  %v40 = vpop.xlane.xlu0 %39
  %v41 = vmul.f32 %v37, %v24
  %v42 = vmul.f32 %v40, %v24
  %v43 = vadd.f32 %v41, 1e-05
  %v44 = vadd.f32 %v42, 1e-05
  %v45 = vrsqrt.pop %v43
  %v46 = vmul.f32 %v45, %v43
  %v47 = vmul.f32 %v46, %v45
  %v48 = vmul.f32 0.5, %v47
  %v49 = vsub.f32 1.5, %v48
  %v50 = vmul.f32 %v45, %v49
  %vm51 = vweird.f32 %v43
  %vm52 = vweird.f32 %v45
  %vm53 = vmor %vm51, %vm52
  %v54 = vsel %vm53, %v45, %v50
  %v55 = vrsqrt.pop %v44
  %v56 = vmul.f32 %v55, %v44
  %v57 = vmul.f32 %v56, %v55
  %v58 = vmul.f32 0.5, %v57
  %v59 = vsub.f32 1.5, %v58
  %v60 = vmul.f32 %v55, %v59
  %vm61 = vweird.f32 %v44
  %vm62 = vweird.f32 %v55
  %vm63 = vmor %vm61, %vm62
  %v64 = vsel %vm63, %v55, %v60
  %v65 = vmul.f32 %v27, %v54
  %v66 = vmul.f32 %v28, %v54
  %v67 = vmul.f32 %v29, %v64
  %v68 = vmul.f32 %v30, %v64
  %vm69 = vcmp.gt.f32.partialorder %v65, 0.0
  %vm70 = vcmp.gt.f32.partialorder %v66, 0.0
  %vm71 = vcmp.gt.f32.partialorder %v67, 0.0
  %vm72 = vcmp.gt.f32.partialorder %v68, 0.0
  %v73 = vmul.f32 %v65, 0.01
  %v74 = vmul.f32 %v66, 0.01
  %v75 = vmul.f32 %v67, 0.01
  %v76 = vmul.f32 %v68, 0.01
  %v77 = vsel %vm69, %v65, %v73
  %v78 = vsel %vm70, %v66, %v74
  %v79 = vsel %vm71, %v67, %v75
  %v80 = vsel %vm72, %v68, %v76
  %81 = vst [vmem:[%s1] sm:$0xff] %v77
  %82 = vst [vmem:[%s1 + $0x8] sm:$0xff] %v78
  %83 = vst [vmem:[%s1 + $0x10] sm:$0xff] %v79
  %84 = vst [vmem:[%s1 + $0x18] sm:$0xff] %v80
  // Predicated region
  $region6: #{generator_forward.77} parent=0 // pred_check
    _
  $region7: #{generator_forward.77} parent=0 // pred_check_branch
    %86 = sbr.rel (0) target = $region9
  $region8: #{generator_forward.77} parent=0 // pred_region
    _
  $region9: #{generator_forward.77} parent=0 // pred_fallthru
    _
  // Predicated region
  $region10: #{generator_forward.77} parent=0 // pred_check
    _
  $region11: #{generator_forward.77} parent=0 // pred_check_branch
    %88 = sbr.rel (0) target = $region13
  $region12: #{generator_forward.77} parent=0 // pred_region
    _
  $region13: #{generator_forward.77} parent=0 // pred_fallthru
    _

// kernel: generator_forward.82
$region0: #{generator_forward.82}
  #allocation0 [shape = 'u32[]', space=smem, size = 0x4, offset = 0x4, fixed_abs, tag = 'smem constant byte address 0x4 - core index']
  #allocation1 [shape = 'u32[72,128]{1,0:T(1,128)}', space=vmem, size = 0x9000, scoped, tag = 'internal scratch']
  %s0 = inlined_call_operand.vmem [shape: f32[8,1024], index: 0, kind: input, shape index: {}]
  %s1 = inlined_call_operand.vmem [shape: f32[8,1024], index: 1, kind: output, shape index: {}]
  %s2 = sld [smem:[#allocation0]]
  $region14: #{generator_forward.82} parent=0
    _
  %s4 = ssub.s32 1, %s2
  %s5 = scalar_select 0, %s4, %s2
  // Predicated region
  $region2: #{generator_forward.82} parent=0 // pred_check
    _
  $region3: #{generator_forward.82} parent=0 // pred_check_branch
    %7 = sbr.rel (0) target = $region5
  $region4: #{generator_forward.82} parent=0 // pred_region
    _
  $region5: #{generator_forward.82} parent=0 // pred_fallthru
    _
  %v8 = vld [vmem:[%s0] sm:$0xff]
  %v9 = vld [vmem:[%s0 + $0x8] sm:$0xff]
  %v10 = vld [vmem:[%s0 + $0x10] sm:$0xff]
  %v11 = vld [vmem:[%s0 + $0x18] sm:$0xff]
  %v12 = vld [vmem:[%s0 + $0x20] sm:$0xff]
  %v13 = vld [vmem:[%s0 + $0x28] sm:$0xff]
  %v14 = vld [vmem:[%s0 + $0x30] sm:$0xff]
  %v15 = vld [vmem:[%s0 + $0x38] sm:$0xff]
  %v16 = vadd.f32 %v8, %v9
  %v17 = vadd.f32 %v16, %v10
  %v18 = vadd.f32 %v17, %v11
  %v19 = vadd.f32 %v18, %v12
  %v20 = vadd.f32 %v19, %v13
  %v21 = vadd.f32 %v20, %v14
  %v22 = vadd.f32 %v21, %v15
  %23 = vadd.xlane.f32.xlu0 %v22
  %v24 = vpop.xlane.xlu0 %23
  %v25 = vrcp.pop 1024.0
  %v26 = vmul.f32 1024.0, %v25
  %v27 = vsub.f32 1.0, %v26
  %v28 = vmul.f32 %v25, %v27
  %v29 = vadd.f32 %v25, %v28
  %vm30 = vweird.f32 %v25
  %v31 = vsel %vm30, %v25, %v29
  %v32 = vmul.f32 %v24, %v31
  %v33 = vsub.f32 %v8, %v32
  %v34 = vsub.f32 %v9, %v32
  %v35 = vsub.f32 %v10, %v32
  %v36 = vsub.f32 %v11, %v32
  %v37 = vsub.f32 %v12, %v32
  %v38 = vsub.f32 %v13, %v32
  %v39 = vsub.f32 %v14, %v32
  %v40 = vsub.f32 %v15, %v32
  %v41 = vmul.f32 %v33, %v33
  %v42 = vmul.f32 %v34, %v34
  %v43 = vmul.f32 %v35, %v35
  %v44 = vmul.f32 %v36, %v36
  %v45 = vmul.f32 %v37, %v37
  %v46 = vmul.f32 %v38, %v38
  %v47 = vmul.f32 %v39, %v39
  %v48 = vmul.f32 %v40, %v40
  %v49 = vadd.f32 %v41, %v42
  %v50 = vadd.f32 %v49, %v43
  %v51 = vadd.f32 %v50, %v44
  %v52 = vadd.f32 %v51, %v45
  %v53 = vadd.f32 %v52, %v46
  %v54 = vadd.f32 %v53, %v47
  %v55 = vadd.f32 %v54, %v48
  %56 = vadd.xlane.f32.xlu0 %v55
  %v57 = vpop.xlane.xlu0 %56
  %v58 = vmul.f32 %v57, %v31
  %v59 = vadd.f32 %v58, 1e-05
  %v60 = vrsqrt.pop %v59
  %v61 = vmul.f32 %v60, %v59
  %v62 = vmul.f32 %v61, %v60
  %v63 = vmul.f32 0.5, %v62
  %v64 = vsub.f32 1.5, %v63
  %v65 = vmul.f32 %v60, %v64
  %vm66 = vweird.f32 %v59
  %vm67 = vweird.f32 %v60
  %vm68 = vmor %vm66, %vm67
  %v69 = vsel %vm68, %v60, %v65
  %v70 = vmul.f32 %v33, %v69
  %v71 = vmul.f32 %v34, %v69
  %v72 = vmul.f32 %v35, %v69
  %v73 = vmul.f32 %v36, %v69
  %v74 = vmul.f32 %v37, %v69
  %v75 = vmul.f32 %v38, %v69
  %v76 = vmul.f32 %v39, %v69
  %v77 = vmul.f32 %v40, %v69
  %vm78 = vcmp.gt.f32.partialorder %v70, 0.0
  %vm79 = vcmp.gt.f32.partialorder %v71, 0.0
  %vm80 = vcmp.gt.f32.partialorder %v72, 0.0
  %vm81 = vcmp.gt.f32.partialorder %v73, 0.0
  %vm82 = vcmp.gt.f32.partialorder %v74, 0.0
  %vm83 = vcmp.gt.f32.partialorder %v75, 0.0
  %vm84 = vcmp.gt.f32.partialorder %v76, 0.0
  %vm85 = vcmp.gt.f32.partialorder %v77, 0.0
  %v86 = vmul.f32 %v70, 0.01
  %v87 = vmul.f32 %v71, 0.01
  %v88 = vmul.f32 %v72, 0.01
  %v89 = vmul.f32 %v73, 0.01
  %v90 = vmul.f32 %v74, 0.01
  %v91 = vmul.f32 %v75, 0.01
  %v92 = vmul.f32 %v76, 0.01
  %v93 = vmul.f32 %v77, 0.01
  %v94 = vsel %vm78, %v70, %v86
  %v95 = vsel %vm79, %v71, %v87
  %v96 = vsel %vm80, %v72, %v88
  %v97 = vsel %vm81, %v73, %v89
  %v98 = vsel %vm82, %v74, %v90
  %v99 = vsel %vm83, %v75, %v91
  %v100 = vsel %vm84, %v76, %v92
  %v101 = vsel %vm85, %v77, %v93
  %102 = vst [vmem:[%s1] sm:$0xff] %v94
  %103 = vst [vmem:[%s1 + $0x8] sm:$0xff] %v95
  %104 = vst [vmem:[%s1 + $0x10] sm:$0xff] %v96
  %105 = vst [vmem:[%s1 + $0x18] sm:$0xff] %v97
  %106 = vst [vmem:[%s1 + $0x20] sm:$0xff] %v98
  %107 = vst [vmem:[%s1 + $0x28] sm:$0xff] %v99
  %108 = vst [vmem:[%s1 + $0x30] sm:$0xff] %v100
  %109 = vst [vmem:[%s1 + $0x38] sm:$0xff] %v101
  // Predicated region
  $region6: #{generator_forward.82} parent=0 // pred_check
    _
  $region7: #{generator_forward.82} parent=0 // pred_check_branch
    %111 = sbr.rel (0) target = $region9
  $region8: #{generator_forward.82} parent=0 // pred_region
    _
  $region9: #{generator_forward.82} parent=0 // pred_fallthru
    _
  // Predicated region
  $region10: #{generator_forward.82} parent=0 // pred_check
    _
  $region11: #{generator_forward.82} parent=0 // pred_check_branch
    %113 = sbr.rel (0) target = $region13
  $region12: #{generator_forward.82} parent=0 // pred_region
    _
  $region13: #{generator_forward.82} parent=0 // pred_fallthru
    _

// kernel: generator_forward.83
$region0: #{generator_forward.83}
  #allocation0 [shape = 'u32[]', space=smem, size = 0x4, offset = 0x4, fixed_abs, tag = 'smem constant byte address 0x4 - core index']
  #allocation1 [shape = 'u32[72,128]{1,0:T(1,128)}', space=vmem, size = 0x9000, scoped, tag = 'internal scratch']
  #allocation2 [shape = 'f32[8,512]{1,0:T(8,128)}', space=vmem, size = 0x4000, scoped, tag = 'scratch operand']
  %s0 = inlined_call_operand.vmem [shape: bf16[8,256], index: 0, kind: input, shape index: {}]
  %s1 = inlined_call_operand.vmem [shape: bf16[256,2048], index: 1, kind: input, shape index: {}]
  %s2 = inlined_call_operand.vmem [shape: f32[8,1], index: 2, kind: input, shape index: {}]
  %s3 = inlined_call_operand.vmem [shape: f32[8,2048], index: 3, kind: output, shape index: {}]
  %s4 = sld [smem:[#allocation0]]
  $region76: #{generator_forward.83} parent=0
    _
  %s6 = ssub.s32 1, %s4
  %s7 = scalar_select 0, %s6, %s4
  $region1: #{generator_forward.83} parent=0
    #allocation3 [shape = 'u8[524288]{0}', space=vmem, size = 0x80000, scoped, tag = 'input window, operand 1']
    loop: start=0, step=1, limit=6
    $region2: #{generator_forward.83} parent=1 // loop_pre_header
      _
    $region3: #{generator_forward.83} parent=1 // loop_header
      %s9 = sphi 0, %s13
      %p10 = scmp.ge.s32.totalorder %s9, 6
      %s16 = sphi 0, %s35
      %s17 = sphi 0, %s31
      %s18 = sphi 0, %s27
      %s19 = sphi 0, %s16
      %s20 = sphi 0, %s17
      %s21 = sphi 0, %s18
      %s22 = sphi 0, %s19
      %s23 = sphi 0, %s20
      %s24 = sphi 0, %s21
      %s40 = sphi 0, %s42
      %s43 = sphi 0, %s40
      %s44 = sphi 0, %s43
      %s60 = sphi 0, %s44
      %s68 = sphi 0, %s70
      %s71 = sphi 0, %s68
      %s72 = sphi 0, %s71
      %s88 = sphi 0, %s72
      %s94 = sphi 0, %s96
      %s97 = sphi 0, %s94
      %s98 = sphi 0, %s97
      %s114 = sphi 0, %s98
      %s122 = sphi 0, %s124
      %s125 = sphi 0, %s122
      %s126 = sphi 0, %s125
      %s142 = sphi 0, %s126
    $region4: #{generator_forward.83} parent=1 // loop_header_branch
      %12 = sbr.rel (%p10) target = $region8
    $region5: #{generator_forward.83} parent=1 // loop_body
      %s14 = ssub.s32 %s9, 1
      %s15 = ssub.s32 %s9, 2
      %s25 = sadd.s32 1, %s18
      %p26 = scmp.ge.s32.totalorder %s25, 1
      %s27 = scalar_select %p26, 0, %s25
      %s28 = sadd.s32 1, %s17
      %s29 = scalar_select %p26, %s28, %s17
      %p30 = scmp.ge.s32.totalorder %s29, 4
      %s31 = scalar_select %p30, 0, %s29
      %s32 = sadd.s32 1, %s16
      %s33 = scalar_select %p30, %s32, %s16
      %p34 = scmp.ge.s32.totalorder %s33, 1
      %s35 = scalar_select %p34, 0, %s33
      %s36 = ssub.s32 %s16, %s35
      %s37 = ssub.s32 %s18, %s27
      %s38 = sor.u32 %s36, %s37
      %p39 = scmp.eq.s32.totalorder %s38, 0
      %s41 = sadd.s32 %s40, 1
      %s42 = scalar_select %p39, %s40, %s41
      %p45 = pneg %p39
      %p46 = scmp.eq.s32.totalorder %s9, 3
      %p47 = por %p45, %p46
      %p48 = scmp.ne.s32.totalorder %s40, %s43
      %p49 = scmp.eq.s32.totalorder %s9, 0
      %p50 = por %p48, %p49
      %p51 = scmp.ne.s32.totalorder %s40, %s43
      %p52 = scmp.eq.s32.totalorder %s14, 3
      %p53 = por %p51, %p52
      %p54 = scmp.ne.s32.totalorder %s43, %s44
      %p55 = scmp.eq.s32.totalorder %s14, 0
      %p56 = por %p54, %p55
      %p57 = scmp.ne.s32.totalorder %s43, %s44
      %p58 = scmp.eq.s32.totalorder %s15, 3
      %p59 = por %p57, %p58
      %p61 = scmp.ne.s32.totalorder %s44, %s60
      %p62 = scmp.eq.s32.totalorder %s15, 0
      %p63 = por %p61, %p62
      %s64 = ssub.s32 %s18, %s27
      %s65 = ssub.s32 %s17, %s31
      %s66 = sor.u32 %s64, %s65
      %p67 = scmp.eq.s32.totalorder %s66, 0
      %s69 = sadd.s32 %s68, 1
      %s70 = scalar_select %p67, %s68, %s69
      %p73 = pneg %p67
      %p74 = scmp.eq.s32.totalorder %s9, 3
      %p75 = por %p73, %p74
      %p76 = scmp.ne.s32.totalorder %s68, %s71
      %p77 = scmp.eq.s32.totalorder %s9, 0
      %p78 = por %p76, %p77
      %p79 = scmp.ne.s32.totalorder %s68, %s71
      %p80 = scmp.eq.s32.totalorder %s14, 3
      %p81 = por %p79, %p80
      %p82 = scmp.ne.s32.totalorder %s71, %s72
      %p83 = scmp.eq.s32.totalorder %s14, 0
      %p84 = por %p82, %p83
      %p85 = scmp.ne.s32.totalorder %s71, %s72
      %p86 = scmp.eq.s32.totalorder %s15, 3
      %p87 = por %p85, %p86
      %p89 = scmp.ne.s32.totalorder %s72, %s88
      %p90 = scmp.eq.s32.totalorder %s15, 0
      %p91 = por %p89, %p90
      %s92 = ssub.s32 %s16, %s35
      %p93 = scmp.eq.s32.totalorder %s92, 0
      %s95 = sadd.s32 %s94, 1
      %s96 = scalar_select %p93, %s94, %s95
      %p99 = pneg %p93
      %p100 = scmp.eq.s32.totalorder %s9, 3
      %p101 = por %p99, %p100
      %p102 = scmp.ne.s32.totalorder %s94, %s97
      %p103 = scmp.eq.s32.totalorder %s9, 0
      %p104 = por %p102, %p103
      %p105 = scmp.ne.s32.totalorder %s94, %s97
      %p106 = scmp.eq.s32.totalorder %s14, 3
      %p107 = por %p105, %p106
      %p108 = scmp.ne.s32.totalorder %s97, %s98
      %p109 = scmp.eq.s32.totalorder %s14, 0
      %p110 = por %p108, %p109
      %p111 = scmp.ne.s32.totalorder %s97, %s98
      %p112 = scmp.eq.s32.totalorder %s15, 3
      %p113 = por %p111, %p112
      %p115 = scmp.ne.s32.totalorder %s98, %s114
      %p116 = scmp.eq.s32.totalorder %s15, 0
      %p117 = por %p115, %p116
      %s118 = ssub.s32 %s16, %s35
      %s119 = ssub.s32 %s17, %s31
      %s120 = sor.u32 %s118, %s119
      %p121 = scmp.eq.s32.totalorder %s120, 0
      %s123 = sadd.s32 %s122, 1
      %s124 = scalar_select %p121, %s122, %s123
      %p127 = pneg %p121
      %p128 = scmp.eq.s32.totalorder %s9, 3
      %p129 = por %p127, %p128
      %p130 = scmp.ne.s32.totalorder %s122, %s125
      %p131 = scmp.eq.s32.totalorder %s9, 0
      %p132 = por %p130, %p131
      %p133 = scmp.ne.s32.totalorder %s122, %s125
      %p134 = scmp.eq.s32.totalorder %s14, 3
      %p135 = por %p133, %p134
      %p136 = scmp.ne.s32.totalorder %s125, %s126
      %p137 = scmp.eq.s32.totalorder %s14, 0
      %p138 = por %p136, %p137
      %p139 = scmp.ne.s32.totalorder %s125, %s126
      %p140 = scmp.eq.s32.totalorder %s15, 3
      %p141 = por %p139, %p140
      %p143 = scmp.ne.s32.totalorder %s126, %s142
      %p144 = scmp.eq.s32.totalorder %s15, 0
      %p145 = por %p143, %p144
      %p146 = scmp.le.s32.totalorder 1, %s9
      %p147 = scmp.lt.s32.totalorder %s9, 5
      %p148 = pnand %p146, %p147
      %p149 = pneg %p148
      // Predicated region
      $region9: #{generator_forward.83} parent=5 // pred_check
        _
      $region10: #{generator_forward.83} parent=5 // pred_check_branch
        %151 = sbr.rel (%p148) target = $region12
      $region11: #{generator_forward.83} parent=5 // pred_region
        %s152 = ssub.s32 %s9, 1
        // Predicated region
        $region13: #{generator_forward.83} parent=11 // pred_check
          %p153 = pneg %p56
        $region14: #{generator_forward.83} parent=11 // pred_check_branch
          %155 = sbr.rel (%p153) target = $region16
        $region15: #{generator_forward.83} parent=11 // pred_region
          %s156 = smul.u32 2, %s21
          %p157 = scmp.lt.s32.totalorder %s19, 0
          %s158 = scalar_select %p157, %s19, 0
          %p159 = scmp.lt.s32.totalorder %s156, 1
          %s160 = scalar_select %p159, %s156, 1
          %s161 = smul.addr %s158, 2
          %s162 = sadd.s32 %s160, %s161
          %s163 = smul.addr %s162, 4
          %s164 = scalar_lea.vmem %s0, %s163
          %s165 = smul.u32 2, %s21
        $region16: #{generator_forward.83} parent=11 // pred_fallthru
          _
        // Predicated region
        $region17: #{generator_forward.83} parent=11 // pred_check
          %p166 = pneg %p110
        $region18: #{generator_forward.83} parent=11 // pred_check_branch
          %168 = sbr.rel (%p166) target = $region20
        $region19: #{generator_forward.83} parent=11 // pred_region
          %p169 = scmp.lt.s32.totalorder %s19, 0
          %s170 = scalar_select %p169, %s19, 0
          %s171 = smul.addr %s170, 8
          %s172 = scalar_lea.vmem %s2, %s171
        $region20: #{generator_forward.83} parent=11 // pred_fallthru
          _
      $region12: #{generator_forward.83} parent=5 // pred_fallthru
        _
      %p173 = scmp.lt.s32.totalorder %s9, 4
      // Predicated region
      $region21: #{generator_forward.83} parent=5 // pred_check
        %p174 = pneg %p173
      $region22: #{generator_forward.83} parent=5 // pred_check_branch
        %176 = sbr.rel (%p174) target = $region24
      $region23: #{generator_forward.83} parent=5 // pred_region
        // Predicated region
        $region25: #{generator_forward.83} parent=23 // pred_check
          %p177 = pneg %p78
        $region26: #{generator_forward.83} parent=23 // pred_check_branch
          %179 = sbr.rel (%p177) target = $region28
        $region27: #{generator_forward.83} parent=23 // pred_region
          %s180 = sand.u32 %s68, 1
          %s181 = sand.u32 %s68, 1
          %s182 = smul.addr %s181, 512
          %s183 = scalar_lea.vmem [#allocation3], %s182
          %s184 = smul.u32 32, %s18
          %s185 = smul.u32 4, %s17
          %s186 = smul.addr %s184, 16
          %s187 = sadd.s32 %s185, %s186
          %s188 = smul.addr %s187, 4
          %s189 = scalar_lea.vmem %s1, %s188
          // Predicated region
          $region29: #{generator_forward.83} parent=27 // pred_check
            _
          $region30: #{generator_forward.83} parent=27 // pred_check_branch
            %191 = sbr.rel (0) target = $region32
          $region31: #{generator_forward.83} parent=27 // pred_region
            // Predicated region
            $region33: #{generator_forward.83} parent=31 // pred_check
              _
            $region34: #{generator_forward.83} parent=31 // pred_check_branch
              %193 = sbr.rel (0) target = $region36
            $region35: #{generator_forward.83} parent=31 // pred_region
              loop: start=0, step=1, limit=1
              $region37: #{generator_forward.83} parent=35 // loop_pre_header
                _
              $region38: #{generator_forward.83} parent=35 // loop_header
                %s195 = sphi 0, %s199
                %p196 = scmp.ge.s32.totalorder %s195, 1
                %s200 = sphi %s189, %s189
                %s201 = sphi %s183, %s183
              $region39: #{generator_forward.83} parent=35 // loop_header_branch
                %198 = sbr.rel (%p196) target = $region43
              $region40: #{generator_forward.83} parent=35 // loop_body
                %v202 = vld [vmem:[%s200] sm:$0xff]
                %203 = vst [vmem:[%s201] sm:$0xff] %v202
                %v204 = vld [vmem:[%s200 + $0x8] sm:$0xff]
                %205 = vst [vmem:[%s201 + $0x8] sm:$0xff] %v204
                %v206 = vld [vmem:[%s200 + $0x40] sm:$0xff]
                %207 = vst [vmem:[%s201 + $0x10] sm:$0xff] %v206
                %v208 = vld [vmem:[%s200 + $0x48] sm:$0xff]
                %209 = vst [vmem:[%s201 + $0x18] sm:$0xff] %v208
                %v210 = vld [vmem:[%s200 + $0x80] sm:$0xff]
                %211 = vst [vmem:[%s201 + $0x20] sm:$0xff] %v210
                %v212 = vld [vmem:[%s200 + $0x88] sm:$0xff]
                %213 = vst [vmem:[%s201 + $0x28] sm:$0xff] %v212
                %v214 = vld [vmem:[%s200 + $0xc0] sm:$0xff]
                %215 = vst [vmem:[%s201 + $0x30] sm:$0xff] %v214
                %v216 = vld [vmem:[%s200 + $0xc8] sm:$0xff]
                %217 = vst [vmem:[%s201 + $0x38] sm:$0xff] %v216
                %v218 = vld [vmem:[%s200 + $0x100] sm:$0xff]
                %219 = vst [vmem:[%s201 + $0x40] sm:$0xff] %v218
                %v220 = vld [vmem:[%s200 + $0x108] sm:$0xff]
                %221 = vst [vmem:[%s201 + $0x48] sm:$0xff] %v220
                %v222 = vld [vmem:[%s200 + $0x140] sm:$0xff]
                %223 = vst [vmem:[%s201 + $0x50] sm:$0xff] %v222
                %v224 = vld [vmem:[%s200 + $0x148] sm:$0xff]
                %225 = vst [vmem:[%s201 + $0x58] sm:$0xff] %v224
                %v226 = vld [vmem:[%s200 + $0x180] sm:$0xff]
                %227 = vst [vmem:[%s201 + $0x60] sm:$0xff] %v226
                %v228 = vld [vmem:[%s200 + $0x188] sm:$0xff]
                %229 = vst [vmem:[%s201 + $0x68] sm:$0xff] %v228
                %v230 = vld [vmem:[%s200 + $0x1c0] sm:$0xff]
                %231 = vst [vmem:[%s201 + $0x70] sm:$0xff] %v230
                %v232 = vld [vmem:[%s200 + $0x1c8] sm:$0xff]
                %233 = vst [vmem:[%s201 + $0x78] sm:$0xff] %v232
                %v234 = vld [vmem:[%s200 + $0x200] sm:$0xff]
                %235 = vst [vmem:[%s201 + $0x80] sm:$0xff] %v234
                %v236 = vld [vmem:[%s200 + $0x208] sm:$0xff]
                %237 = vst [vmem:[%s201 + $0x88] sm:$0xff] %v236
                %v238 = vld [vmem:[%s200 + $0x240] sm:$0xff]
                %239 = vst [vmem:[%s201 + $0x90] sm:$0xff] %v238
                %v240 = vld [vmem:[%s200 + $0x248] sm:$0xff]
                %241 = vst [vmem:[%s201 + $0x98] sm:$0xff] %v240
                %v242 = vld [vmem:[%s200 + $0x280] sm:$0xff]
                %243 = vst [vmem:[%s201 + $0xa0] sm:$0xff] %v242
                %v244 = vld [vmem:[%s200 + $0x288] sm:$0xff]
                %245 = vst [vmem:[%s201 + $0xa8] sm:$0xff] %v244
                %v246 = vld [vmem:[%s200 + $0x2c0] sm:$0xff]
                %247 = vst [vmem:[%s201 + $0xb0] sm:$0xff] %v246
                %v248 = vld [vmem:[%s200 + $0x2c8] sm:$0xff]
                %249 = vst [vmem:[%s201 + $0xb8] sm:$0xff] %v248
                %v250 = vld [vmem:[%s200 + $0x300] sm:$0xff]
                %251 = vst [vmem:[%s201 + $0xc0] sm:$0xff] %v250
                %v252 = vld [vmem:[%s200 + $0x308] sm:$0xff]
                %253 = vst [vmem:[%s201 + $0xc8] sm:$0xff] %v252
                %v254 = vld [vmem:[%s200 + $0x340] sm:$0xff]
                %255 = vst [vmem:[%s201 + $0xd0] sm:$0xff] %v254
                %v256 = vld [vmem:[%s200 + $0x348] sm:$0xff]
                %257 = vst [vmem:[%s201 + $0xd8] sm:$0xff] %v256
                %v258 = vld [vmem:[%s200 + $0x380] sm:$0xff]
                %259 = vst [vmem:[%s201 + $0xe0] sm:$0xff] %v258
                %v260 = vld [vmem:[%s200 + $0x388] sm:$0xff]
                %261 = vst [vmem:[%s201 + $0xe8] sm:$0xff] %v260
                %v262 = vld [vmem:[%s200 + $0x3c0] sm:$0xff]
                %263 = vst [vmem:[%s201 + $0xf0] sm:$0xff] %v262
                %v264 = vld [vmem:[%s200 + $0x3c8] sm:$0xff]
                %265 = vst [vmem:[%s201 + $0xf8] sm:$0xff] %v264
                %v266 = vld [vmem:[%s200 + $0x400] sm:$0xff]
                %267 = vst [vmem:[%s201 + $0x100] sm:$0xff] %v266
                %v268 = vld [vmem:[%s200 + $0x408] sm:$0xff]
                %269 = vst [vmem:[%s201 + $0x108] sm:$0xff] %v268
                %v270 = vld [vmem:[%s200 + $0x440] sm:$0xff]
                %271 = vst [vmem:[%s201 + $0x110] sm:$0xff] %v270
                %v272 = vld [vmem:[%s200 + $0x448] sm:$0xff]
                %273 = vst [vmem:[%s201 + $0x118] sm:$0xff] %v272
                %v274 = vld [vmem:[%s200 + $0x480] sm:$0xff]
                %275 = vst [vmem:[%s201 + $0x120] sm:$0xff] %v274
                %v276 = vld [vmem:[%s200 + $0x488] sm:$0xff]
                %277 = vst [vmem:[%s201 + $0x128] sm:$0xff] %v276
                %v278 = vld [vmem:[%s200 + $0x4c0] sm:$0xff]
                %279 = vst [vmem:[%s201 + $0x130] sm:$0xff] %v278
                %v280 = vld [vmem:[%s200 + $0x4c8] sm:$0xff]
                %281 = vst [vmem:[%s201 + $0x138] sm:$0xff] %v280
                %v282 = vld [vmem:[%s200 + $0x500] sm:$0xff]
                %283 = vst [vmem:[%s201 + $0x140] sm:$0xff] %v282
                %v284 = vld [vmem:[%s200 + $0x508] sm:$0xff]
                %285 = vst [vmem:[%s201 + $0x148] sm:$0xff] %v284
                %v286 = vld [vmem:[%s200 + $0x540] sm:$0xff]
                %287 = vst [vmem:[%s201 + $0x150] sm:$0xff] %v286
                %v288 = vld [vmem:[%s200 + $0x548] sm:$0xff]
                %289 = vst [vmem:[%s201 + $0x158] sm:$0xff] %v288
                %v290 = vld [vmem:[%s200 + $0x580] sm:$0xff]
                %291 = vst [vmem:[%s201 + $0x160] sm:$0xff] %v290
                %v292 = vld [vmem:[%s200 + $0x588] sm:$0xff]
                %293 = vst [vmem:[%s201 + $0x168] sm:$0xff] %v292
                %v294 = vld [vmem:[%s200 + $0x5c0] sm:$0xff]
                %295 = vst [vmem:[%s201 + $0x170] sm:$0xff] %v294
                %v296 = vld [vmem:[%s200 + $0x5c8] sm:$0xff]
                %297 = vst [vmem:[%s201 + $0x178] sm:$0xff] %v296
                %v298 = vld [vmem:[%s200 + $0x600] sm:$0xff]
                %299 = vst [vmem:[%s201 + $0x180] sm:$0xff] %v298
                %v300 = vld [vmem:[%s200 + $0x608] sm:$0xff]
                %301 = vst [vmem:[%s201 + $0x188] sm:$0xff] %v300
                %v302 = vld [vmem:[%s200 + $0x640] sm:$0xff]
                %303 = vst [vmem:[%s201 + $0x190] sm:$0xff] %v302
                %v304 = vld [vmem:[%s200 + $0x648] sm:$0xff]
                %305 = vst [vmem:[%s201 + $0x198] sm:$0xff] %v304
                %v306 = vld [vmem:[%s200 + $0x680] sm:$0xff]
                %307 = vst [vmem:[%s201 + $0x1a0] sm:$0xff] %v306
                %v308 = vld [vmem:[%s200 + $0x688] sm:$0xff]
                %309 = vst [vmem:[%s201 + $0x1a8] sm:$0xff] %v308
                %v310 = vld [vmem:[%s200 + $0x6c0] sm:$0xff]
                %311 = vst [vmem:[%s201 + $0x1b0] sm:$0xff] %v310
                %v312 = vld [vmem:[%s200 + $0x6c8] sm:$0xff]
                %313 = vst [vmem:[%s201 + $0x1b8] sm:$0xff] %v312
                %v314 = vld [vmem:[%s200 + $0x700] sm:$0xff]
                %315 = vst [vmem:[%s201 + $0x1c0] sm:$0xff] %v314
                %v316 = vld [vmem:[%s200 + $0x708] sm:$0xff]
                %317 = vst [vmem:[%s201 + $0x1c8] sm:$0xff] %v316
                %v318 = vld [vmem:[%s200 + $0x740] sm:$0xff]
                %319 = vst [vmem:[%s201 + $0x1d0] sm:$0xff] %v318
                %v320 = vld [vmem:[%s200 + $0x748] sm:$0xff]
                %321 = vst [vmem:[%s201 + $0x1d8] sm:$0xff] %v320
                %v322 = vld [vmem:[%s200 + $0x780] sm:$0xff]
                %323 = vst [vmem:[%s201 + $0x1e0] sm:$0xff] %v322
                %v324 = vld [vmem:[%s200 + $0x788] sm:$0xff]
                %325 = vst [vmem:[%s201 + $0x1e8] sm:$0xff] %v324
                %v326 = vld [vmem:[%s200 + $0x7c0] sm:$0xff]
                %327 = vst [vmem:[%s201 + $0x1f0] sm:$0xff] %v326
                %v328 = vld [vmem:[%s200 + $0x7c8] sm:$0xff]
                %329 = vst [vmem:[%s201 + $0x1f8] sm:$0xff] %v328
              $region41: #{generator_forward.83} parent=35 // loop_footer
                %s199 = sadd.s32 1, %s195
              $region42: #{generator_forward.83} parent=35 // loop_footer_branch
                %194 = sbr.rel target = $region38
              $region43: #{generator_forward.83} parent=35 // loop_exit
                _
            $region36: #{generator_forward.83} parent=31 // pred_fallthru
              _
            // Predicated region
            $region44: #{generator_forward.83} parent=31 // pred_check
              _
            $region45: #{generator_forward.83} parent=31 // pred_check_branch
              %331 = sbr.rel target = $region47
            $region46: #{generator_forward.83} parent=31 // pred_region
              _
            $region47: #{generator_forward.83} parent=31 // pred_fallthru
              _
          $region32: #{generator_forward.83} parent=27 // pred_fallthru
            _
          %332 = vnop
        $region28: #{generator_forward.83} parent=23 // pred_fallthru
          _
      $region24: #{generator_forward.83} parent=5 // pred_fallthru
        _
      %p333 = scmp.le.s32.totalorder 1, %s9
      %p334 = scmp.lt.s32.totalorder %s9, 5
      %p335 = pnand %p333, %p334
      %p336 = pneg %p335
      // Predicated region
      $region48: #{generator_forward.83} parent=5 // pred_check
        _
      $region49: #{generator_forward.83} parent=5 // pred_check_branch
        %338 = sbr.rel (%p335) target = $region51
      $region50: #{generator_forward.83} parent=5 // pred_region
        %s339 = ssub.s32 %s9, 1
        %s340 = sand.u32 %s71, 1
        %s341 = sand.u32 %s71, 1
        %s342 = smul.addr %s341, 512
        %s343 = scalar_lea.vmem [#allocation3], %s342
        // Predicated region
        $region52: #{generator_forward.83} parent=50 // pred_check
          %p344 = pneg %p84
        $region53: #{generator_forward.83} parent=50 // pred_check_branch
          %346 = sbr.rel (%p344) target = $region55
        $region54: #{generator_forward.83} parent=50 // pred_region
          _
        $region55: #{generator_forward.83} parent=50 // pred_fallthru
          _
        %s347 = smul.u32 2, %s21
        %p348 = scmp.lt.s32.totalorder %s19, 0
        %s349 = scalar_select %p348, %s19, 0
        %p350 = scmp.lt.s32.totalorder %s347, 1
        %s351 = scalar_select %p350, %s347, 1
        %s352 = smul.addr %s349, 2
        %s353 = sadd.s32 %s351, %s352
        %s354 = smul.addr %s353, 4
        %s355 = scalar_lea.vmem %s0, %s354
        %p356 = pneg %p56
        %p357 = pneg %p53
        %s358 = sand.u32 %s71, 1
        %s359 = sand.u32 %s71, 1
        %s360 = smul.addr %s359, 512
        %s361 = scalar_lea.vmem [#allocation3], %s360
        %p362 = pneg %p84
        %p363 = pneg %p81
        %p364 = scmp.lt.s32.totalorder %s19, 0
        %s365 = scalar_select %p364, %s19, 0
        %s366 = smul.addr %s365, 8
        %s367 = scalar_lea.vmem %s2, %s366
        %p368 = pneg %p110
        %p369 = pneg %p107
        %p370 = pneg %p138
        %p371 = pneg %p135
        %s372 = smul.u32 4, %s20
        %p373 = scmp.lt.s32.totalorder %s19, 0
        %s374 = scalar_select %p373, %s19, 0
        %p375 = scmp.lt.s32.totalorder %s372, 15
        %s376 = scalar_select %p375, %s372, 15
        %s377 = smul.addr %s374, 16
        %s378 = sadd.s32 %s376, %s377
        %s379 = smul.addr %s378, 8
        %s380 = scalar_lea.vmem %s3, %s379
        %s381 = smul.u32 2, %s21
        %p382 = scmp.lt.s32.totalorder %s19, 0
        %s383 = scalar_select %p382, %s19, 0
        %p384 = scmp.lt.s32.totalorder %s381, 1
        %s385 = scalar_select %p384, %s381, 1
        %s386 = smul.addr %s383, 2
        %s387 = sadd.s32 %s385, %s386
        %s388 = smul.addr %s387, 4
        %s389 = scalar_lea.vmem %s0, %s388
        %s390 = smul.u32 2, %s21
        %s391 = smul.u32 32, %s21
        %s392 = smul.u32 4, %s20
        %p393 = scmp.lt.s32.totalorder %s19, 0
        %s394 = scalar_select %p393, %s19, 0
        %s395 = smul.addr %s394, 8
        %s396 = scalar_lea.vmem %s2, %s395
        %s397 = smul.u32 4, %s20
        %p398 = scmp.lt.s32.totalorder %s19, 0
        %s399 = scalar_select %p398, %s19, 0
        %p400 = scmp.lt.s32.totalorder %s397, 15
        %s401 = scalar_select %p400, %s397, 15
        %s402 = smul.addr %s399, 16
        %s403 = sadd.s32 %s401, %s402
        %s404 = smul.addr %s403, 8
        %s405 = scalar_lea.vmem %s3, %s404
        %s406 = smul.u32 4, %s20
        %p407 = scmp.eq.s32.totalorder %s21, 0
        // Predicated region
        $region56: #{generator_forward.83} parent=50 // pred_check
          %p408 = pneg %p407
        $region57: #{generator_forward.83} parent=50 // pred_check_branch
          %410 = sbr.rel (%p408) target = $region59
        $region58: #{generator_forward.83} parent=50 // pred_region
          %411 = vst [vmem:[#allocation2] sm:$0xff] 0.0
          %412 = vst [vmem:[#allocation2 + $0x8] sm:$0xff] 0.0
          %413 = vst [vmem:[#allocation2 + $0x10] sm:$0xff] 0.0
          %414 = vst [vmem:[#allocation2 + $0x18] sm:$0xff] 0.0
        $region59: #{generator_forward.83} parent=50 // pred_fallthru
          _
        %v415 = vld [vmem:[#allocation2] sm:$0xff]
        %v416 = vld [vmem:[#allocation2 + $0x8] sm:$0xff]
        %v417 = vld [vmem:[#allocation2 + $0x10] sm:$0xff]
        %v418 = vld [vmem:[#allocation2 + $0x18] sm:$0xff]
        %v419 = vld [vmem:[%s389] sm:$0xff]
        %v420 = vld [vmem:[%s343] sm:$0xff]
        %v421 = vld [vmem:[%s343 + $0x8] sm:$0xff]
        %v422 = vld [vmem:[%s343 + $0x10] sm:$0xff]
        %v423 = vld [vmem:[%s343 + $0x18] sm:$0xff]
        %v424 = vld [vmem:[%s343 + $0x20] sm:$0xff]
        %v425 = vld [vmem:[%s343 + $0x28] sm:$0xff]
        %v426 = vld [vmem:[%s343 + $0x30] sm:$0xff]
        %v427 = vld [vmem:[%s343 + $0x38] sm:$0xff]
        %v428 = vld [vmem:[%s343 + $0x40] sm:$0xff]
        %v429 = vld [vmem:[%s343 + $0x48] sm:$0xff]
        %v430 = vld [vmem:[%s343 + $0x50] sm:$0xff]
        %v431 = vld [vmem:[%s343 + $0x58] sm:$0xff]
        %v432 = vld [vmem:[%s343 + $0x60] sm:$0xff]
        %v433 = vld [vmem:[%s343 + $0x68] sm:$0xff]
        %v434 = vld [vmem:[%s343 + $0x70] sm:$0xff]
        %v435 = vld [vmem:[%s343 + $0x78] sm:$0xff]
        %v436 = vld [vmem:[%s343 + $0x80] sm:$0xff]
        %v437 = vld [vmem:[%s343 + $0x88] sm:$0xff]
        %v438 = vld [vmem:[%s343 + $0x90] sm:$0xff]
        %v439 = vld [vmem:[%s343 + $0x98] sm:$0xff]
        %v440 = vld [vmem:[%s343 + $0xa0] sm:$0xff]
        %v441 = vld [vmem:[%s343 + $0xa8] sm:$0xff]
        %v442 = vld [vmem:[%s343 + $0xb0] sm:$0xff]
        %v443 = vld [vmem:[%s343 + $0xb8] sm:$0xff]
        %v444 = vld [vmem:[%s343 + $0xc0] sm:$0xff]
        %v445 = vld [vmem:[%s343 + $0xc8] sm:$0xff]
        %v446 = vld [vmem:[%s343 + $0xd0] sm:$0xff]
        %v447 = vld [vmem:[%s343 + $0xd8] sm:$0xff]
        %v448 = vld [vmem:[%s343 + $0xe0] sm:$0xff]
        %v449 = vld [vmem:[%s343 + $0xe8] sm:$0xff]
        %v450 = vld [vmem:[%s343 + $0xf0] sm:$0xff]
        %v451 = vld [vmem:[%s343 + $0xf8] sm:$0xff]
        %v452 = vld [vmem:[%s343 + $0x100] sm:$0xff]
        %v453 = vld [vmem:[%s343 + $0x108] sm:$0xff]
        %v454 = vld [vmem:[%s343 + $0x110] sm:$0xff]
        %v455 = vld [vmem:[%s343 + $0x118] sm:$0xff]
        %v456 = vld [vmem:[%s343 + $0x120] sm:$0xff]
        %v457 = vld [vmem:[%s343 + $0x128] sm:$0xff]
        %v458 = vld [vmem:[%s343 + $0x130] sm:$0xff]
        %v459 = vld [vmem:[%s343 + $0x138] sm:$0xff]
        %v460 = vld [vmem:[%s343 + $0x140] sm:$0xff]
        %v461 = vld [vmem:[%s343 + $0x148] sm:$0xff]
        %v462 = vld [vmem:[%s343 + $0x150] sm:$0xff]
        %v463 = vld [vmem:[%s343 + $0x158] sm:$0xff]
        %v464 = vld [vmem:[%s343 + $0x160] sm:$0xff]
        %v465 = vld [vmem:[%s343 + $0x168] sm:$0xff]
        %v466 = vld [vmem:[%s343 + $0x170] sm:$0xff]
        %v467 = vld [vmem:[%s343 + $0x178] sm:$0xff]
        %v468 = vld [vmem:[%s343 + $0x180] sm:$0xff]
        %v469 = vld [vmem:[%s343 + $0x188] sm:$0xff]
        %v470 = vld [vmem:[%s343 + $0x190] sm:$0xff]
        %v471 = vld [vmem:[%s343 + $0x198] sm:$0xff]
        %v472 = vld [vmem:[%s343 + $0x1a0] sm:$0xff]
        %v473 = vld [vmem:[%s343 + $0x1a8] sm:$0xff]
        %v474 = vld [vmem:[%s343 + $0x1b0] sm:$0xff]
        %v475 = vld [vmem:[%s343 + $0x1b8] sm:$0xff]
        %v476 = vld [vmem:[%s343 + $0x1c0] sm:$0xff]
        %v477 = vld [vmem:[%s343 + $0x1c8] sm:$0xff]
        %v478 = vld [vmem:[%s343 + $0x1d0] sm:$0xff]
        %v479 = vld [vmem:[%s343 + $0x1d8] sm:$0xff]
        %v480 = vld [vmem:[%s343 + $0x1e0] sm:$0xff]
        %v481 = vld [vmem:[%s343 + $0x1e8] sm:$0xff]
        %v482 = vld [vmem:[%s343 + $0x1f0] sm:$0xff]
        %v483 = vld [vmem:[%s343 + $0x1f8] sm:$0xff]
        %v485 = vunpack.c.l.b16 %v419
        %v486 = vunpack.c.h.b16 %v419
        %v487 = vpack.c.b16 %v485, %v485
        %v488 = vpack.c.b16 %v486, %v486
        %v555 = vunpack.c.l.b16 %v420
        %v556 = vunpack.c.h.b16 %v420
        %v557 = vunpack.c.l.b16 %v421
        %v558 = vunpack.c.h.b16 %v421
        %v559 = vunpack.c.l.b16 %v422
        %v560 = vunpack.c.h.b16 %v422
        %v561 = vunpack.c.l.b16 %v423
        %v562 = vunpack.c.h.b16 %v423
        %v563 = vunpack.c.l.b16 %v424
        %v564 = vunpack.c.h.b16 %v424
        %v565 = vunpack.c.l.b16 %v425
        %v566 = vunpack.c.h.b16 %v425
        %v567 = vunpack.c.l.b16 %v426
        %v568 = vunpack.c.h.b16 %v426
        %v569 = vunpack.c.l.b16 %v427
        %v570 = vunpack.c.h.b16 %v427
        %v571 = vunpack.c.l.b16 %v428
        %v572 = vunpack.c.h.b16 %v428
        %v573 = vunpack.c.l.b16 %v429
        %v574 = vunpack.c.h.b16 %v429
        %v575 = vunpack.c.l.b16 %v430
        %v576 = vunpack.c.h.b16 %v430
        %v577 = vunpack.c.l.b16 %v431
        %v578 = vunpack.c.h.b16 %v431
        %v579 = vunpack.c.l.b16 %v432
        %v580 = vunpack.c.h.b16 %v432
        %v581 = vunpack.c.l.b16 %v433
        %v582 = vunpack.c.h.b16 %v433
        %v583 = vunpack.c.l.b16 %v434
        %v584 = vunpack.c.h.b16 %v434
        %v585 = vunpack.c.l.b16 %v435
        %v586 = vunpack.c.h.b16 %v435
        %v587 = vunpack.c.l.b16 %v436
        %v588 = vunpack.c.h.b16 %v436
        %v589 = vunpack.c.l.b16 %v437
        %v590 = vunpack.c.h.b16 %v437
        %v591 = vunpack.c.l.b16 %v438
        %v592 = vunpack.c.h.b16 %v438
        %v593 = vunpack.c.l.b16 %v439
        %v594 = vunpack.c.h.b16 %v439
        %v595 = vunpack.c.l.b16 %v440
        %v596 = vunpack.c.h.b16 %v440
        %v597 = vunpack.c.l.b16 %v441
        %v598 = vunpack.c.h.b16 %v441
        %v599 = vunpack.c.l.b16 %v442
        %v600 = vunpack.c.h.b16 %v442
        %v601 = vunpack.c.l.b16 %v443
        %v602 = vunpack.c.h.b16 %v443
        %v603 = vunpack.c.l.b16 %v444
        %v604 = vunpack.c.h.b16 %v444
        %v605 = vunpack.c.l.b16 %v445
        %v606 = vunpack.c.h.b16 %v445
        %v607 = vunpack.c.l.b16 %v446
        %v608 = vunpack.c.h.b16 %v446
        %v609 = vunpack.c.l.b16 %v447
        %v610 = vunpack.c.h.b16 %v447
        %v611 = vunpack.c.l.b16 %v448
        %v612 = vunpack.c.h.b16 %v448
        %v613 = vunpack.c.l.b16 %v449
        %v614 = vunpack.c.h.b16 %v449
        %v615 = vunpack.c.l.b16 %v450
        %v616 = vunpack.c.h.b16 %v450
        %v617 = vunpack.c.l.b16 %v451
        %v618 = vunpack.c.h.b16 %v451
        %v619 = vunpack.c.l.b16 %v452
        %v620 = vunpack.c.h.b16 %v452
        %v621 = vunpack.c.l.b16 %v453
        %v622 = vunpack.c.h.b16 %v453
        %v623 = vunpack.c.l.b16 %v454
        %v624 = vunpack.c.h.b16 %v454
        %v625 = vunpack.c.l.b16 %v455
        %v626 = vunpack.c.h.b16 %v455
        %v627 = vunpack.c.l.b16 %v456
        %v628 = vunpack.c.h.b16 %v456
        %v629 = vunpack.c.l.b16 %v457
        %v630 = vunpack.c.h.b16 %v457
        %v631 = vunpack.c.l.b16 %v458
        %v632 = vunpack.c.h.b16 %v458
        %v633 = vunpack.c.l.b16 %v459
        %v634 = vunpack.c.h.b16 %v459
        %v635 = vunpack.c.l.b16 %v460
        %v636 = vunpack.c.h.b16 %v460
        %v637 = vunpack.c.l.b16 %v461
        %v638 = vunpack.c.h.b16 %v461
        %v639 = vunpack.c.l.b16 %v462
        %v640 = vunpack.c.h.b16 %v462
        %v641 = vunpack.c.l.b16 %v463
        %v642 = vunpack.c.h.b16 %v463
        %v643 = vunpack.c.l.b16 %v464
        %v644 = vunpack.c.h.b16 %v464
        %v645 = vunpack.c.l.b16 %v465
        %v646 = vunpack.c.h.b16 %v465
        %v647 = vunpack.c.l.b16 %v466
        %v648 = vunpack.c.h.b16 %v466
        %v649 = vunpack.c.l.b16 %v467
        %v650 = vunpack.c.h.b16 %v467
        %v651 = vunpack.c.l.b16 %v468
        %v652 = vunpack.c.h.b16 %v468
        %v653 = vunpack.c.l.b16 %v469
        %v654 = vunpack.c.h.b16 %v469
        %v655 = vunpack.c.l.b16 %v470
        %v656 = vunpack.c.h.b16 %v470
        %v657 = vunpack.c.l.b16 %v471
        %v658 = vunpack.c.h.b16 %v471
        %v659 = vunpack.c.l.b16 %v472
        %v660 = vunpack.c.h.b16 %v472
        %v661 = vunpack.c.l.b16 %v473
        %v662 = vunpack.c.h.b16 %v473
        %v663 = vunpack.c.l.b16 %v474
        %v664 = vunpack.c.h.b16 %v474
        %v665 = vunpack.c.l.b16 %v475
        %v666 = vunpack.c.h.b16 %v475
        %v667 = vunpack.c.l.b16 %v476
        %v668 = vunpack.c.h.b16 %v476
        %v669 = vunpack.c.l.b16 %v477
        %v670 = vunpack.c.h.b16 %v477
        %v671 = vunpack.c.l.b16 %v478
        %v672 = vunpack.c.h.b16 %v478
        %v673 = vunpack.c.l.b16 %v479
        %v674 = vunpack.c.h.b16 %v479
        %v675 = vunpack.c.l.b16 %v480
        %v676 = vunpack.c.h.b16 %v480
        %v677 = vunpack.c.l.b16 %v481
        %v678 = vunpack.c.h.b16 %v481
        %v679 = vunpack.c.l.b16 %v482
        %v680 = vunpack.c.h.b16 %v482
        %v681 = vunpack.c.l.b16 %v483
        %v682 = vunpack.c.h.b16 %v483
        %v683 = vpack.c.b16 %v559, %v555
        %v684 = vpack.c.b16 %v560, %v556
        %v685 = vpack.c.b16 %v561, %v557
        %v686 = vpack.c.b16 %v562, %v558
        %v687 = vpack.c.b16 %v567, %v563
        %v688 = vpack.c.b16 %v568, %v564
        %v689 = vpack.c.b16 %v569, %v565
        %v690 = vpack.c.b16 %v570, %v566
        %v691 = vpack.c.b16 %v575, %v571
        %v692 = vpack.c.b16 %v576, %v572
        %v693 = vpack.c.b16 %v577, %v573
        %v694 = vpack.c.b16 %v578, %v574
        %v695 = vpack.c.b16 %v583, %v579
        %v696 = vpack.c.b16 %v584, %v580
        %v697 = vpack.c.b16 %v585, %v581
        %v698 = vpack.c.b16 %v586, %v582
        %v699 = vpack.c.b16 %v591, %v587
        %v700 = vpack.c.b16 %v592, %v588
        %v701 = vpack.c.b16 %v593, %v589
        %v702 = vpack.c.b16 %v594, %v590
        %v703 = vpack.c.b16 %v599, %v595
        %v704 = vpack.c.b16 %v600, %v596
        %v705 = vpack.c.b16 %v601, %v597
        %v706 = vpack.c.b16 %v602, %v598
        %v707 = vpack.c.b16 %v607, %v603
        %v708 = vpack.c.b16 %v608, %v604
        %v709 = vpack.c.b16 %v609, %v605
        %v710 = vpack.c.b16 %v610, %v606
        %v711 = vpack.c.b16 %v615, %v611
        %v712 = vpack.c.b16 %v616, %v612
        %v713 = vpack.c.b16 %v617, %v613
        %v714 = vpack.c.b16 %v618, %v614
        %v715 = vpack.c.b16 %v623, %v619
        %v716 = vpack.c.b16 %v624, %v620
        %v717 = vpack.c.b16 %v625, %v621
        %v718 = vpack.c.b16 %v626, %v622
        %v719 = vpack.c.b16 %v631, %v627
        %v720 = vpack.c.b16 %v632, %v628
        %v721 = vpack.c.b16 %v633, %v629
        %v722 = vpack.c.b16 %v634, %v630
        %v723 = vpack.c.b16 %v639, %v635
        %v724 = vpack.c.b16 %v640, %v636
        %v725 = vpack.c.b16 %v641, %v637
        %v726 = vpack.c.b16 %v642, %v638
        %v727 = vpack.c.b16 %v647, %v643
        %v728 = vpack.c.b16 %v648, %v644
        %v729 = vpack.c.b16 %v649, %v645
        %v730 = vpack.c.b16 %v650, %v646
        %v731 = vpack.c.b16 %v655, %v651
        %v732 = vpack.c.b16 %v656, %v652
        %v733 = vpack.c.b16 %v657, %v653
        %v734 = vpack.c.b16 %v658, %v654
        %v735 = vpack.c.b16 %v663, %v659
        %v736 = vpack.c.b16 %v664, %v660
        %v737 = vpack.c.b16 %v665, %v661
        %v738 = vpack.c.b16 %v666, %v662
        %v739 = vpack.c.b16 %v671, %v667
        %v740 = vpack.c.b16 %v672, %v668
        %v741 = vpack.c.b16 %v673, %v669
        %v742 = vpack.c.b16 %v674, %v670
        %v743 = vpack.c.b16 %v679, %v675
        %v744 = vpack.c.b16 %v680, %v676
        %v745 = vpack.c.b16 %v681, %v677
        %v746 = vpack.c.b16 %v682, %v678
        %811 = vmatpush.bf16.msra.mxu0 %v711
        %812 = vmatpush.bf16.msra.mxu0 %v707
        %813 = vmatpush.bf16.msra.mxu0 %v703
        %814 = vmatpush.bf16.msra.mxu0 %v699
        %815 = vmatpush.bf16.msra.mxu0 %v695
        %816 = vmatpush.bf16.msra.mxu0 %v691
        %817 = vmatpush.bf16.msra.mxu0 %v687
        %818 = vmatpush.bf16.msra.mxu0 %v683
        %819 = vmatmul.bf16.gmra.mxu0 %v487
        %v820 = vpop.f32.mrf.mxu0
        %v821 = vadd.f32 0.0, %v820
        %v822 = vpop.f32.mrf.mxu0
        %823 = vdwg.mxu0
        %824 = vmatpush.bf16.msra.mxu0 %v743
        %825 = vmatpush.bf16.msra.mxu0 %v739
        %826 = vmatpush.bf16.msra.mxu0 %v735
        %827 = vmatpush.bf16.msra.mxu0 %v731
        %828 = vmatpush.bf16.msra.mxu0 %v727
        %829 = vmatpush.bf16.msra.mxu0 %v723
        %830 = vmatpush.bf16.msra.mxu0 %v719
        %831 = vmatpush.bf16.msra.mxu0 %v715
        %832 = vmatmul.bf16.gmra.mxu0 %v488
        %v833 = vpop.f32.mrf.mxu0
        %v834 = vadd.f32 %v821, %v833
        %v835 = vpop.f32.mrf.mxu0
        %836 = vdwg.mxu0
        %837 = vmatpush.bf16.msra.mxu0 %v712
        %838 = vmatpush.bf16.msra.mxu0 %v708
        %839 = vmatpush.bf16.msra.mxu0 %v704
        %840 = vmatpush.bf16.msra.mxu0 %v700
        %841 = vmatpush.bf16.msra.mxu0 %v696
        %842 = vmatpush.bf16.msra.mxu0 %v692
        %843 = vmatpush.bf16.msra.mxu0 %v688
        %844 = vmatpush.bf16.msra.mxu0 %v684
        %845 = vmatmul.bf16.gmra.mxu0 %v487
        %v846 = vpop.f32.mrf.mxu0
        %v847 = vadd.f32 0.0, %v846
        %v848 = vpop.f32.mrf.mxu0
        %849 = vdwg.mxu0
        %850 = vmatpush.bf16.msra.mxu0 %v744
        %851 = vmatpush.bf16.msra.mxu0 %v740
        %852 = vmatpush.bf16.msra.mxu0 %v736
        %853 = vmatpush.bf16.msra.mxu0 %v732
        %854 = vmatpush.bf16.msra.mxu0 %v728
        %855 = vmatpush.bf16.msra.mxu0 %v724
        %856 = vmatpush.bf16.msra.mxu0 %v720
        %857 = vmatpush.bf16.msra.mxu0 %v716
        %858 = vmatmul.bf16.gmra.mxu0 %v488
        %v859 = vpop.f32.mrf.mxu0
        %v860 = vadd.f32 %v847, %v859
        %v861 = vpop.f32.mrf.mxu0
        %862 = vdwg.mxu0
        %863 = vmatpush.bf16.msra.mxu0 %v713
        %864 = vmatpush.bf16.msra.mxu0 %v709
        %865 = vmatpush.bf16.msra.mxu0 %v705
        %866 = vmatpush.bf16.msra.mxu0 %v701
        %867 = vmatpush.bf16.msra.mxu0 %v697
        %868 = vmatpush.bf16.msra.mxu0 %v693
        %869 = vmatpush.bf16.msra.mxu0 %v689
        %870 = vmatpush.bf16.msra.mxu0 %v685
        %871 = vmatmul.bf16.gmra.mxu0 %v487
        %v872 = vpop.f32.mrf.mxu0
        %v873 = vadd.f32 0.0, %v872
        %v874 = vpop.f32.mrf.mxu0
        %875 = vdwg.mxu0
        %876 = vmatpush.bf16.msra.mxu0 %v745
        %877 = vmatpush.bf16.msra.mxu0 %v741
        %878 = vmatpush.bf16.msra.mxu0 %v737
        %879 = vmatpush.bf16.msra.mxu0 %v733
        %880 = vmatpush.bf16.msra.mxu0 %v729
        %881 = vmatpush.bf16.msra.mxu0 %v725
        %882 = vmatpush.bf16.msra.mxu0 %v721
        %883 = vmatpush.bf16.msra.mxu0 %v717
        %884 = vmatmul.bf16.gmra.mxu0 %v488
        %v885 = vpop.f32.mrf.mxu0
        %v886 = vadd.f32 %v873, %v885
        %v887 = vpop.f32.mrf.mxu0
        %888 = vdwg.mxu0
        %889 = vmatpush.bf16.msra.mxu0 %v714
        %890 = vmatpush.bf16.msra.mxu0 %v710
        %891 = vmatpush.bf16.msra.mxu0 %v706
        %892 = vmatpush.bf16.msra.mxu0 %v702
        %893 = vmatpush.bf16.msra.mxu0 %v698
        %894 = vmatpush.bf16.msra.mxu0 %v694
        %895 = vmatpush.bf16.msra.mxu0 %v690
        %896 = vmatpush.bf16.msra.mxu0 %v686
        %897 = vmatmul.bf16.gmra.mxu0 %v487
        %v898 = vpop.f32.mrf.mxu0
        %v899 = vadd.f32 0.0, %v898
        %v900 = vpop.f32.mrf.mxu0
        %901 = vdwg.mxu0
        %902 = vmatpush.bf16.msra.mxu0 %v746
        %903 = vmatpush.bf16.msra.mxu0 %v742
        %904 = vmatpush.bf16.msra.mxu0 %v738
        %905 = vmatpush.bf16.msra.mxu0 %v734
        %906 = vmatpush.bf16.msra.mxu0 %v730
        %907 = vmatpush.bf16.msra.mxu0 %v726
        %908 = vmatpush.bf16.msra.mxu0 %v722
        %909 = vmatpush.bf16.msra.mxu0 %v718
        %910 = vmatmul.bf16.gmra.mxu0 %v488
        %v911 = vpop.f32.mrf.mxu0
        %v912 = vadd.f32 %v899, %v911
        %v913 = vpop.f32.mrf.mxu0
        %914 = vdwg.mxu0
        %v915 = vadd.f32 %v415, %v834
        %v916 = vadd.f32 %v416, %v860
        %v917 = vadd.f32 %v417, %v886
        %v918 = vadd.f32 %v418, %v912
        %919 = vst [vmem:[#allocation2] sm:$0xff] %v915
        %920 = vst [vmem:[#allocation2 + $0x8] sm:$0xff] %v916
        %921 = vst [vmem:[#allocation2 + $0x10] sm:$0xff] %v917
        %922 = vst [vmem:[#allocation2 + $0x18] sm:$0xff] %v918
        // Predicated region
        $region60: #{generator_forward.83} parent=50 // pred_check
          %p923 = pneg %p407
        $region61: #{generator_forward.83} parent=50 // pred_check_branch
          %925 = sbr.rel (%p923) target = $region63
        $region62: #{generator_forward.83} parent=50 // pred_region
          %v926 = vld [vmem:[#allocation2] sm:$0xff]
          %v927 = vld [vmem:[#allocation2 + $0x8] sm:$0xff]
          %v928 = vld [vmem:[#allocation2 + $0x10] sm:$0xff]
          %v929 = vld [vmem:[#allocation2 + $0x18] sm:$0xff]
          %v930 = vld [vmem:[%s396] sm:$0xff]
          %932 = vset.pattern.permute.xlu0 0
          %933 = vperm.xlu0 %932, %v930
          %v934 = vpop.permute.xlu0 %933
          %v936 = vadd.f32 %v926, %v934
          %v937 = vadd.f32 %v927, %v934
          %v938 = vadd.f32 %v928, %v934
          %v939 = vadd.f32 %v929, %v934
          %v940 = vtanh.pop %v936
          %v941 = vtanh.pop %v937
          %v942 = vtanh.pop %v938
          %v943 = vtanh.pop %v939
          %944 = vst [vmem:[%s405] sm:$0xff] %v940
          %945 = vst [vmem:[%s405 + $0x8] sm:$0xff] %v941
          %946 = vst [vmem:[%s405 + $0x10] sm:$0xff] %v942
          %947 = vst [vmem:[%s405 + $0x18] sm:$0xff] %v943
        $region63: #{generator_forward.83} parent=50 // pred_fallthru
          _
        %s948 = smul.u32 4, %s20
        %p949 = scmp.lt.s32.totalorder %s19, 0
        %s950 = scalar_select %p949, %s19, 0
        %p951 = scmp.lt.s32.totalorder %s948, 15
        %s952 = scalar_select %p951, %s948, 15
        %s953 = smul.addr %s950, 16
        %s954 = sadd.s32 %s952, %s953
        %s955 = smul.addr %s954, 8
        %s956 = scalar_lea.vmem %s3, %s955
        // Predicated region
        $region64: #{generator_forward.83} parent=50 // pred_check
          %p957 = pneg %p135
        $region65: #{generator_forward.83} parent=50 // pred_check_branch
          %959 = sbr.rel (%p957) target = $region67
        $region66: #{generator_forward.83} parent=50 // pred_region
          %s960 = smul.u32 4, %s20
        $region67: #{generator_forward.83} parent=50 // pred_fallthru
          _
      $region51: #{generator_forward.83} parent=5 // pred_fallthru
        _
      %p961 = scmp.le.s32.totalorder 2, %s9
      // Predicated region
      $region68: #{generator_forward.83} parent=5 // pred_check
        %p962 = pneg %p961
      $region69: #{generator_forward.83} parent=5 // pred_check_branch
        %964 = sbr.rel (%p962) target = $region71
      $region70: #{generator_forward.83} parent=5 // pred_region
        %s965 = ssub.s32 %s9, 2
        // Predicated region
        $region72: #{generator_forward.83} parent=70 // pred_check
          %p966 = pneg %p141
        $region73: #{generator_forward.83} parent=70 // pred_check_branch
          %968 = sbr.rel (%p966) target = $region75
        $region74: #{generator_forward.83} parent=70 // pred_region
          %s969 = smul.u32 4, %s23
          %p970 = scmp.lt.s32.totalorder %s22, 0
          %s971 = scalar_select %p970, %s22, 0
          %p972 = scmp.lt.s32.totalorder %s969, 15
          %s973 = scalar_select %p972, %s969, 15
          %s974 = smul.addr %s971, 16
          %s975 = sadd.s32 %s973, %s974
          %s976 = smul.addr %s975, 8
          %s977 = scalar_lea.vmem %s3, %s976
        $region75: #{generator_forward.83} parent=70 // pred_fallthru
          _
      $region71: #{generator_forward.83} parent=5 // pred_fallthru
        _
    $region6: #{generator_forward.83} parent=1 // loop_footer
      %s13 = sadd.s32 1, %s9
    $region7: #{generator_forward.83} parent=1 // loop_footer_branch
      %8 = sbr.rel target = $region3
    $region8: #{generator_forward.83} parent=1 // loop_exit
      _

</llo_original>
